<compile_context>
chip_gen: v7x
topology: tpu7x:2x2x1
jax: 0.10.0
libtpu: 0.0.40
codegen_flags: <defaults>
</compile_context>

<pallas_src>
import jax
import jax.numpy as jnp
from jax.experimental import pallas as pl
from jax.experimental.pallas import tpu as pltpu

EPS = 1e-5
KD, KH, KW = 4, 3, 3      # conv kernel (depth, height, width)
SD = 2                    # depth stride (H/W stride is 1)
PD = PH = PW = 1          # padding


# ---------------------------------------------------------------------------
# In-kernel helpers (everything below runs inside the single pallas_call).
# ---------------------------------------------------------------------------
def _conv_stage(x, w_ref, bias=None):
    """Conv3d(kernel=(4,3,3), stride=(2,1,1), padding=(1,1,1)) via per-tap
    accumulation.

    x      : (N, Din, H, W*Cin) bf16, lane = w*Cin + ci
    w_ref  : (KD*KH, W*Cin, W*Cout) bf16 banded weight (W padding pre-folded)
    bias   : optional (1, W*Cout) f32 (conv bias tiled over W lane groups)
    returns: ((N*Do*H, W*Cout) f32, Do)
    """
    n, din, hh, wc = x.shape
    hp = hh + 2 * PH
    dp = din + 2 * PD
    do = (dp - KD) // SD + 1
    wcout = w_ref.shape[-1]

    # Zero-pad H (sublane axis) and D (leading axis) in VMEM, bf16.
    zh = jnp.zeros((n, din, PH, wc), x.dtype)
    xh = jnp.concatenate([zh, x, zh], axis=2)            # (N, Din, H+2, WC)
    zd = jnp.zeros((n, PD, hp, wc), x.dtype)
    xp = jnp.concatenate([zd, xh, zd], axis=1)           # (N, Dp,  H+2, WC)

    # Even/odd split of the padded depth axis: the stride-2 depth walk for tap
    # kd becomes a single static slice (leading dims only -> no relayout).
    xr = xp.reshape(n, dp // SD, SD, hp, wc)

    acc = jnp.zeros((n * do * hh, wcout), jnp.float32)
    for kd in range(KD):                                  # short unrolled loop
        base, par = kd // SD, kd % SD
        xkd = xr[:, base:base + do, par]                  # (N, Do, H+2, WC)
        for kh in range(KH):
            tap = xkd[:, :, kh:kh + hh, :].reshape(n * do * hh, wc)
            acc = acc + jnp.dot(tap, w_ref[kd * KH + kh],
                                preferred_element_type=jnp.float32)
    if bias is not None:
        acc = acc + bias
    return acc, do


def _bn_relu(acc, gamma_ref, beta_ref, sel_ref, selt_ref):
    """Training-mode BatchNorm3d + ReLU on a lane-packed (w, c) activation.

    acc: (M, W*C) f32 with lane = w*C + c.  Per-channel statistics over all
    rows and all W lane groups via 0/1 selector matmuls.  Variance uses the
    two-pass (centered) formula for numerical robustness.
    """
    m_rows, wco = acc.shape
    cout = gamma_ref.shape[-1]
    cnt = jnp.float32(m_rows * (wco // cout))             # = N*Do*H*W samples

    colsum = jnp.sum(acc, axis=0, keepdims=True)          # (1, W*C)
    mean_c = jnp.dot(colsum, sel_ref[...],
                     preferred_element_type=jnp.float32) / cnt        # (1, C)
    mean_l = jnp.dot(mean_c, selt_ref[...],
                     preferred_element_type=jnp.float32)              # (1, W*C)

    d = acc - mean_l                                      # centered
    colsq = jnp.sum(d * d, axis=0, keepdims=True)
    var_c = jnp.dot(colsq, sel_ref[...],
                    preferred_element_type=jnp.float32) / cnt  # biased (torch)

    scale_c = gamma_ref[...] * jax.lax.rsqrt(var_c + EPS)
    scale_l = jnp.dot(scale_c, selt_ref[...],
                      preferred_element_type=jnp.float32)              # (1, W*C)
    beta_l = jnp.dot(beta_ref[...], selt_ref[...],
                     preferred_element_type=jnp.float32)
    return jnp.maximum(d * scale_l + beta_l, 0.0)


def block3d_kernel(x_ref, sel_ref, selt_ref,
                   w1_ref, g1_ref, be1_ref,
                   w2_ref, g2_ref, be2_ref,
                   wt_ref, bt_ref, o_ref):
    n, _, hh, _ = x_ref.shape
    x = x_ref[...]                                        # bf16 (N, D, H, W*Cin)

    # conv1 -> BN1 -> ReLU   (conv1 bias dropped: cancelled by BN mean)
    acc1, d1 = _conv_stage(x, w1_ref)
    h1 = _bn_relu(acc1, g1_ref, be1_ref, sel_ref, selt_ref).astype(jnp.bfloat16)
    h1 = h1.reshape(n, d1, hh, w1_ref.shape[-1])          # (N, D1, H, W*Cmid)

    # conv2 -> BN2 -> ReLU   (conv2 bias dropped: cancelled by BN mean)
    acc2, d2 = _conv_stage(h1, w2_ref)
    h2 = _bn_relu(acc2, g2_ref, be2_ref, sel_ref, selt_ref).astype(jnp.bfloat16)
    h2 = h2.reshape(n, d2, hh, w2_ref.shape[-1])          # (N, D2, H, W*Cmid)

    # transform conv (bias kept, no BN/ReLU)
    acc3, d3 = _conv_stage(h2, wt_ref, bt_ref[...])       # (N*D3*H, W*Cfin)

    # Lane-dense writeback: (N*D3*H, W*Cfin) -> (N*D3, H*W*Cfin), last dim a
    # multiple of 128, so the output store/DMA is unmasked and full-width.
    wcf = wt_ref.shape[-1]
    acc3 = acc3.reshape(n * d3, hh, wcf)
    o_ref[...] = jnp.concatenate([acc3[:, r, :] for r in range(hh)], axis=-1)


# ---------------------------------------------------------------------------
# Wrapper-side helpers.
# ---------------------------------------------------------------------------
def _band_taps(wgt, width):
    """Conv weight (KD, KH, KW, Cin, Cout) -> per-tap banded weights
    (KD*KH, W*Cin, W*Cout) implementing the (kw, ci) contraction; W zero
    padding folded in (out-of-range taps are zero rows)."""
    nkd, nkh, nkw, cin, cout = wgt.shape
    w_in = jnp.arange(width)[:, None]
    w_out = jnp.arange(width)[None, :]
    kw_idx = w_in - w_out + PW                            # (W, W)
    valid = ((kw_idx >= 0) & (kw_idx < nkw)).astype(wgt.dtype)[:, :, None, None]
    kw_clamped = jnp.clip(kw_idx, 0, nkw - 1)
    taps = []
    for kd in range(nkd):
        for kh in range(nkh):
            g = wgt[kd, kh][kw_clamped] * valid           # (W, W, Cin, Cout)
            g = jnp.transpose(g, (0, 2, 1, 3))            # (Win, Cin, Wout, Cout)
            taps.append(g.reshape(width * cin, width * cout))
    return jnp.stack(taps, axis=0)                        # (KD*KH, W*Cin, W*Cout)


def _full_spec(shape):
    return pl.BlockSpec(shape, lambda i: (0,) * len(shape))


@jax.jit
def block3d_forward(x_ncdhw, params):
    """x: (N, in_ch, D, H, W) -> (N, in_ch, D_out, H, W), matching PyTorch."""
    n, cin, d, h, w = x_ncdhw.shape
    cmid = params["w1"].shape[-1]

    d1 = (d + 2 * PD - KD) // SD + 1
    d2 = (d1 + 2 * PD - KD) // SD + 1
    d3 = (d2 + 2 * PD - KD) // SD + 1
    # even/odd depth reshape needs even padded depths (holds for these shapes)
    assert (d + 2 * PD) % SD == 0 and (d1 + 2 * PD) % SD == 0 \
        and (d2 + 2 * PD) % SD == 0

    # NCDHW -> NDHWC -> lane-dense bf16 (N, D, H, W*Cin).
    x = jnp.transpose(x_ncdhw, (0, 2, 3, 4, 1))
    x_flat = x.reshape(n, d, h, w * cin).astype(jnp.bfloat16)

    # Per-tap banded bf16 weights, lane-tiled transform bias, BN params,
    # channel-fold selector matrices.
    w1 = _band_taps(params["w1"], w).astype(jnp.bfloat16)   # (12, W*Cin,  W*Cmid)
    w2 = _band_taps(params["w2"], w).astype(jnp.bfloat16)   # (12, W*Cmid, W*Cmid)
    wt = _band_taps(params["wt"], w).astype(jnp.bfloat16)   # (12, W*Cmid, W*Cin)

    bt_lane = jnp.tile(params["bt"].astype(jnp.float32), w).reshape(1, w * cin)

    def chan_row(v):
        return v.astype(jnp.float32).reshape(1, -1)

    eye = jnp.eye(cmid, dtype=jnp.float32)
    sel = jnp.tile(eye, (w, 1))       # (W*Cmid, Cmid): lane -> channel fold
    selt = jnp.tile(eye, (1, w))      # (Cmid, W*Cmid): channel -> lane bcast

    operands = (x_flat, sel, selt,
                w1, chan_row(params["g1"]), chan_row(params["be1"]),
                w2, chan_row(params["g2"]), chan_row(params["be2"]),
                wt, bt_lane)

    out_shape = jax.ShapeDtypeStruct((n * d3, h * w * cin), jnp.float32)

    # Cost estimate: 12 tap matmuls per stage, f32 accumulation.
    m1, k1, n1 = n * d1 * h, w * cin, w * cmid
    m2, k2, n2 = n * d2 * h, w * cmid, w * cmid
    m3, k3, n3 = n * d3 * h, w * cmid, w * cin
    flops = 2 * KD * KH * (m1 * k1 * n1 + m2 * k2 * n2 + m3 * k3 * n3)
    bytes_accessed = (sum(op.size * op.dtype.itemsize for op in operands)
                      + n * d3 * h * w * cin * 4)

    y = pl.pallas_call(
        block3d_kernel,
        out_shape=out_shape,
        # Single grid step: training-mode BatchNorm statistics must be global
        # over the whole (N, D, H, W); any future grid/core split needs a
        # cross-step stats reduction or the numerics silently change.
        grid=(1,),
        in_specs=[_full_spec(op.shape) for op in operands],
        out_specs=_full_spec(out_shape.shape),
        compiler_params=pltpu.CompilerParams(
            dimension_semantics=("arbitrary",),
            # Resident footprint is ~4 MiB (bf16 activations + ~0.8 MiB banded
            # weights + f32 accumulators); 16 MiB leaves compiler headroom and
            # fits all generations (v7x has 64 MiB physical VMEM).
            vmem_limit_bytes=16 * 1024 * 1024),
        cost_estimate=pl.CostEstimate(flops=flops,
                                      transcendentals=2 * cmid,
                                      bytes_accessed=bytes_accessed),
    )(*operands)

    y = y.reshape(n, d3, h, w, cin)                 # free (row-major) reshape
    return jnp.transpose(y, (0, 4, 1, 2, 3))        # back to NCDHW


# ---------------------------------------------------------------------------
# Parameters (weights stored as (KD, KH, KW, Cin, Cout); a PyTorch Conv3d
# weight (Cout, Cin, KD, KH, KW) maps to this via transpose(2, 3, 4, 1, 0)).
# BatchNorm: gamma=1, beta=0 (default init), training-mode batch statistics.
# conv1/conv2 biases are generated for the reference but are mathematically
# cancelled by BatchNorm, so the kernel omits them.
# ---------------------------------------------------------------------------
def init_params(in_ch, out_ch, seed=0):
    key = jax.random.PRNGKey(seed)
    kw1, kw2, kw3, kb1, kb2, kb3 = jax.random.split(key, 6)

    def conv_init(k_w, k_b, ci, co):
        fan_in = KD * KH * KW * ci
        bound = (1.0 / fan_in) ** 0.5
        wgt = jax.random.uniform(k_w, (KD, KH, KW, ci, co), jnp.float32,
                                 -bound, bound)
        b = jax.random.uniform(k_b, (co,), jnp.float32, -bound, bound)
        return wgt, b

    w1, b1 = conv_init(kw1, kb1, in_ch, out_ch)
    w2, b2 = conv_init(kw2, kb2, out_ch, out_ch)
    wt, bt = conv_init(kw3, kb3, out_ch, in_ch)
    return dict(
        w1=w1, b1=b1, g1=jnp.ones((out_ch,), jnp.float32),
        be1=jnp.zeros((out_ch,), jnp.float32),
        w2=w2, b2=b2, g2=jnp.ones((out_ch,), jnp.float32),
        be2=jnp.zeros((out_ch,), jnp.float32),
        wt=wt, bt=bt)


# ---------------------------------------------------------------------------
# Pure-XLA reference (for an in-script numerical check).
# ---------------------------------------------------------------------------
def _conv3d_ref(x, wgt, b):
    y = jax.lax.conv_general_dilated(
        x, wgt, window_strides=(SD, 1, 1),
        padding=((PD, PD), (PH, PH), (PW, PW)),
        dimension_numbers=("NDHWC", "DHWIO", "NDHWC"))
    return y + b


def _bn_relu_ref(x, gamma, beta):
    mean = jnp.mean(x, axis=(0, 1, 2, 3), keepdims=True)
    var = jnp.mean(jnp.square(x - mean), axis=(0, 1, 2, 3), keepdims=True)
    return jnp.maximum((x - mean) * jax.lax.rsqrt(var + EPS) * gamma + beta,
                       0.0)


def block3d_reference(x_ncdhw, p):
    x = jnp.transpose(x_ncdhw, (0, 2, 3, 4, 1)).astype(jnp.float32)
    h1 = _bn_relu_ref(_conv3d_ref(x, p["w1"], p["b1"]), p["g1"], p["be1"])
    hh = _bn_relu_ref(_conv3d_ref(h1, p["w2"], p["b2"]), p["g2"], p["be2"])
    y = _conv3d_ref(hh, p["wt"], p["bt"])
    return jnp.transpose(y, (0, 4, 1, 2, 3))


if __name__ == "__main__":
    n, in_ch, out_ch = 2, 4, 8
    d, h, w = 16, 16, 16

    x = jax.random.normal(jax.random.PRNGKey(0), (n, in_ch, d, h, w),
                          jnp.float32)
    params = init_params(in_ch, out_ch)

    out = jax.block_until_ready(block3d_forward(x, params))

    assert out.shape == (n, in_ch, 2, h, w), out.shape
    assert bool(jnp.all(jnp.isfinite(out)))

    # Numerical check vs. XLA reference (bf16 MXU operands => loose tolerance).
    ref = jax.block_until_ready(block3d_reference(x, params))
    max_err = float(jnp.max(jnp.abs(out - ref)))
    assert max_err < 0.15, f"max abs error vs reference: {max_err}"

    print("KERNEL_OK")
</pallas_src>

<mosaic_0001>
module attributes {stable_mosaic.version = 11 : i64} {
  func.func @block3d_kernel(%arg0: i32, %arg1: memref<2x16x16x64xbf16, #tpu.memory_space<vmem>>, %arg2: memref<128x8xf32, #tpu.memory_space<vmem>>, %arg3: memref<8x128xf32, #tpu.memory_space<vmem>>, %arg4: memref<12x64x128xbf16, #tpu.memory_space<vmem>>, %arg5: memref<1x8xf32, #tpu.memory_space<vmem>>, %arg6: memref<1x8xf32, #tpu.memory_space<vmem>>, %arg7: memref<12x128x128xbf16, #tpu.memory_space<vmem>>, %arg8: memref<1x8xf32, #tpu.memory_space<vmem>>, %arg9: memref<1x8xf32, #tpu.memory_space<vmem>>, %arg10: memref<12x128x64xbf16, #tpu.memory_space<vmem>>, %arg11: memref<1x64xf32, #tpu.memory_space<vmem>>, %arg12: memref<4x1024xf32, #tpu.memory_space<vmem>>) attributes {dimension_semantics = [#tpu.dimension_semantics<arbitrary>], iteration_bounds = array<i64: 1>, scalar_prefetch = 0 : i64, scratch_operands = 0 : i64, tpu.core_type = #tpu.core_type<tc>, window_params = [{pipeline_mode = #tpu.pipeline_mode<synchronous>, transform_indices = @transform_0, window_bounds = array<i64: 2, 16, 16, 64>}, {pipeline_mode = #tpu.pipeline_mode<synchronous>, transform_indices = @transform_1, window_bounds = array<i64: 128, 8>}, {pipeline_mode = #tpu.pipeline_mode<synchronous>, transform_indices = @transform_2, window_bounds = array<i64: 8, 128>}, {pipeline_mode = #tpu.pipeline_mode<synchronous>, transform_indices = @transform_3, window_bounds = array<i64: 12, 64, 128>}, {pipeline_mode = #tpu.pipeline_mode<synchronous>, transform_indices = @transform_4, window_bounds = array<i64: 1, 8>}, {pipeline_mode = #tpu.pipeline_mode<synchronous>, transform_indices = @transform_5, window_bounds = array<i64: 1, 8>}, {pipeline_mode = #tpu.pipeline_mode<synchronous>, transform_indices = @transform_6, window_bounds = array<i64: 12, 128, 128>}, {pipeline_mode = #tpu.pipeline_mode<synchronous>, transform_indices = @transform_7, window_bounds = array<i64: 1, 8>}, {pipeline_mode = #tpu.pipeline_mode<synchronous>, transform_indices = @transform_8, window_bounds = array<i64: 1, 8>}, {pipeline_mode = #tpu.pipeline_mode<synchronous>, transform_indices = @transform_9, window_bounds = array<i64: 12, 128, 64>}, {pipeline_mode = #tpu.pipeline_mode<synchronous>, transform_indices = @transform_10, window_bounds = array<i64: 1, 64>}, {pipeline_mode = #tpu.pipeline_mode<synchronous>, transform_indices = @transform_11, window_bounds = array<i64: 4, 1024>}]} {
    %c0 = arith.constant 0 : index
    %c0_0 = arith.constant 0 : index
    %c0_1 = arith.constant 0 : index
    %c0_2 = arith.constant 0 : index
    %0 = vector.load %arg1[%c0, %c0_0, %c0_1, %c0_2] : memref<2x16x16x64xbf16, #tpu.memory_space<vmem>>, vector<2x16x16x64xbf16>
    %cst = arith.constant 0.000000e+00 : bf16
    %1 = vector.broadcast %cst : bf16 to vector<2x16x1x64xbf16>
    %2 = tpu.concatenate %1, %0, %1 in 2 : vector<2x16x1x64xbf16>, vector<2x16x16x64xbf16>, vector<2x16x1x64xbf16> -> vector<2x16x18x64xbf16>
    %cst_3 = arith.constant 0.000000e+00 : bf16
    %3 = vector.broadcast %cst_3 : bf16 to vector<2x1x18x64xbf16>
    %4 = tpu.concatenate %3, %2, %3 in 1 : vector<2x1x18x64xbf16>, vector<2x16x18x64xbf16>, vector<2x1x18x64xbf16> -> vector<2x18x18x64xbf16>
    %5 = vector.shape_cast %4 : vector<2x18x18x64xbf16> to vector<2x9x2x18x64xbf16>
    %cst_4 = arith.constant 0.000000e+00 : f32
    %6 = vector.broadcast %cst_4 : f32 to vector<256x128xf32>
    %7 = vector.extract_strided_slice %5 {offsets = [0, 0, 0, 0, 0], sizes = [2, 8, 1, 18, 64], strides = [1, 1, 1, 1, 1]} : vector<2x9x2x18x64xbf16> to vector<2x8x1x18x64xbf16>
    %8 = vector.shape_cast %7 : vector<2x8x1x18x64xbf16> to vector<2x8x18x64xbf16>
    %9 = vector.extract_strided_slice %8 {offsets = [0, 0, 0, 0], sizes = [2, 8, 16, 64], strides = [1, 1, 1, 1]} : vector<2x8x18x64xbf16> to vector<2x8x16x64xbf16>
    %10 = vector.shape_cast %9 : vector<2x8x16x64xbf16> to vector<256x64xbf16>
    %c0_5 = arith.constant 0 : index
    %c0_6 = arith.constant 0 : index
    %c0_7 = arith.constant 0 : index
    %11 = vector.load %arg4[%c0_5, %c0_6, %c0_7] : memref<12x64x128xbf16, #tpu.memory_space<vmem>>, vector<1x64x128xbf16>
    %12 = vector.shape_cast %11 : vector<1x64x128xbf16> to vector<64x128xbf16>
    %cst_8 = arith.constant dense<0.000000e+00> : vector<256x128xf32>
    %13 = tpu.matmul %10, %12, %cst_8 {dimension_numbers = #tpu.dot_dimension_numbers<[1], [0], [0], [1], [0, 0, 1, 1], [], []>} : vector<256x64xbf16>, vector<64x128xbf16>, vector<256x128xf32> -> vector<256x128xf32>
    %14 = arith.addf %6, %13 : vector<256x128xf32>
    %15 = vector.extract_strided_slice %8 {offsets = [0, 0, 1, 0], sizes = [2, 8, 16, 64], strides = [1, 1, 1, 1]} : vector<2x8x18x64xbf16> to vector<2x8x16x64xbf16>
    %16 = vector.shape_cast %15 : vector<2x8x16x64xbf16> to vector<256x64xbf16>
    %c1 = arith.constant 1 : index
    %c0_9 = arith.constant 0 : index
    %c0_10 = arith.constant 0 : index
    %17 = vector.load %arg4[%c1, %c0_9, %c0_10] : memref<12x64x128xbf16, #tpu.memory_space<vmem>>, vector<1x64x128xbf16>
    %18 = vector.shape_cast %17 : vector<1x64x128xbf16> to vector<64x128xbf16>
    %cst_11 = arith.constant dense<0.000000e+00> : vector<256x128xf32>
    %19 = tpu.matmul %16, %18, %cst_11 {dimension_numbers = #tpu.dot_dimension_numbers<[1], [0], [0], [1], [0, 0, 1, 1], [], []>} : vector<256x64xbf16>, vector<64x128xbf16>, vector<256x128xf32> -> vector<256x128xf32>
    %20 = arith.addf %14, %19 : vector<256x128xf32>
    %21 = vector.extract_strided_slice %8 {offsets = [0, 0, 2, 0], sizes = [2, 8, 16, 64], strides = [1, 1, 1, 1]} : vector<2x8x18x64xbf16> to vector<2x8x16x64xbf16>
    %22 = vector.shape_cast %21 : vector<2x8x16x64xbf16> to vector<256x64xbf16>
    %c2 = arith.constant 2 : index
    %c0_12 = arith.constant 0 : index
    %c0_13 = arith.constant 0 : index
    %23 = vector.load %arg4[%c2, %c0_12, %c0_13] : memref<12x64x128xbf16, #tpu.memory_space<vmem>>, vector<1x64x128xbf16>
    %24 = vector.shape_cast %23 : vector<1x64x128xbf16> to vector<64x128xbf16>
    %cst_14 = arith.constant dense<0.000000e+00> : vector<256x128xf32>
    %25 = tpu.matmul %22, %24, %cst_14 {dimension_numbers = #tpu.dot_dimension_numbers<[1], [0], [0], [1], [0, 0, 1, 1], [], []>} : vector<256x64xbf16>, vector<64x128xbf16>, vector<256x128xf32> -> vector<256x128xf32>
    %26 = arith.addf %20, %25 : vector<256x128xf32>
    %27 = vector.extract_strided_slice %5 {offsets = [0, 0, 1, 0, 0], sizes = [2, 8, 1, 18, 64], strides = [1, 1, 1, 1, 1]} : vector<2x9x2x18x64xbf16> to vector<2x8x1x18x64xbf16>
    %28 = vector.shape_cast %27 : vector<2x8x1x18x64xbf16> to vector<2x8x18x64xbf16>
    %29 = vector.extract_strided_slice %28 {offsets = [0, 0, 0, 0], sizes = [2, 8, 16, 64], strides = [1, 1, 1, 1]} : vector<2x8x18x64xbf16> to vector<2x8x16x64xbf16>
    %30 = vector.shape_cast %29 : vector<2x8x16x64xbf16> to vector<256x64xbf16>
    %c3 = arith.constant 3 : index
    %c0_15 = arith.constant 0 : index
    %c0_16 = arith.constant 0 : index
    %31 = vector.load %arg4[%c3, %c0_15, %c0_16] : memref<12x64x128xbf16, #tpu.memory_space<vmem>>, vector<1x64x128xbf16>
    %32 = vector.shape_cast %31 : vector<1x64x128xbf16> to vector<64x128xbf16>
    %cst_17 = arith.constant dense<0.000000e+00> : vector<256x128xf32>
    %33 = tpu.matmul %30, %32, %cst_17 {dimension_numbers = #tpu.dot_dimension_numbers<[1], [0], [0], [1], [0, 0, 1, 1], [], []>} : vector<256x64xbf16>, vector<64x128xbf16>, vector<256x128xf32> -> vector<256x128xf32>
    %34 = arith.addf %26, %33 : vector<256x128xf32>
    %35 = vector.extract_strided_slice %28 {offsets = [0, 0, 1, 0], sizes = [2, 8, 16, 64], strides = [1, 1, 1, 1]} : vector<2x8x18x64xbf16> to vector<2x8x16x64xbf16>
    %36 = vector.shape_cast %35 : vector<2x8x16x64xbf16> to vector<256x64xbf16>
    %c4 = arith.constant 4 : index
    %c0_18 = arith.constant 0 : index
    %c0_19 = arith.constant 0 : index
    %37 = vector.load %arg4[%c4, %c0_18, %c0_19] : memref<12x64x128xbf16, #tpu.memory_space<vmem>>, vector<1x64x128xbf16>
    %38 = vector.shape_cast %37 : vector<1x64x128xbf16> to vector<64x128xbf16>
    %cst_20 = arith.constant dense<0.000000e+00> : vector<256x128xf32>
    %39 = tpu.matmul %36, %38, %cst_20 {dimension_numbers = #tpu.dot_dimension_numbers<[1], [0], [0], [1], [0, 0, 1, 1], [], []>} : vector<256x64xbf16>, vector<64x128xbf16>, vector<256x128xf32> -> vector<256x128xf32>
    %40 = arith.addf %34, %39 : vector<256x128xf32>
    %41 = vector.extract_strided_slice %28 {offsets = [0, 0, 2, 0], sizes = [2, 8, 16, 64], strides = [1, 1, 1, 1]} : vector<2x8x18x64xbf16> to vector<2x8x16x64xbf16>
    %42 = vector.shape_cast %41 : vector<2x8x16x64xbf16> to vector<256x64xbf16>
    %c5 = arith.constant 5 : index
    %c0_21 = arith.constant 0 : index
    %c0_22 = arith.constant 0 : index
    %43 = vector.load %arg4[%c5, %c0_21, %c0_22] : memref<12x64x128xbf16, #tpu.memory_space<vmem>>, vector<1x64x128xbf16>
    %44 = vector.shape_cast %43 : vector<1x64x128xbf16> to vector<64x128xbf16>
    %cst_23 = arith.constant dense<0.000000e+00> : vector<256x128xf32>
    %45 = tpu.matmul %42, %44, %cst_23 {dimension_numbers = #tpu.dot_dimension_numbers<[1], [0], [0], [1], [0, 0, 1, 1], [], []>} : vector<256x64xbf16>, vector<64x128xbf16>, vector<256x128xf32> -> vector<256x128xf32>
    %46 = arith.addf %40, %45 : vector<256x128xf32>
    %47 = vector.extract_strided_slice %5 {offsets = [0, 1, 0, 0, 0], sizes = [2, 8, 1, 18, 64], strides = [1, 1, 1, 1, 1]} : vector<2x9x2x18x64xbf16> to vector<2x8x1x18x64xbf16>
    %48 = vector.shape_cast %47 : vector<2x8x1x18x64xbf16> to vector<2x8x18x64xbf16>
    %49 = vector.extract_strided_slice %48 {offsets = [0, 0, 0, 0], sizes = [2, 8, 16, 64], strides = [1, 1, 1, 1]} : vector<2x8x18x64xbf16> to vector<2x8x16x64xbf16>
    %50 = vector.shape_cast %49 : vector<2x8x16x64xbf16> to vector<256x64xbf16>
    %c6 = arith.constant 6 : index
    %c0_24 = arith.constant 0 : index
    %c0_25 = arith.constant 0 : index
    %51 = vector.load %arg4[%c6, %c0_24, %c0_25] : memref<12x64x128xbf16, #tpu.memory_space<vmem>>, vector<1x64x128xbf16>
    %52 = vector.shape_cast %51 : vector<1x64x128xbf16> to vector<64x128xbf16>
    %cst_26 = arith.constant dense<0.000000e+00> : vector<256x128xf32>
    %53 = tpu.matmul %50, %52, %cst_26 {dimension_numbers = #tpu.dot_dimension_numbers<[1], [0], [0], [1], [0, 0, 1, 1], [], []>} : vector<256x64xbf16>, vector<64x128xbf16>, vector<256x128xf32> -> vector<256x128xf32>
    %54 = arith.addf %46, %53 : vector<256x128xf32>
    %55 = vector.extract_strided_slice %48 {offsets = [0, 0, 1, 0], sizes = [2, 8, 16, 64], strides = [1, 1, 1, 1]} : vector<2x8x18x64xbf16> to vector<2x8x16x64xbf16>
    %56 = vector.shape_cast %55 : vector<2x8x16x64xbf16> to vector<256x64xbf16>
    %c7 = arith.constant 7 : index
    %c0_27 = arith.constant 0 : index
    %c0_28 = arith.constant 0 : index
    %57 = vector.load %arg4[%c7, %c0_27, %c0_28] : memref<12x64x128xbf16, #tpu.memory_space<vmem>>, vector<1x64x128xbf16>
    %58 = vector.shape_cast %57 : vector<1x64x128xbf16> to vector<64x128xbf16>
    %cst_29 = arith.constant dense<0.000000e+00> : vector<256x128xf32>
    %59 = tpu.matmul %56, %58, %cst_29 {dimension_numbers = #tpu.dot_dimension_numbers<[1], [0], [0], [1], [0, 0, 1, 1], [], []>} : vector<256x64xbf16>, vector<64x128xbf16>, vector<256x128xf32> -> vector<256x128xf32>
    %60 = arith.addf %54, %59 : vector<256x128xf32>
    %61 = vector.extract_strided_slice %48 {offsets = [0, 0, 2, 0], sizes = [2, 8, 16, 64], strides = [1, 1, 1, 1]} : vector<2x8x18x64xbf16> to vector<2x8x16x64xbf16>
    %62 = vector.shape_cast %61 : vector<2x8x16x64xbf16> to vector<256x64xbf16>
    %c8 = arith.constant 8 : index
    %c0_30 = arith.constant 0 : index
    %c0_31 = arith.constant 0 : index
    %63 = vector.load %arg4[%c8, %c0_30, %c0_31] : memref<12x64x128xbf16, #tpu.memory_space<vmem>>, vector<1x64x128xbf16>
    %64 = vector.shape_cast %63 : vector<1x64x128xbf16> to vector<64x128xbf16>
    %cst_32 = arith.constant dense<0.000000e+00> : vector<256x128xf32>
    %65 = tpu.matmul %62, %64, %cst_32 {dimension_numbers = #tpu.dot_dimension_numbers<[1], [0], [0], [1], [0, 0, 1, 1], [], []>} : vector<256x64xbf16>, vector<64x128xbf16>, vector<256x128xf32> -> vector<256x128xf32>
    %66 = arith.addf %60, %65 : vector<256x128xf32>
    %67 = vector.extract_strided_slice %5 {offsets = [0, 1, 1, 0, 0], sizes = [2, 8, 1, 18, 64], strides = [1, 1, 1, 1, 1]} : vector<2x9x2x18x64xbf16> to vector<2x8x1x18x64xbf16>
    %68 = vector.shape_cast %67 : vector<2x8x1x18x64xbf16> to vector<2x8x18x64xbf16>
    %69 = vector.extract_strided_slice %68 {offsets = [0, 0, 0, 0], sizes = [2, 8, 16, 64], strides = [1, 1, 1, 1]} : vector<2x8x18x64xbf16> to vector<2x8x16x64xbf16>
    %70 = vector.shape_cast %69 : vector<2x8x16x64xbf16> to vector<256x64xbf16>
    %c9 = arith.constant 9 : index
    %c0_33 = arith.constant 0 : index
    %c0_34 = arith.constant 0 : index
    %71 = vector.load %arg4[%c9, %c0_33, %c0_34] : memref<12x64x128xbf16, #tpu.memory_space<vmem>>, vector<1x64x128xbf16>
    %72 = vector.shape_cast %71 : vector<1x64x128xbf16> to vector<64x128xbf16>
    %cst_35 = arith.constant dense<0.000000e+00> : vector<256x128xf32>
    %73 = tpu.matmul %70, %72, %cst_35 {dimension_numbers = #tpu.dot_dimension_numbers<[1], [0], [0], [1], [0, 0, 1, 1], [], []>} : vector<256x64xbf16>, vector<64x128xbf16>, vector<256x128xf32> -> vector<256x128xf32>
    %74 = arith.addf %66, %73 : vector<256x128xf32>
    %75 = vector.extract_strided_slice %68 {offsets = [0, 0, 1, 0], sizes = [2, 8, 16, 64], strides = [1, 1, 1, 1]} : vector<2x8x18x64xbf16> to vector<2x8x16x64xbf16>
    %76 = vector.shape_cast %75 : vector<2x8x16x64xbf16> to vector<256x64xbf16>
    %c10 = arith.constant 10 : index
    %c0_36 = arith.constant 0 : index
    %c0_37 = arith.constant 0 : index
    %77 = vector.load %arg4[%c10, %c0_36, %c0_37] : memref<12x64x128xbf16, #tpu.memory_space<vmem>>, vector<1x64x128xbf16>
    %78 = vector.shape_cast %77 : vector<1x64x128xbf16> to vector<64x128xbf16>
    %cst_38 = arith.constant dense<0.000000e+00> : vector<256x128xf32>
    %79 = tpu.matmul %76, %78, %cst_38 {dimension_numbers = #tpu.dot_dimension_numbers<[1], [0], [0], [1], [0, 0, 1, 1], [], []>} : vector<256x64xbf16>, vector<64x128xbf16>, vector<256x128xf32> -> vector<256x128xf32>
    %80 = arith.addf %74, %79 : vector<256x128xf32>
    %81 = vector.extract_strided_slice %68 {offsets = [0, 0, 2, 0], sizes = [2, 8, 16, 64], strides = [1, 1, 1, 1]} : vector<2x8x18x64xbf16> to vector<2x8x16x64xbf16>
    %82 = vector.shape_cast %81 : vector<2x8x16x64xbf16> to vector<256x64xbf16>
    %c11 = arith.constant 11 : index
    %c0_39 = arith.constant 0 : index
    %c0_40 = arith.constant 0 : index
    %83 = vector.load %arg4[%c11, %c0_39, %c0_40] : memref<12x64x128xbf16, #tpu.memory_space<vmem>>, vector<1x64x128xbf16>
    %84 = vector.shape_cast %83 : vector<1x64x128xbf16> to vector<64x128xbf16>
    %cst_41 = arith.constant dense<0.000000e+00> : vector<256x128xf32>
    %85 = tpu.matmul %82, %84, %cst_41 {dimension_numbers = #tpu.dot_dimension_numbers<[1], [0], [0], [1], [0, 0, 1, 1], [], []>} : vector<256x64xbf16>, vector<64x128xbf16>, vector<256x128xf32> -> vector<256x128xf32>
    %86 = arith.addf %80, %85 : vector<256x128xf32>
    %cst_42 = arith.constant dense<0.000000e+00> : vector<128xf32>
    %87 = vector.multi_reduction <add>, %86, %cst_42 [0] : vector<256x128xf32> to vector<128xf32>
    %88 = vector.shape_cast %87 : vector<128xf32> to vector<1x128xf32>
    %c0_43 = arith.constant 0 : index
    %c0_44 = arith.constant 0 : index
    %89 = vector.load %arg2[%c0_43, %c0_44] : memref<128x8xf32, #tpu.memory_space<vmem>>, vector<128x8xf32>
    %cst_45 = arith.constant dense<0.000000e+00> : vector<1x8xf32>
    %90 = tpu.matmul %88, %89, %cst_45 {dimension_numbers = #tpu.dot_dimension_numbers<[1], [0], [0], [1], [0, 0, 1, 1], [], []>} : vector<1x128xf32>, vector<128x8xf32>, vector<1x8xf32> -> vector<1x8xf32>
    %cst_46 = arith.constant 4.096000e+03 : f32
    %91 = vector.broadcast %cst_46 : f32 to vector<1x8xf32>
    %92 = arith.divf %90, %91 : vector<1x8xf32>
    %c0_47 = arith.constant 0 : index
    %c0_48 = arith.constant 0 : index
    %93 = vector.load %arg3[%c0_47, %c0_48] : memref<8x128xf32, #tpu.memory_space<vmem>>, vector<8x128xf32>
    %cst_49 = arith.constant dense<0.000000e+00> : vector<1x128xf32>
    %94 = tpu.matmul %92, %93, %cst_49 {dimension_numbers = #tpu.dot_dimension_numbers<[1], [0], [0], [1], [0, 0, 1, 1], [], []>} : vector<1x8xf32>, vector<8x128xf32>, vector<1x128xf32> -> vector<1x128xf32>
    %95 = vector.broadcast %94 : vector<1x128xf32> to vector<256x128xf32>
    %96 = arith.subf %86, %95 : vector<256x128xf32>
    %97 = arith.mulf %96, %96 : vector<256x128xf32>
    %cst_50 = arith.constant dense<0.000000e+00> : vector<128xf32>
    %98 = vector.multi_reduction <add>, %97, %cst_50 [0] : vector<256x128xf32> to vector<128xf32>
    %99 = vector.shape_cast %98 : vector<128xf32> to vector<1x128xf32>
    %c0_51 = arith.constant 0 : index
    %c0_52 = arith.constant 0 : index
    %100 = vector.load %arg2[%c0_51, %c0_52] : memref<128x8xf32, #tpu.memory_space<vmem>>, vector<128x8xf32>
    %cst_53 = arith.constant dense<0.000000e+00> : vector<1x8xf32>
    %101 = tpu.matmul %99, %100, %cst_53 {dimension_numbers = #tpu.dot_dimension_numbers<[1], [0], [0], [1], [0, 0, 1, 1], [], []>} : vector<1x128xf32>, vector<128x8xf32>, vector<1x8xf32> -> vector<1x8xf32>
    %cst_54 = arith.constant 4.096000e+03 : f32
    %102 = vector.broadcast %cst_54 : f32 to vector<1x8xf32>
    %103 = arith.divf %101, %102 : vector<1x8xf32>
    %c0_55 = arith.constant 0 : index
    %c0_56 = arith.constant 0 : index
    %104 = vector.load %arg5[%c0_55, %c0_56] : memref<1x8xf32, #tpu.memory_space<vmem>>, vector<1x8xf32>
    %cst_57 = arith.constant 9.99999974E-6 : f32
    %105 = vector.broadcast %cst_57 : f32 to vector<1x8xf32>
    %106 = arith.addf %103, %105 : vector<1x8xf32>
    %107 = math.rsqrt %106 : vector<1x8xf32>
    %108 = arith.mulf %104, %107 : vector<1x8xf32>
    %c0_58 = arith.constant 0 : index
    %c0_59 = arith.constant 0 : index
    %109 = vector.load %arg3[%c0_58, %c0_59] : memref<8x128xf32, #tpu.memory_space<vmem>>, vector<8x128xf32>
    %cst_60 = arith.constant dense<0.000000e+00> : vector<1x128xf32>
    %110 = tpu.matmul %108, %109, %cst_60 {dimension_numbers = #tpu.dot_dimension_numbers<[1], [0], [0], [1], [0, 0, 1, 1], [], []>} : vector<1x8xf32>, vector<8x128xf32>, vector<1x128xf32> -> vector<1x128xf32>
    %c0_61 = arith.constant 0 : index
    %c0_62 = arith.constant 0 : index
    %111 = vector.load %arg6[%c0_61, %c0_62] : memref<1x8xf32, #tpu.memory_space<vmem>>, vector<1x8xf32>
    %c0_63 = arith.constant 0 : index
    %c0_64 = arith.constant 0 : index
    %112 = vector.load %arg3[%c0_63, %c0_64] : memref<8x128xf32, #tpu.memory_space<vmem>>, vector<8x128xf32>
    %cst_65 = arith.constant dense<0.000000e+00> : vector<1x128xf32>
    %113 = tpu.matmul %111, %112, %cst_65 {dimension_numbers = #tpu.dot_dimension_numbers<[1], [0], [0], [1], [0, 0, 1, 1], [], []>} : vector<1x8xf32>, vector<8x128xf32>, vector<1x128xf32> -> vector<1x128xf32>
    %114 = vector.broadcast %110 : vector<1x128xf32> to vector<256x128xf32>
    %115 = arith.mulf %96, %114 : vector<256x128xf32>
    %116 = vector.broadcast %113 : vector<1x128xf32> to vector<256x128xf32>
    %117 = arith.addf %115, %116 : vector<256x128xf32>
    %cst_66 = arith.constant 0.000000e+00 : f32
    %118 = vector.broadcast %cst_66 : f32 to vector<256x128xf32>
    %119 = arith.maximumf %117, %118 : vector<256x128xf32>
    %120 = arith.truncf %119 : vector<256x128xf32> to vector<256x128xbf16>
    %121 = vector.shape_cast %120 : vector<256x128xbf16> to vector<2x8x16x128xbf16>
    %cst_67 = arith.constant 0.000000e+00 : bf16
    %122 = vector.broadcast %cst_67 : bf16 to vector<2x8x1x128xbf16>
    %123 = tpu.concatenate %122, %121, %122 in 2 : vector<2x8x1x128xbf16>, vector<2x8x16x128xbf16>, vector<2x8x1x128xbf16> -> vector<2x8x18x128xbf16>
    %cst_68 = arith.constant 0.000000e+00 : bf16
    %124 = vector.broadcast %cst_68 : bf16 to vector<2x1x18x128xbf16>
    %125 = tpu.concatenate %124, %123, %124 in 1 : vector<2x1x18x128xbf16>, vector<2x8x18x128xbf16>, vector<2x1x18x128xbf16> -> vector<2x10x18x128xbf16>
    %126 = vector.shape_cast %125 : vector<2x10x18x128xbf16> to vector<2x5x2x18x128xbf16>
    %cst_69 = arith.constant 0.000000e+00 : f32
    %127 = vector.broadcast %cst_69 : f32 to vector<128x128xf32>
    %128 = vector.extract_strided_slice %126 {offsets = [0, 0, 0, 0, 0], sizes = [2, 4, 1, 18, 128], strides = [1, 1, 1, 1, 1]} : vector<2x5x2x18x128xbf16> to vector<2x4x1x18x128xbf16>
    %129 = vector.shape_cast %128 : vector<2x4x1x18x128xbf16> to vector<2x4x18x128xbf16>
    %130 = vector.extract_strided_slice %129 {offsets = [0, 0, 0, 0], sizes = [2, 4, 16, 128], strides = [1, 1, 1, 1]} : vector<2x4x18x128xbf16> to vector<2x4x16x128xbf16>
    %131 = vector.shape_cast %130 : vector<2x4x16x128xbf16> to vector<128x128xbf16>
    %c0_70 = arith.constant 0 : index
    %c0_71 = arith.constant 0 : index
    %c0_72 = arith.constant 0 : index
    %132 = vector.load %arg7[%c0_70, %c0_71, %c0_72] : memref<12x128x128xbf16, #tpu.memory_space<vmem>>, vector<1x128x128xbf16>
    %133 = vector.shape_cast %132 : vector<1x128x128xbf16> to vector<128x128xbf16>
    %cst_73 = arith.constant dense<0.000000e+00> : vector<128x128xf32>
    %134 = tpu.matmul %131, %133, %cst_73 {dimension_numbers = #tpu.dot_dimension_numbers<[1], [0], [0], [1], [0, 0, 1, 1], [], []>} : vector<128x128xbf16>, vector<128x128xbf16>, vector<128x128xf32> -> vector<128x128xf32>
    %135 = arith.addf %127, %134 : vector<128x128xf32>
    %136 = vector.extract_strided_slice %129 {offsets = [0, 0, 1, 0], sizes = [2, 4, 16, 128], strides = [1, 1, 1, 1]} : vector<2x4x18x128xbf16> to vector<2x4x16x128xbf16>
    %137 = vector.shape_cast %136 : vector<2x4x16x128xbf16> to vector<128x128xbf16>
    %c1_74 = arith.constant 1 : index
    %c0_75 = arith.constant 0 : index
    %c0_76 = arith.constant 0 : index
    %138 = vector.load %arg7[%c1_74, %c0_75, %c0_76] : memref<12x128x128xbf16, #tpu.memory_space<vmem>>, vector<1x128x128xbf16>
    %139 = vector.shape_cast %138 : vector<1x128x128xbf16> to vector<128x128xbf16>
    %cst_77 = arith.constant dense<0.000000e+00> : vector<128x128xf32>
    %140 = tpu.matmul %137, %139, %cst_77 {dimension_numbers = #tpu.dot_dimension_numbers<[1], [0], [0], [1], [0, 0, 1, 1], [], []>} : vector<128x128xbf16>, vector<128x128xbf16>, vector<128x128xf32> -> vector<128x128xf32>
    %141 = arith.addf %135, %140 : vector<128x128xf32>
    %142 = vector.extract_strided_slice %129 {offsets = [0, 0, 2, 0], sizes = [2, 4, 16, 128], strides = [1, 1, 1, 1]} : vector<2x4x18x128xbf16> to vector<2x4x16x128xbf16>
    %143 = vector.shape_cast %142 : vector<2x4x16x128xbf16> to vector<128x128xbf16>
    %c2_78 = arith.constant 2 : index
    %c0_79 = arith.constant 0 : index
    %c0_80 = arith.constant 0 : index
    %144 = vector.load %arg7[%c2_78, %c0_79, %c0_80] : memref<12x128x128xbf16, #tpu.memory_space<vmem>>, vector<1x128x128xbf16>
    %145 = vector.shape_cast %144 : vector<1x128x128xbf16> to vector<128x128xbf16>
    %cst_81 = arith.constant dense<0.000000e+00> : vector<128x128xf32>
    %146 = tpu.matmul %143, %145, %cst_81 {dimension_numbers = #tpu.dot_dimension_numbers<[1], [0], [0], [1], [0, 0, 1, 1], [], []>} : vector<128x128xbf16>, vector<128x128xbf16>, vector<128x128xf32> -> vector<128x128xf32>
    %147 = arith.addf %141, %146 : vector<128x128xf32>
    %148 = vector.extract_strided_slice %126 {offsets = [0, 0, 1, 0, 0], sizes = [2, 4, 1, 18, 128], strides = [1, 1, 1, 1, 1]} : vector<2x5x2x18x128xbf16> to vector<2x4x1x18x128xbf16>
    %149 = vector.shape_cast %148 : vector<2x4x1x18x128xbf16> to vector<2x4x18x128xbf16>
    %150 = vector.extract_strided_slice %149 {offsets = [0, 0, 0, 0], sizes = [2, 4, 16, 128], strides = [1, 1, 1, 1]} : vector<2x4x18x128xbf16> to vector<2x4x16x128xbf16>
    %151 = vector.shape_cast %150 : vector<2x4x16x128xbf16> to vector<128x128xbf16>
    %c3_82 = arith.constant 3 : index
    %c0_83 = arith.constant 0 : index
    %c0_84 = arith.constant 0 : index
    %152 = vector.load %arg7[%c3_82, %c0_83, %c0_84] : memref<12x128x128xbf16, #tpu.memory_space<vmem>>, vector<1x128x128xbf16>
    %153 = vector.shape_cast %152 : vector<1x128x128xbf16> to vector<128x128xbf16>
    %cst_85 = arith.constant dense<0.000000e+00> : vector<128x128xf32>
    %154 = tpu.matmul %151, %153, %cst_85 {dimension_numbers = #tpu.dot_dimension_numbers<[1], [0], [0], [1], [0, 0, 1, 1], [], []>} : vector<128x128xbf16>, vector<128x128xbf16>, vector<128x128xf32> -> vector<128x128xf32>
    %155 = arith.addf %147, %154 : vector<128x128xf32>
    %156 = vector.extract_strided_slice %149 {offsets = [0, 0, 1, 0], sizes = [2, 4, 16, 128], strides = [1, 1, 1, 1]} : vector<2x4x18x128xbf16> to vector<2x4x16x128xbf16>
    %157 = vector.shape_cast %156 : vector<2x4x16x128xbf16> to vector<128x128xbf16>
    %c4_86 = arith.constant 4 : index
    %c0_87 = arith.constant 0 : index
    %c0_88 = arith.constant 0 : index
    %158 = vector.load %arg7[%c4_86, %c0_87, %c0_88] : memref<12x128x128xbf16, #tpu.memory_space<vmem>>, vector<1x128x128xbf16>
    %159 = vector.shape_cast %158 : vector<1x128x128xbf16> to vector<128x128xbf16>
    %cst_89 = arith.constant dense<0.000000e+00> : vector<128x128xf32>
    %160 = tpu.matmul %157, %159, %cst_89 {dimension_numbers = #tpu.dot_dimension_numbers<[1], [0], [0], [1], [0, 0, 1, 1], [], []>} : vector<128x128xbf16>, vector<128x128xbf16>, vector<128x128xf32> -> vector<128x128xf32>
    %161 = arith.addf %155, %160 : vector<128x128xf32>
    %162 = vector.extract_strided_slice %149 {offsets = [0, 0, 2, 0], sizes = [2, 4, 16, 128], strides = [1, 1, 1, 1]} : vector<2x4x18x128xbf16> to vector<2x4x16x128xbf16>
    %163 = vector.shape_cast %162 : vector<2x4x16x128xbf16> to vector<128x128xbf16>
    %c5_90 = arith.constant 5 : index
    %c0_91 = arith.constant 0 : index
    %c0_92 = arith.constant 0 : index
    %164 = vector.load %arg7[%c5_90, %c0_91, %c0_92] : memref<12x128x128xbf16, #tpu.memory_space<vmem>>, vector<1x128x128xbf16>
    %165 = vector.shape_cast %164 : vector<1x128x128xbf16> to vector<128x128xbf16>
    %cst_93 = arith.constant dense<0.000000e+00> : vector<128x128xf32>
    %166 = tpu.matmul %163, %165, %cst_93 {dimension_numbers = #tpu.dot_dimension_numbers<[1], [0], [0], [1], [0, 0, 1, 1], [], []>} : vector<128x128xbf16>, vector<128x128xbf16>, vector<128x128xf32> -> vector<128x128xf32>
    %167 = arith.addf %161, %166 : vector<128x128xf32>
    %168 = vector.extract_strided_slice %126 {offsets = [0, 1, 0, 0, 0], sizes = [2, 4, 1, 18, 128], strides = [1, 1, 1, 1, 1]} : vector<2x5x2x18x128xbf16> to vector<2x4x1x18x128xbf16>
    %169 = vector.shape_cast %168 : vector<2x4x1x18x128xbf16> to vector<2x4x18x128xbf16>
    %170 = vector.extract_strided_slice %169 {offsets = [0, 0, 0, 0], sizes = [2, 4, 16, 128], strides = [1, 1, 1, 1]} : vector<2x4x18x128xbf16> to vector<2x4x16x128xbf16>
    %171 = vector.shape_cast %170 : vector<2x4x16x128xbf16> to vector<128x128xbf16>
    %c6_94 = arith.constant 6 : index
    %c0_95 = arith.constant 0 : index
    %c0_96 = arith.constant 0 : index
    %172 = vector.load %arg7[%c6_94, %c0_95, %c0_96] : memref<12x128x128xbf16, #tpu.memory_space<vmem>>, vector<1x128x128xbf16>
    %173 = vector.shape_cast %172 : vector<1x128x128xbf16> to vector<128x128xbf16>
    %cst_97 = arith.constant dense<0.000000e+00> : vector<128x128xf32>
    %174 = tpu.matmul %171, %173, %cst_97 {dimension_numbers = #tpu.dot_dimension_numbers<[1], [0], [0], [1], [0, 0, 1, 1], [], []>} : vector<128x128xbf16>, vector<128x128xbf16>, vector<128x128xf32> -> vector<128x128xf32>
    %175 = arith.addf %167, %174 : vector<128x128xf32>
    %176 = vector.extract_strided_slice %169 {offsets = [0, 0, 1, 0], sizes = [2, 4, 16, 128], strides = [1, 1, 1, 1]} : vector<2x4x18x128xbf16> to vector<2x4x16x128xbf16>
    %177 = vector.shape_cast %176 : vector<2x4x16x128xbf16> to vector<128x128xbf16>
    %c7_98 = arith.constant 7 : index
    %c0_99 = arith.constant 0 : index
    %c0_100 = arith.constant 0 : index
    %178 = vector.load %arg7[%c7_98, %c0_99, %c0_100] : memref<12x128x128xbf16, #tpu.memory_space<vmem>>, vector<1x128x128xbf16>
    %179 = vector.shape_cast %178 : vector<1x128x128xbf16> to vector<128x128xbf16>
    %cst_101 = arith.constant dense<0.000000e+00> : vector<128x128xf32>
    %180 = tpu.matmul %177, %179, %cst_101 {dimension_numbers = #tpu.dot_dimension_numbers<[1], [0], [0], [1], [0, 0, 1, 1], [], []>} : vector<128x128xbf16>, vector<128x128xbf16>, vector<128x128xf32> -> vector<128x128xf32>
    %181 = arith.addf %175, %180 : vector<128x128xf32>
    %182 = vector.extract_strided_slice %169 {offsets = [0, 0, 2, 0], sizes = [2, 4, 16, 128], strides = [1, 1, 1, 1]} : vector<2x4x18x128xbf16> to vector<2x4x16x128xbf16>
    %183 = vector.shape_cast %182 : vector<2x4x16x128xbf16> to vector<128x128xbf16>
    %c8_102 = arith.constant 8 : index
    %c0_103 = arith.constant 0 : index
    %c0_104 = arith.constant 0 : index
    %184 = vector.load %arg7[%c8_102, %c0_103, %c0_104] : memref<12x128x128xbf16, #tpu.memory_space<vmem>>, vector<1x128x128xbf16>
    %185 = vector.shape_cast %184 : vector<1x128x128xbf16> to vector<128x128xbf16>
    %cst_105 = arith.constant dense<0.000000e+00> : vector<128x128xf32>
    %186 = tpu.matmul %183, %185, %cst_105 {dimension_numbers = #tpu.dot_dimension_numbers<[1], [0], [0], [1], [0, 0, 1, 1], [], []>} : vector<128x128xbf16>, vector<128x128xbf16>, vector<128x128xf32> -> vector<128x128xf32>
    %187 = arith.addf %181, %186 : vector<128x128xf32>
    %188 = vector.extract_strided_slice %126 {offsets = [0, 1, 1, 0, 0], sizes = [2, 4, 1, 18, 128], strides = [1, 1, 1, 1, 1]} : vector<2x5x2x18x128xbf16> to vector<2x4x1x18x128xbf16>
    %189 = vector.shape_cast %188 : vector<2x4x1x18x128xbf16> to vector<2x4x18x128xbf16>
    %190 = vector.extract_strided_slice %189 {offsets = [0, 0, 0, 0], sizes = [2, 4, 16, 128], strides = [1, 1, 1, 1]} : vector<2x4x18x128xbf16> to vector<2x4x16x128xbf16>
    %191 = vector.shape_cast %190 : vector<2x4x16x128xbf16> to vector<128x128xbf16>
    %c9_106 = arith.constant 9 : index
    %c0_107 = arith.constant 0 : index
    %c0_108 = arith.constant 0 : index
    %192 = vector.load %arg7[%c9_106, %c0_107, %c0_108] : memref<12x128x128xbf16, #tpu.memory_space<vmem>>, vector<1x128x128xbf16>
    %193 = vector.shape_cast %192 : vector<1x128x128xbf16> to vector<128x128xbf16>
    %cst_109 = arith.constant dense<0.000000e+00> : vector<128x128xf32>
    %194 = tpu.matmul %191, %193, %cst_109 {dimension_numbers = #tpu.dot_dimension_numbers<[1], [0], [0], [1], [0, 0, 1, 1], [], []>} : vector<128x128xbf16>, vector<128x128xbf16>, vector<128x128xf32> -> vector<128x128xf32>
    %195 = arith.addf %187, %194 : vector<128x128xf32>
    %196 = vector.extract_strided_slice %189 {offsets = [0, 0, 1, 0], sizes = [2, 4, 16, 128], strides = [1, 1, 1, 1]} : vector<2x4x18x128xbf16> to vector<2x4x16x128xbf16>
    %197 = vector.shape_cast %196 : vector<2x4x16x128xbf16> to vector<128x128xbf16>
    %c10_110 = arith.constant 10 : index
    %c0_111 = arith.constant 0 : index
    %c0_112 = arith.constant 0 : index
    %198 = vector.load %arg7[%c10_110, %c0_111, %c0_112] : memref<12x128x128xbf16, #tpu.memory_space<vmem>>, vector<1x128x128xbf16>
    %199 = vector.shape_cast %198 : vector<1x128x128xbf16> to vector<128x128xbf16>
    %cst_113 = arith.constant dense<0.000000e+00> : vector<128x128xf32>
    %200 = tpu.matmul %197, %199, %cst_113 {dimension_numbers = #tpu.dot_dimension_numbers<[1], [0], [0], [1], [0, 0, 1, 1], [], []>} : vector<128x128xbf16>, vector<128x128xbf16>, vector<128x128xf32> -> vector<128x128xf32>
    %201 = arith.addf %195, %200 : vector<128x128xf32>
    %202 = vector.extract_strided_slice %189 {offsets = [0, 0, 2, 0], sizes = [2, 4, 16, 128], strides = [1, 1, 1, 1]} : vector<2x4x18x128xbf16> to vector<2x4x16x128xbf16>
    %203 = vector.shape_cast %202 : vector<2x4x16x128xbf16> to vector<128x128xbf16>
    %c11_114 = arith.constant 11 : index
    %c0_115 = arith.constant 0 : index
    %c0_116 = arith.constant 0 : index
    %204 = vector.load %arg7[%c11_114, %c0_115, %c0_116] : memref<12x128x128xbf16, #tpu.memory_space<vmem>>, vector<1x128x128xbf16>
    %205 = vector.shape_cast %204 : vector<1x128x128xbf16> to vector<128x128xbf16>
    %cst_117 = arith.constant dense<0.000000e+00> : vector<128x128xf32>
    %206 = tpu.matmul %203, %205, %cst_117 {dimension_numbers = #tpu.dot_dimension_numbers<[1], [0], [0], [1], [0, 0, 1, 1], [], []>} : vector<128x128xbf16>, vector<128x128xbf16>, vector<128x128xf32> -> vector<128x128xf32>
    %207 = arith.addf %201, %206 : vector<128x128xf32>
    %cst_118 = arith.constant dense<0.000000e+00> : vector<128xf32>
    %208 = vector.multi_reduction <add>, %207, %cst_118 [0] : vector<128x128xf32> to vector<128xf32>
    %209 = vector.shape_cast %208 : vector<128xf32> to vector<1x128xf32>
    %c0_119 = arith.constant 0 : index
    %c0_120 = arith.constant 0 : index
    %210 = vector.load %arg2[%c0_119, %c0_120] : memref<128x8xf32, #tpu.memory_space<vmem>>, vector<128x8xf32>
    %cst_121 = arith.constant dense<0.000000e+00> : vector<1x8xf32>
    %211 = tpu.matmul %209, %210, %cst_121 {dimension_numbers = #tpu.dot_dimension_numbers<[1], [0], [0], [1], [0, 0, 1, 1], [], []>} : vector<1x128xf32>, vector<128x8xf32>, vector<1x8xf32> -> vector<1x8xf32>
    %cst_122 = arith.constant 2.048000e+03 : f32
    %212 = vector.broadcast %cst_122 : f32 to vector<1x8xf32>
    %213 = arith.divf %211, %212 : vector<1x8xf32>
    %c0_123 = arith.constant 0 : index
    %c0_124 = arith.constant 0 : index
    %214 = vector.load %arg3[%c0_123, %c0_124] : memref<8x128xf32, #tpu.memory_space<vmem>>, vector<8x128xf32>
    %cst_125 = arith.constant dense<0.000000e+00> : vector<1x128xf32>
    %215 = tpu.matmul %213, %214, %cst_125 {dimension_numbers = #tpu.dot_dimension_numbers<[1], [0], [0], [1], [0, 0, 1, 1], [], []>} : vector<1x8xf32>, vector<8x128xf32>, vector<1x128xf32> -> vector<1x128xf32>
    %216 = vector.broadcast %215 : vector<1x128xf32> to vector<128x128xf32>
    %217 = arith.subf %207, %216 : vector<128x128xf32>
    %218 = arith.mulf %217, %217 : vector<128x128xf32>
    %cst_126 = arith.constant dense<0.000000e+00> : vector<128xf32>
    %219 = vector.multi_reduction <add>, %218, %cst_126 [0] : vector<128x128xf32> to vector<128xf32>
    %220 = vector.shape_cast %219 : vector<128xf32> to vector<1x128xf32>
    %c0_127 = arith.constant 0 : index
    %c0_128 = arith.constant 0 : index
    %221 = vector.load %arg2[%c0_127, %c0_128] : memref<128x8xf32, #tpu.memory_space<vmem>>, vector<128x8xf32>
    %cst_129 = arith.constant dense<0.000000e+00> : vector<1x8xf32>
    %222 = tpu.matmul %220, %221, %cst_129 {dimension_numbers = #tpu.dot_dimension_numbers<[1], [0], [0], [1], [0, 0, 1, 1], [], []>} : vector<1x128xf32>, vector<128x8xf32>, vector<1x8xf32> -> vector<1x8xf32>
    %cst_130 = arith.constant 2.048000e+03 : f32
    %223 = vector.broadcast %cst_130 : f32 to vector<1x8xf32>
    %224 = arith.divf %222, %223 : vector<1x8xf32>
    %c0_131 = arith.constant 0 : index
    %c0_132 = arith.constant 0 : index
    %225 = vector.load %arg8[%c0_131, %c0_132] : memref<1x8xf32, #tpu.memory_space<vmem>>, vector<1x8xf32>
    %cst_133 = arith.constant 9.99999974E-6 : f32
    %226 = vector.broadcast %cst_133 : f32 to vector<1x8xf32>
    %227 = arith.addf %224, %226 : vector<1x8xf32>
    %228 = math.rsqrt %227 : vector<1x8xf32>
    %229 = arith.mulf %225, %228 : vector<1x8xf32>
    %c0_134 = arith.constant 0 : index
    %c0_135 = arith.constant 0 : index
    %230 = vector.load %arg3[%c0_134, %c0_135] : memref<8x128xf32, #tpu.memory_space<vmem>>, vector<8x128xf32>
    %cst_136 = arith.constant dense<0.000000e+00> : vector<1x128xf32>
    %231 = tpu.matmul %229, %230, %cst_136 {dimension_numbers = #tpu.dot_dimension_numbers<[1], [0], [0], [1], [0, 0, 1, 1], [], []>} : vector<1x8xf32>, vector<8x128xf32>, vector<1x128xf32> -> vector<1x128xf32>
    %c0_137 = arith.constant 0 : index
    %c0_138 = arith.constant 0 : index
    %232 = vector.load %arg9[%c0_137, %c0_138] : memref<1x8xf32, #tpu.memory_space<vmem>>, vector<1x8xf32>
    %c0_139 = arith.constant 0 : index
    %c0_140 = arith.constant 0 : index
    %233 = vector.load %arg3[%c0_139, %c0_140] : memref<8x128xf32, #tpu.memory_space<vmem>>, vector<8x128xf32>
    %cst_141 = arith.constant dense<0.000000e+00> : vector<1x128xf32>
    %234 = tpu.matmul %232, %233, %cst_141 {dimension_numbers = #tpu.dot_dimension_numbers<[1], [0], [0], [1], [0, 0, 1, 1], [], []>} : vector<1x8xf32>, vector<8x128xf32>, vector<1x128xf32> -> vector<1x128xf32>
    %235 = vector.broadcast %231 : vector<1x128xf32> to vector<128x128xf32>
    %236 = arith.mulf %217, %235 : vector<128x128xf32>
    %237 = vector.broadcast %234 : vector<1x128xf32> to vector<128x128xf32>
    %238 = arith.addf %236, %237 : vector<128x128xf32>
    %cst_142 = arith.constant 0.000000e+00 : f32
    %239 = vector.broadcast %cst_142 : f32 to vector<128x128xf32>
    %240 = arith.maximumf %238, %239 : vector<128x128xf32>
    %241 = arith.truncf %240 : vector<128x128xf32> to vector<128x128xbf16>
    %242 = vector.shape_cast %241 : vector<128x128xbf16> to vector<2x4x16x128xbf16>
    %c0_143 = arith.constant 0 : index
    %c0_144 = arith.constant 0 : index
    %243 = vector.load %arg11[%c0_143, %c0_144] : memref<1x64xf32, #tpu.memory_space<vmem>>, vector<1x64xf32>
    %cst_145 = arith.constant 0.000000e+00 : bf16
    %244 = vector.broadcast %cst_145 : bf16 to vector<2x4x1x128xbf16>
    %245 = tpu.concatenate %244, %242, %244 in 2 : vector<2x4x1x128xbf16>, vector<2x4x16x128xbf16>, vector<2x4x1x128xbf16> -> vector<2x4x18x128xbf16>
    %cst_146 = arith.constant 0.000000e+00 : bf16
    %246 = vector.broadcast %cst_146 : bf16 to vector<2x1x18x128xbf16>
    %247 = tpu.concatenate %246, %245, %246 in 1 : vector<2x1x18x128xbf16>, vector<2x4x18x128xbf16>, vector<2x1x18x128xbf16> -> vector<2x6x18x128xbf16>
    %248 = vector.shape_cast %247 : vector<2x6x18x128xbf16> to vector<2x3x2x18x128xbf16>
    %cst_147 = arith.constant 0.000000e+00 : f32
    %249 = vector.broadcast %cst_147 : f32 to vector<64x64xf32>
    %250 = vector.extract_strided_slice %248 {offsets = [0, 0, 0, 0, 0], sizes = [2, 2, 1, 18, 128], strides = [1, 1, 1, 1, 1]} : vector<2x3x2x18x128xbf16> to vector<2x2x1x18x128xbf16>
    %251 = vector.shape_cast %250 : vector<2x2x1x18x128xbf16> to vector<2x2x18x128xbf16>
    %252 = vector.extract_strided_slice %251 {offsets = [0, 0, 0, 0], sizes = [2, 2, 16, 128], strides = [1, 1, 1, 1]} : vector<2x2x18x128xbf16> to vector<2x2x16x128xbf16>
    %253 = vector.shape_cast %252 : vector<2x2x16x128xbf16> to vector<64x128xbf16>
    %c0_148 = arith.constant 0 : index
    %c0_149 = arith.constant 0 : index
    %c0_150 = arith.constant 0 : index
    %254 = vector.load %arg10[%c0_148, %c0_149, %c0_150] : memref<12x128x64xbf16, #tpu.memory_space<vmem>>, vector<1x128x64xbf16>
    %255 = vector.shape_cast %254 : vector<1x128x64xbf16> to vector<128x64xbf16>
    %cst_151 = arith.constant dense<0.000000e+00> : vector<64x64xf32>
    %256 = tpu.matmul %253, %255, %cst_151 {dimension_numbers = #tpu.dot_dimension_numbers<[1], [0], [0], [1], [0, 0, 1, 1], [], []>} : vector<64x128xbf16>, vector<128x64xbf16>, vector<64x64xf32> -> vector<64x64xf32>
    %257 = arith.addf %249, %256 : vector<64x64xf32>
    %258 = vector.extract_strided_slice %251 {offsets = [0, 0, 1, 0], sizes = [2, 2, 16, 128], strides = [1, 1, 1, 1]} : vector<2x2x18x128xbf16> to vector<2x2x16x128xbf16>
    %259 = vector.shape_cast %258 : vector<2x2x16x128xbf16> to vector<64x128xbf16>
    %c1_152 = arith.constant 1 : index
    %c0_153 = arith.constant 0 : index
    %c0_154 = arith.constant 0 : index
    %260 = vector.load %arg10[%c1_152, %c0_153, %c0_154] : memref<12x128x64xbf16, #tpu.memory_space<vmem>>, vector<1x128x64xbf16>
    %261 = vector.shape_cast %260 : vector<1x128x64xbf16> to vector<128x64xbf16>
    %cst_155 = arith.constant dense<0.000000e+00> : vector<64x64xf32>
    %262 = tpu.matmul %259, %261, %cst_155 {dimension_numbers = #tpu.dot_dimension_numbers<[1], [0], [0], [1], [0, 0, 1, 1], [], []>} : vector<64x128xbf16>, vector<128x64xbf16>, vector<64x64xf32> -> vector<64x64xf32>
    %263 = arith.addf %257, %262 : vector<64x64xf32>
    %264 = vector.extract_strided_slice %251 {offsets = [0, 0, 2, 0], sizes = [2, 2, 16, 128], strides = [1, 1, 1, 1]} : vector<2x2x18x128xbf16> to vector<2x2x16x128xbf16>
    %265 = vector.shape_cast %264 : vector<2x2x16x128xbf16> to vector<64x128xbf16>
    %c2_156 = arith.constant 2 : index
    %c0_157 = arith.constant 0 : index
    %c0_158 = arith.constant 0 : index
    %266 = vector.load %arg10[%c2_156, %c0_157, %c0_158] : memref<12x128x64xbf16, #tpu.memory_space<vmem>>, vector<1x128x64xbf16>
    %267 = vector.shape_cast %266 : vector<1x128x64xbf16> to vector<128x64xbf16>
    %cst_159 = arith.constant dense<0.000000e+00> : vector<64x64xf32>
    %268 = tpu.matmul %265, %267, %cst_159 {dimension_numbers = #tpu.dot_dimension_numbers<[1], [0], [0], [1], [0, 0, 1, 1], [], []>} : vector<64x128xbf16>, vector<128x64xbf16>, vector<64x64xf32> -> vector<64x64xf32>
    %269 = arith.addf %263, %268 : vector<64x64xf32>
    %270 = vector.extract_strided_slice %248 {offsets = [0, 0, 1, 0, 0], sizes = [2, 2, 1, 18, 128], strides = [1, 1, 1, 1, 1]} : vector<2x3x2x18x128xbf16> to vector<2x2x1x18x128xbf16>
    %271 = vector.shape_cast %270 : vector<2x2x1x18x128xbf16> to vector<2x2x18x128xbf16>
    %272 = vector.extract_strided_slice %271 {offsets = [0, 0, 0, 0], sizes = [2, 2, 16, 128], strides = [1, 1, 1, 1]} : vector<2x2x18x128xbf16> to vector<2x2x16x128xbf16>
    %273 = vector.shape_cast %272 : vector<2x2x16x128xbf16> to vector<64x128xbf16>
    %c3_160 = arith.constant 3 : index
    %c0_161 = arith.constant 0 : index
    %c0_162 = arith.constant 0 : index
    %274 = vector.load %arg10[%c3_160, %c0_161, %c0_162] : memref<12x128x64xbf16, #tpu.memory_space<vmem>>, vector<1x128x64xbf16>
    %275 = vector.shape_cast %274 : vector<1x128x64xbf16> to vector<128x64xbf16>
    %cst_163 = arith.constant dense<0.000000e+00> : vector<64x64xf32>
    %276 = tpu.matmul %273, %275, %cst_163 {dimension_numbers = #tpu.dot_dimension_numbers<[1], [0], [0], [1], [0, 0, 1, 1], [], []>} : vector<64x128xbf16>, vector<128x64xbf16>, vector<64x64xf32> -> vector<64x64xf32>
    %277 = arith.addf %269, %276 : vector<64x64xf32>
    %278 = vector.extract_strided_slice %271 {offsets = [0, 0, 1, 0], sizes = [2, 2, 16, 128], strides = [1, 1, 1, 1]} : vector<2x2x18x128xbf16> to vector<2x2x16x128xbf16>
    %279 = vector.shape_cast %278 : vector<2x2x16x128xbf16> to vector<64x128xbf16>
    %c4_164 = arith.constant 4 : index
    %c0_165 = arith.constant 0 : index
    %c0_166 = arith.constant 0 : index
    %280 = vector.load %arg10[%c4_164, %c0_165, %c0_166] : memref<12x128x64xbf16, #tpu.memory_space<vmem>>, vector<1x128x64xbf16>
    %281 = vector.shape_cast %280 : vector<1x128x64xbf16> to vector<128x64xbf16>
    %cst_167 = arith.constant dense<0.000000e+00> : vector<64x64xf32>
    %282 = tpu.matmul %279, %281, %cst_167 {dimension_numbers = #tpu.dot_dimension_numbers<[1], [0], [0], [1], [0, 0, 1, 1], [], []>} : vector<64x128xbf16>, vector<128x64xbf16>, vector<64x64xf32> -> vector<64x64xf32>
    %283 = arith.addf %277, %282 : vector<64x64xf32>
    %284 = vector.extract_strided_slice %271 {offsets = [0, 0, 2, 0], sizes = [2, 2, 16, 128], strides = [1, 1, 1, 1]} : vector<2x2x18x128xbf16> to vector<2x2x16x128xbf16>
    %285 = vector.shape_cast %284 : vector<2x2x16x128xbf16> to vector<64x128xbf16>
    %c5_168 = arith.constant 5 : index
    %c0_169 = arith.constant 0 : index
    %c0_170 = arith.constant 0 : index
    %286 = vector.load %arg10[%c5_168, %c0_169, %c0_170] : memref<12x128x64xbf16, #tpu.memory_space<vmem>>, vector<1x128x64xbf16>
    %287 = vector.shape_cast %286 : vector<1x128x64xbf16> to vector<128x64xbf16>
    %cst_171 = arith.constant dense<0.000000e+00> : vector<64x64xf32>
    %288 = tpu.matmul %285, %287, %cst_171 {dimension_numbers = #tpu.dot_dimension_numbers<[1], [0], [0], [1], [0, 0, 1, 1], [], []>} : vector<64x128xbf16>, vector<128x64xbf16>, vector<64x64xf32> -> vector<64x64xf32>
    %289 = arith.addf %283, %288 : vector<64x64xf32>
    %290 = vector.extract_strided_slice %248 {offsets = [0, 1, 0, 0, 0], sizes = [2, 2, 1, 18, 128], strides = [1, 1, 1, 1, 1]} : vector<2x3x2x18x128xbf16> to vector<2x2x1x18x128xbf16>
    %291 = vector.shape_cast %290 : vector<2x2x1x18x128xbf16> to vector<2x2x18x128xbf16>
    %292 = vector.extract_strided_slice %291 {offsets = [0, 0, 0, 0], sizes = [2, 2, 16, 128], strides = [1, 1, 1, 1]} : vector<2x2x18x128xbf16> to vector<2x2x16x128xbf16>
    %293 = vector.shape_cast %292 : vector<2x2x16x128xbf16> to vector<64x128xbf16>
    %c6_172 = arith.constant 6 : index
    %c0_173 = arith.constant 0 : index
    %c0_174 = arith.constant 0 : index
    %294 = vector.load %arg10[%c6_172, %c0_173, %c0_174] : memref<12x128x64xbf16, #tpu.memory_space<vmem>>, vector<1x128x64xbf16>
    %295 = vector.shape_cast %294 : vector<1x128x64xbf16> to vector<128x64xbf16>
    %cst_175 = arith.constant dense<0.000000e+00> : vector<64x64xf32>
    %296 = tpu.matmul %293, %295, %cst_175 {dimension_numbers = #tpu.dot_dimension_numbers<[1], [0], [0], [1], [0, 0, 1, 1], [], []>} : vector<64x128xbf16>, vector<128x64xbf16>, vector<64x64xf32> -> vector<64x64xf32>
    %297 = arith.addf %289, %296 : vector<64x64xf32>
    %298 = vector.extract_strided_slice %291 {offsets = [0, 0, 1, 0], sizes = [2, 2, 16, 128], strides = [1, 1, 1, 1]} : vector<2x2x18x128xbf16> to vector<2x2x16x128xbf16>
    %299 = vector.shape_cast %298 : vector<2x2x16x128xbf16> to vector<64x128xbf16>
    %c7_176 = arith.constant 7 : index
    %c0_177 = arith.constant 0 : index
    %c0_178 = arith.constant 0 : index
    %300 = vector.load %arg10[%c7_176, %c0_177, %c0_178] : memref<12x128x64xbf16, #tpu.memory_space<vmem>>, vector<1x128x64xbf16>
    %301 = vector.shape_cast %300 : vector<1x128x64xbf16> to vector<128x64xbf16>
    %cst_179 = arith.constant dense<0.000000e+00> : vector<64x64xf32>
    %302 = tpu.matmul %299, %301, %cst_179 {dimension_numbers = #tpu.dot_dimension_numbers<[1], [0], [0], [1], [0, 0, 1, 1], [], []>} : vector<64x128xbf16>, vector<128x64xbf16>, vector<64x64xf32> -> vector<64x64xf32>
    %303 = arith.addf %297, %302 : vector<64x64xf32>
    %304 = vector.extract_strided_slice %291 {offsets = [0, 0, 2, 0], sizes = [2, 2, 16, 128], strides = [1, 1, 1, 1]} : vector<2x2x18x128xbf16> to vector<2x2x16x128xbf16>
    %305 = vector.shape_cast %304 : vector<2x2x16x128xbf16> to vector<64x128xbf16>
    %c8_180 = arith.constant 8 : index
    %c0_181 = arith.constant 0 : index
    %c0_182 = arith.constant 0 : index
    %306 = vector.load %arg10[%c8_180, %c0_181, %c0_182] : memref<12x128x64xbf16, #tpu.memory_space<vmem>>, vector<1x128x64xbf16>
    %307 = vector.shape_cast %306 : vector<1x128x64xbf16> to vector<128x64xbf16>
    %cst_183 = arith.constant dense<0.000000e+00> : vector<64x64xf32>
    %308 = tpu.matmul %305, %307, %cst_183 {dimension_numbers = #tpu.dot_dimension_numbers<[1], [0], [0], [1], [0, 0, 1, 1], [], []>} : vector<64x128xbf16>, vector<128x64xbf16>, vector<64x64xf32> -> vector<64x64xf32>
    %309 = arith.addf %303, %308 : vector<64x64xf32>
    %310 = vector.extract_strided_slice %248 {offsets = [0, 1, 1, 0, 0], sizes = [2, 2, 1, 18, 128], strides = [1, 1, 1, 1, 1]} : vector<2x3x2x18x128xbf16> to vector<2x2x1x18x128xbf16>
    %311 = vector.shape_cast %310 : vector<2x2x1x18x128xbf16> to vector<2x2x18x128xbf16>
    %312 = vector.extract_strided_slice %311 {offsets = [0, 0, 0, 0], sizes = [2, 2, 16, 128], strides = [1, 1, 1, 1]} : vector<2x2x18x128xbf16> to vector<2x2x16x128xbf16>
    %313 = vector.shape_cast %312 : vector<2x2x16x128xbf16> to vector<64x128xbf16>
    %c9_184 = arith.constant 9 : index
    %c0_185 = arith.constant 0 : index
    %c0_186 = arith.constant 0 : index
    %314 = vector.load %arg10[%c9_184, %c0_185, %c0_186] : memref<12x128x64xbf16, #tpu.memory_space<vmem>>, vector<1x128x64xbf16>
    %315 = vector.shape_cast %314 : vector<1x128x64xbf16> to vector<128x64xbf16>
    %cst_187 = arith.constant dense<0.000000e+00> : vector<64x64xf32>
    %316 = tpu.matmul %313, %315, %cst_187 {dimension_numbers = #tpu.dot_dimension_numbers<[1], [0], [0], [1], [0, 0, 1, 1], [], []>} : vector<64x128xbf16>, vector<128x64xbf16>, vector<64x64xf32> -> vector<64x64xf32>
    %317 = arith.addf %309, %316 : vector<64x64xf32>
    %318 = vector.extract_strided_slice %311 {offsets = [0, 0, 1, 0], sizes = [2, 2, 16, 128], strides = [1, 1, 1, 1]} : vector<2x2x18x128xbf16> to vector<2x2x16x128xbf16>
    %319 = vector.shape_cast %318 : vector<2x2x16x128xbf16> to vector<64x128xbf16>
    %c10_188 = arith.constant 10 : index
    %c0_189 = arith.constant 0 : index
    %c0_190 = arith.constant 0 : index
    %320 = vector.load %arg10[%c10_188, %c0_189, %c0_190] : memref<12x128x64xbf16, #tpu.memory_space<vmem>>, vector<1x128x64xbf16>
    %321 = vector.shape_cast %320 : vector<1x128x64xbf16> to vector<128x64xbf16>
    %cst_191 = arith.constant dense<0.000000e+00> : vector<64x64xf32>
    %322 = tpu.matmul %319, %321, %cst_191 {dimension_numbers = #tpu.dot_dimension_numbers<[1], [0], [0], [1], [0, 0, 1, 1], [], []>} : vector<64x128xbf16>, vector<128x64xbf16>, vector<64x64xf32> -> vector<64x64xf32>
    %323 = arith.addf %317, %322 : vector<64x64xf32>
    %324 = vector.extract_strided_slice %311 {offsets = [0, 0, 2, 0], sizes = [2, 2, 16, 128], strides = [1, 1, 1, 1]} : vector<2x2x18x128xbf16> to vector<2x2x16x128xbf16>
    %325 = vector.shape_cast %324 : vector<2x2x16x128xbf16> to vector<64x128xbf16>
    %c11_192 = arith.constant 11 : index
    %c0_193 = arith.constant 0 : index
    %c0_194 = arith.constant 0 : index
    %326 = vector.load %arg10[%c11_192, %c0_193, %c0_194] : memref<12x128x64xbf16, #tpu.memory_space<vmem>>, vector<1x128x64xbf16>
    %327 = vector.shape_cast %326 : vector<1x128x64xbf16> to vector<128x64xbf16>
    %cst_195 = arith.constant dense<0.000000e+00> : vector<64x64xf32>
    %328 = tpu.matmul %325, %327, %cst_195 {dimension_numbers = #tpu.dot_dimension_numbers<[1], [0], [0], [1], [0, 0, 1, 1], [], []>} : vector<64x128xbf16>, vector<128x64xbf16>, vector<64x64xf32> -> vector<64x64xf32>
    %329 = arith.addf %323, %328 : vector<64x64xf32>
    %330 = vector.broadcast %243 : vector<1x64xf32> to vector<64x64xf32>
    %331 = arith.addf %329, %330 : vector<64x64xf32>
    %332 = vector.shape_cast %331 : vector<64x64xf32> to vector<4x16x64xf32>
    %333 = vector.extract_strided_slice %332 {offsets = [0, 0, 0], sizes = [4, 1, 64], strides = [1, 1, 1]} : vector<4x16x64xf32> to vector<4x1x64xf32>
    %334 = vector.shape_cast %333 : vector<4x1x64xf32> to vector<4x64xf32>
    %335 = vector.extract_strided_slice %332 {offsets = [0, 1, 0], sizes = [4, 1, 64], strides = [1, 1, 1]} : vector<4x16x64xf32> to vector<4x1x64xf32>
    %336 = vector.shape_cast %335 : vector<4x1x64xf32> to vector<4x64xf32>
    %337 = vector.extract_strided_slice %332 {offsets = [0, 2, 0], sizes = [4, 1, 64], strides = [1, 1, 1]} : vector<4x16x64xf32> to vector<4x1x64xf32>
    %338 = vector.shape_cast %337 : vector<4x1x64xf32> to vector<4x64xf32>
    %339 = vector.extract_strided_slice %332 {offsets = [0, 3, 0], sizes = [4, 1, 64], strides = [1, 1, 1]} : vector<4x16x64xf32> to vector<4x1x64xf32>
    %340 = vector.shape_cast %339 : vector<4x1x64xf32> to vector<4x64xf32>
    %341 = vector.extract_strided_slice %332 {offsets = [0, 4, 0], sizes = [4, 1, 64], strides = [1, 1, 1]} : vector<4x16x64xf32> to vector<4x1x64xf32>
    %342 = vector.shape_cast %341 : vector<4x1x64xf32> to vector<4x64xf32>
    %343 = vector.extract_strided_slice %332 {offsets = [0, 5, 0], sizes = [4, 1, 64], strides = [1, 1, 1]} : vector<4x16x64xf32> to vector<4x1x64xf32>
    %344 = vector.shape_cast %343 : vector<4x1x64xf32> to vector<4x64xf32>
    %345 = vector.extract_strided_slice %332 {offsets = [0, 6, 0], sizes = [4, 1, 64], strides = [1, 1, 1]} : vector<4x16x64xf32> to vector<4x1x64xf32>
    %346 = vector.shape_cast %345 : vector<4x1x64xf32> to vector<4x64xf32>
    %347 = vector.extract_strided_slice %332 {offsets = [0, 7, 0], sizes = [4, 1, 64], strides = [1, 1, 1]} : vector<4x16x64xf32> to vector<4x1x64xf32>
    %348 = vector.shape_cast %347 : vector<4x1x64xf32> to vector<4x64xf32>
    %349 = vector.extract_strided_slice %332 {offsets = [0, 8, 0], sizes = [4, 1, 64], strides = [1, 1, 1]} : vector<4x16x64xf32> to vector<4x1x64xf32>
    %350 = vector.shape_cast %349 : vector<4x1x64xf32> to vector<4x64xf32>
    %351 = vector.extract_strided_slice %332 {offsets = [0, 9, 0], sizes = [4, 1, 64], strides = [1, 1, 1]} : vector<4x16x64xf32> to vector<4x1x64xf32>
    %352 = vector.shape_cast %351 : vector<4x1x64xf32> to vector<4x64xf32>
    %353 = vector.extract_strided_slice %332 {offsets = [0, 10, 0], sizes = [4, 1, 64], strides = [1, 1, 1]} : vector<4x16x64xf32> to vector<4x1x64xf32>
    %354 = vector.shape_cast %353 : vector<4x1x64xf32> to vector<4x64xf32>
    %355 = vector.extract_strided_slice %332 {offsets = [0, 11, 0], sizes = [4, 1, 64], strides = [1, 1, 1]} : vector<4x16x64xf32> to vector<4x1x64xf32>
    %356 = vector.shape_cast %355 : vector<4x1x64xf32> to vector<4x64xf32>
    %357 = vector.extract_strided_slice %332 {offsets = [0, 12, 0], sizes = [4, 1, 64], strides = [1, 1, 1]} : vector<4x16x64xf32> to vector<4x1x64xf32>
    %358 = vector.shape_cast %357 : vector<4x1x64xf32> to vector<4x64xf32>
    %359 = vector.extract_strided_slice %332 {offsets = [0, 13, 0], sizes = [4, 1, 64], strides = [1, 1, 1]} : vector<4x16x64xf32> to vector<4x1x64xf32>
    %360 = vector.shape_cast %359 : vector<4x1x64xf32> to vector<4x64xf32>
    %361 = vector.extract_strided_slice %332 {offsets = [0, 14, 0], sizes = [4, 1, 64], strides = [1, 1, 1]} : vector<4x16x64xf32> to vector<4x1x64xf32>
    %362 = vector.shape_cast %361 : vector<4x1x64xf32> to vector<4x64xf32>
    %363 = vector.extract_strided_slice %332 {offsets = [0, 15, 0], sizes = [4, 1, 64], strides = [1, 1, 1]} : vector<4x16x64xf32> to vector<4x1x64xf32>
    %364 = vector.shape_cast %363 : vector<4x1x64xf32> to vector<4x64xf32>
    %365 = tpu.concatenate %334, %336, %338, %340, %342, %344, %346, %348, %350, %352, %354, %356, %358, %360, %362, %364 in 1 : vector<4x64xf32>, vector<4x64xf32>, vector<4x64xf32>, vector<4x64xf32>, vector<4x64xf32>, vector<4x64xf32>, vector<4x64xf32>, vector<4x64xf32>, vector<4x64xf32>, vector<4x64xf32>, vector<4x64xf32>, vector<4x64xf32>, vector<4x64xf32>, vector<4x64xf32>, vector<4x64xf32>, vector<4x64xf32> -> vector<4x1024xf32>
    %c0_196 = arith.constant 0 : index
    %c0_197 = arith.constant 0 : index
    %366 = vector.load %arg12[%c0_196, %c0_197] : memref<4x1024xf32, #tpu.memory_space<vmem>>, vector<4x1024xf32>
    tpu.vector_store %arg12[%c0_196, %c0_197], %365 {strides = array<i32>} : memref<4x1024xf32, #tpu.memory_space<vmem>>, vector<4x1024xf32>,
    return
  }
  func.func @transform_0(%arg0: i32) -> (i32, i32, i32, i32) {
    %c0_i32 = arith.constant 0 : i32
    %c0_i32_0 = arith.constant 0 : i32
    %c0_i32_1 = arith.constant 0 : i32
    %c0_i32_2 = arith.constant 0 : i32
    %c0_i32_3 = arith.constant 0 : i32
    return %c0_i32, %c0_i32_0, %c0_i32_1, %c0_i32_2 : i32, i32, i32, i32
  }
  func.func @transform_1(%arg0: i32) -> (i32, i32) {
    %c0_i32 = arith.constant 0 : i32
    %c0_i32_0 = arith.constant 0 : i32
    %c0_i32_1 = arith.constant 0 : i32
    return %c0_i32, %c0_i32_0 : i32, i32
  }
  func.func @transform_2(%arg0: i32) -> (i32, i32) {
    %c0_i32 = arith.constant 0 : i32
    %c0_i32_0 = arith.constant 0 : i32
    %c0_i32_1 = arith.constant 0 : i32
    return %c0_i32, %c0_i32_0 : i32, i32
  }
  func.func @transform_3(%arg0: i32) -> (i32, i32, i32) {
    %c0_i32 = arith.constant 0 : i32
    %c0_i32_0 = arith.constant 0 : i32
    %c0_i32_1 = arith.constant 0 : i32
    %c0_i32_2 = arith.constant 0 : i32
    return %c0_i32, %c0_i32_0, %c0_i32_1 : i32, i32, i32
  }
  func.func @transform_4(%arg0: i32) -> (i32, i32) {
    %c0_i32 = arith.constant 0 : i32
    %c0_i32_0 = arith.constant 0 : i32
    %c0_i32_1 = arith.constant 0 : i32
    return %c0_i32, %c0_i32_0 : i32, i32
  }
  func.func @transform_5(%arg0: i32) -> (i32, i32) {
    %c0_i32 = arith.constant 0 : i32
    %c0_i32_0 = arith.constant 0 : i32
    %c0_i32_1 = arith.constant 0 : i32
    return %c0_i32, %c0_i32_0 : i32, i32
  }
  func.func @transform_6(%arg0: i32) -> (i32, i32, i32) {
    %c0_i32 = arith.constant 0 : i32
    %c0_i32_0 = arith.constant 0 : i32
    %c0_i32_1 = arith.constant 0 : i32
    %c0_i32_2 = arith.constant 0 : i32
    return %c0_i32, %c0_i32_0, %c0_i32_1 : i32, i32, i32
  }
  func.func @transform_7(%arg0: i32) -> (i32, i32) {
    %c0_i32 = arith.constant 0 : i32
    %c0_i32_0 = arith.constant 0 : i32
    %c0_i32_1 = arith.constant 0 : i32
    return %c0_i32, %c0_i32_0 : i32, i32
  }
  func.func @transform_8(%arg0: i32) -> (i32, i32) {
    %c0_i32 = arith.constant 0 : i32
    %c0_i32_0 = arith.constant 0 : i32
    %c0_i32_1 = arith.constant 0 : i32
    return %c0_i32, %c0_i32_0 : i32, i32
  }
  func.func @transform_9(%arg0: i32) -> (i32, i32, i32) {
    %c0_i32 = arith.constant 0 : i32
    %c0_i32_0 = arith.constant 0 : i32
    %c0_i32_1 = arith.constant 0 : i32
    %c0_i32_2 = arith.constant 0 : i32
    return %c0_i32, %c0_i32_0, %c0_i32_1 : i32, i32, i32
  }
  func.func @transform_10(%arg0: i32) -> (i32, i32) {
    %c0_i32 = arith.constant 0 : i32
    %c0_i32_0 = arith.constant 0 : i32
    %c0_i32_1 = arith.constant 0 : i32
    return %c0_i32, %c0_i32_0 : i32, i32
  }
  func.func @transform_11(%arg0: i32) -> (i32, i32) {
    %c0_i32 = arith.constant 0 : i32
    %c0_i32_0 = arith.constant 0 : i32
    %c0_i32_1 = arith.constant 0 : i32
    return %c0_i32, %c0_i32_0 : i32, i32
  }
}

</mosaic_0001>

<llo_original>
// kernel: tile.29
$region0: #{tile.29}
  %s0 = inlined_call_operand.vmem [shape: f32[8,16,8], index: 0, kind: input, shape index: {}]
  %s1 = inlined_call_operand.vmem [shape: f32[8,128], index: 1, kind: output, shape index: {}]
  %s2 = smov 3
  %v3 = vld [vmem:[%s0] ss:$16 sm:%s2]
  %s4 = smov 12
  %v5 = vld [vmem:[%s0] ss:$16 sm:%s4]
  %vm6 = vcmask 1043458
  %v7 = vsel %vm6, %v5, %v3
  %s8 = smov 48
  %v9 = vld [vmem:[%s0] ss:$16 sm:%s8]
  %vm10 = vcmask 1045508
  %v11 = vsel %vm10, %v9, %v7
  %s12 = smov 192
  %v13 = vld [vmem:[%s0] ss:$16 sm:%s12]
  %vm14 = vcmask 1047558
  %v15 = vsel %vm14, %v13, %v11
  %vm16 = vcmask 64512
  %17 = vst.msk [vmem:[%s1] sm:$0xff] %vm16, %v15
  %s18 = scalar_lea.vmem %s0, 15
  %s19 = smov 3
  %v20 = vld [vmem:[%s18] ss:$16 sm:%s19]
  %s21 = scalar_lea.vmem %s0, 15
  %s22 = smov 12
  %v23 = vld [vmem:[%s21] ss:$16 sm:%s22]
  %vm24 = vcmask 1043458
  %v25 = vsel %vm24, %v23, %v20
  %s26 = scalar_lea.vmem %s0, 15
  %s27 = smov 48
  %v28 = vld [vmem:[%s26] ss:$16 sm:%s27]
  %vm29 = vcmask 1045508
  %v30 = vsel %vm29, %v28, %v25
  %s31 = scalar_lea.vmem %s0, 15
  %s32 = smov 192
  %v33 = vld [vmem:[%s31] ss:$16 sm:%s32]
  %vm34 = vcmask 1047558
  %v35 = vsel %vm34, %v33, %v30
  %36 = vrot.lane.b32.xlu0 %v35, 120
  %v37 = vpop.permute.xlu0 %36
  %vm38 = vcmask 1048512
  %39 = vst.msk [vmem:[%s1] sm:$0xff] %vm38, %v37
  %s40 = scalar_lea.vmem %s0, 14
  %s41 = smov 3
  %v42 = vld [vmem:[%s40] ss:$16 sm:%s41]
  %s43 = scalar_lea.vmem %s0, 14
  %s44 = smov 12
  %v45 = vld [vmem:[%s43] ss:$16 sm:%s44]
  %vm46 = vcmask 1043458
  %v47 = vsel %vm46, %v45, %v42
  %s48 = scalar_lea.vmem %s0, 14
  %s49 = smov 48
  %v50 = vld [vmem:[%s48] ss:$16 sm:%s49]
  %vm51 = vcmask 1045508
  %v52 = vsel %vm51, %v50, %v47
  %s53 = scalar_lea.vmem %s0, 14
  %s54 = smov 192
  %v55 = vld [vmem:[%s53] ss:$16 sm:%s54]
  %vm56 = vcmask 1047558
  %v57 = vsel %vm56, %v55, %v52
  %58 = vrot.lane.b32.xlu0 %v57, 112
  %v59 = vpop.permute.xlu0 %58
  %vm60 = vcmask 982912
  %61 = vst.msk [vmem:[%s1] sm:$0xff] %vm60, %v59
  %s62 = scalar_lea.vmem %s0, 13
  %s63 = smov 3
  %v64 = vld [vmem:[%s62] ss:$16 sm:%s63]
  %s65 = scalar_lea.vmem %s0, 13
  %s66 = smov 12
  %v67 = vld [vmem:[%s65] ss:$16 sm:%s66]
  %vm68 = vcmask 1043458
  %v69 = vsel %vm68, %v67, %v64
  %s70 = scalar_lea.vmem %s0, 13
  %s71 = smov 48
  %v72 = vld [vmem:[%s70] ss:$16 sm:%s71]
  %vm73 = vcmask 1045508
  %v74 = vsel %vm73, %v72, %v69
  %s75 = scalar_lea.vmem %s0, 13
  %s76 = smov 192
  %v77 = vld [vmem:[%s75] ss:$16 sm:%s76]
  %vm78 = vcmask 1047558
  %v79 = vsel %vm78, %v77, %v74
  %80 = vrot.lane.b32.xlu0 %v79, 104
  %v81 = vpop.permute.xlu0 %80
  %vm82 = vcmask 917312
  %83 = vst.msk [vmem:[%s1] sm:$0xff] %vm82, %v81
  %s84 = scalar_lea.vmem %s0, 12
  %s85 = smov 3
  %v86 = vld [vmem:[%s84] ss:$16 sm:%s85]
  %s87 = scalar_lea.vmem %s0, 12
  %s88 = smov 12
  %v89 = vld [vmem:[%s87] ss:$16 sm:%s88]
  %vm90 = vcmask 1043458
  %v91 = vsel %vm90, %v89, %v86
  %s92 = scalar_lea.vmem %s0, 12
  %s93 = smov 48
  %v94 = vld [vmem:[%s92] ss:$16 sm:%s93]
  %vm95 = vcmask 1045508
  %v96 = vsel %vm95, %v94, %v91
  %s97 = scalar_lea.vmem %s0, 12
  %s98 = smov 192
  %v99 = vld [vmem:[%s97] ss:$16 sm:%s98]
  %vm100 = vcmask 1047558
  %v101 = vsel %vm100, %v99, %v96
  %102 = vrot.lane.b32.xlu0 %v101, 96
  %v103 = vpop.permute.xlu0 %102
  %vm104 = vcmask 851712
  %105 = vst.msk [vmem:[%s1] sm:$0xff] %vm104, %v103
  %s106 = scalar_lea.vmem %s0, 11
  %s107 = smov 3
  %v108 = vld [vmem:[%s106] ss:$16 sm:%s107]
  %s109 = scalar_lea.vmem %s0, 11
  %s110 = smov 12
  %v111 = vld [vmem:[%s109] ss:$16 sm:%s110]
  %vm112 = vcmask 1043458
  %v113 = vsel %vm112, %v111, %v108
  %s114 = scalar_lea.vmem %s0, 11
  %s115 = smov 48
  %v116 = vld [vmem:[%s114] ss:$16 sm:%s115]
  %vm117 = vcmask 1045508
  %v118 = vsel %vm117, %v116, %v113
  %s119 = scalar_lea.vmem %s0, 11
  %s120 = smov 192
  %v121 = vld [vmem:[%s119] ss:$16 sm:%s120]
  %vm122 = vcmask 1047558
  %v123 = vsel %vm122, %v121, %v118
  %124 = vrot.lane.b32.xlu0 %v123, 88
  %v125 = vpop.permute.xlu0 %124
  %vm126 = vcmask 786112
  %127 = vst.msk [vmem:[%s1] sm:$0xff] %vm126, %v125
  %s128 = scalar_lea.vmem %s0, 10
  %s129 = smov 3
  %v130 = vld [vmem:[%s128] ss:$16 sm:%s129]
  %s131 = scalar_lea.vmem %s0, 10
  %s132 = smov 12
  %v133 = vld [vmem:[%s131] ss:$16 sm:%s132]
  %vm134 = vcmask 1043458
  %v135 = vsel %vm134, %v133, %v130
  %s136 = scalar_lea.vmem %s0, 10
  %s137 = smov 48
  %v138 = vld [vmem:[%s136] ss:$16 sm:%s137]
  %vm139 = vcmask 1045508
  %v140 = vsel %vm139, %v138, %v135
  %s141 = scalar_lea.vmem %s0, 10
  %s142 = smov 192
  %v143 = vld [vmem:[%s141] ss:$16 sm:%s142]
  %vm144 = vcmask 1047558
  %v145 = vsel %vm144, %v143, %v140
  %146 = vrot.lane.b32.xlu0 %v145, 80
  %v147 = vpop.permute.xlu0 %146
  %vm148 = vcmask 720512
  %149 = vst.msk [vmem:[%s1] sm:$0xff] %vm148, %v147
  %s150 = scalar_lea.vmem %s0, 9
  %s151 = smov 3
  %v152 = vld [vmem:[%s150] ss:$16 sm:%s151]
  %s153 = scalar_lea.vmem %s0, 9
  %s154 = smov 12
  %v155 = vld [vmem:[%s153] ss:$16 sm:%s154]
  %vm156 = vcmask 1043458
  %v157 = vsel %vm156, %v155, %v152
  %s158 = scalar_lea.vmem %s0, 9
  %s159 = smov 48
  %v160 = vld [vmem:[%s158] ss:$16 sm:%s159]
  %vm161 = vcmask 1045508
  %v162 = vsel %vm161, %v160, %v157
  %s163 = scalar_lea.vmem %s0, 9
  %s164 = smov 192
  %v165 = vld [vmem:[%s163] ss:$16 sm:%s164]
  %vm166 = vcmask 1047558
  %v167 = vsel %vm166, %v165, %v162
  %168 = vrot.lane.b32.xlu0 %v167, 72
  %v169 = vpop.permute.xlu0 %168
  %vm170 = vcmask 654912
  %171 = vst.msk [vmem:[%s1] sm:$0xff] %vm170, %v169
  %s172 = scalar_lea.vmem %s0, 8
  %s173 = smov 3
  %v174 = vld [vmem:[%s172] ss:$16 sm:%s173]
  %s175 = scalar_lea.vmem %s0, 8
  %s176 = smov 12
  %v177 = vld [vmem:[%s175] ss:$16 sm:%s176]
  %vm178 = vcmask 1043458
  %v179 = vsel %vm178, %v177, %v174
  %s180 = scalar_lea.vmem %s0, 8
  %s181 = smov 48
  %v182 = vld [vmem:[%s180] ss:$16 sm:%s181]
  %vm183 = vcmask 1045508
  %v184 = vsel %vm183, %v182, %v179
  %s185 = scalar_lea.vmem %s0, 8
  %s186 = smov 192
  %v187 = vld [vmem:[%s185] ss:$16 sm:%s186]
  %vm188 = vcmask 1047558
  %v189 = vsel %vm188, %v187, %v184
  %190 = vrot.lane.b32.xlu0 %v189, 64
  %v191 = vpop.permute.xlu0 %190
  %vm192 = vcmask 589312
  %193 = vst.msk [vmem:[%s1] sm:$0xff] %vm192, %v191
  %s194 = scalar_lea.vmem %s0, 7
  %s195 = smov 3
  %v196 = vld [vmem:[%s194] ss:$16 sm:%s195]
  %s197 = scalar_lea.vmem %s0, 7
  %s198 = smov 12
  %v199 = vld [vmem:[%s197] ss:$16 sm:%s198]
  %vm200 = vcmask 1043458
  %v201 = vsel %vm200, %v199, %v196
  %s202 = scalar_lea.vmem %s0, 7
  %s203 = smov 48
  %v204 = vld [vmem:[%s202] ss:$16 sm:%s203]
  %vm205 = vcmask 1045508
  %v206 = vsel %vm205, %v204, %v201
  %s207 = scalar_lea.vmem %s0, 7
  %s208 = smov 192
  %v209 = vld [vmem:[%s207] ss:$16 sm:%s208]
  %vm210 = vcmask 1047558
  %v211 = vsel %vm210, %v209, %v206
  %212 = vrot.lane.b32.xlu0 %v211, 56
  %v213 = vpop.permute.xlu0 %212
  %vm214 = vcmask 523712
  %215 = vst.msk [vmem:[%s1] sm:$0xff] %vm214, %v213
  %s216 = scalar_lea.vmem %s0, 6
  %s217 = smov 3
  %v218 = vld [vmem:[%s216] ss:$16 sm:%s217]
  %s219 = scalar_lea.vmem %s0, 6
  %s220 = smov 12
  %v221 = vld [vmem:[%s219] ss:$16 sm:%s220]
  %vm222 = vcmask 1043458
  %v223 = vsel %vm222, %v221, %v218
  %s224 = scalar_lea.vmem %s0, 6
  %s225 = smov 48
  %v226 = vld [vmem:[%s224] ss:$16 sm:%s225]
  %vm227 = vcmask 1045508
  %v228 = vsel %vm227, %v226, %v223
  %s229 = scalar_lea.vmem %s0, 6
  %s230 = smov 192
  %v231 = vld [vmem:[%s229] ss:$16 sm:%s230]
  %vm232 = vcmask 1047558
  %v233 = vsel %vm232, %v231, %v228
  %234 = vrot.lane.b32.xlu0 %v233, 48
  %v235 = vpop.permute.xlu0 %234
  %vm236 = vcmask 458112
  %237 = vst.msk [vmem:[%s1] sm:$0xff] %vm236, %v235
  %s238 = scalar_lea.vmem %s0, 5
  %s239 = smov 3
  %v240 = vld [vmem:[%s238] ss:$16 sm:%s239]
  %s241 = scalar_lea.vmem %s0, 5
  %s242 = smov 12
  %v243 = vld [vmem:[%s241] ss:$16 sm:%s242]
  %vm244 = vcmask 1043458
  %v245 = vsel %vm244, %v243, %v240
  %s246 = scalar_lea.vmem %s0, 5
  %s247 = smov 48
  %v248 = vld [vmem:[%s246] ss:$16 sm:%s247]
  %vm249 = vcmask 1045508
  %v250 = vsel %vm249, %v248, %v245
  %s251 = scalar_lea.vmem %s0, 5
  %s252 = smov 192
  %v253 = vld [vmem:[%s251] ss:$16 sm:%s252]
  %vm254 = vcmask 1047558
  %v255 = vsel %vm254, %v253, %v250
  %256 = vrot.lane.b32.xlu0 %v255, 40
  %v257 = vpop.permute.xlu0 %256
  %vm258 = vcmask 392512
  %259 = vst.msk [vmem:[%s1] sm:$0xff] %vm258, %v257
  %s260 = scalar_lea.vmem %s0, 4
  %s261 = smov 3
  %v262 = vld [vmem:[%s260] ss:$16 sm:%s261]
  %s263 = scalar_lea.vmem %s0, 4
  %s264 = smov 12
  %v265 = vld [vmem:[%s263] ss:$16 sm:%s264]
  %vm266 = vcmask 1043458
  %v267 = vsel %vm266, %v265, %v262
  %s268 = scalar_lea.vmem %s0, 4
  %s269 = smov 48
  %v270 = vld [vmem:[%s268] ss:$16 sm:%s269]
  %vm271 = vcmask 1045508
  %v272 = vsel %vm271, %v270, %v267
  %s273 = scalar_lea.vmem %s0, 4
  %s274 = smov 192
  %v275 = vld [vmem:[%s273] ss:$16 sm:%s274]
  %vm276 = vcmask 1047558
  %v277 = vsel %vm276, %v275, %v272
  %278 = vrot.lane.b32.xlu0 %v277, 32
  %v279 = vpop.permute.xlu0 %278
  %vm280 = vcmask 326912
  %281 = vst.msk [vmem:[%s1] sm:$0xff] %vm280, %v279
  %s282 = scalar_lea.vmem %s0, 3
  %s283 = smov 3
  %v284 = vld [vmem:[%s282] ss:$16 sm:%s283]
  %s285 = scalar_lea.vmem %s0, 3
  %s286 = smov 12
  %v287 = vld [vmem:[%s285] ss:$16 sm:%s286]
  %vm288 = vcmask 1043458
  %v289 = vsel %vm288, %v287, %v284
  %s290 = scalar_lea.vmem %s0, 3
  %s291 = smov 48
  %v292 = vld [vmem:[%s290] ss:$16 sm:%s291]
  %vm293 = vcmask 1045508
  %v294 = vsel %vm293, %v292, %v289
  %s295 = scalar_lea.vmem %s0, 3
  %s296 = smov 192
  %v297 = vld [vmem:[%s295] ss:$16 sm:%s296]
  %vm298 = vcmask 1047558
  %v299 = vsel %vm298, %v297, %v294
  %300 = vrot.lane.b32.xlu0 %v299, 24
  %v301 = vpop.permute.xlu0 %300
  %vm302 = vcmask 261312
  %303 = vst.msk [vmem:[%s1] sm:$0xff] %vm302, %v301
  %s304 = scalar_lea.vmem %s0, 2
  %s305 = smov 3
  %v306 = vld [vmem:[%s304] ss:$16 sm:%s305]
  %s307 = scalar_lea.vmem %s0, 2
  %s308 = smov 12
  %v309 = vld [vmem:[%s307] ss:$16 sm:%s308]
  %vm310 = vcmask 1043458
  %v311 = vsel %vm310, %v309, %v306
  %s312 = scalar_lea.vmem %s0, 2
  %s313 = smov 48
  %v314 = vld [vmem:[%s312] ss:$16 sm:%s313]
  %vm315 = vcmask 1045508
  %v316 = vsel %vm315, %v314, %v311
  %s317 = scalar_lea.vmem %s0, 2
  %s318 = smov 192
  %v319 = vld [vmem:[%s317] ss:$16 sm:%s318]
  %vm320 = vcmask 1047558
  %v321 = vsel %vm320, %v319, %v316
  %322 = vrot.lane.b32.xlu0 %v321, 16
  %v323 = vpop.permute.xlu0 %322
  %vm324 = vcmask 195712
  %325 = vst.msk [vmem:[%s1] sm:$0xff] %vm324, %v323
  %s326 = scalar_lea.vmem %s0, 1
  %s327 = smov 3
  %v328 = vld [vmem:[%s326] ss:$16 sm:%s327]
  %s329 = scalar_lea.vmem %s0, 1
  %s330 = smov 12
  %v331 = vld [vmem:[%s329] ss:$16 sm:%s330]
  %vm332 = vcmask 1043458
  %v333 = vsel %vm332, %v331, %v328
  %s334 = scalar_lea.vmem %s0, 1
  %s335 = smov 48
  %v336 = vld [vmem:[%s334] ss:$16 sm:%s335]
  %vm337 = vcmask 1045508
  %v338 = vsel %vm337, %v336, %v333
  %s339 = scalar_lea.vmem %s0, 1
  %s340 = smov 192
  %v341 = vld [vmem:[%s339] ss:$16 sm:%s340]
  %vm342 = vcmask 1047558
  %v343 = vsel %vm342, %v341, %v338
  %344 = vrot.lane.b32.xlu0 %v343, 8
  %v345 = vpop.permute.xlu0 %344
  %vm346 = vcmask 130112
  %347 = vst.msk [vmem:[%s1] sm:$0xff] %vm346, %v345

// kernel: tile.18
$region0: #{tile.18}
  #allocation0 [shape = 's32[1]{0}', space=sflag, size = 0x4, scoped, tag = 'scoped memory for tile.18']
  %s0 = inlined_call_operand.vmem [shape: f32[4], index: 0, kind: input, shape index: {}]
  %s1 = inlined_call_operand.vmem [shape: f32[16,4], index: 1, kind: output, shape index: {}]
  // Predicated region
  $region2: #{tile.18} parent=0 // pred_check
    _
  $region3: #{tile.18} parent=0 // pred_check_branch
    %3 = sbr.rel (0) target = $region5
  $region4: #{tile.18} parent=0 // pred_region
    _
  $region5: #{tile.18} parent=0 // pred_fallthru
    _
  %v4 = vld [vmem:[%s0] ss:$0 sm:$0xff]
  %5 = vst [vmem:[%s1] sm:$0xff] %v4
  %s6 = scalar_lea.vmem %s1, 8
  %7 = vst [vmem:[%s6] sm:$0xff] %v4

// kernel: tile.19
$region0: #{tile.19}
  %s0 = inlined_call_operand.vmem [shape: f32[16,4], index: 0, kind: input, shape index: {}]
  %s1 = inlined_call_operand.vmem [shape: f32[1,64], index: 1, kind: output, shape index: {}]
  $region1: #{tile.19} parent=0
    #allocation0 [shape = 'u8[4096]{0}', space=vmem, size = 0x1000, scoped, tag = 'scoped mem for output reshape']
    %v2 = vld [vmem:[%s0] sm:$0x1]
    %vm3 = vcmask 31744
    %4 = vst.msk [vmem:[#allocation0] sm:$0x1] %vm3, %v2
    %s5 = scalar_lea.vmem %s0, 15
    %v6 = vld [vmem:[%s5] sm:$0x1]
    %7 = vrot.lane.b32.xlu0 %v6, 60
    %v8 = vpop.permute.xlu0 %7
    %vm9 = vcmask 523744
    %10 = vst.msk [vmem:[#allocation0] sm:$0x1] %vm9, %v8
    %s11 = scalar_lea.vmem %s0, 14
    %v12 = vld [vmem:[%s11] sm:$0x1]
    %13 = vrot.lane.b32.xlu0 %v12, 56
    %v14 = vpop.permute.xlu0 %13
    %vm15 = vcmask 490944
    %16 = vst.msk [vmem:[#allocation0] sm:$0x1] %vm15, %v14
    %s17 = scalar_lea.vmem %s0, 13
    %v18 = vld [vmem:[%s17] sm:$0x1]
    %19 = vrot.lane.b32.xlu0 %v18, 52
    %v20 = vpop.permute.xlu0 %19
    %vm21 = vcmask 458144
    %22 = vst.msk [vmem:[#allocation0] sm:$0x1] %vm21, %v20
    %s23 = scalar_lea.vmem %s0, 12
    %v24 = vld [vmem:[%s23] sm:$0x1]
    %25 = vrot.lane.b32.xlu0 %v24, 48
    %v26 = vpop.permute.xlu0 %25
    %vm27 = vcmask 425344
    %28 = vst.msk [vmem:[#allocation0] sm:$0x1] %vm27, %v26
    %s29 = scalar_lea.vmem %s0, 11
    %v30 = vld [vmem:[%s29] sm:$0x1]
    %31 = vrot.lane.b32.xlu0 %v30, 44
    %v32 = vpop.permute.xlu0 %31
    %vm33 = vcmask 392544
    %34 = vst.msk [vmem:[#allocation0] sm:$0x1] %vm33, %v32
    %s35 = scalar_lea.vmem %s0, 10
    %v36 = vld [vmem:[%s35] sm:$0x1]
    %37 = vrot.lane.b32.xlu0 %v36, 40
    %v38 = vpop.permute.xlu0 %37
    %vm39 = vcmask 359744
    %40 = vst.msk [vmem:[#allocation0] sm:$0x1] %vm39, %v38
    %s41 = scalar_lea.vmem %s0, 9
    %v42 = vld [vmem:[%s41] sm:$0x1]
    %43 = vrot.lane.b32.xlu0 %v42, 36
    %v44 = vpop.permute.xlu0 %43
    %vm45 = vcmask 326944
    %46 = vst.msk [vmem:[#allocation0] sm:$0x1] %vm45, %v44
    %s47 = scalar_lea.vmem %s0, 8
    %v48 = vld [vmem:[%s47] sm:$0x1]
    %49 = vrot.lane.b32.xlu0 %v48, 32
    %v50 = vpop.permute.xlu0 %49
    %vm51 = vcmask 294144
    %52 = vst.msk [vmem:[#allocation0] sm:$0x1] %vm51, %v50
    %s53 = scalar_lea.vmem %s0, 7
    %v54 = vld [vmem:[%s53] sm:$0x1]
    %55 = vrot.lane.b32.xlu0 %v54, 28
    %v56 = vpop.permute.xlu0 %55
    %vm57 = vcmask 261344
    %58 = vst.msk [vmem:[#allocation0] sm:$0x1] %vm57, %v56
    %s59 = scalar_lea.vmem %s0, 6
    %v60 = vld [vmem:[%s59] sm:$0x1]
    %61 = vrot.lane.b32.xlu0 %v60, 24
    %v62 = vpop.permute.xlu0 %61
    %vm63 = vcmask 228544
    %64 = vst.msk [vmem:[#allocation0] sm:$0x1] %vm63, %v62
    %s65 = scalar_lea.vmem %s0, 5
    %v66 = vld [vmem:[%s65] sm:$0x1]
    %67 = vrot.lane.b32.xlu0 %v66, 20
    %v68 = vpop.permute.xlu0 %67
    %vm69 = vcmask 195744
    %70 = vst.msk [vmem:[#allocation0] sm:$0x1] %vm69, %v68
    %s71 = scalar_lea.vmem %s0, 4
    %v72 = vld [vmem:[%s71] sm:$0x1]
    %73 = vrot.lane.b32.xlu0 %v72, 16
    %v74 = vpop.permute.xlu0 %73
    %vm75 = vcmask 162944
    %76 = vst.msk [vmem:[#allocation0] sm:$0x1] %vm75, %v74
    %s77 = scalar_lea.vmem %s0, 3
    %v78 = vld [vmem:[%s77] sm:$0x1]
    %79 = vrot.lane.b32.xlu0 %v78, 12
    %v80 = vpop.permute.xlu0 %79
    %vm81 = vcmask 130144
    %82 = vst.msk [vmem:[#allocation0] sm:$0x1] %vm81, %v80
    %s83 = scalar_lea.vmem %s0, 2
    %v84 = vld [vmem:[%s83] sm:$0x1]
    %85 = vrot.lane.b32.xlu0 %v84, 8
    %v86 = vpop.permute.xlu0 %85
    %vm87 = vcmask 97344
    %88 = vst.msk [vmem:[#allocation0] sm:$0x1] %vm87, %v86
    %s89 = scalar_lea.vmem %s0, 1
    %v90 = vld [vmem:[%s89] sm:$0x1]
    %91 = vrot.lane.b32.xlu0 %v90, 4
    %v92 = vpop.permute.xlu0 %91
    %vm93 = vcmask 64544
    %94 = vst.msk [vmem:[#allocation0] sm:$0x1] %vm93, %v92
    %s96 = sshllo.u32 0, 1
    %v98 = vld [vmem:[#allocation0] sm:%s96]
    %s99 = sshllo.u32 0, 1
    %100 = vst [vmem:[%s1] sm:%s99] %v98

// kernel: block3d_forward.1
$region0: #{block3d_forward.1}
  #allocation0 [shape = 'u32[]', space=smem, size = 0x4, offset = 0x4, fixed_abs, tag = 'smem constant byte address 0x4 - core index']
  #allocation1 [shape = 'u32[144,128]{1,0:T(1,128)}', space=vmem, size = 0x12000, scoped, tag = 'internal scratch']
  %s0 = inlined_call_operand.vmem [shape: bf16[2,16,16,64], index: 0, kind: input, shape index: {}]
  %s1 = inlined_call_operand.vmem [shape: f32[128,8], index: 1, kind: input, shape index: {}]
  %s2 = inlined_call_operand.vmem [shape: f32[8,128], index: 2, kind: input, shape index: {}]
  %s3 = inlined_call_operand.vmem [shape: bf16[12,64,128], index: 3, kind: input, shape index: {}]
  %s4 = inlined_call_operand.vmem [shape: f32[1,8], index: 4, kind: input, shape index: {}]
  %s5 = inlined_call_operand.vmem [shape: f32[1,8], index: 5, kind: input, shape index: {}]
  %s6 = inlined_call_operand.vmem [shape: bf16[12,128,128], index: 6, kind: input, shape index: {}]
  %s7 = inlined_call_operand.vmem [shape: f32[1,8], index: 7, kind: input, shape index: {}]
  %s8 = inlined_call_operand.vmem [shape: f32[1,8], index: 8, kind: input, shape index: {}]
  %s9 = inlined_call_operand.vmem [shape: bf16[12,128,64], index: 9, kind: input, shape index: {}]
  %s10 = inlined_call_operand.vmem [shape: f32[1,64], index: 10, kind: input, shape index: {}]
  %s11 = inlined_call_operand.vmem [shape: f32[4,1024], index: 11, kind: output, shape index: {}]
  %s12 = sld [smem:[#allocation0]]
  $region54: #{block3d_forward.1} parent=0
    _
  %s14 = ssub.s32 1, %s12
  %s15 = scalar_select 0, %s14, %s12
  // Predicated region
  $region2: #{block3d_forward.1} parent=0 // pred_check
    _
  $region3: #{block3d_forward.1} parent=0 // pred_check_branch
    %17 = sbr.rel (0) target = $region5
  $region4: #{block3d_forward.1} parent=0 // pred_region
    _
  $region5: #{block3d_forward.1} parent=0 // pred_fallthru
    _
  // Predicated region
  $region6: #{block3d_forward.1} parent=0 // pred_check
    _
  $region7: #{block3d_forward.1} parent=0 // pred_check_branch
    %19 = sbr.rel (0) target = $region9
  $region8: #{block3d_forward.1} parent=0 // pred_region
    _
  $region9: #{block3d_forward.1} parent=0 // pred_fallthru
    _
  // Predicated region
  $region10: #{block3d_forward.1} parent=0 // pred_check
    _
  $region11: #{block3d_forward.1} parent=0 // pred_check_branch
    %21 = sbr.rel (0) target = $region13
  $region12: #{block3d_forward.1} parent=0 // pred_region
    _
  $region13: #{block3d_forward.1} parent=0 // pred_fallthru
    _
  // Predicated region
  $region14: #{block3d_forward.1} parent=0 // pred_check
    _
  $region15: #{block3d_forward.1} parent=0 // pred_check_branch
    %23 = sbr.rel (0) target = $region17
  $region16: #{block3d_forward.1} parent=0 // pred_region
    _
  $region17: #{block3d_forward.1} parent=0 // pred_fallthru
    _
  // Predicated region
  $region18: #{block3d_forward.1} parent=0 // pred_check
    _
  $region19: #{block3d_forward.1} parent=0 // pred_check_branch
    %25 = sbr.rel (0) target = $region21
  $region20: #{block3d_forward.1} parent=0 // pred_region
    _
  $region21: #{block3d_forward.1} parent=0 // pred_fallthru
    _
  // Predicated region
  $region22: #{block3d_forward.1} parent=0 // pred_check
    _
  $region23: #{block3d_forward.1} parent=0 // pred_check_branch
    %27 = sbr.rel (0) target = $region25
  $region24: #{block3d_forward.1} parent=0 // pred_region
    _
  $region25: #{block3d_forward.1} parent=0 // pred_fallthru
    _
  // Predicated region
  $region26: #{block3d_forward.1} parent=0 // pred_check
    _
  $region27: #{block3d_forward.1} parent=0 // pred_check_branch
    %29 = sbr.rel (0) target = $region29
  $region28: #{block3d_forward.1} parent=0 // pred_region
    _
  $region29: #{block3d_forward.1} parent=0 // pred_fallthru
    _
  // Predicated region
  $region30: #{block3d_forward.1} parent=0 // pred_check
    _
  $region31: #{block3d_forward.1} parent=0 // pred_check_branch
    %31 = sbr.rel (0) target = $region33
  $region32: #{block3d_forward.1} parent=0 // pred_region
    _
  $region33: #{block3d_forward.1} parent=0 // pred_fallthru
    _
  // Predicated region
  $region34: #{block3d_forward.1} parent=0 // pred_check
    _
  $region35: #{block3d_forward.1} parent=0 // pred_check_branch
    %33 = sbr.rel (0) target = $region37
  $region36: #{block3d_forward.1} parent=0 // pred_region
    _
  $region37: #{block3d_forward.1} parent=0 // pred_fallthru
    _
  // Predicated region
  $region38: #{block3d_forward.1} parent=0 // pred_check
    _
  $region39: #{block3d_forward.1} parent=0 // pred_check_branch
    %35 = sbr.rel (0) target = $region41
  $region40: #{block3d_forward.1} parent=0 // pred_region
    _
  $region41: #{block3d_forward.1} parent=0 // pred_fallthru
    _
  // Predicated region
  $region42: #{block3d_forward.1} parent=0 // pred_check
    _
  $region43: #{block3d_forward.1} parent=0 // pred_check_branch
    %37 = sbr.rel (0) target = $region45
  $region44: #{block3d_forward.1} parent=0 // pred_region
    _
  $region45: #{block3d_forward.1} parent=0 // pred_fallthru
    _
  %v39 = vld [vmem:[%s0] sm:$0xf]
  %v40 = vld [vmem:[%s0 + $0x4] sm:$0xf]
  %v41 = vld [vmem:[%s0 + $0x8] sm:$0xf]
  %v42 = vld [vmem:[%s0 + $0xc] sm:$0xf]
  %v43 = vld [vmem:[%s0 + $0x10] sm:$0xf]
  %v44 = vld [vmem:[%s0 + $0x14] sm:$0xf]
  %v45 = vld [vmem:[%s0 + $0x18] sm:$0xf]
  %v46 = vld [vmem:[%s0 + $0x1c] sm:$0xf]
  %v47 = vld [vmem:[%s0 + $0x20] sm:$0xf]
  %v48 = vld [vmem:[%s0 + $0x24] sm:$0xf]
  %v49 = vld [vmem:[%s0 + $0x28] sm:$0xf]
  %v50 = vld [vmem:[%s0 + $0x2c] sm:$0xf]
  %v51 = vld [vmem:[%s0 + $0x30] sm:$0xf]
  %v52 = vld [vmem:[%s0 + $0x34] sm:$0xf]
  %v53 = vld [vmem:[%s0 + $0x38] sm:$0xf]
  %v54 = vld [vmem:[%s0 + $0x3c] sm:$0xf]
  %v55 = vld [vmem:[%s0 + $0x40] sm:$0xf]
  %v56 = vld [vmem:[%s0 + $0x44] sm:$0xf]
  %v57 = vld [vmem:[%s0 + $0x48] sm:$0xf]
  %v58 = vld [vmem:[%s0 + $0x4c] sm:$0xf]
  %v59 = vld [vmem:[%s0 + $0x50] sm:$0xf]
  %v60 = vld [vmem:[%s0 + $0x54] sm:$0xf]
  %v61 = vld [vmem:[%s0 + $0x58] sm:$0xf]
  %v62 = vld [vmem:[%s0 + $0x5c] sm:$0xf]
  %v63 = vld [vmem:[%s0 + $0x60] sm:$0xf]
  %v64 = vld [vmem:[%s0 + $0x64] sm:$0xf]
  %v65 = vld [vmem:[%s0 + $0x68] sm:$0xf]
  %v66 = vld [vmem:[%s0 + $0x6c] sm:$0xf]
  %v67 = vld [vmem:[%s0 + $0x70] sm:$0xf]
  %v68 = vld [vmem:[%s0 + $0x74] sm:$0xf]
  %v69 = vld [vmem:[%s0 + $0x78] sm:$0xf]
  %v70 = vld [vmem:[%s0 + $0x7c] sm:$0xf]
  %v71 = vld [vmem:[%s0 + $0x80] sm:$0xf]
  %v72 = vld [vmem:[%s0 + $0x84] sm:$0xf]
  %v73 = vld [vmem:[%s0 + $0x88] sm:$0xf]
  %v74 = vld [vmem:[%s0 + $0x8c] sm:$0xf]
  %v75 = vld [vmem:[%s0 + $0x90] sm:$0xf]
  %v76 = vld [vmem:[%s0 + $0x94] sm:$0xf]
  %v77 = vld [vmem:[%s0 + $0x98] sm:$0xf]
  %v78 = vld [vmem:[%s0 + $0x9c] sm:$0xf]
  %v79 = vld [vmem:[%s0 + $0xa0] sm:$0xf]
  %v80 = vld [vmem:[%s0 + $0xa4] sm:$0xf]
  %v81 = vld [vmem:[%s0 + $0xa8] sm:$0xf]
  %v82 = vld [vmem:[%s0 + $0xac] sm:$0xf]
  %v83 = vld [vmem:[%s0 + $0xb0] sm:$0xf]
  %v84 = vld [vmem:[%s0 + $0xb4] sm:$0xf]
  %v85 = vld [vmem:[%s0 + $0xb8] sm:$0xf]
  %v86 = vld [vmem:[%s0 + $0xbc] sm:$0xf]
  %v87 = vld [vmem:[%s0 + $0xc0] sm:$0xf]
  %v88 = vld [vmem:[%s0 + $0xc4] sm:$0xf]
  %v89 = vld [vmem:[%s0 + $0xc8] sm:$0xf]
  %v90 = vld [vmem:[%s0 + $0xcc] sm:$0xf]
  %v91 = vld [vmem:[%s0 + $0xd0] sm:$0xf]
  %v92 = vld [vmem:[%s0 + $0xd4] sm:$0xf]
  %v93 = vld [vmem:[%s0 + $0xd8] sm:$0xf]
  %v94 = vld [vmem:[%s0 + $0xdc] sm:$0xf]
  %v95 = vld [vmem:[%s0 + $0xe0] sm:$0xf]
  %v96 = vld [vmem:[%s0 + $0xe4] sm:$0xf]
  %v97 = vld [vmem:[%s0 + $0xe8] sm:$0xf]
  %v98 = vld [vmem:[%s0 + $0xec] sm:$0xf]
  %v99 = vld [vmem:[%s0 + $0xf0] sm:$0xf]
  %v100 = vld [vmem:[%s0 + $0xf4] sm:$0xf]
  %v101 = vld [vmem:[%s0 + $0xf8] sm:$0xf]
  %v102 = vld [vmem:[%s0 + $0xfc] sm:$0xf]
  %v167 = vunpack.c.l.b16 %v39
  %v168 = vunpack.c.l.b16 %v40
  %v169 = vunpack.c.l.b16 %v41
  %v170 = vunpack.c.l.b16 %v42
  %v171 = vunpack.c.l.b16 %v43
  %v172 = vunpack.c.l.b16 %v44
  %v173 = vunpack.c.l.b16 %v45
  %v174 = vunpack.c.l.b16 %v46
  %v175 = vunpack.c.l.b16 %v47
  %v176 = vunpack.c.l.b16 %v48
  %v177 = vunpack.c.l.b16 %v49
  %v178 = vunpack.c.l.b16 %v50
  %v179 = vunpack.c.l.b16 %v51
  %v180 = vunpack.c.l.b16 %v52
  %v181 = vunpack.c.l.b16 %v53
  %v182 = vunpack.c.l.b16 %v54
  %v183 = vunpack.c.l.b16 %v55
  %v184 = vunpack.c.l.b16 %v56
  %v185 = vunpack.c.l.b16 %v57
  %v186 = vunpack.c.l.b16 %v58
  %v187 = vunpack.c.l.b16 %v59
  %v188 = vunpack.c.l.b16 %v60
  %v189 = vunpack.c.l.b16 %v61
  %v190 = vunpack.c.l.b16 %v62
  %v191 = vunpack.c.l.b16 %v63
  %v192 = vunpack.c.l.b16 %v64
  %v193 = vunpack.c.l.b16 %v65
  %v194 = vunpack.c.l.b16 %v66
  %v195 = vunpack.c.l.b16 %v67
  %v196 = vunpack.c.l.b16 %v68
  %v197 = vunpack.c.l.b16 %v69
  %v198 = vunpack.c.l.b16 %v70
  %v199 = vunpack.c.l.b16 %v71
  %v200 = vunpack.c.l.b16 %v72
  %v201 = vunpack.c.l.b16 %v73
  %v202 = vunpack.c.l.b16 %v74
  %v203 = vunpack.c.l.b16 %v75
  %v204 = vunpack.c.l.b16 %v76
  %v205 = vunpack.c.l.b16 %v77
  %v206 = vunpack.c.l.b16 %v78
  %v207 = vunpack.c.l.b16 %v79
  %v208 = vunpack.c.l.b16 %v80
  %v209 = vunpack.c.l.b16 %v81
  %v210 = vunpack.c.l.b16 %v82
  %v211 = vunpack.c.l.b16 %v83
  %v212 = vunpack.c.l.b16 %v84
  %v213 = vunpack.c.l.b16 %v85
  %v214 = vunpack.c.l.b16 %v86
  %v215 = vunpack.c.l.b16 %v87
  %v216 = vunpack.c.l.b16 %v88
  %v217 = vunpack.c.l.b16 %v89
  %v218 = vunpack.c.l.b16 %v90
  %v219 = vunpack.c.l.b16 %v91
  %v220 = vunpack.c.l.b16 %v92
  %v221 = vunpack.c.l.b16 %v93
  %v222 = vunpack.c.l.b16 %v94
  %v223 = vunpack.c.l.b16 %v95
  %v224 = vunpack.c.l.b16 %v96
  %v225 = vunpack.c.l.b16 %v97
  %v226 = vunpack.c.l.b16 %v98
  %v227 = vunpack.c.l.b16 %v99
  %v228 = vunpack.c.l.b16 %v100
  %v229 = vunpack.c.l.b16 %v101
  %v230 = vunpack.c.l.b16 %v102
  %v231 = vpack.c.b16 %v168, %v167
  %v232 = vpack.c.b16 %v170, %v169
  %v233 = vpack.c.b16 %v172, %v171
  %v234 = vpack.c.b16 %v174, %v173
  %v235 = vpack.c.b16 %v176, %v175
  %v236 = vpack.c.b16 %v178, %v177
  %v237 = vpack.c.b16 %v180, %v179
  %v238 = vpack.c.b16 %v182, %v181
  %v239 = vpack.c.b16 %v184, %v183
  %v240 = vpack.c.b16 %v186, %v185
  %v241 = vpack.c.b16 %v188, %v187
  %v242 = vpack.c.b16 %v190, %v189
  %v243 = vpack.c.b16 %v192, %v191
  %v244 = vpack.c.b16 %v194, %v193
  %v245 = vpack.c.b16 %v196, %v195
  %v246 = vpack.c.b16 %v198, %v197
  %v247 = vpack.c.b16 %v200, %v199
  %v248 = vpack.c.b16 %v202, %v201
  %v249 = vpack.c.b16 %v204, %v203
  %v250 = vpack.c.b16 %v206, %v205
  %v251 = vpack.c.b16 %v208, %v207
  %v252 = vpack.c.b16 %v210, %v209
  %v253 = vpack.c.b16 %v212, %v211
  %v254 = vpack.c.b16 %v214, %v213
  %v255 = vpack.c.b16 %v216, %v215
  %v256 = vpack.c.b16 %v218, %v217
  %v257 = vpack.c.b16 %v220, %v219
  %v258 = vpack.c.b16 %v222, %v221
  %v259 = vpack.c.b16 %v224, %v223
  %v260 = vpack.c.b16 %v226, %v225
  %v261 = vpack.c.b16 %v228, %v227
  %v262 = vpack.c.b16 %v230, %v229
  %v264 = vshrl.u32 %v231, 16
  %v266 = vrot.slane %v264, 7
  %v267 = vshll.u32 %v231, 16
  %v269 = vor.u32 %v266, %v267
  %v271 = vshrl.u32 %v232, 16
  %v273 = vrot.slane %v271, 7
  %v274 = vshll.u32 %v232, 16
  %v276 = vor.u32 %v273, %v274
  %v278 = vshrl.u32 %v233, 16
  %v280 = vrot.slane %v278, 7
  %v281 = vshll.u32 %v233, 16
  %v283 = vor.u32 %v280, %v281
  %v285 = vshrl.u32 %v234, 16
  %v287 = vrot.slane %v285, 7
  %v288 = vshll.u32 %v234, 16
  %v290 = vor.u32 %v287, %v288
  %v292 = vshrl.u32 %v235, 16
  %v294 = vrot.slane %v292, 7
  %v295 = vshll.u32 %v235, 16
  %v297 = vor.u32 %v294, %v295
  %v299 = vshrl.u32 %v236, 16
  %v301 = vrot.slane %v299, 7
  %v302 = vshll.u32 %v236, 16
  %v304 = vor.u32 %v301, %v302
  %v306 = vshrl.u32 %v237, 16
  %v308 = vrot.slane %v306, 7
  %v309 = vshll.u32 %v237, 16
  %v311 = vor.u32 %v308, %v309
  %v313 = vshrl.u32 %v238, 16
  %v315 = vrot.slane %v313, 7
  %v316 = vshll.u32 %v238, 16
  %v318 = vor.u32 %v315, %v316
  %v320 = vshrl.u32 %v239, 16
  %v322 = vrot.slane %v320, 7
  %v323 = vshll.u32 %v239, 16
  %v325 = vor.u32 %v322, %v323
  %v327 = vshrl.u32 %v240, 16
  %v329 = vrot.slane %v327, 7
  %v330 = vshll.u32 %v240, 16
  %v332 = vor.u32 %v329, %v330
  %v334 = vshrl.u32 %v241, 16
  %v336 = vrot.slane %v334, 7
  %v337 = vshll.u32 %v241, 16
  %v339 = vor.u32 %v336, %v337
  %v341 = vshrl.u32 %v242, 16
  %v343 = vrot.slane %v341, 7
  %v344 = vshll.u32 %v242, 16
  %v346 = vor.u32 %v343, %v344
  %v348 = vshrl.u32 %v243, 16
  %v350 = vrot.slane %v348, 7
  %v351 = vshll.u32 %v243, 16
  %v353 = vor.u32 %v350, %v351
  %v355 = vshrl.u32 %v244, 16
  %v357 = vrot.slane %v355, 7
  %v358 = vshll.u32 %v244, 16
  %v360 = vor.u32 %v357, %v358
  %v362 = vshrl.u32 %v245, 16
  %v364 = vrot.slane %v362, 7
  %v365 = vshll.u32 %v245, 16
  %v367 = vor.u32 %v364, %v365
  %v369 = vshrl.u32 %v246, 16
  %v371 = vrot.slane %v369, 7
  %v372 = vshll.u32 %v246, 16
  %v374 = vor.u32 %v371, %v372
  %v376 = vshrl.u32 %v247, 16
  %v378 = vrot.slane %v376, 7
  %v379 = vshll.u32 %v247, 16
  %v381 = vor.u32 %v378, %v379
  %v383 = vshrl.u32 %v248, 16
  %v385 = vrot.slane %v383, 7
  %v386 = vshll.u32 %v248, 16
  %v388 = vor.u32 %v385, %v386
  %v390 = vshrl.u32 %v249, 16
  %v392 = vrot.slane %v390, 7
  %v393 = vshll.u32 %v249, 16
  %v395 = vor.u32 %v392, %v393
  %v397 = vshrl.u32 %v250, 16
  %v399 = vrot.slane %v397, 7
  %v400 = vshll.u32 %v250, 16
  %v402 = vor.u32 %v399, %v400
  %v404 = vshrl.u32 %v251, 16
  %v406 = vrot.slane %v404, 7
  %v407 = vshll.u32 %v251, 16
  %v409 = vor.u32 %v406, %v407
  %v411 = vshrl.u32 %v252, 16
  %v413 = vrot.slane %v411, 7
  %v414 = vshll.u32 %v252, 16
  %v416 = vor.u32 %v413, %v414
  %v418 = vshrl.u32 %v253, 16
  %v420 = vrot.slane %v418, 7
  %v421 = vshll.u32 %v253, 16
  %v423 = vor.u32 %v420, %v421
  %v425 = vshrl.u32 %v254, 16
  %v427 = vrot.slane %v425, 7
  %v428 = vshll.u32 %v254, 16
  %v430 = vor.u32 %v427, %v428
  %v432 = vshrl.u32 %v255, 16
  %v434 = vrot.slane %v432, 7
  %v435 = vshll.u32 %v255, 16
  %v437 = vor.u32 %v434, %v435
  %v439 = vshrl.u32 %v256, 16
  %v441 = vrot.slane %v439, 7
  %v442 = vshll.u32 %v256, 16
  %v444 = vor.u32 %v441, %v442
  %v446 = vshrl.u32 %v257, 16
  %v448 = vrot.slane %v446, 7
  %v449 = vshll.u32 %v257, 16
  %v451 = vor.u32 %v448, %v449
  %v453 = vshrl.u32 %v258, 16
  %v455 = vrot.slane %v453, 7
  %v456 = vshll.u32 %v258, 16
  %v458 = vor.u32 %v455, %v456
  %v460 = vshrl.u32 %v259, 16
  %v462 = vrot.slane %v460, 7
  %v463 = vshll.u32 %v259, 16
  %v465 = vor.u32 %v462, %v463
  %v467 = vshrl.u32 %v260, 16
  %v469 = vrot.slane %v467, 7
  %v470 = vshll.u32 %v260, 16
  %v472 = vor.u32 %v469, %v470
  %v474 = vshrl.u32 %v261, 16
  %v476 = vrot.slane %v474, 7
  %v477 = vshll.u32 %v261, 16
  %v479 = vor.u32 %v476, %v477
  %v481 = vshrl.u32 %v262, 16
  %v483 = vrot.slane %v481, 7
  %v484 = vshll.u32 %v262, 16
  %v486 = vor.u32 %v483, %v484
  %vm551 = vcmask 1040384
  %vm552 = vsmask.f32 256
  %vm553 = vmand %vm551, %vm552
  %v554 = vsel %vm553, 0, %v269
  %v555 = vsel %vm553, 0, %v276
  %v556 = vsel %vm553, 0, %v283
  %v557 = vsel %vm553, 0, %v290
  %v558 = vsel %vm553, 0, %v297
  %v559 = vsel %vm553, 0, %v304
  %v560 = vsel %vm553, 0, %v311
  %v561 = vsel %vm553, 0, %v318
  %v562 = vsel %vm553, 0, %v325
  %v563 = vsel %vm553, 0, %v332
  %v564 = vsel %vm553, 0, %v339
  %v565 = vsel %vm553, 0, %v346
  %v566 = vsel %vm553, 0, %v353
  %v567 = vsel %vm553, 0, %v360
  %v568 = vsel %vm553, 0, %v367
  %v569 = vsel %vm553, 0, %v374
  %v570 = vsel %vm553, 0, %v381
  %v571 = vsel %vm553, 0, %v388
  %v572 = vsel %vm553, 0, %v395
  %v573 = vsel %vm553, 0, %v402
  %v574 = vsel %vm553, 0, %v409
  %v575 = vsel %vm553, 0, %v416
  %v576 = vsel %vm553, 0, %v423
  %v577 = vsel %vm553, 0, %v430
  %v578 = vsel %vm553, 0, %v437
  %v579 = vsel %vm553, 0, %v444
  %v580 = vsel %vm553, 0, %v451
  %v581 = vsel %vm553, 0, %v458
  %v582 = vsel %vm553, 0, %v465
  %v583 = vsel %vm553, 0, %v472
  %v584 = vsel %vm553, 0, %v479
  %v585 = vsel %vm553, 0, %v486
  %v586 = vsel %vm553, %v266, 0
  %v587 = vsel %vm553, %v273, 0
  %v588 = vsel %vm553, %v280, 0
  %v589 = vsel %vm553, %v287, 0
  %v590 = vsel %vm553, %v294, 0
  %v591 = vsel %vm553, %v301, 0
  %v592 = vsel %vm553, %v308, 0
  %v593 = vsel %vm553, %v315, 0
  %v594 = vsel %vm553, %v322, 0
  %v595 = vsel %vm553, %v329, 0
  %v596 = vsel %vm553, %v336, 0
  %v597 = vsel %vm553, %v343, 0
  %v598 = vsel %vm553, %v350, 0
  %v599 = vsel %vm553, %v357, 0
  %v600 = vsel %vm553, %v364, 0
  %v601 = vsel %vm553, %v371, 0
  %v602 = vsel %vm553, %v378, 0
  %v603 = vsel %vm553, %v385, 0
  %v604 = vsel %vm553, %v392, 0
  %v605 = vsel %vm553, %v399, 0
  %v606 = vsel %vm553, %v406, 0
  %v607 = vsel %vm553, %v413, 0
  %v608 = vsel %vm553, %v420, 0
  %v609 = vsel %vm553, %v427, 0
  %v610 = vsel %vm553, %v434, 0
  %v611 = vsel %vm553, %v441, 0
  %v612 = vsel %vm553, %v448, 0
  %v613 = vsel %vm553, %v455, 0
  %v614 = vsel %vm553, %v462, 0
  %v615 = vsel %vm553, %v469, 0
  %v616 = vsel %vm553, %v476, 0
  %v617 = vsel %vm553, %v483, 0
  %v618 = vld [vmem:[%s3] sm:$0xf]
  %v619 = vld [vmem:[%s3 + $0x4] sm:$0xf]
  %v620 = vld [vmem:[%s3 + $0x8] sm:$0xf]
  %v621 = vld [vmem:[%s3 + $0xc] sm:$0xf]
  %v622 = vld [vmem:[%s3 + $0x10] sm:$0xf]
  %v623 = vld [vmem:[%s3 + $0x14] sm:$0xf]
  %v624 = vld [vmem:[%s3 + $0x18] sm:$0xf]
  %v625 = vld [vmem:[%s3 + $0x1c] sm:$0xf]
  %vm626 = vsmask.f32 7424
  %v628 = vshrl.u32 0, 16
  %v630 = vshll.u32 0, 16
  %v632 = vrot.slane %v630, 1
  %v633 = vor.u32 %v628, %v632
  %v634 = vsel %vm626, %v633, %v632
  %v636 = vshrl.u32 %v555, 16
  %v638 = vshll.u32 %v555, 16
  %v640 = vrot.slane %v638, 1
  %v641 = vor.u32 %v636, %v640
  %v643 = vshll.u32 %v587, 16
  %v645 = vrot.slane %v643, 1
  %v646 = vsel %vm626, %v641, %v645
  %v648 = vshrl.u32 %v557, 16
  %v650 = vshll.u32 %v557, 16
  %v652 = vrot.slane %v650, 1
  %v653 = vor.u32 %v648, %v652
  %v655 = vshll.u32 %v589, 16
  %v657 = vrot.slane %v655, 1
  %v658 = vsel %vm626, %v653, %v657
  %v660 = vshrl.u32 %v559, 16
  %v662 = vshll.u32 %v559, 16
  %v664 = vrot.slane %v662, 1
  %v665 = vor.u32 %v660, %v664
  %v667 = vshll.u32 %v591, 16
  %v669 = vrot.slane %v667, 1
  %v670 = vsel %vm626, %v665, %v669
  %v672 = vshrl.u32 %v561, 16
  %v674 = vshll.u32 %v561, 16
  %v676 = vrot.slane %v674, 1
  %v677 = vor.u32 %v672, %v676
  %v679 = vshll.u32 %v593, 16
  %v681 = vrot.slane %v679, 1
  %v682 = vsel %vm626, %v677, %v681
  %v684 = vshrl.u32 %v563, 16
  %v686 = vshll.u32 %v563, 16
  %v688 = vrot.slane %v686, 1
  %v689 = vor.u32 %v684, %v688
  %v691 = vshll.u32 %v595, 16
  %v693 = vrot.slane %v691, 1
  %v694 = vsel %vm626, %v689, %v693
  %v696 = vshrl.u32 %v565, 16
  %v698 = vshll.u32 %v565, 16
  %v700 = vrot.slane %v698, 1
  %v701 = vor.u32 %v696, %v700
  %v703 = vshll.u32 %v597, 16
  %v705 = vrot.slane %v703, 1
  %v706 = vsel %vm626, %v701, %v705
  %v708 = vshrl.u32 %v567, 16
  %v710 = vshll.u32 %v567, 16
  %v712 = vrot.slane %v710, 1
  %v713 = vor.u32 %v708, %v712
  %v715 = vshll.u32 %v599, 16
  %v717 = vrot.slane %v715, 1
  %v718 = vsel %vm626, %v713, %v717
  %v720 = vshrl.u32 %v571, 16
  %v722 = vshll.u32 %v571, 16
  %v724 = vrot.slane %v722, 1
  %v725 = vor.u32 %v720, %v724
  %v727 = vshll.u32 %v603, 16
  %v729 = vrot.slane %v727, 1
  %v730 = vsel %vm626, %v725, %v729
  %v732 = vshrl.u32 %v573, 16
  %v734 = vshll.u32 %v573, 16
  %v736 = vrot.slane %v734, 1
  %v737 = vor.u32 %v732, %v736
  %v739 = vshll.u32 %v605, 16
  %v741 = vrot.slane %v739, 1
  %v742 = vsel %vm626, %v737, %v741
  %v744 = vshrl.u32 %v575, 16
  %v746 = vshll.u32 %v575, 16
  %v748 = vrot.slane %v746, 1
  %v749 = vor.u32 %v744, %v748
  %v751 = vshll.u32 %v607, 16
  %v753 = vrot.slane %v751, 1
  %v754 = vsel %vm626, %v749, %v753
  %v756 = vshrl.u32 %v577, 16
  %v758 = vshll.u32 %v577, 16
  %v760 = vrot.slane %v758, 1
  %v761 = vor.u32 %v756, %v760
  %v763 = vshll.u32 %v609, 16
  %v765 = vrot.slane %v763, 1
  %v766 = vsel %vm626, %v761, %v765
  %v768 = vshrl.u32 %v579, 16
  %v770 = vshll.u32 %v579, 16
  %v772 = vrot.slane %v770, 1
  %v773 = vor.u32 %v768, %v772
  %v775 = vshll.u32 %v611, 16
  %v777 = vrot.slane %v775, 1
  %v778 = vsel %vm626, %v773, %v777
  %v780 = vshrl.u32 %v581, 16
  %v782 = vshll.u32 %v581, 16
  %v784 = vrot.slane %v782, 1
  %v785 = vor.u32 %v780, %v784
  %v787 = vshll.u32 %v613, 16
  %v789 = vrot.slane %v787, 1
  %v790 = vsel %vm626, %v785, %v789
  %v792 = vshrl.u32 %v583, 16
  %v794 = vshll.u32 %v583, 16
  %v796 = vrot.slane %v794, 1
  %v797 = vor.u32 %v792, %v796
  %v799 = vshll.u32 %v615, 16
  %v801 = vrot.slane %v799, 1
  %v802 = vsel %vm626, %v797, %v801
  %s803 = scalar_lea.vmem %s3, 32
  %v804 = vld [vmem:[%s803] sm:$0xf]
  %v805 = vld [vmem:[%s803 + $0x4] sm:$0xf]
  %v806 = vld [vmem:[%s803 + $0x8] sm:$0xf]
  %v807 = vld [vmem:[%s803 + $0xc] sm:$0xf]
  %v808 = vld [vmem:[%s803 + $0x10] sm:$0xf]
  %v809 = vld [vmem:[%s803 + $0x14] sm:$0xf]
  %v810 = vld [vmem:[%s803 + $0x18] sm:$0xf]
  %v811 = vld [vmem:[%s803 + $0x1c] sm:$0xf]
  %v820 = vunpack.c.l.b16 %v804
  %v821 = vunpack.c.l.b16 %v805
  %v822 = vunpack.c.l.b16 %v806
  %v823 = vunpack.c.l.b16 %v807
  %v824 = vunpack.c.l.b16 %v808
  %v825 = vunpack.c.l.b16 %v809
  %v826 = vunpack.c.l.b16 %v810
  %v827 = vunpack.c.l.b16 %v811
  %v828 = vpack.c.b16 %v821, %v820
  %v829 = vpack.c.b16 %v823, %v822
  %v830 = vpack.c.b16 %v825, %v824
  %v831 = vpack.c.b16 %v827, %v826
  %vm836 = vcmask 523264
  %v838 = vsel %vm836, %v634, 0
  %v841 = vsel %vm836, %v646, 0
  %v844 = vsel %vm836, %v658, 0
  %v847 = vsel %vm836, %v670, 0
  %v850 = vsel %vm836, %v682, 0
  %v853 = vsel %vm836, %v694, 0
  %v856 = vsel %vm836, %v706, 0
  %v859 = vsel %vm836, %v718, 0
  %v862 = vsel %vm836, %v730, 0
  %v865 = vsel %vm836, %v742, 0
  %v868 = vsel %vm836, %v754, 0
  %v871 = vsel %vm836, %v766, 0
  %v874 = vsel %vm836, %v778, 0
  %v877 = vsel %vm836, %v790, 0
  %v880 = vsel %vm836, %v802, 0
  %882 = vmatprep.subr.bf16.mxu0 0
  %883 = vmatpush1.bf16.msra.mxu0 %v828
  %884 = vmatprep.subr.bf16.mxu0 0
  %885 = vmatpush1.bf16.msra.mxu0 %v829
  %886 = vmatprep.subr.bf16.mxu0 0
  %887 = vmatpush1.bf16.msra.mxu0 %v830
  %888 = vmatprep.subr.bf16.mxu0 0
  %889 = vmatpush1.bf16.msra.mxu0 %v831
  %890 = vmatprep.subr.bf16.mxu0 0
  %891 = vmatpush1.bf16.msra.mxu0 0
  %892 = vmatprep.subr.bf16.mxu0 0
  %893 = vmatpush1.bf16.msra.mxu0 0
  %894 = vmatprep.subr.bf16.mxu0 0
  %895 = vmatpush1.bf16.msra.mxu0 0
  %896 = vmatprep.subr.bf16.mxu0 0
  %897 = vmatpush1.bf16.msra.mxu0 0
  %898 = vmatprep.subr.bf16.mxu0 0
  %899 = vmatpush1.bf16.msra.mxu0 0
  %900 = vmatprep.subr.bf16.mxu0 0
  %901 = vmatpush1.bf16.msra.mxu0 0
  %902 = vmatprep.subr.bf16.mxu0 0
  %903 = vmatpush1.bf16.msra.mxu0 0
  %904 = vmatprep.subr.bf16.mxu0 0
  %905 = vmatpush1.bf16.msra.mxu0 0
  %906 = vmatprep.subr.bf16.mxu0 0
  %907 = vmatpush1.bf16.msra.mxu0 0
  %908 = vmatprep.subr.bf16.mxu0 0
  %909 = vmatpush1.bf16.msra.mxu0 0
  %910 = vmatprep.subr.bf16.mxu0 0
  %911 = vmatpush1.bf16.msra.mxu0 0
  %912 = vmatprep.subr.bf16.mxu0 0
  %913 = vmatpush1.bf16.msra.mxu0 0
  %914 = vmatprep.mubr.bf16.mxu0 0
  %915 = vmatmul.mubr.bf16.gmra.mrb[0].mxu0 %v838
  %v916 = vpop.f32.mrb[0].mxu0
  %v917 = vadd.f32 0.0, %v916
  %v918 = vpop.f32.mrb[0].mxu0
  %v919 = vpop.f32.mrb[0].mxu0
  %v920 = vadd.f32 0.0, %v919
  %v921 = vpop.f32.mrb[0].mxu0
  %922 = vmatprep.mubr.bf16.mxu0 0
  %923 = vmatmul.mubr.bf16.gmra.mrb[0].mxu0 %v841
  %v924 = vpop.f32.mrb[0].mxu0
  %v925 = vadd.f32 0.0, %v924
  %v926 = vpop.f32.mrb[0].mxu0
  %v927 = vpop.f32.mrb[0].mxu0
  %v928 = vadd.f32 0.0, %v927
  %v929 = vpop.f32.mrb[0].mxu0
  %930 = vmatprep.mubr.bf16.mxu0 0
  %931 = vmatmul.mubr.bf16.gmra.mrb[0].mxu0 %v844
  %v932 = vpop.f32.mrb[0].mxu0
  %v933 = vadd.f32 0.0, %v932
  %v934 = vpop.f32.mrb[0].mxu0
  %v935 = vpop.f32.mrb[0].mxu0
  %v936 = vadd.f32 0.0, %v935
  %v937 = vpop.f32.mrb[0].mxu0
  %938 = vmatprep.mubr.bf16.mxu0 0
  %939 = vmatmul.mubr.bf16.gmra.mrb[0].mxu0 %v847
  %v940 = vpop.f32.mrb[0].mxu0
  %v941 = vadd.f32 0.0, %v940
  %v942 = vpop.f32.mrb[0].mxu0
  %v943 = vpop.f32.mrb[0].mxu0
  %v944 = vadd.f32 0.0, %v943
  %v945 = vpop.f32.mrb[0].mxu0
  %946 = vmatprep.mubr.bf16.mxu0 0
  %947 = vmatmul.mubr.bf16.gmra.mrb[0].mxu0 %v850
  %v948 = vpop.f32.mrb[0].mxu0
  %v949 = vadd.f32 0.0, %v948
  %v950 = vpop.f32.mrb[0].mxu0
  %v951 = vpop.f32.mrb[0].mxu0
  %v952 = vadd.f32 0.0, %v951
  %v953 = vpop.f32.mrb[0].mxu0
  %954 = vmatprep.mubr.bf16.mxu0 0
  %955 = vmatmul.mubr.bf16.gmra.mrb[0].mxu0 %v853
  %v956 = vpop.f32.mrb[0].mxu0
  %v957 = vadd.f32 0.0, %v956
  %v958 = vpop.f32.mrb[0].mxu0
  %v959 = vpop.f32.mrb[0].mxu0
  %v960 = vadd.f32 0.0, %v959
  %v961 = vpop.f32.mrb[0].mxu0
  %962 = vmatprep.mubr.bf16.mxu0 0
  %963 = vmatmul.mubr.bf16.gmra.mrb[0].mxu0 %v856
  %v964 = vpop.f32.mrb[0].mxu0
  %v965 = vadd.f32 0.0, %v964
  %v966 = vpop.f32.mrb[0].mxu0
  %v967 = vpop.f32.mrb[0].mxu0
  %v968 = vadd.f32 0.0, %v967
  %v969 = vpop.f32.mrb[0].mxu0
  %970 = vmatprep.mubr.bf16.mxu0 0
  %971 = vmatmul.mubr.bf16.gmra.mrb[0].mxu0 %v859
  %v972 = vpop.f32.mrb[0].mxu0
  %v973 = vadd.f32 0.0, %v972
  %v974 = vpop.f32.mrb[0].mxu0
  %v975 = vpop.f32.mrb[0].mxu0
  %v976 = vadd.f32 0.0, %v975
  %v977 = vpop.f32.mrb[0].mxu0
  %978 = vmatprep.mubr.bf16.mxu0 0
  %979 = vmatmul.mubr.bf16.gmra.mrb[0].mxu0 %v838
  %v980 = vpop.f32.mrb[0].mxu0
  %v981 = vadd.f32 0.0, %v980
  %v982 = vpop.f32.mrb[0].mxu0
  %v983 = vpop.f32.mrb[0].mxu0
  %v984 = vadd.f32 0.0, %v983
  %v985 = vpop.f32.mrb[0].mxu0
  %986 = vmatprep.mubr.bf16.mxu0 0
  %987 = vmatmul.mubr.bf16.gmra.mrb[0].mxu0 %v862
  %v988 = vpop.f32.mrb[0].mxu0
  %v989 = vadd.f32 0.0, %v988
  %v990 = vpop.f32.mrb[0].mxu0
  %v991 = vpop.f32.mrb[0].mxu0
  %v992 = vadd.f32 0.0, %v991
  %v993 = vpop.f32.mrb[0].mxu0
  %994 = vmatprep.mubr.bf16.mxu0 0
  %995 = vmatmul.mubr.bf16.gmra.mrb[0].mxu0 %v865
  %v996 = vpop.f32.mrb[0].mxu0
  %v997 = vadd.f32 0.0, %v996
  %v998 = vpop.f32.mrb[0].mxu0
  %v999 = vpop.f32.mrb[0].mxu0
  %v1000 = vadd.f32 0.0, %v999
  %v1001 = vpop.f32.mrb[0].mxu0
  %1002 = vmatprep.mubr.bf16.mxu0 0
  %1003 = vmatmul.mubr.bf16.gmra.mrb[0].mxu0 %v868
  %v1004 = vpop.f32.mrb[0].mxu0
  %v1005 = vadd.f32 0.0, %v1004
  %v1006 = vpop.f32.mrb[0].mxu0
  %v1007 = vpop.f32.mrb[0].mxu0
  %v1008 = vadd.f32 0.0, %v1007
  %v1009 = vpop.f32.mrb[0].mxu0
  %1010 = vmatprep.mubr.bf16.mxu0 0
  %1011 = vmatmul.mubr.bf16.gmra.mrb[0].mxu0 %v871
  %v1012 = vpop.f32.mrb[0].mxu0
  %v1013 = vadd.f32 0.0, %v1012
  %v1014 = vpop.f32.mrb[0].mxu0
  %v1015 = vpop.f32.mrb[0].mxu0
  %v1016 = vadd.f32 0.0, %v1015
  %v1017 = vpop.f32.mrb[0].mxu0
  %1018 = vmatprep.mubr.bf16.mxu0 0
  %1019 = vmatmul.mubr.bf16.gmra.mrb[0].mxu0 %v874
  %v1020 = vpop.f32.mrb[0].mxu0
  %v1021 = vadd.f32 0.0, %v1020
  %v1022 = vpop.f32.mrb[0].mxu0
  %v1023 = vpop.f32.mrb[0].mxu0
  %v1024 = vadd.f32 0.0, %v1023
  %v1025 = vpop.f32.mrb[0].mxu0
  %1026 = vmatprep.mubr.bf16.mxu0 0
  %1027 = vmatmul.mubr.bf16.gmra.mrb[0].mxu0 %v877
  %v1028 = vpop.f32.mrb[0].mxu0
  %v1029 = vadd.f32 0.0, %v1028
  %v1030 = vpop.f32.mrb[0].mxu0
  %v1031 = vpop.f32.mrb[0].mxu0
  %v1032 = vadd.f32 0.0, %v1031
  %v1033 = vpop.f32.mrb[0].mxu0
  %1034 = vmatprep.mubr.bf16.mxu0 0
  %1035 = vmatmul.mubr.bf16.gmra.mrb[0].mxu0 %v880
  %v1036 = vpop.f32.mrb[0].mxu0
  %v1037 = vadd.f32 0.0, %v1036
  %v1038 = vpop.f32.mrb[0].mxu0
  %v1039 = vpop.f32.mrb[0].mxu0
  %v1040 = vadd.f32 0.0, %v1039
  %v1041 = vpop.f32.mrb[0].mxu0
  %1042 = vdwg.mxu0
  %v1051 = vunpack.c.l.b16 %v618
  %v1052 = vunpack.c.l.b16 %v619
  %v1053 = vunpack.c.l.b16 %v620
  %v1054 = vunpack.c.l.b16 %v621
  %v1055 = vunpack.c.l.b16 %v622
  %v1056 = vunpack.c.l.b16 %v623
  %v1057 = vunpack.c.l.b16 %v624
  %v1058 = vunpack.c.l.b16 %v625
  %v1059 = vpack.c.b16 %v1052, %v1051
  %v1060 = vpack.c.b16 %v1054, %v1053
  %v1061 = vpack.c.b16 %v1056, %v1055
  %v1062 = vpack.c.b16 %v1058, %v1057
  %v1067 = vsel %vm836, 0, 0
  %v1069 = vsel %vm836, %v555, 0
  %v1071 = vsel %vm836, %v557, 0
  %v1073 = vsel %vm836, %v559, 0
  %v1075 = vsel %vm836, %v561, 0
  %v1077 = vsel %vm836, %v563, 0
  %v1079 = vsel %vm836, %v565, 0
  %v1081 = vsel %vm836, %v567, 0
  %v1083 = vsel %vm836, %v571, 0
  %v1085 = vsel %vm836, %v573, 0
  %v1087 = vsel %vm836, %v575, 0
  %v1089 = vsel %vm836, %v577, 0
  %v1091 = vsel %vm836, %v579, 0
  %v1093 = vsel %vm836, %v581, 0
  %v1095 = vsel %vm836, %v583, 0
  %1097 = vmatprep.subr.bf16.mxu0 0
  %1098 = vmatpush1.bf16.msra.mxu0 %v1059
  %1099 = vmatprep.subr.bf16.mxu0 0
  %1100 = vmatpush1.bf16.msra.mxu0 %v1060
  %1101 = vmatprep.subr.bf16.mxu0 0
  %1102 = vmatpush1.bf16.msra.mxu0 %v1061
  %1103 = vmatprep.subr.bf16.mxu0 0
  %1104 = vmatpush1.bf16.msra.mxu0 %v1062
  %1105 = vmatprep.subr.bf16.mxu0 0
  %1106 = vmatpush1.bf16.msra.mxu0 0
  %1107 = vmatprep.subr.bf16.mxu0 0
  %1108 = vmatpush1.bf16.msra.mxu0 0
  %1109 = vmatprep.subr.bf16.mxu0 0
  %1110 = vmatpush1.bf16.msra.mxu0 0
  %1111 = vmatprep.subr.bf16.mxu0 0
  %1112 = vmatpush1.bf16.msra.mxu0 0
  %1113 = vmatprep.subr.bf16.mxu0 0
  %1114 = vmatpush1.bf16.msra.mxu0 0
  %1115 = vmatprep.subr.bf16.mxu0 0
  %1116 = vmatpush1.bf16.msra.mxu0 0
  %1117 = vmatprep.subr.bf16.mxu0 0
  %1118 = vmatpush1.bf16.msra.mxu0 0
  %1119 = vmatprep.subr.bf16.mxu0 0
  %1120 = vmatpush1.bf16.msra.mxu0 0
  %1121 = vmatprep.subr.bf16.mxu0 0
  %1122 = vmatpush1.bf16.msra.mxu0 0
  %1123 = vmatprep.subr.bf16.mxu0 0
  %1124 = vmatpush1.bf16.msra.mxu0 0
  %1125 = vmatprep.subr.bf16.mxu0 0
  %1126 = vmatpush1.bf16.msra.mxu0 0
  %1127 = vmatprep.subr.bf16.mxu0 0
  %1128 = vmatpush1.bf16.msra.mxu0 0
  %1129 = vmatprep.mubr.bf16.mxu0 0
  %1130 = vmatmul.mubr.bf16.gmra.mrb[0].mxu0 %v1067
  %v1131 = vpop.f32.mrb[0].mxu0
  %v1132 = vadd.f32 %v917, %v1131
  %v1133 = vpop.f32.mrb[0].mxu0
  %v1134 = vpop.f32.mrb[0].mxu0
  %v1135 = vadd.f32 %v920, %v1134
  %v1136 = vpop.f32.mrb[0].mxu0
  %1137 = vmatprep.mubr.bf16.mxu0 0
  %1138 = vmatmul.mubr.bf16.gmra.mrb[0].mxu0 %v1069
  %v1139 = vpop.f32.mrb[0].mxu0
  %v1140 = vadd.f32 %v925, %v1139
  %v1141 = vpop.f32.mrb[0].mxu0
  %v1142 = vpop.f32.mrb[0].mxu0
  %v1143 = vadd.f32 %v928, %v1142
  %v1144 = vpop.f32.mrb[0].mxu0
  %1145 = vmatprep.mubr.bf16.mxu0 0
  %1146 = vmatmul.mubr.bf16.gmra.mrb[0].mxu0 %v1071
  %v1147 = vpop.f32.mrb[0].mxu0
  %v1148 = vadd.f32 %v933, %v1147
  %v1149 = vpop.f32.mrb[0].mxu0
  %v1150 = vpop.f32.mrb[0].mxu0
  %v1151 = vadd.f32 %v936, %v1150
  %v1152 = vpop.f32.mrb[0].mxu0
  %1153 = vmatprep.mubr.bf16.mxu0 0
  %1154 = vmatmul.mubr.bf16.gmra.mrb[0].mxu0 %v1073
  %v1155 = vpop.f32.mrb[0].mxu0
  %v1156 = vadd.f32 %v941, %v1155
  %v1157 = vpop.f32.mrb[0].mxu0
  %v1158 = vpop.f32.mrb[0].mxu0
  %v1159 = vadd.f32 %v944, %v1158
  %v1160 = vpop.f32.mrb[0].mxu0
  %1161 = vmatprep.mubr.bf16.mxu0 0
  %1162 = vmatmul.mubr.bf16.gmra.mrb[0].mxu0 %v1075
  %v1163 = vpop.f32.mrb[0].mxu0
  %v1164 = vadd.f32 %v949, %v1163
  %v1165 = vpop.f32.mrb[0].mxu0
  %v1166 = vpop.f32.mrb[0].mxu0
  %v1167 = vadd.f32 %v952, %v1166
  %v1168 = vpop.f32.mrb[0].mxu0
  %1169 = vmatprep.mubr.bf16.mxu0 0
  %1170 = vmatmul.mubr.bf16.gmra.mrb[0].mxu0 %v1077
  %v1171 = vpop.f32.mrb[0].mxu0
  %v1172 = vadd.f32 %v957, %v1171
  %v1173 = vpop.f32.mrb[0].mxu0
  %v1174 = vpop.f32.mrb[0].mxu0
  %v1175 = vadd.f32 %v960, %v1174
  %v1176 = vpop.f32.mrb[0].mxu0
  %1177 = vmatprep.mubr.bf16.mxu0 0
  %1178 = vmatmul.mubr.bf16.gmra.mrb[0].mxu0 %v1079
  %v1179 = vpop.f32.mrb[0].mxu0
  %v1180 = vadd.f32 %v965, %v1179
  %v1181 = vpop.f32.mrb[0].mxu0
  %v1182 = vpop.f32.mrb[0].mxu0
  %v1183 = vadd.f32 %v968, %v1182
  %v1184 = vpop.f32.mrb[0].mxu0
  %1185 = vmatprep.mubr.bf16.mxu0 0
  %1186 = vmatmul.mubr.bf16.gmra.mrb[0].mxu0 %v1081
  %v1187 = vpop.f32.mrb[0].mxu0
  %v1188 = vadd.f32 %v973, %v1187
  %v1189 = vpop.f32.mrb[0].mxu0
  %v1190 = vpop.f32.mrb[0].mxu0
  %v1191 = vadd.f32 %v976, %v1190
  %v1192 = vpop.f32.mrb[0].mxu0
  %1193 = vmatprep.mubr.bf16.mxu0 0
  %1194 = vmatmul.mubr.bf16.gmra.mrb[0].mxu0 %v1067
  %v1195 = vpop.f32.mrb[0].mxu0
  %v1196 = vadd.f32 %v981, %v1195
  %v1197 = vpop.f32.mrb[0].mxu0
  %v1198 = vpop.f32.mrb[0].mxu0
  %v1199 = vadd.f32 %v984, %v1198
  %v1200 = vpop.f32.mrb[0].mxu0
  %1201 = vmatprep.mubr.bf16.mxu0 0
  %1202 = vmatmul.mubr.bf16.gmra.mrb[0].mxu0 %v1083
  %v1203 = vpop.f32.mrb[0].mxu0
  %v1204 = vadd.f32 %v989, %v1203
  %v1205 = vpop.f32.mrb[0].mxu0
  %v1206 = vpop.f32.mrb[0].mxu0
  %v1207 = vadd.f32 %v992, %v1206
  %v1208 = vpop.f32.mrb[0].mxu0
  %1209 = vmatprep.mubr.bf16.mxu0 0
  %1210 = vmatmul.mubr.bf16.gmra.mrb[0].mxu0 %v1085
  %v1211 = vpop.f32.mrb[0].mxu0
  %v1212 = vadd.f32 %v997, %v1211
  %v1213 = vpop.f32.mrb[0].mxu0
  %v1214 = vpop.f32.mrb[0].mxu0
  %v1215 = vadd.f32 %v1000, %v1214
  %v1216 = vpop.f32.mrb[0].mxu0
  %1217 = vmatprep.mubr.bf16.mxu0 0
  %1218 = vmatmul.mubr.bf16.gmra.mrb[0].mxu0 %v1087
  %v1219 = vpop.f32.mrb[0].mxu0
  %v1220 = vadd.f32 %v1005, %v1219
  %v1221 = vpop.f32.mrb[0].mxu0
  %v1222 = vpop.f32.mrb[0].mxu0
  %v1223 = vadd.f32 %v1008, %v1222
  %v1224 = vpop.f32.mrb[0].mxu0
  %1225 = vmatprep.mubr.bf16.mxu0 0
  %1226 = vmatmul.mubr.bf16.gmra.mrb[0].mxu0 %v1089
  %v1227 = vpop.f32.mrb[0].mxu0
  %v1228 = vadd.f32 %v1013, %v1227
  %v1229 = vpop.f32.mrb[0].mxu0
  %v1230 = vpop.f32.mrb[0].mxu0
  %v1231 = vadd.f32 %v1016, %v1230
  %v1232 = vpop.f32.mrb[0].mxu0
  %1233 = vmatprep.mubr.bf16.mxu0 0
  %1234 = vmatmul.mubr.bf16.gmra.mrb[0].mxu0 %v1091
  %v1235 = vpop.f32.mrb[0].mxu0
  %v1236 = vadd.f32 %v1021, %v1235
  %v1237 = vpop.f32.mrb[0].mxu0
  %v1238 = vpop.f32.mrb[0].mxu0
  %v1239 = vadd.f32 %v1024, %v1238
  %v1240 = vpop.f32.mrb[0].mxu0
  %1241 = vmatprep.mubr.bf16.mxu0 0
  %1242 = vmatmul.mubr.bf16.gmra.mrb[0].mxu0 %v1093
  %v1243 = vpop.f32.mrb[0].mxu0
  %v1244 = vadd.f32 %v1029, %v1243
  %v1245 = vpop.f32.mrb[0].mxu0
  %v1246 = vpop.f32.mrb[0].mxu0
  %v1247 = vadd.f32 %v1032, %v1246
  %v1248 = vpop.f32.mrb[0].mxu0
  %1249 = vmatprep.mubr.bf16.mxu0 0
  %1250 = vmatmul.mubr.bf16.gmra.mrb[0].mxu0 %v1095
  %v1251 = vpop.f32.mrb[0].mxu0
  %v1252 = vadd.f32 %v1037, %v1251
  %v1253 = vpop.f32.mrb[0].mxu0
  %v1254 = vpop.f32.mrb[0].mxu0
  %v1255 = vadd.f32 %v1040, %v1254
  %v1256 = vpop.f32.mrb[0].mxu0
  %1257 = vdwg.mxu0
  %vm1287 = vcmask 1046528
  %v1288 = vrot.slane 0, 1
  %v1289 = vsel %vm1287, %v1288, %v1288
  %v1290 = vrot.slane %v555, 1
  %v1291 = vrot.slane %v587, 1
  %v1292 = vsel %vm1287, %v1290, %v1291
  %v1293 = vrot.slane %v557, 1
  %v1294 = vrot.slane %v589, 1
  %v1295 = vsel %vm1287, %v1293, %v1294
  %v1296 = vrot.slane %v559, 1
  %v1297 = vrot.slane %v591, 1
  %v1298 = vsel %vm1287, %v1296, %v1297
  %v1299 = vrot.slane %v561, 1
  %v1300 = vrot.slane %v593, 1
  %v1301 = vsel %vm1287, %v1299, %v1300
  %v1302 = vrot.slane %v563, 1
  %v1303 = vrot.slane %v595, 1
  %v1304 = vsel %vm1287, %v1302, %v1303
  %v1305 = vrot.slane %v565, 1
  %v1306 = vrot.slane %v597, 1
  %v1307 = vsel %vm1287, %v1305, %v1306
  %v1308 = vrot.slane %v567, 1
  %v1309 = vrot.slane %v599, 1
  %v1310 = vsel %vm1287, %v1308, %v1309
  %v1311 = vrot.slane %v571, 1
  %v1312 = vrot.slane %v603, 1
  %v1313 = vsel %vm1287, %v1311, %v1312
  %v1314 = vrot.slane %v573, 1
  %v1315 = vrot.slane %v605, 1
  %v1316 = vsel %vm1287, %v1314, %v1315
  %v1317 = vrot.slane %v575, 1
  %v1318 = vrot.slane %v607, 1
  %v1319 = vsel %vm1287, %v1317, %v1318
  %v1320 = vrot.slane %v577, 1
  %v1321 = vrot.slane %v609, 1
  %v1322 = vsel %vm1287, %v1320, %v1321
  %v1323 = vrot.slane %v579, 1
  %v1324 = vrot.slane %v611, 1
  %v1325 = vsel %vm1287, %v1323, %v1324
  %v1326 = vrot.slane %v581, 1
  %v1327 = vrot.slane %v613, 1
  %v1328 = vsel %vm1287, %v1326, %v1327
  %v1329 = vrot.slane %v583, 1
  %v1330 = vrot.slane %v615, 1
  %v1331 = vsel %vm1287, %v1329, %v1330
  %s1332 = scalar_lea.vmem %s3, 64
  %v1333 = vld [vmem:[%s1332] sm:$0xf]
  %v1334 = vld [vmem:[%s1332 + $0x4] sm:$0xf]
  %v1335 = vld [vmem:[%s1332 + $0x8] sm:$0xf]
  %v1336 = vld [vmem:[%s1332 + $0xc] sm:$0xf]
  %v1337 = vld [vmem:[%s1332 + $0x10] sm:$0xf]
  %v1338 = vld [vmem:[%s1332 + $0x14] sm:$0xf]
  %v1339 = vld [vmem:[%s1332 + $0x18] sm:$0xf]
  %v1340 = vld [vmem:[%s1332 + $0x1c] sm:$0xf]
  %v1349 = vunpack.c.l.b16 %v1333
  %v1350 = vunpack.c.l.b16 %v1334
  %v1351 = vunpack.c.l.b16 %v1335
  %v1352 = vunpack.c.l.b16 %v1336
  %v1353 = vunpack.c.l.b16 %v1337
  %v1354 = vunpack.c.l.b16 %v1338
  %v1355 = vunpack.c.l.b16 %v1339
  %v1356 = vunpack.c.l.b16 %v1340
  %v1357 = vpack.c.b16 %v1350, %v1349
  %v1358 = vpack.c.b16 %v1352, %v1351
  %v1359 = vpack.c.b16 %v1354, %v1353
  %v1360 = vpack.c.b16 %v1356, %v1355
  %v1366 = vsel %vm836, %v1289, 0
  %v1369 = vsel %vm836, %v1292, 0
  %v1372 = vsel %vm836, %v1295, 0
  %v1375 = vsel %vm836, %v1298, 0
  %v1378 = vsel %vm836, %v1301, 0
  %v1381 = vsel %vm836, %v1304, 0
  %v1384 = vsel %vm836, %v1307, 0
  %v1387 = vsel %vm836, %v1310, 0
  %v1390 = vsel %vm836, %v1313, 0
  %v1393 = vsel %vm836, %v1316, 0
  %v1396 = vsel %vm836, %v1319, 0
  %v1399 = vsel %vm836, %v1322, 0
  %v1402 = vsel %vm836, %v1325, 0
  %v1405 = vsel %vm836, %v1328, 0
  %v1408 = vsel %vm836, %v1331, 0
  %1410 = vmatprep.subr.bf16.mxu0 0
  %1411 = vmatpush1.bf16.msra.mxu0 %v1357
  %1412 = vmatprep.subr.bf16.mxu0 0
  %1413 = vmatpush1.bf16.msra.mxu0 %v1358
  %1414 = vmatprep.subr.bf16.mxu0 0
  %1415 = vmatpush1.bf16.msra.mxu0 %v1359
  %1416 = vmatprep.subr.bf16.mxu0 0
  %1417 = vmatpush1.bf16.msra.mxu0 %v1360
  %1418 = vmatprep.subr.bf16.mxu0 0
  %1419 = vmatpush1.bf16.msra.mxu0 0
  %1420 = vmatprep.subr.bf16.mxu0 0
  %1421 = vmatpush1.bf16.msra.mxu0 0
  %1422 = vmatprep.subr.bf16.mxu0 0
  %1423 = vmatpush1.bf16.msra.mxu0 0
  %1424 = vmatprep.subr.bf16.mxu0 0
  %1425 = vmatpush1.bf16.msra.mxu0 0
  %1426 = vmatprep.subr.bf16.mxu0 0
  %1427 = vmatpush1.bf16.msra.mxu0 0
  %1428 = vmatprep.subr.bf16.mxu0 0
  %1429 = vmatpush1.bf16.msra.mxu0 0
  %1430 = vmatprep.subr.bf16.mxu0 0
  %1431 = vmatpush1.bf16.msra.mxu0 0
  %1432 = vmatprep.subr.bf16.mxu0 0
  %1433 = vmatpush1.bf16.msra.mxu0 0
  %1434 = vmatprep.subr.bf16.mxu0 0
  %1435 = vmatpush1.bf16.msra.mxu0 0
  %1436 = vmatprep.subr.bf16.mxu0 0
  %1437 = vmatpush1.bf16.msra.mxu0 0
  %1438 = vmatprep.subr.bf16.mxu0 0
  %1439 = vmatpush1.bf16.msra.mxu0 0
  %1440 = vmatprep.subr.bf16.mxu0 0
  %1441 = vmatpush1.bf16.msra.mxu0 0
  %1442 = vmatprep.mubr.bf16.mxu0 0
  %1443 = vmatmul.mubr.bf16.gmra.mrb[0].mxu0 %v1366
  %v1444 = vpop.f32.mrb[0].mxu0
  %v1445 = vadd.f32 0.0, %v1444
  %v1446 = vpop.f32.mrb[0].mxu0
  %v1447 = vpop.f32.mrb[0].mxu0
  %v1448 = vadd.f32 0.0, %v1447
  %v1449 = vpop.f32.mrb[0].mxu0
  %1450 = vmatprep.mubr.bf16.mxu0 0
  %1451 = vmatmul.mubr.bf16.gmra.mrb[0].mxu0 %v1369
  %v1452 = vpop.f32.mrb[0].mxu0
  %v1453 = vadd.f32 0.0, %v1452
  %v1454 = vpop.f32.mrb[0].mxu0
  %v1455 = vpop.f32.mrb[0].mxu0
  %v1456 = vadd.f32 0.0, %v1455
  %v1457 = vpop.f32.mrb[0].mxu0
  %1458 = vmatprep.mubr.bf16.mxu0 0
  %1459 = vmatmul.mubr.bf16.gmra.mrb[0].mxu0 %v1372
  %v1460 = vpop.f32.mrb[0].mxu0
  %v1461 = vadd.f32 0.0, %v1460
  %v1462 = vpop.f32.mrb[0].mxu0
  %v1463 = vpop.f32.mrb[0].mxu0
  %v1464 = vadd.f32 0.0, %v1463
  %v1465 = vpop.f32.mrb[0].mxu0
  %1466 = vmatprep.mubr.bf16.mxu0 0
  %1467 = vmatmul.mubr.bf16.gmra.mrb[0].mxu0 %v1375
  %v1468 = vpop.f32.mrb[0].mxu0
  %v1469 = vadd.f32 0.0, %v1468
  %v1470 = vpop.f32.mrb[0].mxu0
  %v1471 = vpop.f32.mrb[0].mxu0
  %v1472 = vadd.f32 0.0, %v1471
  %v1473 = vpop.f32.mrb[0].mxu0
  %1474 = vmatprep.mubr.bf16.mxu0 0
  %1475 = vmatmul.mubr.bf16.gmra.mrb[0].mxu0 %v1378
  %v1476 = vpop.f32.mrb[0].mxu0
  %v1477 = vadd.f32 0.0, %v1476
  %v1478 = vpop.f32.mrb[0].mxu0
  %v1479 = vpop.f32.mrb[0].mxu0
  %v1480 = vadd.f32 0.0, %v1479
  %v1481 = vpop.f32.mrb[0].mxu0
  %1482 = vmatprep.mubr.bf16.mxu0 0
  %1483 = vmatmul.mubr.bf16.gmra.mrb[0].mxu0 %v1381
  %v1484 = vpop.f32.mrb[0].mxu0
  %v1485 = vadd.f32 0.0, %v1484
  %v1486 = vpop.f32.mrb[0].mxu0
  %v1487 = vpop.f32.mrb[0].mxu0
  %v1488 = vadd.f32 0.0, %v1487
  %v1489 = vpop.f32.mrb[0].mxu0
  %1490 = vmatprep.mubr.bf16.mxu0 0
  %1491 = vmatmul.mubr.bf16.gmra.mrb[0].mxu0 %v1384
  %v1492 = vpop.f32.mrb[0].mxu0
  %v1493 = vadd.f32 0.0, %v1492
  %v1494 = vpop.f32.mrb[0].mxu0
  %v1495 = vpop.f32.mrb[0].mxu0
  %v1496 = vadd.f32 0.0, %v1495
  %v1497 = vpop.f32.mrb[0].mxu0
  %1498 = vmatprep.mubr.bf16.mxu0 0
  %1499 = vmatmul.mubr.bf16.gmra.mrb[0].mxu0 %v1387
  %v1500 = vpop.f32.mrb[0].mxu0
  %v1501 = vadd.f32 0.0, %v1500
  %v1502 = vpop.f32.mrb[0].mxu0
  %v1503 = vpop.f32.mrb[0].mxu0
  %v1504 = vadd.f32 0.0, %v1503
  %v1505 = vpop.f32.mrb[0].mxu0
  %1506 = vmatprep.mubr.bf16.mxu0 0
  %1507 = vmatmul.mubr.bf16.gmra.mrb[0].mxu0 %v1366
  %v1508 = vpop.f32.mrb[0].mxu0
  %v1509 = vadd.f32 0.0, %v1508
  %v1510 = vpop.f32.mrb[0].mxu0
  %v1511 = vpop.f32.mrb[0].mxu0
  %v1512 = vadd.f32 0.0, %v1511
  %v1513 = vpop.f32.mrb[0].mxu0
  %1514 = vmatprep.mubr.bf16.mxu0 0
  %1515 = vmatmul.mubr.bf16.gmra.mrb[0].mxu0 %v1390
  %v1516 = vpop.f32.mrb[0].mxu0
  %v1517 = vadd.f32 0.0, %v1516
  %v1518 = vpop.f32.mrb[0].mxu0
  %v1519 = vpop.f32.mrb[0].mxu0
  %v1520 = vadd.f32 0.0, %v1519
  %v1521 = vpop.f32.mrb[0].mxu0
  %1522 = vmatprep.mubr.bf16.mxu0 0
  %1523 = vmatmul.mubr.bf16.gmra.mrb[0].mxu0 %v1393
  %v1524 = vpop.f32.mrb[0].mxu0
  %v1525 = vadd.f32 0.0, %v1524
  %v1526 = vpop.f32.mrb[0].mxu0
  %v1527 = vpop.f32.mrb[0].mxu0
  %v1528 = vadd.f32 0.0, %v1527
  %v1529 = vpop.f32.mrb[0].mxu0
  %1530 = vmatprep.mubr.bf16.mxu0 0
  %1531 = vmatmul.mubr.bf16.gmra.mrb[0].mxu0 %v1396
  %v1532 = vpop.f32.mrb[0].mxu0
  %v1533 = vadd.f32 0.0, %v1532
  %v1534 = vpop.f32.mrb[0].mxu0
  %v1535 = vpop.f32.mrb[0].mxu0
  %v1536 = vadd.f32 0.0, %v1535
  %v1537 = vpop.f32.mrb[0].mxu0
  %1538 = vmatprep.mubr.bf16.mxu0 0
  %1539 = vmatmul.mubr.bf16.gmra.mrb[0].mxu0 %v1399
  %v1540 = vpop.f32.mrb[0].mxu0
  %v1541 = vadd.f32 0.0, %v1540
  %v1542 = vpop.f32.mrb[0].mxu0
  %v1543 = vpop.f32.mrb[0].mxu0
  %v1544 = vadd.f32 0.0, %v1543
  %v1545 = vpop.f32.mrb[0].mxu0
  %1546 = vmatprep.mubr.bf16.mxu0 0
  %1547 = vmatmul.mubr.bf16.gmra.mrb[0].mxu0 %v1402
  %v1548 = vpop.f32.mrb[0].mxu0
  %v1549 = vadd.f32 0.0, %v1548
  %v1550 = vpop.f32.mrb[0].mxu0
  %v1551 = vpop.f32.mrb[0].mxu0
  %v1552 = vadd.f32 0.0, %v1551
  %v1553 = vpop.f32.mrb[0].mxu0
  %1554 = vmatprep.mubr.bf16.mxu0 0
  %1555 = vmatmul.mubr.bf16.gmra.mrb[0].mxu0 %v1405
  %v1556 = vpop.f32.mrb[0].mxu0
  %v1557 = vadd.f32 0.0, %v1556
  %v1558 = vpop.f32.mrb[0].mxu0
  %v1559 = vpop.f32.mrb[0].mxu0
  %v1560 = vadd.f32 0.0, %v1559
  %v1561 = vpop.f32.mrb[0].mxu0
  %1562 = vmatprep.mubr.bf16.mxu0 0
  %1563 = vmatmul.mubr.bf16.gmra.mrb[0].mxu0 %v1408
  %v1564 = vpop.f32.mrb[0].mxu0
  %v1565 = vadd.f32 0.0, %v1564
  %v1566 = vpop.f32.mrb[0].mxu0
  %v1567 = vpop.f32.mrb[0].mxu0
  %v1568 = vadd.f32 0.0, %v1567
  %v1569 = vpop.f32.mrb[0].mxu0
  %1570 = vdwg.mxu0
  %v1571 = vadd.f32 %v1132, %v1445
  %v1572 = vadd.f32 %v1135, %v1448
  %v1573 = vadd.f32 %v1140, %v1453
  %v1574 = vadd.f32 %v1143, %v1456
  %v1575 = vadd.f32 %v1148, %v1461
  %v1576 = vadd.f32 %v1151, %v1464
  %v1577 = vadd.f32 %v1156, %v1469
  %v1578 = vadd.f32 %v1159, %v1472
  %v1579 = vadd.f32 %v1164, %v1477
  %v1580 = vadd.f32 %v1167, %v1480
  %v1581 = vadd.f32 %v1172, %v1485
  %v1582 = vadd.f32 %v1175, %v1488
  %v1583 = vadd.f32 %v1180, %v1493
  %v1584 = vadd.f32 %v1183, %v1496
  %v1585 = vadd.f32 %v1188, %v1501
  %v1586 = vadd.f32 %v1191, %v1504
  %v1587 = vadd.f32 %v1196, %v1509
  %v1588 = vadd.f32 %v1199, %v1512
  %v1589 = vadd.f32 %v1204, %v1517
  %v1590 = vadd.f32 %v1207, %v1520
  %v1591 = vadd.f32 %v1212, %v1525
  %v1592 = vadd.f32 %v1215, %v1528
  %v1593 = vadd.f32 %v1220, %v1533
  %v1594 = vadd.f32 %v1223, %v1536
  %v1595 = vadd.f32 %v1228, %v1541
  %v1596 = vadd.f32 %v1231, %v1544
  %v1597 = vadd.f32 %v1236, %v1549
  %v1598 = vadd.f32 %v1239, %v1552
  %v1599 = vadd.f32 %v1244, %v1557
  %v1600 = vadd.f32 %v1247, %v1560
  %v1601 = vadd.f32 %v1252, %v1565
  %v1602 = vadd.f32 %v1255, %v1568
  %s1603 = scalar_lea.vmem %s3, 96
  %v1604 = vld [vmem:[%s1603] sm:$0xf]
  %v1605 = vld [vmem:[%s1603 + $0x4] sm:$0xf]
  %v1606 = vld [vmem:[%s1603 + $0x8] sm:$0xf]
  %v1607 = vld [vmem:[%s1603 + $0xc] sm:$0xf]
  %v1608 = vld [vmem:[%s1603 + $0x10] sm:$0xf]
  %v1609 = vld [vmem:[%s1603 + $0x14] sm:$0xf]
  %v1610 = vld [vmem:[%s1603 + $0x18] sm:$0xf]
  %v1611 = vld [vmem:[%s1603 + $0x1c] sm:$0xf]
  %v1620 = vunpack.c.l.b16 %v1604
  %v1621 = vunpack.c.l.b16 %v1605
  %v1622 = vunpack.c.l.b16 %v1606
  %v1623 = vunpack.c.l.b16 %v1607
  %v1624 = vunpack.c.l.b16 %v1608
  %v1625 = vunpack.c.l.b16 %v1609
  %v1626 = vunpack.c.l.b16 %v1610
  %v1627 = vunpack.c.l.b16 %v1611
  %v1628 = vpack.c.b16 %v1621, %v1620
  %v1629 = vpack.c.b16 %v1623, %v1622
  %v1630 = vpack.c.b16 %v1625, %v1624
  %v1631 = vpack.c.b16 %v1627, %v1626
  %v1637 = vsel %vm836, %v554, 0
  %v1640 = vsel %vm836, %v556, 0
  %v1643 = vsel %vm836, %v558, 0
  %v1646 = vsel %vm836, %v560, 0
  %v1649 = vsel %vm836, %v562, 0
  %v1652 = vsel %vm836, %v564, 0
  %v1655 = vsel %vm836, %v566, 0
  %v1658 = vsel %vm836, %v568, 0
  %v1661 = vsel %vm836, %v570, 0
  %v1664 = vsel %vm836, %v572, 0
  %v1667 = vsel %vm836, %v574, 0
  %v1670 = vsel %vm836, %v576, 0
  %v1673 = vsel %vm836, %v578, 0
  %v1676 = vsel %vm836, %v580, 0
  %v1679 = vsel %vm836, %v582, 0
  %v1682 = vsel %vm836, %v584, 0
  %1684 = vmatprep.subr.bf16.mxu0 0
  %1685 = vmatpush1.bf16.msra.mxu0 %v1628
  %1686 = vmatprep.subr.bf16.mxu0 0
  %1687 = vmatpush1.bf16.msra.mxu0 %v1629
  %1688 = vmatprep.subr.bf16.mxu0 0
  %1689 = vmatpush1.bf16.msra.mxu0 %v1630
  %1690 = vmatprep.subr.bf16.mxu0 0
  %1691 = vmatpush1.bf16.msra.mxu0 %v1631
  %1692 = vmatprep.subr.bf16.mxu0 0
  %1693 = vmatpush1.bf16.msra.mxu0 0
  %1694 = vmatprep.subr.bf16.mxu0 0
  %1695 = vmatpush1.bf16.msra.mxu0 0
  %1696 = vmatprep.subr.bf16.mxu0 0
  %1697 = vmatpush1.bf16.msra.mxu0 0
  %1698 = vmatprep.subr.bf16.mxu0 0
  %1699 = vmatpush1.bf16.msra.mxu0 0
  %1700 = vmatprep.subr.bf16.mxu0 0
  %1701 = vmatpush1.bf16.msra.mxu0 0
  %1702 = vmatprep.subr.bf16.mxu0 0
  %1703 = vmatpush1.bf16.msra.mxu0 0
  %1704 = vmatprep.subr.bf16.mxu0 0
  %1705 = vmatpush1.bf16.msra.mxu0 0
  %1706 = vmatprep.subr.bf16.mxu0 0
  %1707 = vmatpush1.bf16.msra.mxu0 0
  %1708 = vmatprep.subr.bf16.mxu0 0
  %1709 = vmatpush1.bf16.msra.mxu0 0
  %1710 = vmatprep.subr.bf16.mxu0 0
  %1711 = vmatpush1.bf16.msra.mxu0 0
  %1712 = vmatprep.subr.bf16.mxu0 0
  %1713 = vmatpush1.bf16.msra.mxu0 0
  %1714 = vmatprep.subr.bf16.mxu0 0
  %1715 = vmatpush1.bf16.msra.mxu0 0
  %1716 = vmatprep.mubr.bf16.mxu0 0
  %1717 = vmatmul.mubr.bf16.gmra.mrb[0].mxu0 %v1637
  %v1718 = vpop.f32.mrb[0].mxu0
  %v1719 = vadd.f32 0.0, %v1718
  %v1720 = vpop.f32.mrb[0].mxu0
  %v1721 = vpop.f32.mrb[0].mxu0
  %v1722 = vadd.f32 0.0, %v1721
  %v1723 = vpop.f32.mrb[0].mxu0
  %1724 = vmatprep.mubr.bf16.mxu0 0
  %1725 = vmatmul.mubr.bf16.gmra.mrb[0].mxu0 %v1640
  %v1726 = vpop.f32.mrb[0].mxu0
  %v1727 = vadd.f32 0.0, %v1726
  %v1728 = vpop.f32.mrb[0].mxu0
  %v1729 = vpop.f32.mrb[0].mxu0
  %v1730 = vadd.f32 0.0, %v1729
  %v1731 = vpop.f32.mrb[0].mxu0
  %1732 = vmatprep.mubr.bf16.mxu0 0
  %1733 = vmatmul.mubr.bf16.gmra.mrb[0].mxu0 %v1643
  %v1734 = vpop.f32.mrb[0].mxu0
  %v1735 = vadd.f32 0.0, %v1734
  %v1736 = vpop.f32.mrb[0].mxu0
  %v1737 = vpop.f32.mrb[0].mxu0
  %v1738 = vadd.f32 0.0, %v1737
  %v1739 = vpop.f32.mrb[0].mxu0
  %1740 = vmatprep.mubr.bf16.mxu0 0
  %1741 = vmatmul.mubr.bf16.gmra.mrb[0].mxu0 %v1646
  %v1742 = vpop.f32.mrb[0].mxu0
  %v1743 = vadd.f32 0.0, %v1742
  %v1744 = vpop.f32.mrb[0].mxu0
  %v1745 = vpop.f32.mrb[0].mxu0
  %v1746 = vadd.f32 0.0, %v1745
  %v1747 = vpop.f32.mrb[0].mxu0
  %1748 = vmatprep.mubr.bf16.mxu0 0
  %1749 = vmatmul.mubr.bf16.gmra.mrb[0].mxu0 %v1649
  %v1750 = vpop.f32.mrb[0].mxu0
  %v1751 = vadd.f32 0.0, %v1750
  %v1752 = vpop.f32.mrb[0].mxu0
  %v1753 = vpop.f32.mrb[0].mxu0
  %v1754 = vadd.f32 0.0, %v1753
  %v1755 = vpop.f32.mrb[0].mxu0
  %1756 = vmatprep.mubr.bf16.mxu0 0
  %1757 = vmatmul.mubr.bf16.gmra.mrb[0].mxu0 %v1652
  %v1758 = vpop.f32.mrb[0].mxu0
  %v1759 = vadd.f32 0.0, %v1758
  %v1760 = vpop.f32.mrb[0].mxu0
  %v1761 = vpop.f32.mrb[0].mxu0
  %v1762 = vadd.f32 0.0, %v1761
  %v1763 = vpop.f32.mrb[0].mxu0
  %1764 = vmatprep.mubr.bf16.mxu0 0
  %1765 = vmatmul.mubr.bf16.gmra.mrb[0].mxu0 %v1655
  %v1766 = vpop.f32.mrb[0].mxu0
  %v1767 = vadd.f32 0.0, %v1766
  %v1768 = vpop.f32.mrb[0].mxu0
  %v1769 = vpop.f32.mrb[0].mxu0
  %v1770 = vadd.f32 0.0, %v1769
  %v1771 = vpop.f32.mrb[0].mxu0
  %1772 = vmatprep.mubr.bf16.mxu0 0
  %1773 = vmatmul.mubr.bf16.gmra.mrb[0].mxu0 %v1658
  %v1774 = vpop.f32.mrb[0].mxu0
  %v1775 = vadd.f32 0.0, %v1774
  %v1776 = vpop.f32.mrb[0].mxu0
  %v1777 = vpop.f32.mrb[0].mxu0
  %v1778 = vadd.f32 0.0, %v1777
  %v1779 = vpop.f32.mrb[0].mxu0
  %1780 = vmatprep.mubr.bf16.mxu0 0
  %1781 = vmatmul.mubr.bf16.gmra.mrb[0].mxu0 %v1661
  %v1782 = vpop.f32.mrb[0].mxu0
  %v1783 = vadd.f32 0.0, %v1782
  %v1784 = vpop.f32.mrb[0].mxu0
  %v1785 = vpop.f32.mrb[0].mxu0
  %v1786 = vadd.f32 0.0, %v1785
  %v1787 = vpop.f32.mrb[0].mxu0
  %1788 = vmatprep.mubr.bf16.mxu0 0
  %1789 = vmatmul.mubr.bf16.gmra.mrb[0].mxu0 %v1664
  %v1790 = vpop.f32.mrb[0].mxu0
  %v1791 = vadd.f32 0.0, %v1790
  %v1792 = vpop.f32.mrb[0].mxu0
  %v1793 = vpop.f32.mrb[0].mxu0
  %v1794 = vadd.f32 0.0, %v1793
  %v1795 = vpop.f32.mrb[0].mxu0
  %1796 = vmatprep.mubr.bf16.mxu0 0
  %1797 = vmatmul.mubr.bf16.gmra.mrb[0].mxu0 %v1667
  %v1798 = vpop.f32.mrb[0].mxu0
  %v1799 = vadd.f32 0.0, %v1798
  %v1800 = vpop.f32.mrb[0].mxu0
  %v1801 = vpop.f32.mrb[0].mxu0
  %v1802 = vadd.f32 0.0, %v1801
  %v1803 = vpop.f32.mrb[0].mxu0
  %1804 = vmatprep.mubr.bf16.mxu0 0
  %1805 = vmatmul.mubr.bf16.gmra.mrb[0].mxu0 %v1670
  %v1806 = vpop.f32.mrb[0].mxu0
  %v1807 = vadd.f32 0.0, %v1806
  %v1808 = vpop.f32.mrb[0].mxu0
  %v1809 = vpop.f32.mrb[0].mxu0
  %v1810 = vadd.f32 0.0, %v1809
  %v1811 = vpop.f32.mrb[0].mxu0
  %1812 = vmatprep.mubr.bf16.mxu0 0
  %1813 = vmatmul.mubr.bf16.gmra.mrb[0].mxu0 %v1673
  %v1814 = vpop.f32.mrb[0].mxu0
  %v1815 = vadd.f32 0.0, %v1814
  %v1816 = vpop.f32.mrb[0].mxu0
  %v1817 = vpop.f32.mrb[0].mxu0
  %v1818 = vadd.f32 0.0, %v1817
  %v1819 = vpop.f32.mrb[0].mxu0
  %1820 = vmatprep.mubr.bf16.mxu0 0
  %1821 = vmatmul.mubr.bf16.gmra.mrb[0].mxu0 %v1676
  %v1822 = vpop.f32.mrb[0].mxu0
  %v1823 = vadd.f32 0.0, %v1822
  %v1824 = vpop.f32.mrb[0].mxu0
  %v1825 = vpop.f32.mrb[0].mxu0
  %v1826 = vadd.f32 0.0, %v1825
  %v1827 = vpop.f32.mrb[0].mxu0
  %1828 = vmatprep.mubr.bf16.mxu0 0
  %1829 = vmatmul.mubr.bf16.gmra.mrb[0].mxu0 %v1679
  %v1830 = vpop.f32.mrb[0].mxu0
  %v1831 = vadd.f32 0.0, %v1830
  %v1832 = vpop.f32.mrb[0].mxu0
  %v1833 = vpop.f32.mrb[0].mxu0
  %v1834 = vadd.f32 0.0, %v1833
  %v1835 = vpop.f32.mrb[0].mxu0
  %1836 = vmatprep.mubr.bf16.mxu0 0
  %1837 = vmatmul.mubr.bf16.gmra.mrb[0].mxu0 %v1682
  %v1838 = vpop.f32.mrb[0].mxu0
  %v1839 = vadd.f32 0.0, %v1838
  %v1840 = vpop.f32.mrb[0].mxu0
  %v1841 = vpop.f32.mrb[0].mxu0
  %v1842 = vadd.f32 0.0, %v1841
  %v1843 = vpop.f32.mrb[0].mxu0
  %1844 = vdwg.mxu0
  %v1845 = vadd.f32 %v1571, %v1719
  %v1846 = vadd.f32 %v1572, %v1722
  %v1847 = vadd.f32 %v1573, %v1727
  %v1848 = vadd.f32 %v1574, %v1730
  %v1849 = vadd.f32 %v1575, %v1735
  %v1850 = vadd.f32 %v1576, %v1738
  %v1851 = vadd.f32 %v1577, %v1743
  %v1852 = vadd.f32 %v1578, %v1746
  %v1853 = vadd.f32 %v1579, %v1751
  %v1854 = vadd.f32 %v1580, %v1754
  %v1855 = vadd.f32 %v1581, %v1759
  %v1856 = vadd.f32 %v1582, %v1762
  %v1857 = vadd.f32 %v1583, %v1767
  %v1858 = vadd.f32 %v1584, %v1770
  %v1859 = vadd.f32 %v1585, %v1775
  %v1860 = vadd.f32 %v1586, %v1778
  %v1861 = vadd.f32 %v1587, %v1783
  %v1862 = vadd.f32 %v1588, %v1786
  %v1863 = vadd.f32 %v1589, %v1791
  %v1864 = vadd.f32 %v1590, %v1794
  %v1865 = vadd.f32 %v1591, %v1799
  %v1866 = vadd.f32 %v1592, %v1802
  %v1867 = vadd.f32 %v1593, %v1807
  %v1868 = vadd.f32 %v1594, %v1810
  %v1869 = vadd.f32 %v1595, %v1815
  %v1870 = vadd.f32 %v1596, %v1818
  %v1871 = vadd.f32 %v1597, %v1823
  %v1872 = vadd.f32 %v1598, %v1826
  %v1873 = vadd.f32 %v1599, %v1831
  %v1874 = vadd.f32 %v1600, %v1834
  %v1875 = vadd.f32 %v1601, %v1839
  %v1876 = vadd.f32 %v1602, %v1842
  %v1877 = vshrl.u32 %v554, 16
  %v1879 = vshll.u32 %v554, 16
  %v1881 = vrot.slane %v1879, 1
  %v1882 = vor.u32 %v1877, %v1881
  %v1884 = vshll.u32 %v586, 16
  %v1886 = vrot.slane %v1884, 1
  %v1887 = vsel %vm626, %v1882, %v1886
  %v1888 = vshrl.u32 %v556, 16
  %v1890 = vshll.u32 %v556, 16
  %v1892 = vrot.slane %v1890, 1
  %v1893 = vor.u32 %v1888, %v1892
  %v1895 = vshll.u32 %v588, 16
  %v1897 = vrot.slane %v1895, 1
  %v1898 = vsel %vm626, %v1893, %v1897
  %v1899 = vshrl.u32 %v558, 16
  %v1901 = vshll.u32 %v558, 16
  %v1903 = vrot.slane %v1901, 1
  %v1904 = vor.u32 %v1899, %v1903
  %v1906 = vshll.u32 %v590, 16
  %v1908 = vrot.slane %v1906, 1
  %v1909 = vsel %vm626, %v1904, %v1908
  %v1910 = vshrl.u32 %v560, 16
  %v1912 = vshll.u32 %v560, 16
  %v1914 = vrot.slane %v1912, 1
  %v1915 = vor.u32 %v1910, %v1914
  %v1917 = vshll.u32 %v592, 16
  %v1919 = vrot.slane %v1917, 1
  %v1920 = vsel %vm626, %v1915, %v1919
  %v1921 = vshrl.u32 %v562, 16
  %v1923 = vshll.u32 %v562, 16
  %v1925 = vrot.slane %v1923, 1
  %v1926 = vor.u32 %v1921, %v1925
  %v1928 = vshll.u32 %v594, 16
  %v1930 = vrot.slane %v1928, 1
  %v1931 = vsel %vm626, %v1926, %v1930
  %v1932 = vshrl.u32 %v564, 16
  %v1934 = vshll.u32 %v564, 16
  %v1936 = vrot.slane %v1934, 1
  %v1937 = vor.u32 %v1932, %v1936
  %v1939 = vshll.u32 %v596, 16
  %v1941 = vrot.slane %v1939, 1
  %v1942 = vsel %vm626, %v1937, %v1941
  %v1943 = vshrl.u32 %v566, 16
  %v1945 = vshll.u32 %v566, 16
  %v1947 = vrot.slane %v1945, 1
  %v1948 = vor.u32 %v1943, %v1947
  %v1950 = vshll.u32 %v598, 16
  %v1952 = vrot.slane %v1950, 1
  %v1953 = vsel %vm626, %v1948, %v1952
  %v1954 = vshrl.u32 %v568, 16
  %v1956 = vshll.u32 %v568, 16
  %v1958 = vrot.slane %v1956, 1
  %v1959 = vor.u32 %v1954, %v1958
  %v1961 = vshll.u32 %v600, 16
  %v1963 = vrot.slane %v1961, 1
  %v1964 = vsel %vm626, %v1959, %v1963
  %v1965 = vshrl.u32 %v570, 16
  %v1967 = vshll.u32 %v570, 16
  %v1969 = vrot.slane %v1967, 1
  %v1970 = vor.u32 %v1965, %v1969
  %v1972 = vshll.u32 %v602, 16
  %v1974 = vrot.slane %v1972, 1
  %v1975 = vsel %vm626, %v1970, %v1974
  %v1976 = vshrl.u32 %v572, 16
  %v1978 = vshll.u32 %v572, 16
  %v1980 = vrot.slane %v1978, 1
  %v1981 = vor.u32 %v1976, %v1980
  %v1983 = vshll.u32 %v604, 16
  %v1985 = vrot.slane %v1983, 1
  %v1986 = vsel %vm626, %v1981, %v1985
  %v1987 = vshrl.u32 %v574, 16
  %v1989 = vshll.u32 %v574, 16
  %v1991 = vrot.slane %v1989, 1
  %v1992 = vor.u32 %v1987, %v1991
  %v1994 = vshll.u32 %v606, 16
  %v1996 = vrot.slane %v1994, 1
  %v1997 = vsel %vm626, %v1992, %v1996
  %v1998 = vshrl.u32 %v576, 16
  %v2000 = vshll.u32 %v576, 16
  %v2002 = vrot.slane %v2000, 1
  %v2003 = vor.u32 %v1998, %v2002
  %v2005 = vshll.u32 %v608, 16
  %v2007 = vrot.slane %v2005, 1
  %v2008 = vsel %vm626, %v2003, %v2007
  %v2009 = vshrl.u32 %v578, 16
  %v2011 = vshll.u32 %v578, 16
  %v2013 = vrot.slane %v2011, 1
  %v2014 = vor.u32 %v2009, %v2013
  %v2016 = vshll.u32 %v610, 16
  %v2018 = vrot.slane %v2016, 1
  %v2019 = vsel %vm626, %v2014, %v2018
  %v2020 = vshrl.u32 %v580, 16
  %v2022 = vshll.u32 %v580, 16
  %v2024 = vrot.slane %v2022, 1
  %v2025 = vor.u32 %v2020, %v2024
  %v2027 = vshll.u32 %v612, 16
  %v2029 = vrot.slane %v2027, 1
  %v2030 = vsel %vm626, %v2025, %v2029
  %v2031 = vshrl.u32 %v582, 16
  %v2033 = vshll.u32 %v582, 16
  %v2035 = vrot.slane %v2033, 1
  %v2036 = vor.u32 %v2031, %v2035
  %v2038 = vshll.u32 %v614, 16
  %v2040 = vrot.slane %v2038, 1
  %v2041 = vsel %vm626, %v2036, %v2040
  %v2042 = vshrl.u32 %v584, 16
  %v2044 = vshll.u32 %v584, 16
  %v2046 = vrot.slane %v2044, 1
  %v2047 = vor.u32 %v2042, %v2046
  %v2049 = vshll.u32 %v616, 16
  %v2051 = vrot.slane %v2049, 1
  %v2052 = vsel %vm626, %v2047, %v2051
  %s2053 = scalar_lea.vmem %s3, 128
  %v2054 = vld [vmem:[%s2053] sm:$0xf]
  %v2055 = vld [vmem:[%s2053 + $0x4] sm:$0xf]
  %v2056 = vld [vmem:[%s2053 + $0x8] sm:$0xf]
  %v2057 = vld [vmem:[%s2053 + $0xc] sm:$0xf]
  %v2058 = vld [vmem:[%s2053 + $0x10] sm:$0xf]
  %v2059 = vld [vmem:[%s2053 + $0x14] sm:$0xf]
  %v2060 = vld [vmem:[%s2053 + $0x18] sm:$0xf]
  %v2061 = vld [vmem:[%s2053 + $0x1c] sm:$0xf]
  %v2070 = vunpack.c.l.b16 %v2054
  %v2071 = vunpack.c.l.b16 %v2055
  %v2072 = vunpack.c.l.b16 %v2056
  %v2073 = vunpack.c.l.b16 %v2057
  %v2074 = vunpack.c.l.b16 %v2058
  %v2075 = vunpack.c.l.b16 %v2059
  %v2076 = vunpack.c.l.b16 %v2060
  %v2077 = vunpack.c.l.b16 %v2061
  %v2078 = vpack.c.b16 %v2071, %v2070
  %v2079 = vpack.c.b16 %v2073, %v2072
  %v2080 = vpack.c.b16 %v2075, %v2074
  %v2081 = vpack.c.b16 %v2077, %v2076
  %v2087 = vsel %vm836, %v1887, 0
  %v2090 = vsel %vm836, %v1898, 0
  %v2093 = vsel %vm836, %v1909, 0
  %v2096 = vsel %vm836, %v1920, 0
  %v2099 = vsel %vm836, %v1931, 0
  %v2102 = vsel %vm836, %v1942, 0
  %v2105 = vsel %vm836, %v1953, 0
  %v2108 = vsel %vm836, %v1964, 0
  %v2111 = vsel %vm836, %v1975, 0
  %v2114 = vsel %vm836, %v1986, 0
  %v2117 = vsel %vm836, %v1997, 0
  %v2120 = vsel %vm836, %v2008, 0
  %v2123 = vsel %vm836, %v2019, 0
  %v2126 = vsel %vm836, %v2030, 0
  %v2129 = vsel %vm836, %v2041, 0
  %v2132 = vsel %vm836, %v2052, 0
  %2134 = vmatprep.subr.bf16.mxu0 0
  %2135 = vmatpush1.bf16.msra.mxu0 %v2078
  %2136 = vmatprep.subr.bf16.mxu0 0
  %2137 = vmatpush1.bf16.msra.mxu0 %v2079
  %2138 = vmatprep.subr.bf16.mxu0 0
  %2139 = vmatpush1.bf16.msra.mxu0 %v2080
  %2140 = vmatprep.subr.bf16.mxu0 0
  %2141 = vmatpush1.bf16.msra.mxu0 %v2081
  %2142 = vmatprep.subr.bf16.mxu0 0
  %2143 = vmatpush1.bf16.msra.mxu0 0
  %2144 = vmatprep.subr.bf16.mxu0 0
  %2145 = vmatpush1.bf16.msra.mxu0 0
  %2146 = vmatprep.subr.bf16.mxu0 0
  %2147 = vmatpush1.bf16.msra.mxu0 0
  %2148 = vmatprep.subr.bf16.mxu0 0
  %2149 = vmatpush1.bf16.msra.mxu0 0
  %2150 = vmatprep.subr.bf16.mxu0 0
  %2151 = vmatpush1.bf16.msra.mxu0 0
  %2152 = vmatprep.subr.bf16.mxu0 0
  %2153 = vmatpush1.bf16.msra.mxu0 0
  %2154 = vmatprep.subr.bf16.mxu0 0
  %2155 = vmatpush1.bf16.msra.mxu0 0
  %2156 = vmatprep.subr.bf16.mxu0 0
  %2157 = vmatpush1.bf16.msra.mxu0 0
  %2158 = vmatprep.subr.bf16.mxu0 0
  %2159 = vmatpush1.bf16.msra.mxu0 0
  %2160 = vmatprep.subr.bf16.mxu0 0
  %2161 = vmatpush1.bf16.msra.mxu0 0
  %2162 = vmatprep.subr.bf16.mxu0 0
  %2163 = vmatpush1.bf16.msra.mxu0 0
  %2164 = vmatprep.subr.bf16.mxu0 0
  %2165 = vmatpush1.bf16.msra.mxu0 0
  %2166 = vmatprep.mubr.bf16.mxu0 0
  %2167 = vmatmul.mubr.bf16.gmra.mrb[0].mxu0 %v2087
  %v2168 = vpop.f32.mrb[0].mxu0
  %v2169 = vadd.f32 0.0, %v2168
  %v2170 = vpop.f32.mrb[0].mxu0
  %v2171 = vpop.f32.mrb[0].mxu0
  %v2172 = vadd.f32 0.0, %v2171
  %v2173 = vpop.f32.mrb[0].mxu0
  %2174 = vmatprep.mubr.bf16.mxu0 0
  %2175 = vmatmul.mubr.bf16.gmra.mrb[0].mxu0 %v2090
  %v2176 = vpop.f32.mrb[0].mxu0
  %v2177 = vadd.f32 0.0, %v2176
  %v2178 = vpop.f32.mrb[0].mxu0
  %v2179 = vpop.f32.mrb[0].mxu0
  %v2180 = vadd.f32 0.0, %v2179
  %v2181 = vpop.f32.mrb[0].mxu0
  %2182 = vmatprep.mubr.bf16.mxu0 0
  %2183 = vmatmul.mubr.bf16.gmra.mrb[0].mxu0 %v2093
  %v2184 = vpop.f32.mrb[0].mxu0
  %v2185 = vadd.f32 0.0, %v2184
  %v2186 = vpop.f32.mrb[0].mxu0
  %v2187 = vpop.f32.mrb[0].mxu0
  %v2188 = vadd.f32 0.0, %v2187
  %v2189 = vpop.f32.mrb[0].mxu0
  %2190 = vmatprep.mubr.bf16.mxu0 0
  %2191 = vmatmul.mubr.bf16.gmra.mrb[0].mxu0 %v2096
  %v2192 = vpop.f32.mrb[0].mxu0
  %v2193 = vadd.f32 0.0, %v2192
  %v2194 = vpop.f32.mrb[0].mxu0
  %v2195 = vpop.f32.mrb[0].mxu0
  %v2196 = vadd.f32 0.0, %v2195
  %v2197 = vpop.f32.mrb[0].mxu0
  %2198 = vmatprep.mubr.bf16.mxu0 0
  %2199 = vmatmul.mubr.bf16.gmra.mrb[0].mxu0 %v2099
  %v2200 = vpop.f32.mrb[0].mxu0
  %v2201 = vadd.f32 0.0, %v2200
  %v2202 = vpop.f32.mrb[0].mxu0
  %v2203 = vpop.f32.mrb[0].mxu0
  %v2204 = vadd.f32 0.0, %v2203
  %v2205 = vpop.f32.mrb[0].mxu0
  %2206 = vmatprep.mubr.bf16.mxu0 0
  %2207 = vmatmul.mubr.bf16.gmra.mrb[0].mxu0 %v2102
  %v2208 = vpop.f32.mrb[0].mxu0
  %v2209 = vadd.f32 0.0, %v2208
  %v2210 = vpop.f32.mrb[0].mxu0
  %v2211 = vpop.f32.mrb[0].mxu0
  %v2212 = vadd.f32 0.0, %v2211
  %v2213 = vpop.f32.mrb[0].mxu0
  %2214 = vmatprep.mubr.bf16.mxu0 0
  %2215 = vmatmul.mubr.bf16.gmra.mrb[0].mxu0 %v2105
  %v2216 = vpop.f32.mrb[0].mxu0
  %v2217 = vadd.f32 0.0, %v2216
  %v2218 = vpop.f32.mrb[0].mxu0
  %v2219 = vpop.f32.mrb[0].mxu0
  %v2220 = vadd.f32 0.0, %v2219
  %v2221 = vpop.f32.mrb[0].mxu0
  %2222 = vmatprep.mubr.bf16.mxu0 0
  %2223 = vmatmul.mubr.bf16.gmra.mrb[0].mxu0 %v2108
  %v2224 = vpop.f32.mrb[0].mxu0
  %v2225 = vadd.f32 0.0, %v2224
  %v2226 = vpop.f32.mrb[0].mxu0
  %v2227 = vpop.f32.mrb[0].mxu0
  %v2228 = vadd.f32 0.0, %v2227
  %v2229 = vpop.f32.mrb[0].mxu0
  %2230 = vmatprep.mubr.bf16.mxu0 0
  %2231 = vmatmul.mubr.bf16.gmra.mrb[0].mxu0 %v2111
  %v2232 = vpop.f32.mrb[0].mxu0
  %v2233 = vadd.f32 0.0, %v2232
  %v2234 = vpop.f32.mrb[0].mxu0
  %v2235 = vpop.f32.mrb[0].mxu0
  %v2236 = vadd.f32 0.0, %v2235
  %v2237 = vpop.f32.mrb[0].mxu0
  %2238 = vmatprep.mubr.bf16.mxu0 0
  %2239 = vmatmul.mubr.bf16.gmra.mrb[0].mxu0 %v2114
  %v2240 = vpop.f32.mrb[0].mxu0
  %v2241 = vadd.f32 0.0, %v2240
  %v2242 = vpop.f32.mrb[0].mxu0
  %v2243 = vpop.f32.mrb[0].mxu0
  %v2244 = vadd.f32 0.0, %v2243
  %v2245 = vpop.f32.mrb[0].mxu0
  %2246 = vmatprep.mubr.bf16.mxu0 0
  %2247 = vmatmul.mubr.bf16.gmra.mrb[0].mxu0 %v2117
  %v2248 = vpop.f32.mrb[0].mxu0
  %v2249 = vadd.f32 0.0, %v2248
  %v2250 = vpop.f32.mrb[0].mxu0
  %v2251 = vpop.f32.mrb[0].mxu0
  %v2252 = vadd.f32 0.0, %v2251
  %v2253 = vpop.f32.mrb[0].mxu0
  %2254 = vmatprep.mubr.bf16.mxu0 0
  %2255 = vmatmul.mubr.bf16.gmra.mrb[0].mxu0 %v2120
  %v2256 = vpop.f32.mrb[0].mxu0
  %v2257 = vadd.f32 0.0, %v2256
  %v2258 = vpop.f32.mrb[0].mxu0
  %v2259 = vpop.f32.mrb[0].mxu0
  %v2260 = vadd.f32 0.0, %v2259
  %v2261 = vpop.f32.mrb[0].mxu0
  %2262 = vmatprep.mubr.bf16.mxu0 0
  %2263 = vmatmul.mubr.bf16.gmra.mrb[0].mxu0 %v2123
  %v2264 = vpop.f32.mrb[0].mxu0
  %v2265 = vadd.f32 0.0, %v2264
  %v2266 = vpop.f32.mrb[0].mxu0
  %v2267 = vpop.f32.mrb[0].mxu0
  %v2268 = vadd.f32 0.0, %v2267
  %v2269 = vpop.f32.mrb[0].mxu0
  %2270 = vmatprep.mubr.bf16.mxu0 0
  %2271 = vmatmul.mubr.bf16.gmra.mrb[0].mxu0 %v2126
  %v2272 = vpop.f32.mrb[0].mxu0
  %v2273 = vadd.f32 0.0, %v2272
  %v2274 = vpop.f32.mrb[0].mxu0
  %v2275 = vpop.f32.mrb[0].mxu0
  %v2276 = vadd.f32 0.0, %v2275
  %v2277 = vpop.f32.mrb[0].mxu0
  %2278 = vmatprep.mubr.bf16.mxu0 0
  %2279 = vmatmul.mubr.bf16.gmra.mrb[0].mxu0 %v2129
  %v2280 = vpop.f32.mrb[0].mxu0
  %v2281 = vadd.f32 0.0, %v2280
  %v2282 = vpop.f32.mrb[0].mxu0
  %v2283 = vpop.f32.mrb[0].mxu0
  %v2284 = vadd.f32 0.0, %v2283
  %v2285 = vpop.f32.mrb[0].mxu0
  %2286 = vmatprep.mubr.bf16.mxu0 0
  %2287 = vmatmul.mubr.bf16.gmra.mrb[0].mxu0 %v2132
  %v2288 = vpop.f32.mrb[0].mxu0
  %v2289 = vadd.f32 0.0, %v2288
  %v2290 = vpop.f32.mrb[0].mxu0
  %v2291 = vpop.f32.mrb[0].mxu0
  %v2292 = vadd.f32 0.0, %v2291
  %v2293 = vpop.f32.mrb[0].mxu0
  %2294 = vdwg.mxu0
  %v2295 = vadd.f32 %v1845, %v2169
  %v2296 = vadd.f32 %v1846, %v2172
  %v2297 = vadd.f32 %v1847, %v2177
  %v2298 = vadd.f32 %v1848, %v2180
  %v2299 = vadd.f32 %v1849, %v2185
  %v2300 = vadd.f32 %v1850, %v2188
  %v2301 = vadd.f32 %v1851, %v2193
  %v2302 = vadd.f32 %v1852, %v2196
  %v2303 = vadd.f32 %v1853, %v2201
  %v2304 = vadd.f32 %v1854, %v2204
  %v2305 = vadd.f32 %v1855, %v2209
  %v2306 = vadd.f32 %v1856, %v2212
  %v2307 = vadd.f32 %v1857, %v2217
  %v2308 = vadd.f32 %v1858, %v2220
  %v2309 = vadd.f32 %v1859, %v2225
  %v2310 = vadd.f32 %v1860, %v2228
  %v2311 = vadd.f32 %v1861, %v2233
  %v2312 = vadd.f32 %v1862, %v2236
  %v2313 = vadd.f32 %v1863, %v2241
  %v2314 = vadd.f32 %v1864, %v2244
  %v2315 = vadd.f32 %v1865, %v2249
  %v2316 = vadd.f32 %v1866, %v2252
  %v2317 = vadd.f32 %v1867, %v2257
  %v2318 = vadd.f32 %v1868, %v2260
  %v2319 = vadd.f32 %v1869, %v2265
  %v2320 = vadd.f32 %v1870, %v2268
  %v2321 = vadd.f32 %v1871, %v2273
  %v2322 = vadd.f32 %v1872, %v2276
  %v2323 = vadd.f32 %v1873, %v2281
  %v2324 = vadd.f32 %v1874, %v2284
  %v2325 = vadd.f32 %v1875, %v2289
  %v2326 = vadd.f32 %v1876, %v2292
  %v2359 = vrot.slane %v554, 1
  %v2360 = vrot.slane %v586, 1
  %v2361 = vsel %vm1287, %v2359, %v2360
  %v2362 = vrot.slane %v556, 1
  %v2363 = vrot.slane %v588, 1
  %v2364 = vsel %vm1287, %v2362, %v2363
  %v2365 = vrot.slane %v558, 1
  %v2366 = vrot.slane %v590, 1
  %v2367 = vsel %vm1287, %v2365, %v2366
  %v2368 = vrot.slane %v560, 1
  %v2369 = vrot.slane %v592, 1
  %v2370 = vsel %vm1287, %v2368, %v2369
  %v2371 = vrot.slane %v562, 1
  %v2372 = vrot.slane %v594, 1
  %v2373 = vsel %vm1287, %v2371, %v2372
  %v2374 = vrot.slane %v564, 1
  %v2375 = vrot.slane %v596, 1
  %v2376 = vsel %vm1287, %v2374, %v2375
  %v2377 = vrot.slane %v566, 1
  %v2378 = vrot.slane %v598, 1
  %v2379 = vsel %vm1287, %v2377, %v2378
  %v2380 = vrot.slane %v568, 1
  %v2381 = vrot.slane %v600, 1
  %v2382 = vsel %vm1287, %v2380, %v2381
  %v2383 = vrot.slane %v570, 1
  %v2384 = vrot.slane %v602, 1
  %v2385 = vsel %vm1287, %v2383, %v2384
  %v2386 = vrot.slane %v572, 1
  %v2387 = vrot.slane %v604, 1
  %v2388 = vsel %vm1287, %v2386, %v2387
  %v2389 = vrot.slane %v574, 1
  %v2390 = vrot.slane %v606, 1
  %v2391 = vsel %vm1287, %v2389, %v2390
  %v2392 = vrot.slane %v576, 1
  %v2393 = vrot.slane %v608, 1
  %v2394 = vsel %vm1287, %v2392, %v2393
  %v2395 = vrot.slane %v578, 1
  %v2396 = vrot.slane %v610, 1
  %v2397 = vsel %vm1287, %v2395, %v2396
  %v2398 = vrot.slane %v580, 1
  %v2399 = vrot.slane %v612, 1
  %v2400 = vsel %vm1287, %v2398, %v2399
  %v2401 = vrot.slane %v582, 1
  %v2402 = vrot.slane %v614, 1
  %v2403 = vsel %vm1287, %v2401, %v2402
  %v2404 = vrot.slane %v584, 1
  %v2405 = vrot.slane %v616, 1
  %v2406 = vsel %vm1287, %v2404, %v2405
  %s2407 = scalar_lea.vmem %s3, 160
  %v2408 = vld [vmem:[%s2407] sm:$0xf]
  %v2409 = vld [vmem:[%s2407 + $0x4] sm:$0xf]
  %v2410 = vld [vmem:[%s2407 + $0x8] sm:$0xf]
  %v2411 = vld [vmem:[%s2407 + $0xc] sm:$0xf]
  %v2412 = vld [vmem:[%s2407 + $0x10] sm:$0xf]
  %v2413 = vld [vmem:[%s2407 + $0x14] sm:$0xf]
  %v2414 = vld [vmem:[%s2407 + $0x18] sm:$0xf]
  %v2415 = vld [vmem:[%s2407 + $0x1c] sm:$0xf]
  %v2424 = vunpack.c.l.b16 %v2408
  %v2425 = vunpack.c.l.b16 %v2409
  %v2426 = vunpack.c.l.b16 %v2410
  %v2427 = vunpack.c.l.b16 %v2411
  %v2428 = vunpack.c.l.b16 %v2412
  %v2429 = vunpack.c.l.b16 %v2413
  %v2430 = vunpack.c.l.b16 %v2414
  %v2431 = vunpack.c.l.b16 %v2415
  %v2432 = vpack.c.b16 %v2425, %v2424
  %v2433 = vpack.c.b16 %v2427, %v2426
  %v2434 = vpack.c.b16 %v2429, %v2428
  %v2435 = vpack.c.b16 %v2431, %v2430
  %v2441 = vsel %vm836, %v2361, 0
  %v2444 = vsel %vm836, %v2364, 0
  %v2447 = vsel %vm836, %v2367, 0
  %v2450 = vsel %vm836, %v2370, 0
  %v2453 = vsel %vm836, %v2373, 0
  %v2456 = vsel %vm836, %v2376, 0
  %v2459 = vsel %vm836, %v2379, 0
  %v2462 = vsel %vm836, %v2382, 0
  %v2465 = vsel %vm836, %v2385, 0
  %v2468 = vsel %vm836, %v2388, 0
  %v2471 = vsel %vm836, %v2391, 0
  %v2474 = vsel %vm836, %v2394, 0
  %v2477 = vsel %vm836, %v2397, 0
  %v2480 = vsel %vm836, %v2400, 0
  %v2483 = vsel %vm836, %v2403, 0
  %v2486 = vsel %vm836, %v2406, 0
  %2488 = vmatprep.subr.bf16.mxu0 0
  %2489 = vmatpush1.bf16.msra.mxu0 %v2432
  %2490 = vmatprep.subr.bf16.mxu0 0
  %2491 = vmatpush1.bf16.msra.mxu0 %v2433
  %2492 = vmatprep.subr.bf16.mxu0 0
  %2493 = vmatpush1.bf16.msra.mxu0 %v2434
  %2494 = vmatprep.subr.bf16.mxu0 0
  %2495 = vmatpush1.bf16.msra.mxu0 %v2435
  %2496 = vmatprep.subr.bf16.mxu0 0
  %2497 = vmatpush1.bf16.msra.mxu0 0
  %2498 = vmatprep.subr.bf16.mxu0 0
  %2499 = vmatpush1.bf16.msra.mxu0 0
  %2500 = vmatprep.subr.bf16.mxu0 0
  %2501 = vmatpush1.bf16.msra.mxu0 0
  %2502 = vmatprep.subr.bf16.mxu0 0
  %2503 = vmatpush1.bf16.msra.mxu0 0
  %2504 = vmatprep.subr.bf16.mxu0 0
  %2505 = vmatpush1.bf16.msra.mxu0 0
  %2506 = vmatprep.subr.bf16.mxu0 0
  %2507 = vmatpush1.bf16.msra.mxu0 0
  %2508 = vmatprep.subr.bf16.mxu0 0
  %2509 = vmatpush1.bf16.msra.mxu0 0
  %2510 = vmatprep.subr.bf16.mxu0 0
  %2511 = vmatpush1.bf16.msra.mxu0 0
  %2512 = vmatprep.subr.bf16.mxu0 0
  %2513 = vmatpush1.bf16.msra.mxu0 0
  %2514 = vmatprep.subr.bf16.mxu0 0
  %2515 = vmatpush1.bf16.msra.mxu0 0
  %2516 = vmatprep.subr.bf16.mxu0 0
  %2517 = vmatpush1.bf16.msra.mxu0 0
  %2518 = vmatprep.subr.bf16.mxu0 0
  %2519 = vmatpush1.bf16.msra.mxu0 0
  %2520 = vmatprep.mubr.bf16.mxu0 0
  %2521 = vmatmul.mubr.bf16.gmra.mrb[0].mxu0 %v2441
  %v2522 = vpop.f32.mrb[0].mxu0
  %v2523 = vadd.f32 0.0, %v2522
  %v2524 = vpop.f32.mrb[0].mxu0
  %v2525 = vpop.f32.mrb[0].mxu0
  %v2526 = vadd.f32 0.0, %v2525
  %v2527 = vpop.f32.mrb[0].mxu0
  %2528 = vmatprep.mubr.bf16.mxu0 0
  %2529 = vmatmul.mubr.bf16.gmra.mrb[0].mxu0 %v2444
  %v2530 = vpop.f32.mrb[0].mxu0
  %v2531 = vadd.f32 0.0, %v2530
  %v2532 = vpop.f32.mrb[0].mxu0
  %v2533 = vpop.f32.mrb[0].mxu0
  %v2534 = vadd.f32 0.0, %v2533
  %v2535 = vpop.f32.mrb[0].mxu0
  %2536 = vmatprep.mubr.bf16.mxu0 0
  %2537 = vmatmul.mubr.bf16.gmra.mrb[0].mxu0 %v2447
  %v2538 = vpop.f32.mrb[0].mxu0
  %v2539 = vadd.f32 0.0, %v2538
  %v2540 = vpop.f32.mrb[0].mxu0
  %v2541 = vpop.f32.mrb[0].mxu0
  %v2542 = vadd.f32 0.0, %v2541
  %v2543 = vpop.f32.mrb[0].mxu0
  %2544 = vmatprep.mubr.bf16.mxu0 0
  %2545 = vmatmul.mubr.bf16.gmra.mrb[0].mxu0 %v2450
  %v2546 = vpop.f32.mrb[0].mxu0
  %v2547 = vadd.f32 0.0, %v2546
  %v2548 = vpop.f32.mrb[0].mxu0
  %v2549 = vpop.f32.mrb[0].mxu0
  %v2550 = vadd.f32 0.0, %v2549
  %v2551 = vpop.f32.mrb[0].mxu0
  %2552 = vmatprep.mubr.bf16.mxu0 0
  %2553 = vmatmul.mubr.bf16.gmra.mrb[0].mxu0 %v2453
  %v2554 = vpop.f32.mrb[0].mxu0
  %v2555 = vadd.f32 0.0, %v2554
  %v2556 = vpop.f32.mrb[0].mxu0
  %v2557 = vpop.f32.mrb[0].mxu0
  %v2558 = vadd.f32 0.0, %v2557
  %v2559 = vpop.f32.mrb[0].mxu0
  %2560 = vmatprep.mubr.bf16.mxu0 0
  %2561 = vmatmul.mubr.bf16.gmra.mrb[0].mxu0 %v2456
  %v2562 = vpop.f32.mrb[0].mxu0
  %v2563 = vadd.f32 0.0, %v2562
  %v2564 = vpop.f32.mrb[0].mxu0
  %v2565 = vpop.f32.mrb[0].mxu0
  %v2566 = vadd.f32 0.0, %v2565
  %v2567 = vpop.f32.mrb[0].mxu0
  %2568 = vmatprep.mubr.bf16.mxu0 0
  %2569 = vmatmul.mubr.bf16.gmra.mrb[0].mxu0 %v2459
  %v2570 = vpop.f32.mrb[0].mxu0
  %v2571 = vadd.f32 0.0, %v2570
  %v2572 = vpop.f32.mrb[0].mxu0
  %v2573 = vpop.f32.mrb[0].mxu0
  %v2574 = vadd.f32 0.0, %v2573
  %v2575 = vpop.f32.mrb[0].mxu0
  %2576 = vmatprep.mubr.bf16.mxu0 0
  %2577 = vmatmul.mubr.bf16.gmra.mrb[0].mxu0 %v2462
  %v2578 = vpop.f32.mrb[0].mxu0
  %v2579 = vadd.f32 0.0, %v2578
  %v2580 = vpop.f32.mrb[0].mxu0
  %v2581 = vpop.f32.mrb[0].mxu0
  %v2582 = vadd.f32 0.0, %v2581
  %v2583 = vpop.f32.mrb[0].mxu0
  %2584 = vmatprep.mubr.bf16.mxu0 0
  %2585 = vmatmul.mubr.bf16.gmra.mrb[0].mxu0 %v2465
  %v2586 = vpop.f32.mrb[0].mxu0
  %v2587 = vadd.f32 0.0, %v2586
  %v2588 = vpop.f32.mrb[0].mxu0
  %v2589 = vpop.f32.mrb[0].mxu0
  %v2590 = vadd.f32 0.0, %v2589
  %v2591 = vpop.f32.mrb[0].mxu0
  %2592 = vmatprep.mubr.bf16.mxu0 0
  %2593 = vmatmul.mubr.bf16.gmra.mrb[0].mxu0 %v2468
  %v2594 = vpop.f32.mrb[0].mxu0
  %v2595 = vadd.f32 0.0, %v2594
  %v2596 = vpop.f32.mrb[0].mxu0
  %v2597 = vpop.f32.mrb[0].mxu0
  %v2598 = vadd.f32 0.0, %v2597
  %v2599 = vpop.f32.mrb[0].mxu0
  %2600 = vmatprep.mubr.bf16.mxu0 0
  %2601 = vmatmul.mubr.bf16.gmra.mrb[0].mxu0 %v2471
  %v2602 = vpop.f32.mrb[0].mxu0
  %v2603 = vadd.f32 0.0, %v2602
  %v2604 = vpop.f32.mrb[0].mxu0
  %v2605 = vpop.f32.mrb[0].mxu0
  %v2606 = vadd.f32 0.0, %v2605
  %v2607 = vpop.f32.mrb[0].mxu0
  %2608 = vmatprep.mubr.bf16.mxu0 0
  %2609 = vmatmul.mubr.bf16.gmra.mrb[0].mxu0 %v2474
  %v2610 = vpop.f32.mrb[0].mxu0
  %v2611 = vadd.f32 0.0, %v2610
  %v2612 = vpop.f32.mrb[0].mxu0
  %v2613 = vpop.f32.mrb[0].mxu0
  %v2614 = vadd.f32 0.0, %v2613
  %v2615 = vpop.f32.mrb[0].mxu0
  %2616 = vmatprep.mubr.bf16.mxu0 0
  %2617 = vmatmul.mubr.bf16.gmra.mrb[0].mxu0 %v2477
  %v2618 = vpop.f32.mrb[0].mxu0
  %v2619 = vadd.f32 0.0, %v2618
  %v2620 = vpop.f32.mrb[0].mxu0
  %v2621 = vpop.f32.mrb[0].mxu0
  %v2622 = vadd.f32 0.0, %v2621
  %v2623 = vpop.f32.mrb[0].mxu0
  %2624 = vmatprep.mubr.bf16.mxu0 0
  %2625 = vmatmul.mubr.bf16.gmra.mrb[0].mxu0 %v2480
  %v2626 = vpop.f32.mrb[0].mxu0
  %v2627 = vadd.f32 0.0, %v2626
  %v2628 = vpop.f32.mrb[0].mxu0
  %v2629 = vpop.f32.mrb[0].mxu0
  %v2630 = vadd.f32 0.0, %v2629
  %v2631 = vpop.f32.mrb[0].mxu0
  %2632 = vmatprep.mubr.bf16.mxu0 0
  %2633 = vmatmul.mubr.bf16.gmra.mrb[0].mxu0 %v2483
  %v2634 = vpop.f32.mrb[0].mxu0
  %v2635 = vadd.f32 0.0, %v2634
  %v2636 = vpop.f32.mrb[0].mxu0
  %v2637 = vpop.f32.mrb[0].mxu0
  %v2638 = vadd.f32 0.0, %v2637
  %v2639 = vpop.f32.mrb[0].mxu0
  %2640 = vmatprep.mubr.bf16.mxu0 0
  %2641 = vmatmul.mubr.bf16.gmra.mrb[0].mxu0 %v2486
  %v2642 = vpop.f32.mrb[0].mxu0
  %v2643 = vadd.f32 0.0, %v2642
  %v2644 = vpop.f32.mrb[0].mxu0
  %v2645 = vpop.f32.mrb[0].mxu0
  %v2646 = vadd.f32 0.0, %v2645
  %v2647 = vpop.f32.mrb[0].mxu0
  %2648 = vdwg.mxu0
  %v2649 = vadd.f32 %v2295, %v2523
  %v2650 = vadd.f32 %v2296, %v2526
  %v2651 = vadd.f32 %v2297, %v2531
  %v2652 = vadd.f32 %v2298, %v2534
  %v2653 = vadd.f32 %v2299, %v2539
  %v2654 = vadd.f32 %v2300, %v2542
  %v2655 = vadd.f32 %v2301, %v2547
  %v2656 = vadd.f32 %v2302, %v2550
  %v2657 = vadd.f32 %v2303, %v2555
  %v2658 = vadd.f32 %v2304, %v2558
  %v2659 = vadd.f32 %v2305, %v2563
  %v2660 = vadd.f32 %v2306, %v2566
  %v2661 = vadd.f32 %v2307, %v2571
  %v2662 = vadd.f32 %v2308, %v2574
  %v2663 = vadd.f32 %v2309, %v2579
  %v2664 = vadd.f32 %v2310, %v2582
  %v2665 = vadd.f32 %v2311, %v2587
  %v2666 = vadd.f32 %v2312, %v2590
  %v2667 = vadd.f32 %v2313, %v2595
  %v2668 = vadd.f32 %v2314, %v2598
  %v2669 = vadd.f32 %v2315, %v2603
  %v2670 = vadd.f32 %v2316, %v2606
  %v2671 = vadd.f32 %v2317, %v2611
  %v2672 = vadd.f32 %v2318, %v2614
  %v2673 = vadd.f32 %v2319, %v2619
  %v2674 = vadd.f32 %v2320, %v2622
  %v2675 = vadd.f32 %v2321, %v2627
  %v2676 = vadd.f32 %v2322, %v2630
  %v2677 = vadd.f32 %v2323, %v2635
  %v2678 = vadd.f32 %v2324, %v2638
  %v2679 = vadd.f32 %v2325, %v2643
  %v2680 = vadd.f32 %v2326, %v2646
  %s2681 = scalar_lea.vmem %s3, 192
  %v2682 = vld [vmem:[%s2681] sm:$0xf]
  %v2683 = vld [vmem:[%s2681 + $0x4] sm:$0xf]
  %v2684 = vld [vmem:[%s2681 + $0x8] sm:$0xf]
  %v2685 = vld [vmem:[%s2681 + $0xc] sm:$0xf]
  %v2686 = vld [vmem:[%s2681 + $0x10] sm:$0xf]
  %v2687 = vld [vmem:[%s2681 + $0x14] sm:$0xf]
  %v2688 = vld [vmem:[%s2681 + $0x18] sm:$0xf]
  %v2689 = vld [vmem:[%s2681 + $0x1c] sm:$0xf]
  %v2698 = vunpack.c.l.b16 %v2682
  %v2699 = vunpack.c.l.b16 %v2683
  %v2700 = vunpack.c.l.b16 %v2684
  %v2701 = vunpack.c.l.b16 %v2685
  %v2702 = vunpack.c.l.b16 %v2686
  %v2703 = vunpack.c.l.b16 %v2687
  %v2704 = vunpack.c.l.b16 %v2688
  %v2705 = vunpack.c.l.b16 %v2689
  %v2706 = vpack.c.b16 %v2699, %v2698
  %v2707 = vpack.c.b16 %v2701, %v2700
  %v2708 = vpack.c.b16 %v2703, %v2702
  %v2709 = vpack.c.b16 %v2705, %v2704
  %v2715 = vsel %vm836, %v569, 0
  %v2718 = vsel %vm836, %v585, 0
  %2720 = vmatprep.subr.bf16.mxu0 0
  %2721 = vmatpush1.bf16.msra.mxu0 %v2706
  %2722 = vmatprep.subr.bf16.mxu0 0
  %2723 = vmatpush1.bf16.msra.mxu0 %v2707
  %2724 = vmatprep.subr.bf16.mxu0 0
  %2725 = vmatpush1.bf16.msra.mxu0 %v2708
  %2726 = vmatprep.subr.bf16.mxu0 0
  %2727 = vmatpush1.bf16.msra.mxu0 %v2709
  %2728 = vmatprep.subr.bf16.mxu0 0
  %2729 = vmatpush1.bf16.msra.mxu0 0
  %2730 = vmatprep.subr.bf16.mxu0 0
  %2731 = vmatpush1.bf16.msra.mxu0 0
  %2732 = vmatprep.subr.bf16.mxu0 0
  %2733 = vmatpush1.bf16.msra.mxu0 0
  %2734 = vmatprep.subr.bf16.mxu0 0
  %2735 = vmatpush1.bf16.msra.mxu0 0
  %2736 = vmatprep.subr.bf16.mxu0 0
  %2737 = vmatpush1.bf16.msra.mxu0 0
  %2738 = vmatprep.subr.bf16.mxu0 0
  %2739 = vmatpush1.bf16.msra.mxu0 0
  %2740 = vmatprep.subr.bf16.mxu0 0
  %2741 = vmatpush1.bf16.msra.mxu0 0
  %2742 = vmatprep.subr.bf16.mxu0 0
  %2743 = vmatpush1.bf16.msra.mxu0 0
  %2744 = vmatprep.subr.bf16.mxu0 0
  %2745 = vmatpush1.bf16.msra.mxu0 0
  %2746 = vmatprep.subr.bf16.mxu0 0
  %2747 = vmatpush1.bf16.msra.mxu0 0
  %2748 = vmatprep.subr.bf16.mxu0 0
  %2749 = vmatpush1.bf16.msra.mxu0 0
  %2750 = vmatprep.subr.bf16.mxu0 0
  %2751 = vmatpush1.bf16.msra.mxu0 0
  %2752 = vmatprep.mubr.bf16.mxu0 0
  %2753 = vmatmul.mubr.bf16.gmra.mrb[0].mxu0 %v1069
  %v2754 = vpop.f32.mrb[0].mxu0
  %v2755 = vadd.f32 0.0, %v2754
  %v2756 = vpop.f32.mrb[0].mxu0
  %v2757 = vpop.f32.mrb[0].mxu0
  %v2758 = vadd.f32 0.0, %v2757
  %v2759 = vpop.f32.mrb[0].mxu0
  %2760 = vmatprep.mubr.bf16.mxu0 0
  %2761 = vmatmul.mubr.bf16.gmra.mrb[0].mxu0 %v1071
  %v2762 = vpop.f32.mrb[0].mxu0
  %v2763 = vadd.f32 0.0, %v2762
  %v2764 = vpop.f32.mrb[0].mxu0
  %v2765 = vpop.f32.mrb[0].mxu0
  %v2766 = vadd.f32 0.0, %v2765
  %v2767 = vpop.f32.mrb[0].mxu0
  %2768 = vmatprep.mubr.bf16.mxu0 0
  %2769 = vmatmul.mubr.bf16.gmra.mrb[0].mxu0 %v1073
  %v2770 = vpop.f32.mrb[0].mxu0
  %v2771 = vadd.f32 0.0, %v2770
  %v2772 = vpop.f32.mrb[0].mxu0
  %v2773 = vpop.f32.mrb[0].mxu0
  %v2774 = vadd.f32 0.0, %v2773
  %v2775 = vpop.f32.mrb[0].mxu0
  %2776 = vmatprep.mubr.bf16.mxu0 0
  %2777 = vmatmul.mubr.bf16.gmra.mrb[0].mxu0 %v1075
  %v2778 = vpop.f32.mrb[0].mxu0
  %v2779 = vadd.f32 0.0, %v2778
  %v2780 = vpop.f32.mrb[0].mxu0
  %v2781 = vpop.f32.mrb[0].mxu0
  %v2782 = vadd.f32 0.0, %v2781
  %v2783 = vpop.f32.mrb[0].mxu0
  %2784 = vmatprep.mubr.bf16.mxu0 0
  %2785 = vmatmul.mubr.bf16.gmra.mrb[0].mxu0 %v1077
  %v2786 = vpop.f32.mrb[0].mxu0
  %v2787 = vadd.f32 0.0, %v2786
  %v2788 = vpop.f32.mrb[0].mxu0
  %v2789 = vpop.f32.mrb[0].mxu0
  %v2790 = vadd.f32 0.0, %v2789
  %v2791 = vpop.f32.mrb[0].mxu0
  %2792 = vmatprep.mubr.bf16.mxu0 0
  %2793 = vmatmul.mubr.bf16.gmra.mrb[0].mxu0 %v1079
  %v2794 = vpop.f32.mrb[0].mxu0
  %v2795 = vadd.f32 0.0, %v2794
  %v2796 = vpop.f32.mrb[0].mxu0
  %v2797 = vpop.f32.mrb[0].mxu0
  %v2798 = vadd.f32 0.0, %v2797
  %v2799 = vpop.f32.mrb[0].mxu0
  %2800 = vmatprep.mubr.bf16.mxu0 0
  %2801 = vmatmul.mubr.bf16.gmra.mrb[0].mxu0 %v1081
  %v2802 = vpop.f32.mrb[0].mxu0
  %v2803 = vadd.f32 0.0, %v2802
  %v2804 = vpop.f32.mrb[0].mxu0
  %v2805 = vpop.f32.mrb[0].mxu0
  %v2806 = vadd.f32 0.0, %v2805
  %v2807 = vpop.f32.mrb[0].mxu0
  %2808 = vmatprep.mubr.bf16.mxu0 0
  %2809 = vmatmul.mubr.bf16.gmra.mrb[0].mxu0 %v2715
  %v2810 = vpop.f32.mrb[0].mxu0
  %v2811 = vadd.f32 0.0, %v2810
  %v2812 = vpop.f32.mrb[0].mxu0
  %v2813 = vpop.f32.mrb[0].mxu0
  %v2814 = vadd.f32 0.0, %v2813
  %v2815 = vpop.f32.mrb[0].mxu0
  %2816 = vmatprep.mubr.bf16.mxu0 0
  %2817 = vmatmul.mubr.bf16.gmra.mrb[0].mxu0 %v1083
  %v2818 = vpop.f32.mrb[0].mxu0
  %v2819 = vadd.f32 0.0, %v2818
  %v2820 = vpop.f32.mrb[0].mxu0
  %v2821 = vpop.f32.mrb[0].mxu0
  %v2822 = vadd.f32 0.0, %v2821
  %v2823 = vpop.f32.mrb[0].mxu0
  %2824 = vmatprep.mubr.bf16.mxu0 0
  %2825 = vmatmul.mubr.bf16.gmra.mrb[0].mxu0 %v1085
  %v2826 = vpop.f32.mrb[0].mxu0
  %v2827 = vadd.f32 0.0, %v2826
  %v2828 = vpop.f32.mrb[0].mxu0
  %v2829 = vpop.f32.mrb[0].mxu0
  %v2830 = vadd.f32 0.0, %v2829
  %v2831 = vpop.f32.mrb[0].mxu0
  %2832 = vmatprep.mubr.bf16.mxu0 0
  %2833 = vmatmul.mubr.bf16.gmra.mrb[0].mxu0 %v1087
  %v2834 = vpop.f32.mrb[0].mxu0
  %v2835 = vadd.f32 0.0, %v2834
  %v2836 = vpop.f32.mrb[0].mxu0
  %v2837 = vpop.f32.mrb[0].mxu0
  %v2838 = vadd.f32 0.0, %v2837
  %v2839 = vpop.f32.mrb[0].mxu0
  %2840 = vmatprep.mubr.bf16.mxu0 0
  %2841 = vmatmul.mubr.bf16.gmra.mrb[0].mxu0 %v1089
  %v2842 = vpop.f32.mrb[0].mxu0
  %v2843 = vadd.f32 0.0, %v2842
  %v2844 = vpop.f32.mrb[0].mxu0
  %v2845 = vpop.f32.mrb[0].mxu0
  %v2846 = vadd.f32 0.0, %v2845
  %v2847 = vpop.f32.mrb[0].mxu0
  %2848 = vmatprep.mubr.bf16.mxu0 0
  %2849 = vmatmul.mubr.bf16.gmra.mrb[0].mxu0 %v1091
  %v2850 = vpop.f32.mrb[0].mxu0
  %v2851 = vadd.f32 0.0, %v2850
  %v2852 = vpop.f32.mrb[0].mxu0
  %v2853 = vpop.f32.mrb[0].mxu0
  %v2854 = vadd.f32 0.0, %v2853
  %v2855 = vpop.f32.mrb[0].mxu0
  %2856 = vmatprep.mubr.bf16.mxu0 0
  %2857 = vmatmul.mubr.bf16.gmra.mrb[0].mxu0 %v1093
  %v2858 = vpop.f32.mrb[0].mxu0
  %v2859 = vadd.f32 0.0, %v2858
  %v2860 = vpop.f32.mrb[0].mxu0
  %v2861 = vpop.f32.mrb[0].mxu0
  %v2862 = vadd.f32 0.0, %v2861
  %v2863 = vpop.f32.mrb[0].mxu0
  %2864 = vmatprep.mubr.bf16.mxu0 0
  %2865 = vmatmul.mubr.bf16.gmra.mrb[0].mxu0 %v1095
  %v2866 = vpop.f32.mrb[0].mxu0
  %v2867 = vadd.f32 0.0, %v2866
  %v2868 = vpop.f32.mrb[0].mxu0
  %v2869 = vpop.f32.mrb[0].mxu0
  %v2870 = vadd.f32 0.0, %v2869
  %v2871 = vpop.f32.mrb[0].mxu0
  %2872 = vmatprep.mubr.bf16.mxu0 0
  %2873 = vmatmul.mubr.bf16.gmra.mrb[0].mxu0 %v2718
  %v2874 = vpop.f32.mrb[0].mxu0
  %v2875 = vadd.f32 0.0, %v2874
  %v2876 = vpop.f32.mrb[0].mxu0
  %v2877 = vpop.f32.mrb[0].mxu0
  %v2878 = vadd.f32 0.0, %v2877
  %v2879 = vpop.f32.mrb[0].mxu0
  %2880 = vdwg.mxu0
  %v2881 = vadd.f32 %v2649, %v2755
  %v2882 = vadd.f32 %v2650, %v2758
  %v2883 = vadd.f32 %v2651, %v2763
  %v2884 = vadd.f32 %v2652, %v2766
  %v2885 = vadd.f32 %v2653, %v2771
  %v2886 = vadd.f32 %v2654, %v2774
  %v2887 = vadd.f32 %v2655, %v2779
  %v2888 = vadd.f32 %v2656, %v2782
  %v2889 = vadd.f32 %v2657, %v2787
  %v2890 = vadd.f32 %v2658, %v2790
  %v2891 = vadd.f32 %v2659, %v2795
  %v2892 = vadd.f32 %v2660, %v2798
  %v2893 = vadd.f32 %v2661, %v2803
  %v2894 = vadd.f32 %v2662, %v2806
  %v2895 = vadd.f32 %v2663, %v2811
  %v2896 = vadd.f32 %v2664, %v2814
  %v2897 = vadd.f32 %v2665, %v2819
  %v2898 = vadd.f32 %v2666, %v2822
  %v2899 = vadd.f32 %v2667, %v2827
  %v2900 = vadd.f32 %v2668, %v2830
  %v2901 = vadd.f32 %v2669, %v2835
  %v2902 = vadd.f32 %v2670, %v2838
  %v2903 = vadd.f32 %v2671, %v2843
  %v2904 = vadd.f32 %v2672, %v2846
  %v2905 = vadd.f32 %v2673, %v2851
  %v2906 = vadd.f32 %v2674, %v2854
  %v2907 = vadd.f32 %v2675, %v2859
  %v2908 = vadd.f32 %v2676, %v2862
  %v2909 = vadd.f32 %v2677, %v2867
  %v2910 = vadd.f32 %v2678, %v2870
  %v2911 = vadd.f32 %v2679, %v2875
  %v2912 = vadd.f32 %v2680, %v2878
  %v2913 = vshrl.u32 %v569, 16
  %v2915 = vshll.u32 %v569, 16
  %v2917 = vrot.slane %v2915, 1
  %v2918 = vor.u32 %v2913, %v2917
  %v2920 = vshll.u32 %v601, 16
  %v2922 = vrot.slane %v2920, 1
  %v2923 = vsel %vm626, %v2918, %v2922
  %v2924 = vshrl.u32 %v585, 16
  %v2926 = vshll.u32 %v585, 16
  %v2928 = vrot.slane %v2926, 1
  %v2929 = vor.u32 %v2924, %v2928
  %v2931 = vshll.u32 %v617, 16
  %v2933 = vrot.slane %v2931, 1
  %v2934 = vsel %vm626, %v2929, %v2933
  %s2935 = scalar_lea.vmem %s3, 224
  %v2936 = vld [vmem:[%s2935] sm:$0xf]
  %v2937 = vld [vmem:[%s2935 + $0x4] sm:$0xf]
  %v2938 = vld [vmem:[%s2935 + $0x8] sm:$0xf]
  %v2939 = vld [vmem:[%s2935 + $0xc] sm:$0xf]
  %v2940 = vld [vmem:[%s2935 + $0x10] sm:$0xf]
  %v2941 = vld [vmem:[%s2935 + $0x14] sm:$0xf]
  %v2942 = vld [vmem:[%s2935 + $0x18] sm:$0xf]
  %v2943 = vld [vmem:[%s2935 + $0x1c] sm:$0xf]
  %v2952 = vunpack.c.l.b16 %v2936
  %v2953 = vunpack.c.l.b16 %v2937
  %v2954 = vunpack.c.l.b16 %v2938
  %v2955 = vunpack.c.l.b16 %v2939
  %v2956 = vunpack.c.l.b16 %v2940
  %v2957 = vunpack.c.l.b16 %v2941
  %v2958 = vunpack.c.l.b16 %v2942
  %v2959 = vunpack.c.l.b16 %v2943
  %v2960 = vpack.c.b16 %v2953, %v2952
  %v2961 = vpack.c.b16 %v2955, %v2954
  %v2962 = vpack.c.b16 %v2957, %v2956
  %v2963 = vpack.c.b16 %v2959, %v2958
  %v2969 = vsel %vm836, %v2923, 0
  %v2972 = vsel %vm836, %v2934, 0
  %2974 = vmatprep.subr.bf16.mxu0 0
  %2975 = vmatpush1.bf16.msra.mxu0 %v2960
  %2976 = vmatprep.subr.bf16.mxu0 0
  %2977 = vmatpush1.bf16.msra.mxu0 %v2961
  %2978 = vmatprep.subr.bf16.mxu0 0
  %2979 = vmatpush1.bf16.msra.mxu0 %v2962
  %2980 = vmatprep.subr.bf16.mxu0 0
  %2981 = vmatpush1.bf16.msra.mxu0 %v2963
  %2982 = vmatprep.subr.bf16.mxu0 0
  %2983 = vmatpush1.bf16.msra.mxu0 0
  %2984 = vmatprep.subr.bf16.mxu0 0
  %2985 = vmatpush1.bf16.msra.mxu0 0
  %2986 = vmatprep.subr.bf16.mxu0 0
  %2987 = vmatpush1.bf16.msra.mxu0 0
  %2988 = vmatprep.subr.bf16.mxu0 0
  %2989 = vmatpush1.bf16.msra.mxu0 0
  %2990 = vmatprep.subr.bf16.mxu0 0
  %2991 = vmatpush1.bf16.msra.mxu0 0
  %2992 = vmatprep.subr.bf16.mxu0 0
  %2993 = vmatpush1.bf16.msra.mxu0 0
  %2994 = vmatprep.subr.bf16.mxu0 0
  %2995 = vmatpush1.bf16.msra.mxu0 0
  %2996 = vmatprep.subr.bf16.mxu0 0
  %2997 = vmatpush1.bf16.msra.mxu0 0
  %2998 = vmatprep.subr.bf16.mxu0 0
  %2999 = vmatpush1.bf16.msra.mxu0 0
  %3000 = vmatprep.subr.bf16.mxu0 0
  %3001 = vmatpush1.bf16.msra.mxu0 0
  %3002 = vmatprep.subr.bf16.mxu0 0
  %3003 = vmatpush1.bf16.msra.mxu0 0
  %3004 = vmatprep.subr.bf16.mxu0 0
  %3005 = vmatpush1.bf16.msra.mxu0 0
  %3006 = vmatprep.mubr.bf16.mxu0 0
  %3007 = vmatmul.mubr.bf16.gmra.mrb[0].mxu0 %v841
  %v3008 = vpop.f32.mrb[0].mxu0
  %v3009 = vadd.f32 0.0, %v3008
  %v3010 = vpop.f32.mrb[0].mxu0
  %v3011 = vpop.f32.mrb[0].mxu0
  %v3012 = vadd.f32 0.0, %v3011
  %v3013 = vpop.f32.mrb[0].mxu0
  %3014 = vmatprep.mubr.bf16.mxu0 0
  %3015 = vmatmul.mubr.bf16.gmra.mrb[0].mxu0 %v844
  %v3016 = vpop.f32.mrb[0].mxu0
  %v3017 = vadd.f32 0.0, %v3016
  %v3018 = vpop.f32.mrb[0].mxu0
  %v3019 = vpop.f32.mrb[0].mxu0
  %v3020 = vadd.f32 0.0, %v3019
  %v3021 = vpop.f32.mrb[0].mxu0
  %3022 = vmatprep.mubr.bf16.mxu0 0
  %3023 = vmatmul.mubr.bf16.gmra.mrb[0].mxu0 %v847
  %v3024 = vpop.f32.mrb[0].mxu0
  %v3025 = vadd.f32 0.0, %v3024
  %v3026 = vpop.f32.mrb[0].mxu0
  %v3027 = vpop.f32.mrb[0].mxu0
  %v3028 = vadd.f32 0.0, %v3027
  %v3029 = vpop.f32.mrb[0].mxu0
  %3030 = vmatprep.mubr.bf16.mxu0 0
  %3031 = vmatmul.mubr.bf16.gmra.mrb[0].mxu0 %v850
  %v3032 = vpop.f32.mrb[0].mxu0
  %v3033 = vadd.f32 0.0, %v3032
  %v3034 = vpop.f32.mrb[0].mxu0
  %v3035 = vpop.f32.mrb[0].mxu0
  %v3036 = vadd.f32 0.0, %v3035
  %v3037 = vpop.f32.mrb[0].mxu0
  %3038 = vmatprep.mubr.bf16.mxu0 0
  %3039 = vmatmul.mubr.bf16.gmra.mrb[0].mxu0 %v853
  %v3040 = vpop.f32.mrb[0].mxu0
  %v3041 = vadd.f32 0.0, %v3040
  %v3042 = vpop.f32.mrb[0].mxu0
  %v3043 = vpop.f32.mrb[0].mxu0
  %v3044 = vadd.f32 0.0, %v3043
  %v3045 = vpop.f32.mrb[0].mxu0
  %3046 = vmatprep.mubr.bf16.mxu0 0
  %3047 = vmatmul.mubr.bf16.gmra.mrb[0].mxu0 %v856
  %v3048 = vpop.f32.mrb[0].mxu0
  %v3049 = vadd.f32 0.0, %v3048
  %v3050 = vpop.f32.mrb[0].mxu0
  %v3051 = vpop.f32.mrb[0].mxu0
  %v3052 = vadd.f32 0.0, %v3051
  %v3053 = vpop.f32.mrb[0].mxu0
  %3054 = vmatprep.mubr.bf16.mxu0 0
  %3055 = vmatmul.mubr.bf16.gmra.mrb[0].mxu0 %v859
  %v3056 = vpop.f32.mrb[0].mxu0
  %v3057 = vadd.f32 0.0, %v3056
  %v3058 = vpop.f32.mrb[0].mxu0
  %v3059 = vpop.f32.mrb[0].mxu0
  %v3060 = vadd.f32 0.0, %v3059
  %v3061 = vpop.f32.mrb[0].mxu0
  %3062 = vmatprep.mubr.bf16.mxu0 0
  %3063 = vmatmul.mubr.bf16.gmra.mrb[0].mxu0 %v2969
  %v3064 = vpop.f32.mrb[0].mxu0
  %v3065 = vadd.f32 0.0, %v3064
  %v3066 = vpop.f32.mrb[0].mxu0
  %v3067 = vpop.f32.mrb[0].mxu0
  %v3068 = vadd.f32 0.0, %v3067
  %v3069 = vpop.f32.mrb[0].mxu0
  %3070 = vmatprep.mubr.bf16.mxu0 0
  %3071 = vmatmul.mubr.bf16.gmra.mrb[0].mxu0 %v862
  %v3072 = vpop.f32.mrb[0].mxu0
  %v3073 = vadd.f32 0.0, %v3072
  %v3074 = vpop.f32.mrb[0].mxu0
  %v3075 = vpop.f32.mrb[0].mxu0
  %v3076 = vadd.f32 0.0, %v3075
  %v3077 = vpop.f32.mrb[0].mxu0
  %3078 = vmatprep.mubr.bf16.mxu0 0
  %3079 = vmatmul.mubr.bf16.gmra.mrb[0].mxu0 %v865
  %v3080 = vpop.f32.mrb[0].mxu0
  %v3081 = vadd.f32 0.0, %v3080
  %v3082 = vpop.f32.mrb[0].mxu0
  %v3083 = vpop.f32.mrb[0].mxu0
  %v3084 = vadd.f32 0.0, %v3083
  %v3085 = vpop.f32.mrb[0].mxu0
  %3086 = vmatprep.mubr.bf16.mxu0 0
  %3087 = vmatmul.mubr.bf16.gmra.mrb[0].mxu0 %v868
  %v3088 = vpop.f32.mrb[0].mxu0
  %v3089 = vadd.f32 0.0, %v3088
  %v3090 = vpop.f32.mrb[0].mxu0
  %v3091 = vpop.f32.mrb[0].mxu0
  %v3092 = vadd.f32 0.0, %v3091
  %v3093 = vpop.f32.mrb[0].mxu0
  %3094 = vmatprep.mubr.bf16.mxu0 0
  %3095 = vmatmul.mubr.bf16.gmra.mrb[0].mxu0 %v871
  %v3096 = vpop.f32.mrb[0].mxu0
  %v3097 = vadd.f32 0.0, %v3096
  %v3098 = vpop.f32.mrb[0].mxu0
  %v3099 = vpop.f32.mrb[0].mxu0
  %v3100 = vadd.f32 0.0, %v3099
  %v3101 = vpop.f32.mrb[0].mxu0
  %3102 = vmatprep.mubr.bf16.mxu0 0
  %3103 = vmatmul.mubr.bf16.gmra.mrb[0].mxu0 %v874
  %v3104 = vpop.f32.mrb[0].mxu0
  %v3105 = vadd.f32 0.0, %v3104
  %v3106 = vpop.f32.mrb[0].mxu0
  %v3107 = vpop.f32.mrb[0].mxu0
  %v3108 = vadd.f32 0.0, %v3107
  %v3109 = vpop.f32.mrb[0].mxu0
  %3110 = vmatprep.mubr.bf16.mxu0 0
  %3111 = vmatmul.mubr.bf16.gmra.mrb[0].mxu0 %v877
  %v3112 = vpop.f32.mrb[0].mxu0
  %v3113 = vadd.f32 0.0, %v3112
  %v3114 = vpop.f32.mrb[0].mxu0
  %v3115 = vpop.f32.mrb[0].mxu0
  %v3116 = vadd.f32 0.0, %v3115
  %v3117 = vpop.f32.mrb[0].mxu0
  %3118 = vmatprep.mubr.bf16.mxu0 0
  %3119 = vmatmul.mubr.bf16.gmra.mrb[0].mxu0 %v880
  %v3120 = vpop.f32.mrb[0].mxu0
  %v3121 = vadd.f32 0.0, %v3120
  %v3122 = vpop.f32.mrb[0].mxu0
  %v3123 = vpop.f32.mrb[0].mxu0
  %v3124 = vadd.f32 0.0, %v3123
  %v3125 = vpop.f32.mrb[0].mxu0
  %3126 = vmatprep.mubr.bf16.mxu0 0
  %3127 = vmatmul.mubr.bf16.gmra.mrb[0].mxu0 %v2972
  %v3128 = vpop.f32.mrb[0].mxu0
  %v3129 = vadd.f32 0.0, %v3128
  %v3130 = vpop.f32.mrb[0].mxu0
  %v3131 = vpop.f32.mrb[0].mxu0
  %v3132 = vadd.f32 0.0, %v3131
  %v3133 = vpop.f32.mrb[0].mxu0
  %3134 = vdwg.mxu0
  %v3135 = vadd.f32 %v2881, %v3009
  %v3136 = vadd.f32 %v2882, %v3012
  %v3137 = vadd.f32 %v2883, %v3017
  %v3138 = vadd.f32 %v2884, %v3020
  %v3139 = vadd.f32 %v2885, %v3025
  %v3140 = vadd.f32 %v2886, %v3028
  %v3141 = vadd.f32 %v2887, %v3033
  %v3142 = vadd.f32 %v2888, %v3036
  %v3143 = vadd.f32 %v2889, %v3041
  %v3144 = vadd.f32 %v2890, %v3044
  %v3145 = vadd.f32 %v2891, %v3049
  %v3146 = vadd.f32 %v2892, %v3052
  %v3147 = vadd.f32 %v2893, %v3057
  %v3148 = vadd.f32 %v2894, %v3060
  %v3149 = vadd.f32 %v2895, %v3065
  %v3150 = vadd.f32 %v2896, %v3068
  %v3151 = vadd.f32 %v2897, %v3073
  %v3152 = vadd.f32 %v2898, %v3076
  %v3153 = vadd.f32 %v2899, %v3081
  %v3154 = vadd.f32 %v2900, %v3084
  %v3155 = vadd.f32 %v2901, %v3089
  %v3156 = vadd.f32 %v2902, %v3092
  %v3157 = vadd.f32 %v2903, %v3097
  %v3158 = vadd.f32 %v2904, %v3100
  %v3159 = vadd.f32 %v2905, %v3105
  %v3160 = vadd.f32 %v2906, %v3108
  %v3161 = vadd.f32 %v2907, %v3113
  %v3162 = vadd.f32 %v2908, %v3116
  %v3163 = vadd.f32 %v2909, %v3121
  %v3164 = vadd.f32 %v2910, %v3124
  %v3165 = vadd.f32 %v2911, %v3129
  %v3166 = vadd.f32 %v2912, %v3132
  %v3171 = vrot.slane %v569, 1
  %v3172 = vrot.slane %v601, 1
  %v3173 = vsel %vm1287, %v3171, %v3172
  %v3174 = vrot.slane %v585, 1
  %v3175 = vrot.slane %v617, 1
  %v3176 = vsel %vm1287, %v3174, %v3175
  %s3177 = scalar_lea.vmem %s3, 256
  %v3178 = vld [vmem:[%s3177] sm:$0xf]
  %v3179 = vld [vmem:[%s3177 + $0x4] sm:$0xf]
  %v3180 = vld [vmem:[%s3177 + $0x8] sm:$0xf]
  %v3181 = vld [vmem:[%s3177 + $0xc] sm:$0xf]
  %v3182 = vld [vmem:[%s3177 + $0x10] sm:$0xf]
  %v3183 = vld [vmem:[%s3177 + $0x14] sm:$0xf]
  %v3184 = vld [vmem:[%s3177 + $0x18] sm:$0xf]
  %v3185 = vld [vmem:[%s3177 + $0x1c] sm:$0xf]
  %v3194 = vunpack.c.l.b16 %v3178
  %v3195 = vunpack.c.l.b16 %v3179
  %v3196 = vunpack.c.l.b16 %v3180
  %v3197 = vunpack.c.l.b16 %v3181
  %v3198 = vunpack.c.l.b16 %v3182
  %v3199 = vunpack.c.l.b16 %v3183
  %v3200 = vunpack.c.l.b16 %v3184
  %v3201 = vunpack.c.l.b16 %v3185
  %v3202 = vpack.c.b16 %v3195, %v3194
  %v3203 = vpack.c.b16 %v3197, %v3196
  %v3204 = vpack.c.b16 %v3199, %v3198
  %v3205 = vpack.c.b16 %v3201, %v3200
  %v3211 = vsel %vm836, %v3173, 0
  %v3214 = vsel %vm836, %v3176, 0
  %3216 = vmatprep.subr.bf16.mxu0 0
  %3217 = vmatpush1.bf16.msra.mxu0 %v3202
  %3218 = vmatprep.subr.bf16.mxu0 0
  %3219 = vmatpush1.bf16.msra.mxu0 %v3203
  %3220 = vmatprep.subr.bf16.mxu0 0
  %3221 = vmatpush1.bf16.msra.mxu0 %v3204
  %3222 = vmatprep.subr.bf16.mxu0 0
  %3223 = vmatpush1.bf16.msra.mxu0 %v3205
  %3224 = vmatprep.subr.bf16.mxu0 0
  %3225 = vmatpush1.bf16.msra.mxu0 0
  %3226 = vmatprep.subr.bf16.mxu0 0
  %3227 = vmatpush1.bf16.msra.mxu0 0
  %3228 = vmatprep.subr.bf16.mxu0 0
  %3229 = vmatpush1.bf16.msra.mxu0 0
  %3230 = vmatprep.subr.bf16.mxu0 0
  %3231 = vmatpush1.bf16.msra.mxu0 0
  %3232 = vmatprep.subr.bf16.mxu0 0
  %3233 = vmatpush1.bf16.msra.mxu0 0
  %3234 = vmatprep.subr.bf16.mxu0 0
  %3235 = vmatpush1.bf16.msra.mxu0 0
  %3236 = vmatprep.subr.bf16.mxu0 0
  %3237 = vmatpush1.bf16.msra.mxu0 0
  %3238 = vmatprep.subr.bf16.mxu0 0
  %3239 = vmatpush1.bf16.msra.mxu0 0
  %3240 = vmatprep.subr.bf16.mxu0 0
  %3241 = vmatpush1.bf16.msra.mxu0 0
  %3242 = vmatprep.subr.bf16.mxu0 0
  %3243 = vmatpush1.bf16.msra.mxu0 0
  %3244 = vmatprep.subr.bf16.mxu0 0
  %3245 = vmatpush1.bf16.msra.mxu0 0
  %3246 = vmatprep.subr.bf16.mxu0 0
  %3247 = vmatpush1.bf16.msra.mxu0 0
  %3248 = vmatprep.mubr.bf16.mxu0 0
  %3249 = vmatmul.mubr.bf16.gmra.mrb[0].mxu0 %v1369
  %v3250 = vpop.f32.mrb[0].mxu0
  %v3251 = vadd.f32 0.0, %v3250
  %v3252 = vpop.f32.mrb[0].mxu0
  %v3253 = vpop.f32.mrb[0].mxu0
  %v3254 = vadd.f32 0.0, %v3253
  %v3255 = vpop.f32.mrb[0].mxu0
  %3256 = vmatprep.mubr.bf16.mxu0 0
  %3257 = vmatmul.mubr.bf16.gmra.mrb[0].mxu0 %v1372
  %v3258 = vpop.f32.mrb[0].mxu0
  %v3259 = vadd.f32 0.0, %v3258
  %v3260 = vpop.f32.mrb[0].mxu0
  %v3261 = vpop.f32.mrb[0].mxu0
  %v3262 = vadd.f32 0.0, %v3261
  %v3263 = vpop.f32.mrb[0].mxu0
  %3264 = vmatprep.mubr.bf16.mxu0 0
  %3265 = vmatmul.mubr.bf16.gmra.mrb[0].mxu0 %v1375
  %v3266 = vpop.f32.mrb[0].mxu0
  %v3267 = vadd.f32 0.0, %v3266
  %v3268 = vpop.f32.mrb[0].mxu0
  %v3269 = vpop.f32.mrb[0].mxu0
  %v3270 = vadd.f32 0.0, %v3269
  %v3271 = vpop.f32.mrb[0].mxu0
  %3272 = vmatprep.mubr.bf16.mxu0 0
  %3273 = vmatmul.mubr.bf16.gmra.mrb[0].mxu0 %v1378
  %v3274 = vpop.f32.mrb[0].mxu0
  %v3275 = vadd.f32 0.0, %v3274
  %v3276 = vpop.f32.mrb[0].mxu0
  %v3277 = vpop.f32.mrb[0].mxu0
  %v3278 = vadd.f32 0.0, %v3277
  %v3279 = vpop.f32.mrb[0].mxu0
  %3280 = vmatprep.mubr.bf16.mxu0 0
  %3281 = vmatmul.mubr.bf16.gmra.mrb[0].mxu0 %v1381
  %v3282 = vpop.f32.mrb[0].mxu0
  %v3283 = vadd.f32 0.0, %v3282
  %v3284 = vpop.f32.mrb[0].mxu0
  %v3285 = vpop.f32.mrb[0].mxu0
  %v3286 = vadd.f32 0.0, %v3285
  %v3287 = vpop.f32.mrb[0].mxu0
  %3288 = vmatprep.mubr.bf16.mxu0 0
  %3289 = vmatmul.mubr.bf16.gmra.mrb[0].mxu0 %v1384
  %v3290 = vpop.f32.mrb[0].mxu0
  %v3291 = vadd.f32 0.0, %v3290
  %v3292 = vpop.f32.mrb[0].mxu0
  %v3293 = vpop.f32.mrb[0].mxu0
  %v3294 = vadd.f32 0.0, %v3293
  %v3295 = vpop.f32.mrb[0].mxu0
  %3296 = vmatprep.mubr.bf16.mxu0 0
  %3297 = vmatmul.mubr.bf16.gmra.mrb[0].mxu0 %v1387
  %v3298 = vpop.f32.mrb[0].mxu0
  %v3299 = vadd.f32 0.0, %v3298
  %v3300 = vpop.f32.mrb[0].mxu0
  %v3301 = vpop.f32.mrb[0].mxu0
  %v3302 = vadd.f32 0.0, %v3301
  %v3303 = vpop.f32.mrb[0].mxu0
  %3304 = vmatprep.mubr.bf16.mxu0 0
  %3305 = vmatmul.mubr.bf16.gmra.mrb[0].mxu0 %v3211
  %v3306 = vpop.f32.mrb[0].mxu0
  %v3307 = vadd.f32 0.0, %v3306
  %v3308 = vpop.f32.mrb[0].mxu0
  %v3309 = vpop.f32.mrb[0].mxu0
  %v3310 = vadd.f32 0.0, %v3309
  %v3311 = vpop.f32.mrb[0].mxu0
  %3312 = vmatprep.mubr.bf16.mxu0 0
  %3313 = vmatmul.mubr.bf16.gmra.mrb[0].mxu0 %v1390
  %v3314 = vpop.f32.mrb[0].mxu0
  %v3315 = vadd.f32 0.0, %v3314
  %v3316 = vpop.f32.mrb[0].mxu0
  %v3317 = vpop.f32.mrb[0].mxu0
  %v3318 = vadd.f32 0.0, %v3317
  %v3319 = vpop.f32.mrb[0].mxu0
  %3320 = vmatprep.mubr.bf16.mxu0 0
  %3321 = vmatmul.mubr.bf16.gmra.mrb[0].mxu0 %v1393
  %v3322 = vpop.f32.mrb[0].mxu0
  %v3323 = vadd.f32 0.0, %v3322
  %v3324 = vpop.f32.mrb[0].mxu0
  %v3325 = vpop.f32.mrb[0].mxu0
  %v3326 = vadd.f32 0.0, %v3325
  %v3327 = vpop.f32.mrb[0].mxu0
  %3328 = vmatprep.mubr.bf16.mxu0 0
  %3329 = vmatmul.mubr.bf16.gmra.mrb[0].mxu0 %v1396
  %v3330 = vpop.f32.mrb[0].mxu0
  %v3331 = vadd.f32 0.0, %v3330
  %v3332 = vpop.f32.mrb[0].mxu0
  %v3333 = vpop.f32.mrb[0].mxu0
  %v3334 = vadd.f32 0.0, %v3333
  %v3335 = vpop.f32.mrb[0].mxu0
  %3336 = vmatprep.mubr.bf16.mxu0 0
  %3337 = vmatmul.mubr.bf16.gmra.mrb[0].mxu0 %v1399
  %v3338 = vpop.f32.mrb[0].mxu0
  %v3339 = vadd.f32 0.0, %v3338
  %v3340 = vpop.f32.mrb[0].mxu0
  %v3341 = vpop.f32.mrb[0].mxu0
  %v3342 = vadd.f32 0.0, %v3341
  %v3343 = vpop.f32.mrb[0].mxu0
  %3344 = vmatprep.mubr.bf16.mxu0 0
  %3345 = vmatmul.mubr.bf16.gmra.mrb[0].mxu0 %v1402
  %v3346 = vpop.f32.mrb[0].mxu0
  %v3347 = vadd.f32 0.0, %v3346
  %v3348 = vpop.f32.mrb[0].mxu0
  %v3349 = vpop.f32.mrb[0].mxu0
  %v3350 = vadd.f32 0.0, %v3349
  %v3351 = vpop.f32.mrb[0].mxu0
  %3352 = vmatprep.mubr.bf16.mxu0 0
  %3353 = vmatmul.mubr.bf16.gmra.mrb[0].mxu0 %v1405
  %v3354 = vpop.f32.mrb[0].mxu0
  %v3355 = vadd.f32 0.0, %v3354
  %v3356 = vpop.f32.mrb[0].mxu0
  %v3357 = vpop.f32.mrb[0].mxu0
  %v3358 = vadd.f32 0.0, %v3357
  %v3359 = vpop.f32.mrb[0].mxu0
  %3360 = vmatprep.mubr.bf16.mxu0 0
  %3361 = vmatmul.mubr.bf16.gmra.mrb[0].mxu0 %v1408
  %v3362 = vpop.f32.mrb[0].mxu0
  %v3363 = vadd.f32 0.0, %v3362
  %v3364 = vpop.f32.mrb[0].mxu0
  %v3365 = vpop.f32.mrb[0].mxu0
  %v3366 = vadd.f32 0.0, %v3365
  %v3367 = vpop.f32.mrb[0].mxu0
  %3368 = vmatprep.mubr.bf16.mxu0 0
  %3369 = vmatmul.mubr.bf16.gmra.mrb[0].mxu0 %v3214
  %v3370 = vpop.f32.mrb[0].mxu0
  %v3371 = vadd.f32 0.0, %v3370
  %v3372 = vpop.f32.mrb[0].mxu0
  %v3373 = vpop.f32.mrb[0].mxu0
  %v3374 = vadd.f32 0.0, %v3373
  %v3375 = vpop.f32.mrb[0].mxu0
  %3376 = vdwg.mxu0
  %v3377 = vadd.f32 %v3135, %v3251
  %v3378 = vadd.f32 %v3136, %v3254
  %v3379 = vadd.f32 %v3137, %v3259
  %v3380 = vadd.f32 %v3138, %v3262
  %v3381 = vadd.f32 %v3139, %v3267
  %v3382 = vadd.f32 %v3140, %v3270
  %v3383 = vadd.f32 %v3141, %v3275
  %v3384 = vadd.f32 %v3142, %v3278
  %v3385 = vadd.f32 %v3143, %v3283
  %v3386 = vadd.f32 %v3144, %v3286
  %v3387 = vadd.f32 %v3145, %v3291
  %v3388 = vadd.f32 %v3146, %v3294
  %v3389 = vadd.f32 %v3147, %v3299
  %v3390 = vadd.f32 %v3148, %v3302
  %v3391 = vadd.f32 %v3149, %v3307
  %v3392 = vadd.f32 %v3150, %v3310
  %v3393 = vadd.f32 %v3151, %v3315
  %v3394 = vadd.f32 %v3152, %v3318
  %v3395 = vadd.f32 %v3153, %v3323
  %v3396 = vadd.f32 %v3154, %v3326
  %v3397 = vadd.f32 %v3155, %v3331
  %v3398 = vadd.f32 %v3156, %v3334
  %v3399 = vadd.f32 %v3157, %v3339
  %v3400 = vadd.f32 %v3158, %v3342
  %v3401 = vadd.f32 %v3159, %v3347
  %v3402 = vadd.f32 %v3160, %v3350
  %v3403 = vadd.f32 %v3161, %v3355
  %v3404 = vadd.f32 %v3162, %v3358
  %v3405 = vadd.f32 %v3163, %v3363
  %v3406 = vadd.f32 %v3164, %v3366
  %v3407 = vadd.f32 %v3165, %v3371
  %v3408 = vadd.f32 %v3166, %v3374
  %s3409 = scalar_lea.vmem %s3, 288
  %v3410 = vld [vmem:[%s3409] sm:$0xf]
  %v3411 = vld [vmem:[%s3409 + $0x4] sm:$0xf]
  %v3412 = vld [vmem:[%s3409 + $0x8] sm:$0xf]
  %v3413 = vld [vmem:[%s3409 + $0xc] sm:$0xf]
  %v3414 = vld [vmem:[%s3409 + $0x10] sm:$0xf]
  %v3415 = vld [vmem:[%s3409 + $0x14] sm:$0xf]
  %v3416 = vld [vmem:[%s3409 + $0x18] sm:$0xf]
  %v3417 = vld [vmem:[%s3409 + $0x1c] sm:$0xf]
  %v3426 = vunpack.c.l.b16 %v3410
  %v3427 = vunpack.c.l.b16 %v3411
  %v3428 = vunpack.c.l.b16 %v3412
  %v3429 = vunpack.c.l.b16 %v3413
  %v3430 = vunpack.c.l.b16 %v3414
  %v3431 = vunpack.c.l.b16 %v3415
  %v3432 = vunpack.c.l.b16 %v3416
  %v3433 = vunpack.c.l.b16 %v3417
  %v3434 = vpack.c.b16 %v3427, %v3426
  %v3435 = vpack.c.b16 %v3429, %v3428
  %v3436 = vpack.c.b16 %v3431, %v3430
  %v3437 = vpack.c.b16 %v3433, %v3432
  %3442 = vmatprep.subr.bf16.mxu0 0
  %3443 = vmatpush1.bf16.msra.mxu0 %v3434
  %3444 = vmatprep.subr.bf16.mxu0 0
  %3445 = vmatpush1.bf16.msra.mxu0 %v3435
  %3446 = vmatprep.subr.bf16.mxu0 0
  %3447 = vmatpush1.bf16.msra.mxu0 %v3436
  %3448 = vmatprep.subr.bf16.mxu0 0
  %3449 = vmatpush1.bf16.msra.mxu0 %v3437
  %3450 = vmatprep.subr.bf16.mxu0 0
  %3451 = vmatpush1.bf16.msra.mxu0 0
  %3452 = vmatprep.subr.bf16.mxu0 0
  %3453 = vmatpush1.bf16.msra.mxu0 0
  %3454 = vmatprep.subr.bf16.mxu0 0
  %3455 = vmatpush1.bf16.msra.mxu0 0
  %3456 = vmatprep.subr.bf16.mxu0 0
  %3457 = vmatpush1.bf16.msra.mxu0 0
  %3458 = vmatprep.subr.bf16.mxu0 0
  %3459 = vmatpush1.bf16.msra.mxu0 0
  %3460 = vmatprep.subr.bf16.mxu0 0
  %3461 = vmatpush1.bf16.msra.mxu0 0
  %3462 = vmatprep.subr.bf16.mxu0 0
  %3463 = vmatpush1.bf16.msra.mxu0 0
  %3464 = vmatprep.subr.bf16.mxu0 0
  %3465 = vmatpush1.bf16.msra.mxu0 0
  %3466 = vmatprep.subr.bf16.mxu0 0
  %3467 = vmatpush1.bf16.msra.mxu0 0
  %3468 = vmatprep.subr.bf16.mxu0 0
  %3469 = vmatpush1.bf16.msra.mxu0 0
  %3470 = vmatprep.subr.bf16.mxu0 0
  %3471 = vmatpush1.bf16.msra.mxu0 0
  %3472 = vmatprep.subr.bf16.mxu0 0
  %3473 = vmatpush1.bf16.msra.mxu0 0
  %3474 = vmatprep.mubr.bf16.mxu0 0
  %3475 = vmatmul.mubr.bf16.gmra.mrb[0].mxu0 %v1640
  %v3476 = vpop.f32.mrb[0].mxu0
  %v3477 = vadd.f32 0.0, %v3476
  %v3478 = vpop.f32.mrb[0].mxu0
  %v3479 = vpop.f32.mrb[0].mxu0
  %v3480 = vadd.f32 0.0, %v3479
  %v3481 = vpop.f32.mrb[0].mxu0
  %3482 = vmatprep.mubr.bf16.mxu0 0
  %3483 = vmatmul.mubr.bf16.gmra.mrb[0].mxu0 %v1643
  %v3484 = vpop.f32.mrb[0].mxu0
  %v3485 = vadd.f32 0.0, %v3484
  %v3486 = vpop.f32.mrb[0].mxu0
  %v3487 = vpop.f32.mrb[0].mxu0
  %v3488 = vadd.f32 0.0, %v3487
  %v3489 = vpop.f32.mrb[0].mxu0
  %3490 = vmatprep.mubr.bf16.mxu0 0
  %3491 = vmatmul.mubr.bf16.gmra.mrb[0].mxu0 %v1646
  %v3492 = vpop.f32.mrb[0].mxu0
  %v3493 = vadd.f32 0.0, %v3492
  %v3494 = vpop.f32.mrb[0].mxu0
  %v3495 = vpop.f32.mrb[0].mxu0
  %v3496 = vadd.f32 0.0, %v3495
  %v3497 = vpop.f32.mrb[0].mxu0
  %3498 = vmatprep.mubr.bf16.mxu0 0
  %3499 = vmatmul.mubr.bf16.gmra.mrb[0].mxu0 %v1649
  %v3500 = vpop.f32.mrb[0].mxu0
  %v3501 = vadd.f32 0.0, %v3500
  %v3502 = vpop.f32.mrb[0].mxu0
  %v3503 = vpop.f32.mrb[0].mxu0
  %v3504 = vadd.f32 0.0, %v3503
  %v3505 = vpop.f32.mrb[0].mxu0
  %3506 = vmatprep.mubr.bf16.mxu0 0
  %3507 = vmatmul.mubr.bf16.gmra.mrb[0].mxu0 %v1652
  %v3508 = vpop.f32.mrb[0].mxu0
  %v3509 = vadd.f32 0.0, %v3508
  %v3510 = vpop.f32.mrb[0].mxu0
  %v3511 = vpop.f32.mrb[0].mxu0
  %v3512 = vadd.f32 0.0, %v3511
  %v3513 = vpop.f32.mrb[0].mxu0
  %3514 = vmatprep.mubr.bf16.mxu0 0
  %3515 = vmatmul.mubr.bf16.gmra.mrb[0].mxu0 %v1655
  %v3516 = vpop.f32.mrb[0].mxu0
  %v3517 = vadd.f32 0.0, %v3516
  %v3518 = vpop.f32.mrb[0].mxu0
  %v3519 = vpop.f32.mrb[0].mxu0
  %v3520 = vadd.f32 0.0, %v3519
  %v3521 = vpop.f32.mrb[0].mxu0
  %3522 = vmatprep.mubr.bf16.mxu0 0
  %3523 = vmatmul.mubr.bf16.gmra.mrb[0].mxu0 %v1658
  %v3524 = vpop.f32.mrb[0].mxu0
  %v3525 = vadd.f32 0.0, %v3524
  %v3526 = vpop.f32.mrb[0].mxu0
  %v3527 = vpop.f32.mrb[0].mxu0
  %v3528 = vadd.f32 0.0, %v3527
  %v3529 = vpop.f32.mrb[0].mxu0
  %3530 = vmatprep.mubr.bf16.mxu0 0
  %3531 = vmatmul.mubr.bf16.gmra.mrb[0].mxu0 %v1067
  %v3532 = vpop.f32.mrb[0].mxu0
  %v3533 = vadd.f32 0.0, %v3532
  %v3534 = vpop.f32.mrb[0].mxu0
  %v3535 = vpop.f32.mrb[0].mxu0
  %v3536 = vadd.f32 0.0, %v3535
  %v3537 = vpop.f32.mrb[0].mxu0
  %3538 = vmatprep.mubr.bf16.mxu0 0
  %3539 = vmatmul.mubr.bf16.gmra.mrb[0].mxu0 %v1664
  %v3540 = vpop.f32.mrb[0].mxu0
  %v3541 = vadd.f32 0.0, %v3540
  %v3542 = vpop.f32.mrb[0].mxu0
  %v3543 = vpop.f32.mrb[0].mxu0
  %v3544 = vadd.f32 0.0, %v3543
  %v3545 = vpop.f32.mrb[0].mxu0
  %3546 = vmatprep.mubr.bf16.mxu0 0
  %3547 = vmatmul.mubr.bf16.gmra.mrb[0].mxu0 %v1667
  %v3548 = vpop.f32.mrb[0].mxu0
  %v3549 = vadd.f32 0.0, %v3548
  %v3550 = vpop.f32.mrb[0].mxu0
  %v3551 = vpop.f32.mrb[0].mxu0
  %v3552 = vadd.f32 0.0, %v3551
  %v3553 = vpop.f32.mrb[0].mxu0
  %3554 = vmatprep.mubr.bf16.mxu0 0
  %3555 = vmatmul.mubr.bf16.gmra.mrb[0].mxu0 %v1670
  %v3556 = vpop.f32.mrb[0].mxu0
  %v3557 = vadd.f32 0.0, %v3556
  %v3558 = vpop.f32.mrb[0].mxu0
  %v3559 = vpop.f32.mrb[0].mxu0
  %v3560 = vadd.f32 0.0, %v3559
  %v3561 = vpop.f32.mrb[0].mxu0
  %3562 = vmatprep.mubr.bf16.mxu0 0
  %3563 = vmatmul.mubr.bf16.gmra.mrb[0].mxu0 %v1673
  %v3564 = vpop.f32.mrb[0].mxu0
  %v3565 = vadd.f32 0.0, %v3564
  %v3566 = vpop.f32.mrb[0].mxu0
  %v3567 = vpop.f32.mrb[0].mxu0
  %v3568 = vadd.f32 0.0, %v3567
  %v3569 = vpop.f32.mrb[0].mxu0
  %3570 = vmatprep.mubr.bf16.mxu0 0
  %3571 = vmatmul.mubr.bf16.gmra.mrb[0].mxu0 %v1676
  %v3572 = vpop.f32.mrb[0].mxu0
  %v3573 = vadd.f32 0.0, %v3572
  %v3574 = vpop.f32.mrb[0].mxu0
  %v3575 = vpop.f32.mrb[0].mxu0
  %v3576 = vadd.f32 0.0, %v3575
  %v3577 = vpop.f32.mrb[0].mxu0
  %3578 = vmatprep.mubr.bf16.mxu0 0
  %3579 = vmatmul.mubr.bf16.gmra.mrb[0].mxu0 %v1679
  %v3580 = vpop.f32.mrb[0].mxu0
  %v3581 = vadd.f32 0.0, %v3580
  %v3582 = vpop.f32.mrb[0].mxu0
  %v3583 = vpop.f32.mrb[0].mxu0
  %v3584 = vadd.f32 0.0, %v3583
  %v3585 = vpop.f32.mrb[0].mxu0
  %3586 = vmatprep.mubr.bf16.mxu0 0
  %3587 = vmatmul.mubr.bf16.gmra.mrb[0].mxu0 %v1682
  %v3588 = vpop.f32.mrb[0].mxu0
  %v3589 = vadd.f32 0.0, %v3588
  %v3590 = vpop.f32.mrb[0].mxu0
  %v3591 = vpop.f32.mrb[0].mxu0
  %v3592 = vadd.f32 0.0, %v3591
  %v3593 = vpop.f32.mrb[0].mxu0
  %3594 = vmatprep.mubr.bf16.mxu0 0
  %3595 = vmatmul.mubr.bf16.gmra.mrb[0].mxu0 %v1067
  %v3596 = vpop.f32.mrb[0].mxu0
  %v3597 = vadd.f32 0.0, %v3596
  %v3598 = vpop.f32.mrb[0].mxu0
  %v3599 = vpop.f32.mrb[0].mxu0
  %v3600 = vadd.f32 0.0, %v3599
  %v3601 = vpop.f32.mrb[0].mxu0
  %3602 = vdwg.mxu0
  %v3603 = vadd.f32 %v3377, %v3477
  %v3604 = vadd.f32 %v3378, %v3480
  %v3605 = vadd.f32 %v3379, %v3485
  %v3606 = vadd.f32 %v3380, %v3488
  %v3607 = vadd.f32 %v3381, %v3493
  %v3608 = vadd.f32 %v3382, %v3496
  %v3609 = vadd.f32 %v3383, %v3501
  %v3610 = vadd.f32 %v3384, %v3504
  %v3611 = vadd.f32 %v3385, %v3509
  %v3612 = vadd.f32 %v3386, %v3512
  %v3613 = vadd.f32 %v3387, %v3517
  %v3614 = vadd.f32 %v3388, %v3520
  %v3615 = vadd.f32 %v3389, %v3525
  %v3616 = vadd.f32 %v3390, %v3528
  %v3617 = vadd.f32 %v3391, %v3533
  %v3618 = vadd.f32 %v3392, %v3536
  %v3619 = vadd.f32 %v3393, %v3541
  %v3620 = vadd.f32 %v3394, %v3544
  %v3621 = vadd.f32 %v3395, %v3549
  %v3622 = vadd.f32 %v3396, %v3552
  %v3623 = vadd.f32 %v3397, %v3557
  %v3624 = vadd.f32 %v3398, %v3560
  %v3625 = vadd.f32 %v3399, %v3565
  %v3626 = vadd.f32 %v3400, %v3568
  %v3627 = vadd.f32 %v3401, %v3573
  %v3628 = vadd.f32 %v3402, %v3576
  %v3629 = vadd.f32 %v3403, %v3581
  %v3630 = vadd.f32 %v3404, %v3584
  %v3631 = vadd.f32 %v3405, %v3589
  %v3632 = vadd.f32 %v3406, %v3592
  %v3633 = vadd.f32 %v3407, %v3597
  %v3634 = vadd.f32 %v3408, %v3600
  %s3635 = scalar_lea.vmem %s3, 320
  %v3636 = vld [vmem:[%s3635] sm:$0xf]
  %v3637 = vld [vmem:[%s3635 + $0x4] sm:$0xf]
  %v3638 = vld [vmem:[%s3635 + $0x8] sm:$0xf]
  %v3639 = vld [vmem:[%s3635 + $0xc] sm:$0xf]
  %v3640 = vld [vmem:[%s3635 + $0x10] sm:$0xf]
  %v3641 = vld [vmem:[%s3635 + $0x14] sm:$0xf]
  %v3642 = vld [vmem:[%s3635 + $0x18] sm:$0xf]
  %v3643 = vld [vmem:[%s3635 + $0x1c] sm:$0xf]
  %v3652 = vunpack.c.l.b16 %v3636
  %v3653 = vunpack.c.l.b16 %v3637
  %v3654 = vunpack.c.l.b16 %v3638
  %v3655 = vunpack.c.l.b16 %v3639
  %v3656 = vunpack.c.l.b16 %v3640
  %v3657 = vunpack.c.l.b16 %v3641
  %v3658 = vunpack.c.l.b16 %v3642
  %v3659 = vunpack.c.l.b16 %v3643
  %v3660 = vpack.c.b16 %v3653, %v3652
  %v3661 = vpack.c.b16 %v3655, %v3654
  %v3662 = vpack.c.b16 %v3657, %v3656
  %v3663 = vpack.c.b16 %v3659, %v3658
  %3668 = vmatprep.subr.bf16.mxu0 0
  %3669 = vmatpush1.bf16.msra.mxu0 %v3660
  %3670 = vmatprep.subr.bf16.mxu0 0
  %3671 = vmatpush1.bf16.msra.mxu0 %v3661
  %3672 = vmatprep.subr.bf16.mxu0 0
  %3673 = vmatpush1.bf16.msra.mxu0 %v3662
  %3674 = vmatprep.subr.bf16.mxu0 0
  %3675 = vmatpush1.bf16.msra.mxu0 %v3663
  %3676 = vmatprep.subr.bf16.mxu0 0
  %3677 = vmatpush1.bf16.msra.mxu0 0
  %3678 = vmatprep.subr.bf16.mxu0 0
  %3679 = vmatpush1.bf16.msra.mxu0 0
  %3680 = vmatprep.subr.bf16.mxu0 0
  %3681 = vmatpush1.bf16.msra.mxu0 0
  %3682 = vmatprep.subr.bf16.mxu0 0
  %3683 = vmatpush1.bf16.msra.mxu0 0
  %3684 = vmatprep.subr.bf16.mxu0 0
  %3685 = vmatpush1.bf16.msra.mxu0 0
  %3686 = vmatprep.subr.bf16.mxu0 0
  %3687 = vmatpush1.bf16.msra.mxu0 0
  %3688 = vmatprep.subr.bf16.mxu0 0
  %3689 = vmatpush1.bf16.msra.mxu0 0
  %3690 = vmatprep.subr.bf16.mxu0 0
  %3691 = vmatpush1.bf16.msra.mxu0 0
  %3692 = vmatprep.subr.bf16.mxu0 0
  %3693 = vmatpush1.bf16.msra.mxu0 0
  %3694 = vmatprep.subr.bf16.mxu0 0
  %3695 = vmatpush1.bf16.msra.mxu0 0
  %3696 = vmatprep.subr.bf16.mxu0 0
  %3697 = vmatpush1.bf16.msra.mxu0 0
  %3698 = vmatprep.subr.bf16.mxu0 0
  %3699 = vmatpush1.bf16.msra.mxu0 0
  %3700 = vmatprep.mubr.bf16.mxu0 0
  %3701 = vmatmul.mubr.bf16.gmra.mrb[0].mxu0 %v2090
  %v3702 = vpop.f32.mrb[0].mxu0
  %v3703 = vadd.f32 0.0, %v3702
  %v3704 = vpop.f32.mrb[0].mxu0
  %v3705 = vpop.f32.mrb[0].mxu0
  %v3706 = vadd.f32 0.0, %v3705
  %v3707 = vpop.f32.mrb[0].mxu0
  %3708 = vmatprep.mubr.bf16.mxu0 0
  %3709 = vmatmul.mubr.bf16.gmra.mrb[0].mxu0 %v2093
  %v3710 = vpop.f32.mrb[0].mxu0
  %v3711 = vadd.f32 0.0, %v3710
  %v3712 = vpop.f32.mrb[0].mxu0
  %v3713 = vpop.f32.mrb[0].mxu0
  %v3714 = vadd.f32 0.0, %v3713
  %v3715 = vpop.f32.mrb[0].mxu0
  %3716 = vmatprep.mubr.bf16.mxu0 0
  %3717 = vmatmul.mubr.bf16.gmra.mrb[0].mxu0 %v2096
  %v3718 = vpop.f32.mrb[0].mxu0
  %v3719 = vadd.f32 0.0, %v3718
  %v3720 = vpop.f32.mrb[0].mxu0
  %v3721 = vpop.f32.mrb[0].mxu0
  %v3722 = vadd.f32 0.0, %v3721
  %v3723 = vpop.f32.mrb[0].mxu0
  %3724 = vmatprep.mubr.bf16.mxu0 0
  %3725 = vmatmul.mubr.bf16.gmra.mrb[0].mxu0 %v2099
  %v3726 = vpop.f32.mrb[0].mxu0
  %v3727 = vadd.f32 0.0, %v3726
  %v3728 = vpop.f32.mrb[0].mxu0
  %v3729 = vpop.f32.mrb[0].mxu0
  %v3730 = vadd.f32 0.0, %v3729
  %v3731 = vpop.f32.mrb[0].mxu0
  %3732 = vmatprep.mubr.bf16.mxu0 0
  %3733 = vmatmul.mubr.bf16.gmra.mrb[0].mxu0 %v2102
  %v3734 = vpop.f32.mrb[0].mxu0
  %v3735 = vadd.f32 0.0, %v3734
  %v3736 = vpop.f32.mrb[0].mxu0
  %v3737 = vpop.f32.mrb[0].mxu0
  %v3738 = vadd.f32 0.0, %v3737
  %v3739 = vpop.f32.mrb[0].mxu0
  %3740 = vmatprep.mubr.bf16.mxu0 0
  %3741 = vmatmul.mubr.bf16.gmra.mrb[0].mxu0 %v2105
  %v3742 = vpop.f32.mrb[0].mxu0
  %v3743 = vadd.f32 0.0, %v3742
  %v3744 = vpop.f32.mrb[0].mxu0
  %v3745 = vpop.f32.mrb[0].mxu0
  %v3746 = vadd.f32 0.0, %v3745
  %v3747 = vpop.f32.mrb[0].mxu0
  %3748 = vmatprep.mubr.bf16.mxu0 0
  %3749 = vmatmul.mubr.bf16.gmra.mrb[0].mxu0 %v2108
  %v3750 = vpop.f32.mrb[0].mxu0
  %v3751 = vadd.f32 0.0, %v3750
  %v3752 = vpop.f32.mrb[0].mxu0
  %v3753 = vpop.f32.mrb[0].mxu0
  %v3754 = vadd.f32 0.0, %v3753
  %v3755 = vpop.f32.mrb[0].mxu0
  %3756 = vmatprep.mubr.bf16.mxu0 0
  %3757 = vmatmul.mubr.bf16.gmra.mrb[0].mxu0 %v838
  %v3758 = vpop.f32.mrb[0].mxu0
  %v3759 = vadd.f32 0.0, %v3758
  %v3760 = vpop.f32.mrb[0].mxu0
  %v3761 = vpop.f32.mrb[0].mxu0
  %v3762 = vadd.f32 0.0, %v3761
  %v3763 = vpop.f32.mrb[0].mxu0
  %3764 = vmatprep.mubr.bf16.mxu0 0
  %3765 = vmatmul.mubr.bf16.gmra.mrb[0].mxu0 %v2114
  %v3766 = vpop.f32.mrb[0].mxu0
  %v3767 = vadd.f32 0.0, %v3766
  %v3768 = vpop.f32.mrb[0].mxu0
  %v3769 = vpop.f32.mrb[0].mxu0
  %v3770 = vadd.f32 0.0, %v3769
  %v3771 = vpop.f32.mrb[0].mxu0
  %3772 = vmatprep.mubr.bf16.mxu0 0
  %3773 = vmatmul.mubr.bf16.gmra.mrb[0].mxu0 %v2117
  %v3774 = vpop.f32.mrb[0].mxu0
  %v3775 = vadd.f32 0.0, %v3774
  %v3776 = vpop.f32.mrb[0].mxu0
  %v3777 = vpop.f32.mrb[0].mxu0
  %v3778 = vadd.f32 0.0, %v3777
  %v3779 = vpop.f32.mrb[0].mxu0
  %3780 = vmatprep.mubr.bf16.mxu0 0
  %3781 = vmatmul.mubr.bf16.gmra.mrb[0].mxu0 %v2120
  %v3782 = vpop.f32.mrb[0].mxu0
  %v3783 = vadd.f32 0.0, %v3782
  %v3784 = vpop.f32.mrb[0].mxu0
  %v3785 = vpop.f32.mrb[0].mxu0
  %v3786 = vadd.f32 0.0, %v3785
  %v3787 = vpop.f32.mrb[0].mxu0
  %3788 = vmatprep.mubr.bf16.mxu0 0
  %3789 = vmatmul.mubr.bf16.gmra.mrb[0].mxu0 %v2123
  %v3790 = vpop.f32.mrb[0].mxu0
  %v3791 = vadd.f32 0.0, %v3790
  %v3792 = vpop.f32.mrb[0].mxu0
  %v3793 = vpop.f32.mrb[0].mxu0
  %v3794 = vadd.f32 0.0, %v3793
  %v3795 = vpop.f32.mrb[0].mxu0
  %3796 = vmatprep.mubr.bf16.mxu0 0
  %3797 = vmatmul.mubr.bf16.gmra.mrb[0].mxu0 %v2126
  %v3798 = vpop.f32.mrb[0].mxu0
  %v3799 = vadd.f32 0.0, %v3798
  %v3800 = vpop.f32.mrb[0].mxu0
  %v3801 = vpop.f32.mrb[0].mxu0
  %v3802 = vadd.f32 0.0, %v3801
  %v3803 = vpop.f32.mrb[0].mxu0
  %3804 = vmatprep.mubr.bf16.mxu0 0
  %3805 = vmatmul.mubr.bf16.gmra.mrb[0].mxu0 %v2129
  %v3806 = vpop.f32.mrb[0].mxu0
  %v3807 = vadd.f32 0.0, %v3806
  %v3808 = vpop.f32.mrb[0].mxu0
  %v3809 = vpop.f32.mrb[0].mxu0
  %v3810 = vadd.f32 0.0, %v3809
  %v3811 = vpop.f32.mrb[0].mxu0
  %3812 = vmatprep.mubr.bf16.mxu0 0
  %3813 = vmatmul.mubr.bf16.gmra.mrb[0].mxu0 %v2132
  %v3814 = vpop.f32.mrb[0].mxu0
  %v3815 = vadd.f32 0.0, %v3814
  %v3816 = vpop.f32.mrb[0].mxu0
  %v3817 = vpop.f32.mrb[0].mxu0
  %v3818 = vadd.f32 0.0, %v3817
  %v3819 = vpop.f32.mrb[0].mxu0
  %3820 = vmatprep.mubr.bf16.mxu0 0
  %3821 = vmatmul.mubr.bf16.gmra.mrb[0].mxu0 %v838
  %v3822 = vpop.f32.mrb[0].mxu0
  %v3823 = vadd.f32 0.0, %v3822
  %v3824 = vpop.f32.mrb[0].mxu0
  %v3825 = vpop.f32.mrb[0].mxu0
  %v3826 = vadd.f32 0.0, %v3825
  %v3827 = vpop.f32.mrb[0].mxu0
  %3828 = vdwg.mxu0
  %v3829 = vadd.f32 %v3603, %v3703
  %v3830 = vadd.f32 %v3604, %v3706
  %v3831 = vadd.f32 %v3605, %v3711
  %v3832 = vadd.f32 %v3606, %v3714
  %v3833 = vadd.f32 %v3607, %v3719
  %v3834 = vadd.f32 %v3608, %v3722
  %v3835 = vadd.f32 %v3609, %v3727
  %v3836 = vadd.f32 %v3610, %v3730
  %v3837 = vadd.f32 %v3611, %v3735
  %v3838 = vadd.f32 %v3612, %v3738
  %v3839 = vadd.f32 %v3613, %v3743
  %v3840 = vadd.f32 %v3614, %v3746
  %v3841 = vadd.f32 %v3615, %v3751
  %v3842 = vadd.f32 %v3616, %v3754
  %v3843 = vadd.f32 %v3617, %v3759
  %v3844 = vadd.f32 %v3618, %v3762
  %v3845 = vadd.f32 %v3619, %v3767
  %v3846 = vadd.f32 %v3620, %v3770
  %v3847 = vadd.f32 %v3621, %v3775
  %v3848 = vadd.f32 %v3622, %v3778
  %v3849 = vadd.f32 %v3623, %v3783
  %v3850 = vadd.f32 %v3624, %v3786
  %v3851 = vadd.f32 %v3625, %v3791
  %v3852 = vadd.f32 %v3626, %v3794
  %v3853 = vadd.f32 %v3627, %v3799
  %v3854 = vadd.f32 %v3628, %v3802
  %v3855 = vadd.f32 %v3629, %v3807
  %v3856 = vadd.f32 %v3630, %v3810
  %v3857 = vadd.f32 %v3631, %v3815
  %v3858 = vadd.f32 %v3632, %v3818
  %v3859 = vadd.f32 %v3633, %v3823
  %v3860 = vadd.f32 %v3634, %v3826
  %s3861 = scalar_lea.vmem %s3, 352
  %v3862 = vld [vmem:[%s3861] sm:$0xf]
  %v3863 = vld [vmem:[%s3861 + $0x4] sm:$0xf]
  %v3864 = vld [vmem:[%s3861 + $0x8] sm:$0xf]
  %v3865 = vld [vmem:[%s3861 + $0xc] sm:$0xf]
  %v3866 = vld [vmem:[%s3861 + $0x10] sm:$0xf]
  %v3867 = vld [vmem:[%s3861 + $0x14] sm:$0xf]
  %v3868 = vld [vmem:[%s3861 + $0x18] sm:$0xf]
  %v3869 = vld [vmem:[%s3861 + $0x1c] sm:$0xf]
  %v3878 = vunpack.c.l.b16 %v3862
  %v3879 = vunpack.c.l.b16 %v3863
  %v3880 = vunpack.c.l.b16 %v3864
  %v3881 = vunpack.c.l.b16 %v3865
  %v3882 = vunpack.c.l.b16 %v3866
  %v3883 = vunpack.c.l.b16 %v3867
  %v3884 = vunpack.c.l.b16 %v3868
  %v3885 = vunpack.c.l.b16 %v3869
  %v3886 = vpack.c.b16 %v3879, %v3878
  %v3887 = vpack.c.b16 %v3881, %v3880
  %v3888 = vpack.c.b16 %v3883, %v3882
  %v3889 = vpack.c.b16 %v3885, %v3884
  %3894 = vmatprep.subr.bf16.mxu0 0
  %3895 = vmatpush1.bf16.msra.mxu0 %v3886
  %3896 = vmatprep.subr.bf16.mxu0 0
  %3897 = vmatpush1.bf16.msra.mxu0 %v3887
  %3898 = vmatprep.subr.bf16.mxu0 0
  %3899 = vmatpush1.bf16.msra.mxu0 %v3888
  %3900 = vmatprep.subr.bf16.mxu0 0
  %3901 = vmatpush1.bf16.msra.mxu0 %v3889
  %3902 = vmatprep.subr.bf16.mxu0 0
  %3903 = vmatpush1.bf16.msra.mxu0 0
  %3904 = vmatprep.subr.bf16.mxu0 0
  %3905 = vmatpush1.bf16.msra.mxu0 0
  %3906 = vmatprep.subr.bf16.mxu0 0
  %3907 = vmatpush1.bf16.msra.mxu0 0
  %3908 = vmatprep.subr.bf16.mxu0 0
  %3909 = vmatpush1.bf16.msra.mxu0 0
  %3910 = vmatprep.subr.bf16.mxu0 0
  %3911 = vmatpush1.bf16.msra.mxu0 0
  %3912 = vmatprep.subr.bf16.mxu0 0
  %3913 = vmatpush1.bf16.msra.mxu0 0
  %3914 = vmatprep.subr.bf16.mxu0 0
  %3915 = vmatpush1.bf16.msra.mxu0 0
  %3916 = vmatprep.subr.bf16.mxu0 0
  %3917 = vmatpush1.bf16.msra.mxu0 0
  %3918 = vmatprep.subr.bf16.mxu0 0
  %3919 = vmatpush1.bf16.msra.mxu0 0
  %3920 = vmatprep.subr.bf16.mxu0 0
  %3921 = vmatpush1.bf16.msra.mxu0 0
  %3922 = vmatprep.subr.bf16.mxu0 0
  %3923 = vmatpush1.bf16.msra.mxu0 0
  %3924 = vmatprep.subr.bf16.mxu0 0
  %3925 = vmatpush1.bf16.msra.mxu0 0
  %3926 = vmatprep.mubr.bf16.mxu0 0
  %3927 = vmatmul.mubr.bf16.gmra.mrb[0].mxu0 %v2444
  %v3928 = vpop.f32.mrb[0].mxu0
  %v3929 = vadd.f32 0.0, %v3928
  %v3930 = vpop.f32.mrb[0].mxu0
  %v3931 = vpop.f32.mrb[0].mxu0
  %v3932 = vadd.f32 0.0, %v3931
  %v3933 = vpop.f32.mrb[0].mxu0
  %3934 = vmatprep.mubr.bf16.mxu0 0
  %3935 = vmatmul.mubr.bf16.gmra.mrb[0].mxu0 %v2447
  %v3936 = vpop.f32.mrb[0].mxu0
  %v3937 = vadd.f32 0.0, %v3936
  %v3938 = vpop.f32.mrb[0].mxu0
  %v3939 = vpop.f32.mrb[0].mxu0
  %v3940 = vadd.f32 0.0, %v3939
  %v3941 = vpop.f32.mrb[0].mxu0
  %3942 = vmatprep.mubr.bf16.mxu0 0
  %3943 = vmatmul.mubr.bf16.gmra.mrb[0].mxu0 %v2450
  %v3944 = vpop.f32.mrb[0].mxu0
  %v3945 = vadd.f32 0.0, %v3944
  %v3946 = vpop.f32.mrb[0].mxu0
  %v3947 = vpop.f32.mrb[0].mxu0
  %v3948 = vadd.f32 0.0, %v3947
  %v3949 = vpop.f32.mrb[0].mxu0
  %3950 = vmatprep.mubr.bf16.mxu0 0
  %3951 = vmatmul.mubr.bf16.gmra.mrb[0].mxu0 %v2453
  %v3952 = vpop.f32.mrb[0].mxu0
  %v3953 = vadd.f32 0.0, %v3952
  %v3954 = vpop.f32.mrb[0].mxu0
  %v3955 = vpop.f32.mrb[0].mxu0
  %v3956 = vadd.f32 0.0, %v3955
  %v3957 = vpop.f32.mrb[0].mxu0
  %3958 = vmatprep.mubr.bf16.mxu0 0
  %3959 = vmatmul.mubr.bf16.gmra.mrb[0].mxu0 %v2456
  %v3960 = vpop.f32.mrb[0].mxu0
  %v3961 = vadd.f32 0.0, %v3960
  %v3962 = vpop.f32.mrb[0].mxu0
  %v3963 = vpop.f32.mrb[0].mxu0
  %v3964 = vadd.f32 0.0, %v3963
  %v3965 = vpop.f32.mrb[0].mxu0
  %3966 = vmatprep.mubr.bf16.mxu0 0
  %3967 = vmatmul.mubr.bf16.gmra.mrb[0].mxu0 %v2459
  %v3968 = vpop.f32.mrb[0].mxu0
  %v3969 = vadd.f32 0.0, %v3968
  %v3970 = vpop.f32.mrb[0].mxu0
  %v3971 = vpop.f32.mrb[0].mxu0
  %v3972 = vadd.f32 0.0, %v3971
  %v3973 = vpop.f32.mrb[0].mxu0
  %3974 = vmatprep.mubr.bf16.mxu0 0
  %3975 = vmatmul.mubr.bf16.gmra.mrb[0].mxu0 %v2462
  %v3976 = vpop.f32.mrb[0].mxu0
  %v3977 = vadd.f32 0.0, %v3976
  %v3978 = vpop.f32.mrb[0].mxu0
  %v3979 = vpop.f32.mrb[0].mxu0
  %v3980 = vadd.f32 0.0, %v3979
  %v3981 = vpop.f32.mrb[0].mxu0
  %3982 = vmatprep.mubr.bf16.mxu0 0
  %3983 = vmatmul.mubr.bf16.gmra.mrb[0].mxu0 %v1366
  %v3984 = vpop.f32.mrb[0].mxu0
  %v3985 = vadd.f32 0.0, %v3984
  %v3986 = vpop.f32.mrb[0].mxu0
  %v3987 = vpop.f32.mrb[0].mxu0
  %v3988 = vadd.f32 0.0, %v3987
  %v3989 = vpop.f32.mrb[0].mxu0
  %3990 = vmatprep.mubr.bf16.mxu0 0
  %3991 = vmatmul.mubr.bf16.gmra.mrb[0].mxu0 %v2468
  %v3992 = vpop.f32.mrb[0].mxu0
  %v3993 = vadd.f32 0.0, %v3992
  %v3994 = vpop.f32.mrb[0].mxu0
  %v3995 = vpop.f32.mrb[0].mxu0
  %v3996 = vadd.f32 0.0, %v3995
  %v3997 = vpop.f32.mrb[0].mxu0
  %3998 = vmatprep.mubr.bf16.mxu0 0
  %3999 = vmatmul.mubr.bf16.gmra.mrb[0].mxu0 %v2471
  %v4000 = vpop.f32.mrb[0].mxu0
  %v4001 = vadd.f32 0.0, %v4000
  %v4002 = vpop.f32.mrb[0].mxu0
  %v4003 = vpop.f32.mrb[0].mxu0
  %v4004 = vadd.f32 0.0, %v4003
  %v4005 = vpop.f32.mrb[0].mxu0
  %4006 = vmatprep.mubr.bf16.mxu0 0
  %4007 = vmatmul.mubr.bf16.gmra.mrb[0].mxu0 %v2474
  %v4008 = vpop.f32.mrb[0].mxu0
  %v4009 = vadd.f32 0.0, %v4008
  %v4010 = vpop.f32.mrb[0].mxu0
  %v4011 = vpop.f32.mrb[0].mxu0
  %v4012 = vadd.f32 0.0, %v4011
  %v4013 = vpop.f32.mrb[0].mxu0
  %4014 = vmatprep.mubr.bf16.mxu0 0
  %4015 = vmatmul.mubr.bf16.gmra.mrb[0].mxu0 %v2477
  %v4016 = vpop.f32.mrb[0].mxu0
  %v4017 = vadd.f32 0.0, %v4016
  %v4018 = vpop.f32.mrb[0].mxu0
  %v4019 = vpop.f32.mrb[0].mxu0
  %v4020 = vadd.f32 0.0, %v4019
  %v4021 = vpop.f32.mrb[0].mxu0
  %4022 = vmatprep.mubr.bf16.mxu0 0
  %4023 = vmatmul.mubr.bf16.gmra.mrb[0].mxu0 %v2480
  %v4024 = vpop.f32.mrb[0].mxu0
  %v4025 = vadd.f32 0.0, %v4024
  %v4026 = vpop.f32.mrb[0].mxu0
  %v4027 = vpop.f32.mrb[0].mxu0
  %v4028 = vadd.f32 0.0, %v4027
  %v4029 = vpop.f32.mrb[0].mxu0
  %4030 = vmatprep.mubr.bf16.mxu0 0
  %4031 = vmatmul.mubr.bf16.gmra.mrb[0].mxu0 %v2483
  %v4032 = vpop.f32.mrb[0].mxu0
  %v4033 = vadd.f32 0.0, %v4032
  %v4034 = vpop.f32.mrb[0].mxu0
  %v4035 = vpop.f32.mrb[0].mxu0
  %v4036 = vadd.f32 0.0, %v4035
  %v4037 = vpop.f32.mrb[0].mxu0
  %4038 = vmatprep.mubr.bf16.mxu0 0
  %4039 = vmatmul.mubr.bf16.gmra.mrb[0].mxu0 %v2486
  %v4040 = vpop.f32.mrb[0].mxu0
  %v4041 = vadd.f32 0.0, %v4040
  %v4042 = vpop.f32.mrb[0].mxu0
  %v4043 = vpop.f32.mrb[0].mxu0
  %v4044 = vadd.f32 0.0, %v4043
  %v4045 = vpop.f32.mrb[0].mxu0
  %4046 = vmatprep.mubr.bf16.mxu0 0
  %4047 = vmatmul.mubr.bf16.gmra.mrb[0].mxu0 %v1366
  %v4048 = vpop.f32.mrb[0].mxu0
  %v4049 = vadd.f32 0.0, %v4048
  %v4050 = vpop.f32.mrb[0].mxu0
  %v4051 = vpop.f32.mrb[0].mxu0
  %v4052 = vadd.f32 0.0, %v4051
  %v4053 = vpop.f32.mrb[0].mxu0
  %4054 = vdwg.mxu0
  %v4055 = vadd.f32 %v3829, %v3929
  %v4056 = vadd.f32 %v3830, %v3932
  %v4057 = vadd.f32 %v3831, %v3937
  %v4058 = vadd.f32 %v3832, %v3940
  %v4059 = vadd.f32 %v3833, %v3945
  %v4060 = vadd.f32 %v3834, %v3948
  %v4061 = vadd.f32 %v3835, %v3953
  %v4062 = vadd.f32 %v3836, %v3956
  %v4063 = vadd.f32 %v3837, %v3961
  %v4064 = vadd.f32 %v3838, %v3964
  %v4065 = vadd.f32 %v3839, %v3969
  %v4066 = vadd.f32 %v3840, %v3972
  %v4067 = vadd.f32 %v3841, %v3977
  %v4068 = vadd.f32 %v3842, %v3980
  %v4069 = vadd.f32 %v3843, %v3985
  %v4070 = vadd.f32 %v3844, %v3988
  %v4071 = vadd.f32 %v3845, %v3993
  %v4072 = vadd.f32 %v3846, %v3996
  %v4073 = vadd.f32 %v3847, %v4001
  %v4074 = vadd.f32 %v3848, %v4004
  %v4075 = vadd.f32 %v3849, %v4009
  %v4076 = vadd.f32 %v3850, %v4012
  %v4077 = vadd.f32 %v3851, %v4017
  %v4078 = vadd.f32 %v3852, %v4020
  %v4079 = vadd.f32 %v3853, %v4025
  %v4080 = vadd.f32 %v3854, %v4028
  %v4081 = vadd.f32 %v3855, %v4033
  %v4082 = vadd.f32 %v3856, %v4036
  %v4083 = vadd.f32 %v3857, %v4041
  %v4084 = vadd.f32 %v3858, %v4044
  %v4085 = vadd.f32 %v3859, %v4049
  %v4086 = vadd.f32 %v3860, %v4052
  %v4087 = vadd.f32 %v4055, %v4056
  %v4088 = vadd.f32 %v4087, %v4057
  %v4089 = vadd.f32 %v4088, %v4058
  %v4090 = vadd.f32 %v4089, %v4059
  %v4091 = vadd.f32 %v4090, %v4060
  %v4092 = vadd.f32 %v4091, %v4061
  %v4093 = vadd.f32 %v4092, %v4062
  %v4094 = vadd.f32 %v4093, %v4063
  %v4095 = vadd.f32 %v4094, %v4064
  %v4096 = vadd.f32 %v4095, %v4065
  %v4097 = vadd.f32 %v4096, %v4066
  %v4098 = vadd.f32 %v4097, %v4067
  %v4099 = vadd.f32 %v4098, %v4068
  %v4100 = vadd.f32 %v4099, %v4069
  %v4101 = vadd.f32 %v4100, %v4070
  %v4102 = vadd.f32 %v4101, %v4071
  %v4103 = vadd.f32 %v4102, %v4072
  %v4104 = vadd.f32 %v4103, %v4073
  %v4105 = vadd.f32 %v4104, %v4074
  %v4106 = vadd.f32 %v4105, %v4075
  %v4107 = vadd.f32 %v4106, %v4076
  %v4108 = vadd.f32 %v4107, %v4077
  %v4109 = vadd.f32 %v4108, %v4078
  %v4110 = vadd.f32 %v4109, %v4079
  %v4111 = vadd.f32 %v4110, %v4080
  %v4112 = vadd.f32 %v4111, %v4081
  %v4113 = vadd.f32 %v4112, %v4082
  %v4114 = vadd.f32 %v4113, %v4083
  %v4115 = vadd.f32 %v4114, %v4084
  %v4116 = vadd.f32 %v4115, %v4085
  %v4117 = vadd.f32 %v4116, %v4086
  %v4118 = vrot.slane %v4117, 4
  %v4119 = vadd.f32 %v4117, %v4118
  %v4120 = vrot.slane %v4119, 2
  %v4121 = vadd.f32 %v4119, %v4120
  %v4122 = vrot.slane %v4121, 1
  %v4123 = vadd.f32 %v4121, %v4122
  %v4124 = vld [vmem:[%s1] sm:$0xff]
  %v4125 = vld [vmem:[%s1 + $0x8] sm:$0xff]
  %v4126 = vld [vmem:[%s1 + $0x10] sm:$0xff]
  %v4127 = vld [vmem:[%s1 + $0x18] sm:$0xff]
  %v4128 = vld [vmem:[%s1 + $0x20] sm:$0xff]
  %v4129 = vld [vmem:[%s1 + $0x28] sm:$0xff]
  %v4130 = vld [vmem:[%s1 + $0x30] sm:$0xff]
  %v4131 = vld [vmem:[%s1 + $0x38] sm:$0xff]
  %v4132 = vld [vmem:[%s1 + $0x40] sm:$0xff]
  %v4133 = vld [vmem:[%s1 + $0x48] sm:$0xff]
  %v4134 = vld [vmem:[%s1 + $0x50] sm:$0xff]
  %v4135 = vld [vmem:[%s1 + $0x58] sm:$0xff]
  %v4136 = vld [vmem:[%s1 + $0x60] sm:$0xff]
  %v4137 = vld [vmem:[%s1 + $0x68] sm:$0xff]
  %v4138 = vld [vmem:[%s1 + $0x70] sm:$0xff]
  %v4139 = vld [vmem:[%s1 + $0x78] sm:$0xff]
  %4140 = vmatprep.subr.mxu0 0.0
  %4141 = vmatpush1.msra.mxu0 %v4124
  %4142 = vmatprep.subr.mxu0 0.0
  %4143 = vmatpush1.msra.mxu0 %v4125
  %4144 = vmatprep.subr.mxu0 0.0
  %4145 = vmatpush1.msra.mxu0 %v4126
  %4146 = vmatprep.subr.mxu0 0.0
  %4147 = vmatpush1.msra.mxu0 %v4127
  %4148 = vmatprep.subr.mxu0 0.0
  %4149 = vmatpush1.msra.mxu0 %v4128
  %4150 = vmatprep.subr.mxu0 0.0
  %4151 = vmatpush1.msra.mxu0 %v4129
  %4152 = vmatprep.subr.mxu0 0.0
  %4153 = vmatpush1.msra.mxu0 %v4130
  %4154 = vmatprep.subr.mxu0 0.0
  %4155 = vmatpush1.msra.mxu0 %v4131
  %4156 = vmatprep.subr.mxu0 0.0
  %4157 = vmatpush1.msra.mxu0 %v4132
  %4158 = vmatprep.subr.mxu0 0.0
  %4159 = vmatpush1.msra.mxu0 %v4133
  %4160 = vmatprep.subr.mxu0 0.0
  %4161 = vmatpush1.msra.mxu0 %v4134
  %4162 = vmatprep.subr.mxu0 0.0
  %4163 = vmatpush1.msra.mxu0 %v4135
  %4164 = vmatprep.subr.mxu0 0.0
  %4165 = vmatpush1.msra.mxu0 %v4136
  %4166 = vmatprep.subr.mxu0 0.0
  %4167 = vmatpush1.msra.mxu0 %v4137
  %4168 = vmatprep.subr.mxu0 0.0
  %4169 = vmatpush1.msra.mxu0 %v4138
  %4170 = vmatprep.subr.mxu0 0.0
  %4171 = vmatpush1.msra.mxu0 %v4139
  %4172 = vmatprep.subr.mxu0 0.0
  %4173 = vmatpush1.msra.mxu0 0.0
  %4174 = vmatprep.subr.mxu0 0.0
  %4175 = vmatpush1.msra.mxu0 0.0
  %4176 = vmatprep.subr.mxu0 0.0
  %4177 = vmatpush1.msra.mxu0 0.0
  %4178 = vmatprep.subr.mxu0 0.0
  %4179 = vmatpush1.msra.mxu0 0.0
  %4180 = vmatprep.subr.mxu0 0.0
  %4181 = vmatpush1.msra.mxu0 0.0
  %4182 = vmatprep.subr.mxu0 0.0
  %4183 = vmatpush1.msra.mxu0 0.0
  %4184 = vmatprep.subr.mxu0 0.0
  %4185 = vmatpush1.msra.mxu0 0.0
  %4186 = vmatprep.subr.mxu0 0.0
  %4187 = vmatpush1.msra.mxu0 0.0
  %4188 = vmatprep.subr.mxu0 0.0
  %4189 = vmatpush1.msra.mxu0 0.0
  %4190 = vmatprep.subr.mxu0 0.0
  %4191 = vmatpush1.msra.mxu0 0.0
  %4192 = vmatprep.subr.mxu0 0.0
  %4193 = vmatpush1.msra.mxu0 0.0
  %4194 = vmatprep.subr.mxu0 0.0
  %4195 = vmatpush1.msra.mxu0 0.0
  %4196 = vmatprep.subr.mxu0 0.0
  %4197 = vmatpush1.msra.mxu0 0.0
  %4198 = vmatprep.subr.mxu0 0.0
  %4199 = vmatpush1.msra.mxu0 0.0
  %4200 = vmatprep.subr.mxu0 0.0
  %4201 = vmatpush1.msra.mxu0 0.0
  %4202 = vmatprep.subr.mxu0 0.0
  %4203 = vmatpush1.msra.mxu0 0.0
  %4204 = vmatprep.mubr.f32.mxu0 0.0
  %4205 = vmatmul.mubr.f32.gmra.mrb[0].mxu0 %v4123
  %v4206 = vpop.f32.mrb[0].mxu0
  %v4207 = vadd.f32 0.0, %v4206
  %v4208 = vpop.f32.mrb[0].mxu0
  %4209 = vdwg.mxu0
  %v4210 = vrcp.pop 4096.0
  %v4211 = vmul.f32 %v4207, %v4210
  %v4212 = vld [vmem:[%s2] sm:$0xff]
  %vm4213 = vcmask 64512
  %v4215 = vsel %vm4213, %v4211, 0
  %4217 = vmatprep.subr.mxu0 0.0
  %4218 = vmatpush1.msra.mxu0 %v4212
  %4219 = vmatprep.subr.mxu0 0.0
  %4220 = vmatpush1.msra.mxu0 0.0
  %4221 = vmatprep.subr.mxu0 0.0
  %4222 = vmatpush1.msra.mxu0 0.0
  %4223 = vmatprep.subr.mxu0 0.0
  %4224 = vmatpush1.msra.mxu0 0.0
  %4225 = vmatprep.subr.mxu0 0.0
  %4226 = vmatpush1.msra.mxu0 0.0
  %4227 = vmatprep.subr.mxu0 0.0
  %4228 = vmatpush1.msra.mxu0 0.0
  %4229 = vmatprep.subr.mxu0 0.0
  %4230 = vmatpush1.msra.mxu0 0.0
  %4231 = vmatprep.subr.mxu0 0.0
  %4232 = vmatpush1.msra.mxu0 0.0
  %4233 = vmatprep.subr.mxu0 0.0
  %4234 = vmatpush1.msra.mxu0 0.0
  %4235 = vmatprep.subr.mxu0 0.0
  %4236 = vmatpush1.msra.mxu0 0.0
  %4237 = vmatprep.subr.mxu0 0.0
  %4238 = vmatpush1.msra.mxu0 0.0
  %4239 = vmatprep.subr.mxu0 0.0
  %4240 = vmatpush1.msra.mxu0 0.0
  %4241 = vmatprep.subr.mxu0 0.0
  %4242 = vmatpush1.msra.mxu0 0.0
  %4243 = vmatprep.subr.mxu0 0.0
  %4244 = vmatpush1.msra.mxu0 0.0
  %4245 = vmatprep.subr.mxu0 0.0
  %4246 = vmatpush1.msra.mxu0 0.0
  %4247 = vmatprep.subr.mxu0 0.0
  %4248 = vmatpush1.msra.mxu0 0.0
  %4249 = vmatprep.subr.mxu0 0.0
  %4250 = vmatpush1.msra.mxu0 0.0
  %4251 = vmatprep.subr.mxu0 0.0
  %4252 = vmatpush1.msra.mxu0 0.0
  %4253 = vmatprep.subr.mxu0 0.0
  %4254 = vmatpush1.msra.mxu0 0.0
  %4255 = vmatprep.subr.mxu0 0.0
  %4256 = vmatpush1.msra.mxu0 0.0
  %4257 = vmatprep.subr.mxu0 0.0
  %4258 = vmatpush1.msra.mxu0 0.0
  %4259 = vmatprep.subr.mxu0 0.0
  %4260 = vmatpush1.msra.mxu0 0.0
  %4261 = vmatprep.subr.mxu0 0.0
  %4262 = vmatpush1.msra.mxu0 0.0
  %4263 = vmatprep.subr.mxu0 0.0
  %4264 = vmatpush1.msra.mxu0 0.0
  %4265 = vmatprep.subr.mxu0 0.0
  %4266 = vmatpush1.msra.mxu0 0.0
  %4267 = vmatprep.subr.mxu0 0.0
  %4268 = vmatpush1.msra.mxu0 0.0
  %4269 = vmatprep.subr.mxu0 0.0
  %4270 = vmatpush1.msra.mxu0 0.0
  %4271 = vmatprep.subr.mxu0 0.0
  %4272 = vmatpush1.msra.mxu0 0.0
  %4273 = vmatprep.subr.mxu0 0.0
  %4274 = vmatpush1.msra.mxu0 0.0
  %4275 = vmatprep.subr.mxu0 0.0
  %4276 = vmatpush1.msra.mxu0 0.0
  %4277 = vmatprep.subr.mxu0 0.0
  %4278 = vmatpush1.msra.mxu0 0.0
  %4279 = vmatprep.subr.mxu0 0.0
  %4280 = vmatpush1.msra.mxu0 0.0
  %4281 = vmatprep.mubr.f32.mxu0 0.0
  %4282 = vmatmul.mubr.f32.gmra.mrb[0].mxu0 %v4215
  %v4283 = vpop.f32.mrb[0].mxu0
  %v4284 = vadd.f32 0.0, %v4283
  %v4285 = vpop.f32.mrb[0].mxu0
  %4286 = vdwg.mxu0
  %v4287 = vlaneseq
  %v4288 = vshrl.u32 %v4287, 7
  %v4289 = vsub.s32 0, %v4288
  %v4290 = vrot.slane %v4284, %v4289
  %v4291 = vsub.f32 %v4055, %v4290
  %v4292 = vsub.f32 %v4056, %v4290
  %v4293 = vsub.f32 %v4057, %v4290
  %v4294 = vsub.f32 %v4058, %v4290
  %v4295 = vsub.f32 %v4059, %v4290
  %v4296 = vsub.f32 %v4060, %v4290
  %v4297 = vsub.f32 %v4061, %v4290
  %v4298 = vsub.f32 %v4062, %v4290
  %v4299 = vsub.f32 %v4063, %v4290
  %v4300 = vsub.f32 %v4064, %v4290
  %v4301 = vsub.f32 %v4065, %v4290
  %v4302 = vsub.f32 %v4066, %v4290
  %v4303 = vsub.f32 %v4067, %v4290
  %v4304 = vsub.f32 %v4068, %v4290
  %v4305 = vsub.f32 %v4069, %v4290
  %v4306 = vsub.f32 %v4070, %v4290
  %v4307 = vsub.f32 %v4071, %v4290
  %v4308 = vsub.f32 %v4072, %v4290
  %v4309 = vsub.f32 %v4073, %v4290
  %v4310 = vsub.f32 %v4074, %v4290
  %v4311 = vsub.f32 %v4075, %v4290
  %v4312 = vsub.f32 %v4076, %v4290
  %v4313 = vsub.f32 %v4077, %v4290
  %v4314 = vsub.f32 %v4078, %v4290
  %v4315 = vsub.f32 %v4079, %v4290
  %v4316 = vsub.f32 %v4080, %v4290
  %v4317 = vsub.f32 %v4081, %v4290
  %v4318 = vsub.f32 %v4082, %v4290
  %v4319 = vsub.f32 %v4083, %v4290
  %v4320 = vsub.f32 %v4084, %v4290
  %v4321 = vsub.f32 %v4085, %v4290
  %v4322 = vsub.f32 %v4086, %v4290
  %v4323 = vmul.f32 %v4291, %v4291
  %v4324 = vmul.f32 %v4292, %v4292
  %v4325 = vmul.f32 %v4293, %v4293
  %v4326 = vmul.f32 %v4294, %v4294
  %v4327 = vmul.f32 %v4295, %v4295
  %v4328 = vmul.f32 %v4296, %v4296
  %v4329 = vmul.f32 %v4297, %v4297
  %v4330 = vmul.f32 %v4298, %v4298
  %v4331 = vmul.f32 %v4299, %v4299
  %v4332 = vmul.f32 %v4300, %v4300
  %v4333 = vmul.f32 %v4301, %v4301
  %v4334 = vmul.f32 %v4302, %v4302
  %v4335 = vmul.f32 %v4303, %v4303
  %v4336 = vmul.f32 %v4304, %v4304
  %v4337 = vmul.f32 %v4305, %v4305
  %v4338 = vmul.f32 %v4306, %v4306
  %v4339 = vmul.f32 %v4307, %v4307
  %v4340 = vmul.f32 %v4308, %v4308
  %v4341 = vmul.f32 %v4309, %v4309
  %v4342 = vmul.f32 %v4310, %v4310
  %v4343 = vmul.f32 %v4311, %v4311
  %v4344 = vmul.f32 %v4312, %v4312
  %v4345 = vmul.f32 %v4313, %v4313
  %v4346 = vmul.f32 %v4314, %v4314
  %v4347 = vmul.f32 %v4315, %v4315
  %v4348 = vmul.f32 %v4316, %v4316
  %v4349 = vmul.f32 %v4317, %v4317
  %v4350 = vmul.f32 %v4318, %v4318
  %v4351 = vmul.f32 %v4319, %v4319
  %v4352 = vmul.f32 %v4320, %v4320
  %v4353 = vmul.f32 %v4321, %v4321
  %v4354 = vmul.f32 %v4322, %v4322
  %v4355 = vadd.f32 %v4323, %v4324
  %v4356 = vadd.f32 %v4355, %v4325
  %v4357 = vadd.f32 %v4356, %v4326
  %v4358 = vadd.f32 %v4357, %v4327
  %v4359 = vadd.f32 %v4358, %v4328
  %v4360 = vadd.f32 %v4359, %v4329
  %v4361 = vadd.f32 %v4360, %v4330
  %v4362 = vadd.f32 %v4361, %v4331
  %v4363 = vadd.f32 %v4362, %v4332
  %v4364 = vadd.f32 %v4363, %v4333
  %v4365 = vadd.f32 %v4364, %v4334
  %v4366 = vadd.f32 %v4365, %v4335
  %v4367 = vadd.f32 %v4366, %v4336
  %v4368 = vadd.f32 %v4367, %v4337
  %v4369 = vadd.f32 %v4368, %v4338
  %v4370 = vadd.f32 %v4369, %v4339
  %v4371 = vadd.f32 %v4370, %v4340
  %v4372 = vadd.f32 %v4371, %v4341
  %v4373 = vadd.f32 %v4372, %v4342
  %v4374 = vadd.f32 %v4373, %v4343
  %v4375 = vadd.f32 %v4374, %v4344
  %v4376 = vadd.f32 %v4375, %v4345
  %v4377 = vadd.f32 %v4376, %v4346
  %v4378 = vadd.f32 %v4377, %v4347
  %v4379 = vadd.f32 %v4378, %v4348
  %v4380 = vadd.f32 %v4379, %v4349
  %v4381 = vadd.f32 %v4380, %v4350
  %v4382 = vadd.f32 %v4381, %v4351
  %v4383 = vadd.f32 %v4382, %v4352
  %v4384 = vadd.f32 %v4383, %v4353
  %v4385 = vadd.f32 %v4384, %v4354
  %v4386 = vrot.slane %v4385, 4
  %v4387 = vadd.f32 %v4385, %v4386
  %v4388 = vrot.slane %v4387, 2
  %v4389 = vadd.f32 %v4387, %v4388
  %v4390 = vrot.slane %v4389, 1
  %v4391 = vadd.f32 %v4389, %v4390
  %4392 = vmatprep.subr.mxu0 0.0
  %4393 = vmatpush1.msra.mxu0 %v4124
  %4394 = vmatprep.subr.mxu0 0.0
  %4395 = vmatpush1.msra.mxu0 %v4125
  %4396 = vmatprep.subr.mxu0 0.0
  %4397 = vmatpush1.msra.mxu0 %v4126
  %4398 = vmatprep.subr.mxu0 0.0
  %4399 = vmatpush1.msra.mxu0 %v4127
  %4400 = vmatprep.subr.mxu0 0.0
  %4401 = vmatpush1.msra.mxu0 %v4128
  %4402 = vmatprep.subr.mxu0 0.0
  %4403 = vmatpush1.msra.mxu0 %v4129
  %4404 = vmatprep.subr.mxu0 0.0
  %4405 = vmatpush1.msra.mxu0 %v4130
  %4406 = vmatprep.subr.mxu0 0.0
  %4407 = vmatpush1.msra.mxu0 %v4131
  %4408 = vmatprep.subr.mxu0 0.0
  %4409 = vmatpush1.msra.mxu0 %v4132
  %4410 = vmatprep.subr.mxu0 0.0
  %4411 = vmatpush1.msra.mxu0 %v4133
  %4412 = vmatprep.subr.mxu0 0.0
  %4413 = vmatpush1.msra.mxu0 %v4134
  %4414 = vmatprep.subr.mxu0 0.0
  %4415 = vmatpush1.msra.mxu0 %v4135
  %4416 = vmatprep.subr.mxu0 0.0
  %4417 = vmatpush1.msra.mxu0 %v4136
  %4418 = vmatprep.subr.mxu0 0.0
  %4419 = vmatpush1.msra.mxu0 %v4137
  %4420 = vmatprep.subr.mxu0 0.0
  %4421 = vmatpush1.msra.mxu0 %v4138
  %4422 = vmatprep.subr.mxu0 0.0
  %4423 = vmatpush1.msra.mxu0 %v4139
  %4424 = vmatprep.subr.mxu0 0.0
  %4425 = vmatpush1.msra.mxu0 0.0
  %4426 = vmatprep.subr.mxu0 0.0
  %4427 = vmatpush1.msra.mxu0 0.0
  %4428 = vmatprep.subr.mxu0 0.0
  %4429 = vmatpush1.msra.mxu0 0.0
  %4430 = vmatprep.subr.mxu0 0.0
  %4431 = vmatpush1.msra.mxu0 0.0
  %4432 = vmatprep.subr.mxu0 0.0
  %4433 = vmatpush1.msra.mxu0 0.0
  %4434 = vmatprep.subr.mxu0 0.0
  %4435 = vmatpush1.msra.mxu0 0.0
  %4436 = vmatprep.subr.mxu0 0.0
  %4437 = vmatpush1.msra.mxu0 0.0
  %4438 = vmatprep.subr.mxu0 0.0
  %4439 = vmatpush1.msra.mxu0 0.0
  %4440 = vmatprep.subr.mxu0 0.0
  %4441 = vmatpush1.msra.mxu0 0.0
  %4442 = vmatprep.subr.mxu0 0.0
  %4443 = vmatpush1.msra.mxu0 0.0
  %4444 = vmatprep.subr.mxu0 0.0
  %4445 = vmatpush1.msra.mxu0 0.0
  %4446 = vmatprep.subr.mxu0 0.0
  %4447 = vmatpush1.msra.mxu0 0.0
  %4448 = vmatprep.subr.mxu0 0.0
  %4449 = vmatpush1.msra.mxu0 0.0
  %4450 = vmatprep.subr.mxu0 0.0
  %4451 = vmatpush1.msra.mxu0 0.0
  %4452 = vmatprep.subr.mxu0 0.0
  %4453 = vmatpush1.msra.mxu0 0.0
  %4454 = vmatprep.subr.mxu0 0.0
  %4455 = vmatpush1.msra.mxu0 0.0
  %4456 = vmatprep.mubr.f32.mxu0 0.0
  %4457 = vmatmul.mubr.f32.gmra.mrb[0].mxu0 %v4391
  %v4458 = vpop.f32.mrb[0].mxu0
  %v4459 = vadd.f32 0.0, %v4458
  %v4460 = vpop.f32.mrb[0].mxu0
  %4461 = vdwg.mxu0
  %v4462 = vmul.f32 %v4459, %v4210
  %v4463 = vld [vmem:[%s4] sm:$0x1]
  %v4464 = vadd.f32 %v4462, 1e-05
  %v4465 = vrsqrt.pop %v4464
  %v4466 = vmul.f32 %v4463, %v4465
  %v4468 = vsel %vm4213, %v4466, 0
  %4470 = vmatprep.subr.mxu0 0.0
  %4471 = vmatpush1.msra.mxu0 %v4212
  %4472 = vmatprep.subr.mxu0 0.0
  %4473 = vmatpush1.msra.mxu0 0.0
  %4474 = vmatprep.subr.mxu0 0.0
  %4475 = vmatpush1.msra.mxu0 0.0
  %4476 = vmatprep.subr.mxu0 0.0
  %4477 = vmatpush1.msra.mxu0 0.0
  %4478 = vmatprep.subr.mxu0 0.0
  %4479 = vmatpush1.msra.mxu0 0.0
  %4480 = vmatprep.subr.mxu0 0.0
  %4481 = vmatpush1.msra.mxu0 0.0
  %4482 = vmatprep.subr.mxu0 0.0
  %4483 = vmatpush1.msra.mxu0 0.0
  %4484 = vmatprep.subr.mxu0 0.0
  %4485 = vmatpush1.msra.mxu0 0.0
  %4486 = vmatprep.subr.mxu0 0.0
  %4487 = vmatpush1.msra.mxu0 0.0
  %4488 = vmatprep.subr.mxu0 0.0
  %4489 = vmatpush1.msra.mxu0 0.0
  %4490 = vmatprep.subr.mxu0 0.0
  %4491 = vmatpush1.msra.mxu0 0.0
  %4492 = vmatprep.subr.mxu0 0.0
  %4493 = vmatpush1.msra.mxu0 0.0
  %4494 = vmatprep.subr.mxu0 0.0
  %4495 = vmatpush1.msra.mxu0 0.0
  %4496 = vmatprep.subr.mxu0 0.0
  %4497 = vmatpush1.msra.mxu0 0.0
  %4498 = vmatprep.subr.mxu0 0.0
  %4499 = vmatpush1.msra.mxu0 0.0
  %4500 = vmatprep.subr.mxu0 0.0
  %4501 = vmatpush1.msra.mxu0 0.0
  %4502 = vmatprep.subr.mxu0 0.0
  %4503 = vmatpush1.msra.mxu0 0.0
  %4504 = vmatprep.subr.mxu0 0.0
  %4505 = vmatpush1.msra.mxu0 0.0
  %4506 = vmatprep.subr.mxu0 0.0
  %4507 = vmatpush1.msra.mxu0 0.0
  %4508 = vmatprep.subr.mxu0 0.0
  %4509 = vmatpush1.msra.mxu0 0.0
  %4510 = vmatprep.subr.mxu0 0.0
  %4511 = vmatpush1.msra.mxu0 0.0
  %4512 = vmatprep.subr.mxu0 0.0
  %4513 = vmatpush1.msra.mxu0 0.0
  %4514 = vmatprep.subr.mxu0 0.0
  %4515 = vmatpush1.msra.mxu0 0.0
  %4516 = vmatprep.subr.mxu0 0.0
  %4517 = vmatpush1.msra.mxu0 0.0
  %4518 = vmatprep.subr.mxu0 0.0
  %4519 = vmatpush1.msra.mxu0 0.0
  %4520 = vmatprep.subr.mxu0 0.0
  %4521 = vmatpush1.msra.mxu0 0.0
  %4522 = vmatprep.subr.mxu0 0.0
  %4523 = vmatpush1.msra.mxu0 0.0
  %4524 = vmatprep.subr.mxu0 0.0
  %4525 = vmatpush1.msra.mxu0 0.0
  %4526 = vmatprep.subr.mxu0 0.0
  %4527 = vmatpush1.msra.mxu0 0.0
  %4528 = vmatprep.subr.mxu0 0.0
  %4529 = vmatpush1.msra.mxu0 0.0
  %4530 = vmatprep.subr.mxu0 0.0
  %4531 = vmatpush1.msra.mxu0 0.0
  %4532 = vmatprep.subr.mxu0 0.0
  %4533 = vmatpush1.msra.mxu0 0.0
  %4534 = vmatprep.mubr.f32.mxu0 0.0
  %4535 = vmatmul.mubr.f32.gmra.mrb[0].mxu0 %v4468
  %v4536 = vpop.f32.mrb[0].mxu0
  %v4537 = vadd.f32 0.0, %v4536
  %v4538 = vpop.f32.mrb[0].mxu0
  %4539 = vdwg.mxu0
  %v4540 = vld [vmem:[%s5] sm:$0x1]
  %v4542 = vsel %vm4213, %v4540, 0
  %4544 = vmatprep.subr.mxu0 0.0
  %4545 = vmatpush1.msra.mxu0 %v4212
  %4546 = vmatprep.subr.mxu0 0.0
  %4547 = vmatpush1.msra.mxu0 0.0
  %4548 = vmatprep.subr.mxu0 0.0
  %4549 = vmatpush1.msra.mxu0 0.0
  %4550 = vmatprep.subr.mxu0 0.0
  %4551 = vmatpush1.msra.mxu0 0.0
  %4552 = vmatprep.subr.mxu0 0.0
  %4553 = vmatpush1.msra.mxu0 0.0
  %4554 = vmatprep.subr.mxu0 0.0
  %4555 = vmatpush1.msra.mxu0 0.0
  %4556 = vmatprep.subr.mxu0 0.0
  %4557 = vmatpush1.msra.mxu0 0.0
  %4558 = vmatprep.subr.mxu0 0.0
  %4559 = vmatpush1.msra.mxu0 0.0
  %4560 = vmatprep.subr.mxu0 0.0
  %4561 = vmatpush1.msra.mxu0 0.0
  %4562 = vmatprep.subr.mxu0 0.0
  %4563 = vmatpush1.msra.mxu0 0.0
  %4564 = vmatprep.subr.mxu0 0.0
  %4565 = vmatpush1.msra.mxu0 0.0
  %4566 = vmatprep.subr.mxu0 0.0
  %4567 = vmatpush1.msra.mxu0 0.0
  %4568 = vmatprep.subr.mxu0 0.0
  %4569 = vmatpush1.msra.mxu0 0.0
  %4570 = vmatprep.subr.mxu0 0.0
  %4571 = vmatpush1.msra.mxu0 0.0
  %4572 = vmatprep.subr.mxu0 0.0
  %4573 = vmatpush1.msra.mxu0 0.0
  %4574 = vmatprep.subr.mxu0 0.0
  %4575 = vmatpush1.msra.mxu0 0.0
  %4576 = vmatprep.subr.mxu0 0.0
  %4577 = vmatpush1.msra.mxu0 0.0
  %4578 = vmatprep.subr.mxu0 0.0
  %4579 = vmatpush1.msra.mxu0 0.0
  %4580 = vmatprep.subr.mxu0 0.0
  %4581 = vmatpush1.msra.mxu0 0.0
  %4582 = vmatprep.subr.mxu0 0.0
  %4583 = vmatpush1.msra.mxu0 0.0
  %4584 = vmatprep.subr.mxu0 0.0
  %4585 = vmatpush1.msra.mxu0 0.0
  %4586 = vmatprep.subr.mxu0 0.0
  %4587 = vmatpush1.msra.mxu0 0.0
  %4588 = vmatprep.subr.mxu0 0.0
  %4589 = vmatpush1.msra.mxu0 0.0
  %4590 = vmatprep.subr.mxu0 0.0
  %4591 = vmatpush1.msra.mxu0 0.0
  %4592 = vmatprep.subr.mxu0 0.0
  %4593 = vmatpush1.msra.mxu0 0.0
  %4594 = vmatprep.subr.mxu0 0.0
  %4595 = vmatpush1.msra.mxu0 0.0
  %4596 = vmatprep.subr.mxu0 0.0
  %4597 = vmatpush1.msra.mxu0 0.0
  %4598 = vmatprep.subr.mxu0 0.0
  %4599 = vmatpush1.msra.mxu0 0.0
  %4600 = vmatprep.subr.mxu0 0.0
  %4601 = vmatpush1.msra.mxu0 0.0
  %4602 = vmatprep.subr.mxu0 0.0
  %4603 = vmatpush1.msra.mxu0 0.0
  %4604 = vmatprep.subr.mxu0 0.0
  %4605 = vmatpush1.msra.mxu0 0.0
  %4606 = vmatprep.subr.mxu0 0.0
  %4607 = vmatpush1.msra.mxu0 0.0
  %4608 = vmatprep.mubr.f32.mxu0 0.0
  %4609 = vmatmul.mubr.f32.gmra.mrb[0].mxu0 %v4542
  %v4610 = vpop.f32.mrb[0].mxu0
  %v4611 = vadd.f32 0.0, %v4610
  %v4612 = vpop.f32.mrb[0].mxu0
  %4613 = vdwg.mxu0
  %v4614 = vlaneseq
  %v4615 = vshrl.u32 %v4614, 7
  %v4616 = vsub.s32 0, %v4615
  %v4617 = vrot.slane %v4537, %v4616
  %v4618 = vmul.f32 %v4291, %v4617
  %v4619 = vmul.f32 %v4292, %v4617
  %v4620 = vmul.f32 %v4293, %v4617
  %v4621 = vmul.f32 %v4294, %v4617
  %v4622 = vmul.f32 %v4295, %v4617
  %v4623 = vmul.f32 %v4296, %v4617
  %v4624 = vmul.f32 %v4297, %v4617
  %v4625 = vmul.f32 %v4298, %v4617
  %v4626 = vmul.f32 %v4299, %v4617
  %v4627 = vmul.f32 %v4300, %v4617
  %v4628 = vmul.f32 %v4301, %v4617
  %v4629 = vmul.f32 %v4302, %v4617
  %v4630 = vmul.f32 %v4303, %v4617
  %v4631 = vmul.f32 %v4304, %v4617
  %v4632 = vmul.f32 %v4305, %v4617
  %v4633 = vmul.f32 %v4306, %v4617
  %v4634 = vmul.f32 %v4307, %v4617
  %v4635 = vmul.f32 %v4308, %v4617
  %v4636 = vmul.f32 %v4309, %v4617
  %v4637 = vmul.f32 %v4310, %v4617
  %v4638 = vmul.f32 %v4311, %v4617
  %v4639 = vmul.f32 %v4312, %v4617
  %v4640 = vmul.f32 %v4313, %v4617
  %v4641 = vmul.f32 %v4314, %v4617
  %v4642 = vmul.f32 %v4315, %v4617
  %v4643 = vmul.f32 %v4316, %v4617
  %v4644 = vmul.f32 %v4317, %v4617
  %v4645 = vmul.f32 %v4318, %v4617
  %v4646 = vmul.f32 %v4319, %v4617
  %v4647 = vmul.f32 %v4320, %v4617
  %v4648 = vmul.f32 %v4321, %v4617
  %v4649 = vmul.f32 %v4322, %v4617
  %v4650 = vlaneseq
  %v4651 = vshrl.u32 %v4650, 7
  %v4652 = vsub.s32 0, %v4651
  %v4653 = vrot.slane %v4611, %v4652
  %v4654 = vadd.f32 %v4618, %v4653
  %v4655 = vadd.f32 %v4619, %v4653
  %v4656 = vadd.f32 %v4620, %v4653
  %v4657 = vadd.f32 %v4621, %v4653
  %v4658 = vadd.f32 %v4622, %v4653
  %v4659 = vadd.f32 %v4623, %v4653
  %v4660 = vadd.f32 %v4624, %v4653
  %v4661 = vadd.f32 %v4625, %v4653
  %v4662 = vadd.f32 %v4626, %v4653
  %v4663 = vadd.f32 %v4627, %v4653
  %v4664 = vadd.f32 %v4628, %v4653
  %v4665 = vadd.f32 %v4629, %v4653
  %v4666 = vadd.f32 %v4630, %v4653
  %v4667 = vadd.f32 %v4631, %v4653
  %v4668 = vadd.f32 %v4632, %v4653
  %v4669 = vadd.f32 %v4633, %v4653
  %v4670 = vadd.f32 %v4634, %v4653
  %v4671 = vadd.f32 %v4635, %v4653
  %v4672 = vadd.f32 %v4636, %v4653
  %v4673 = vadd.f32 %v4637, %v4653
  %v4674 = vadd.f32 %v4638, %v4653
  %v4675 = vadd.f32 %v4639, %v4653
  %v4676 = vadd.f32 %v4640, %v4653
  %v4677 = vadd.f32 %v4641, %v4653
  %v4678 = vadd.f32 %v4642, %v4653
  %v4679 = vadd.f32 %v4643, %v4653
  %v4680 = vadd.f32 %v4644, %v4653
  %v4681 = vadd.f32 %v4645, %v4653
  %v4682 = vadd.f32 %v4646, %v4653
  %v4683 = vadd.f32 %v4647, %v4653
  %v4684 = vadd.f32 %v4648, %v4653
  %v4685 = vadd.f32 %v4649, %v4653
  %v4686 = vmax.f32 %v4654, 0.0
  %v4687 = vmax.f32 %v4655, 0.0
  %v4688 = vmax.f32 %v4656, 0.0
  %v4689 = vmax.f32 %v4657, 0.0
  %v4690 = vmax.f32 %v4658, 0.0
  %v4691 = vmax.f32 %v4659, 0.0
  %v4692 = vmax.f32 %v4660, 0.0
  %v4693 = vmax.f32 %v4661, 0.0
  %v4694 = vmax.f32 %v4662, 0.0
  %v4695 = vmax.f32 %v4663, 0.0
  %v4696 = vmax.f32 %v4664, 0.0
  %v4697 = vmax.f32 %v4665, 0.0
  %v4698 = vmax.f32 %v4666, 0.0
  %v4699 = vmax.f32 %v4667, 0.0
  %v4700 = vmax.f32 %v4668, 0.0
  %v4701 = vmax.f32 %v4669, 0.0
  %v4702 = vmax.f32 %v4670, 0.0
  %v4703 = vmax.f32 %v4671, 0.0
  %v4704 = vmax.f32 %v4672, 0.0
  %v4705 = vmax.f32 %v4673, 0.0
  %v4706 = vmax.f32 %v4674, 0.0
  %v4707 = vmax.f32 %v4675, 0.0
  %v4708 = vmax.f32 %v4676, 0.0
  %v4709 = vmax.f32 %v4677, 0.0
  %v4710 = vmax.f32 %v4678, 0.0
  %v4711 = vmax.f32 %v4679, 0.0
  %v4712 = vmax.f32 %v4680, 0.0
  %v4713 = vmax.f32 %v4681, 0.0
  %v4714 = vmax.f32 %v4682, 0.0
  %v4715 = vmax.f32 %v4683, 0.0
  %v4716 = vmax.f32 %v4684, 0.0
  %v4717 = vmax.f32 %v4685, 0.0
  %v4718 = vpack.c.bf16 %v4687, %v4686
  %v4719 = vpack.c.bf16 %v4689, %v4688
  %v4720 = vpack.c.bf16 %v4691, %v4690
  %v4721 = vpack.c.bf16 %v4693, %v4692
  %v4722 = vpack.c.bf16 %v4695, %v4694
  %v4723 = vpack.c.bf16 %v4697, %v4696
  %v4724 = vpack.c.bf16 %v4699, %v4698
  %v4725 = vpack.c.bf16 %v4701, %v4700
  %v4726 = vpack.c.bf16 %v4703, %v4702
  %v4727 = vpack.c.bf16 %v4705, %v4704
  %v4728 = vpack.c.bf16 %v4707, %v4706
  %v4729 = vpack.c.bf16 %v4709, %v4708
  %v4730 = vpack.c.bf16 %v4711, %v4710
  %v4731 = vpack.c.bf16 %v4713, %v4712
  %v4732 = vpack.c.bf16 %v4715, %v4714
  %v4733 = vpack.c.bf16 %v4717, %v4716
  %v4735 = vshrl.u32 %v4718, 16
  %v4737 = vrot.slane %v4735, 7
  %v4738 = vshll.u32 %v4718, 16
  %v4740 = vor.u32 %v4737, %v4738
  %v4742 = vshrl.u32 %v4719, 16
  %v4744 = vrot.slane %v4742, 7
  %v4745 = vshll.u32 %v4719, 16
  %v4747 = vor.u32 %v4744, %v4745
  %v4749 = vshrl.u32 %v4720, 16
  %v4751 = vrot.slane %v4749, 7
  %v4752 = vshll.u32 %v4720, 16
  %v4754 = vor.u32 %v4751, %v4752
  %v4756 = vshrl.u32 %v4721, 16
  %v4758 = vrot.slane %v4756, 7
  %v4759 = vshll.u32 %v4721, 16
  %v4761 = vor.u32 %v4758, %v4759
  %v4763 = vshrl.u32 %v4722, 16
  %v4765 = vrot.slane %v4763, 7
  %v4766 = vshll.u32 %v4722, 16
  %v4768 = vor.u32 %v4765, %v4766
  %v4770 = vshrl.u32 %v4723, 16
  %v4772 = vrot.slane %v4770, 7
  %v4773 = vshll.u32 %v4723, 16
  %v4775 = vor.u32 %v4772, %v4773
  %v4777 = vshrl.u32 %v4724, 16
  %v4779 = vrot.slane %v4777, 7
  %v4780 = vshll.u32 %v4724, 16
  %v4782 = vor.u32 %v4779, %v4780
  %v4784 = vshrl.u32 %v4725, 16
  %v4786 = vrot.slane %v4784, 7
  %v4787 = vshll.u32 %v4725, 16
  %v4789 = vor.u32 %v4786, %v4787
  %v4791 = vshrl.u32 %v4726, 16
  %v4793 = vrot.slane %v4791, 7
  %v4794 = vshll.u32 %v4726, 16
  %v4796 = vor.u32 %v4793, %v4794
  %v4798 = vshrl.u32 %v4727, 16
  %v4800 = vrot.slane %v4798, 7
  %v4801 = vshll.u32 %v4727, 16
  %v4803 = vor.u32 %v4800, %v4801
  %v4805 = vshrl.u32 %v4728, 16
  %v4807 = vrot.slane %v4805, 7
  %v4808 = vshll.u32 %v4728, 16
  %v4810 = vor.u32 %v4807, %v4808
  %v4812 = vshrl.u32 %v4729, 16
  %v4814 = vrot.slane %v4812, 7
  %v4815 = vshll.u32 %v4729, 16
  %v4817 = vor.u32 %v4814, %v4815
  %v4819 = vshrl.u32 %v4730, 16
  %v4821 = vrot.slane %v4819, 7
  %v4822 = vshll.u32 %v4730, 16
  %v4824 = vor.u32 %v4821, %v4822
  %v4826 = vshrl.u32 %v4731, 16
  %v4828 = vrot.slane %v4826, 7
  %v4829 = vshll.u32 %v4731, 16
  %v4831 = vor.u32 %v4828, %v4829
  %v4833 = vshrl.u32 %v4732, 16
  %v4835 = vrot.slane %v4833, 7
  %v4836 = vshll.u32 %v4732, 16
  %v4838 = vor.u32 %v4835, %v4836
  %v4840 = vshrl.u32 %v4733, 16
  %v4842 = vrot.slane %v4840, 7
  %v4843 = vshll.u32 %v4733, 16
  %v4845 = vor.u32 %v4842, %v4843
  %v4878 = vsel %vm553, 0, %v4740
  %v4879 = vsel %vm553, 0, %v4747
  %v4880 = vsel %vm553, 0, %v4754
  %v4881 = vsel %vm553, 0, %v4761
  %v4882 = vsel %vm553, 0, %v4768
  %v4883 = vsel %vm553, 0, %v4775
  %v4884 = vsel %vm553, 0, %v4782
  %v4885 = vsel %vm553, 0, %v4789
  %v4886 = vsel %vm553, 0, %v4796
  %v4887 = vsel %vm553, 0, %v4803
  %v4888 = vsel %vm553, 0, %v4810
  %v4889 = vsel %vm553, 0, %v4817
  %v4890 = vsel %vm553, 0, %v4824
  %v4891 = vsel %vm553, 0, %v4831
  %v4892 = vsel %vm553, 0, %v4838
  %v4893 = vsel %vm553, 0, %v4845
  %v4894 = vsel %vm553, %v4737, 0
  %v4895 = vsel %vm553, %v4744, 0
  %v4896 = vsel %vm553, %v4751, 0
  %v4897 = vsel %vm553, %v4758, 0
  %v4898 = vsel %vm553, %v4765, 0
  %v4899 = vsel %vm553, %v4772, 0
  %v4900 = vsel %vm553, %v4779, 0
  %v4901 = vsel %vm553, %v4786, 0
  %v4902 = vsel %vm553, %v4793, 0
  %v4903 = vsel %vm553, %v4800, 0
  %v4904 = vsel %vm553, %v4807, 0
  %v4905 = vsel %vm553, %v4814, 0
  %v4906 = vsel %vm553, %v4821, 0
  %v4907 = vsel %vm553, %v4828, 0
  %v4908 = vsel %vm553, %v4835, 0
  %v4909 = vsel %vm553, %v4842, 0
  %v4910 = vld [vmem:[%s6] sm:$0xf]
  %v4911 = vld [vmem:[%s6 + $0x4] sm:$0xf]
  %v4912 = vld [vmem:[%s6 + $0x8] sm:$0xf]
  %v4913 = vld [vmem:[%s6 + $0xc] sm:$0xf]
  %v4914 = vld [vmem:[%s6 + $0x10] sm:$0xf]
  %v4915 = vld [vmem:[%s6 + $0x14] sm:$0xf]
  %v4916 = vld [vmem:[%s6 + $0x18] sm:$0xf]
  %v4917 = vld [vmem:[%s6 + $0x1c] sm:$0xf]
  %v4918 = vld [vmem:[%s6 + $0x20] sm:$0xf]
  %v4919 = vld [vmem:[%s6 + $0x24] sm:$0xf]
  %v4920 = vld [vmem:[%s6 + $0x28] sm:$0xf]
  %v4921 = vld [vmem:[%s6 + $0x2c] sm:$0xf]
  %v4922 = vld [vmem:[%s6 + $0x30] sm:$0xf]
  %v4923 = vld [vmem:[%s6 + $0x34] sm:$0xf]
  %v4924 = vld [vmem:[%s6 + $0x38] sm:$0xf]
  %v4925 = vld [vmem:[%s6 + $0x3c] sm:$0xf]
  %v4927 = vshrl.u32 %v4879, 16
  %v4929 = vshll.u32 %v4879, 16
  %v4931 = vrot.slane %v4929, 1
  %v4932 = vor.u32 %v4927, %v4931
  %v4934 = vshll.u32 %v4895, 16
  %v4936 = vrot.slane %v4934, 1
  %v4937 = vsel %vm626, %v4932, %v4936
  %v4939 = vshrl.u32 %v4881, 16
  %v4941 = vshll.u32 %v4881, 16
  %v4943 = vrot.slane %v4941, 1
  %v4944 = vor.u32 %v4939, %v4943
  %v4946 = vshll.u32 %v4897, 16
  %v4948 = vrot.slane %v4946, 1
  %v4949 = vsel %vm626, %v4944, %v4948
  %v4951 = vshrl.u32 %v4883, 16
  %v4953 = vshll.u32 %v4883, 16
  %v4955 = vrot.slane %v4953, 1
  %v4956 = vor.u32 %v4951, %v4955
  %v4958 = vshll.u32 %v4899, 16
  %v4960 = vrot.slane %v4958, 1
  %v4961 = vsel %vm626, %v4956, %v4960
  %v4963 = vshrl.u32 %v4887, 16
  %v4965 = vshll.u32 %v4887, 16
  %v4967 = vrot.slane %v4965, 1
  %v4968 = vor.u32 %v4963, %v4967
  %v4970 = vshll.u32 %v4903, 16
  %v4972 = vrot.slane %v4970, 1
  %v4973 = vsel %vm626, %v4968, %v4972
  %v4975 = vshrl.u32 %v4889, 16
  %v4977 = vshll.u32 %v4889, 16
  %v4979 = vrot.slane %v4977, 1
  %v4980 = vor.u32 %v4975, %v4979
  %v4982 = vshll.u32 %v4905, 16
  %v4984 = vrot.slane %v4982, 1
  %v4985 = vsel %vm626, %v4980, %v4984
  %v4987 = vshrl.u32 %v4891, 16
  %v4989 = vshll.u32 %v4891, 16
  %v4991 = vrot.slane %v4989, 1
  %v4992 = vor.u32 %v4987, %v4991
  %v4994 = vshll.u32 %v4907, 16
  %v4996 = vrot.slane %v4994, 1
  %v4997 = vsel %vm626, %v4992, %v4996
  %s5005 = scalar_lea.vmem %s6, 64
  %v5006 = vld [vmem:[%s5005] sm:$0xf]
  %v5007 = vld [vmem:[%s5005 + $0x4] sm:$0xf]
  %v5008 = vld [vmem:[%s5005 + $0x8] sm:$0xf]
  %v5009 = vld [vmem:[%s5005 + $0xc] sm:$0xf]
  %v5010 = vld [vmem:[%s5005 + $0x10] sm:$0xf]
  %v5011 = vld [vmem:[%s5005 + $0x14] sm:$0xf]
  %v5012 = vld [vmem:[%s5005 + $0x18] sm:$0xf]
  %v5013 = vld [vmem:[%s5005 + $0x1c] sm:$0xf]
  %v5014 = vld [vmem:[%s5005 + $0x20] sm:$0xf]
  %v5015 = vld [vmem:[%s5005 + $0x24] sm:$0xf]
  %v5016 = vld [vmem:[%s5005 + $0x28] sm:$0xf]
  %v5017 = vld [vmem:[%s5005 + $0x2c] sm:$0xf]
  %v5018 = vld [vmem:[%s5005 + $0x30] sm:$0xf]
  %v5019 = vld [vmem:[%s5005 + $0x34] sm:$0xf]
  %v5020 = vld [vmem:[%s5005 + $0x38] sm:$0xf]
  %v5021 = vld [vmem:[%s5005 + $0x3c] sm:$0xf]
  %v5038 = vunpack.c.l.b16 %v5006
  %v5039 = vunpack.c.l.b16 %v5007
  %v5040 = vunpack.c.l.b16 %v5008
  %v5041 = vunpack.c.l.b16 %v5009
  %v5042 = vunpack.c.l.b16 %v5010
  %v5043 = vunpack.c.l.b16 %v5011
  %v5044 = vunpack.c.l.b16 %v5012
  %v5045 = vunpack.c.l.b16 %v5013
  %v5046 = vunpack.c.l.b16 %v5014
  %v5047 = vunpack.c.l.b16 %v5015
  %v5048 = vunpack.c.l.b16 %v5016
  %v5049 = vunpack.c.l.b16 %v5017
  %v5050 = vunpack.c.l.b16 %v5018
  %v5051 = vunpack.c.l.b16 %v5019
  %v5052 = vunpack.c.l.b16 %v5020
  %v5053 = vunpack.c.l.b16 %v5021
  %v5054 = vpack.c.b16 %v5039, %v5038
  %v5055 = vpack.c.b16 %v5041, %v5040
  %v5056 = vpack.c.b16 %v5043, %v5042
  %v5057 = vpack.c.b16 %v5045, %v5044
  %v5058 = vpack.c.b16 %v5047, %v5046
  %v5059 = vpack.c.b16 %v5049, %v5048
  %v5060 = vpack.c.b16 %v5051, %v5050
  %v5061 = vpack.c.b16 %v5053, %v5052
  %5070 = vmatprep.subr.bf16.mxu0 0
  %5071 = vmatpush1.bf16.msra.mxu0 %v5054
  %5072 = vmatprep.subr.bf16.mxu0 0
  %5073 = vmatpush1.bf16.msra.mxu0 %v5055
  %5074 = vmatprep.subr.bf16.mxu0 0
  %5075 = vmatpush1.bf16.msra.mxu0 %v5056
  %5076 = vmatprep.subr.bf16.mxu0 0
  %5077 = vmatpush1.bf16.msra.mxu0 %v5057
  %5078 = vmatprep.subr.bf16.mxu0 0
  %5079 = vmatpush1.bf16.msra.mxu0 %v5058
  %5080 = vmatprep.subr.bf16.mxu0 0
  %5081 = vmatpush1.bf16.msra.mxu0 %v5059
  %5082 = vmatprep.subr.bf16.mxu0 0
  %5083 = vmatpush1.bf16.msra.mxu0 %v5060
  %5084 = vmatprep.subr.bf16.mxu0 0
  %5085 = vmatpush1.bf16.msra.mxu0 %v5061
  %5086 = vmatprep.subr.bf16.mxu0 0
  %5087 = vmatpush1.bf16.msra.mxu0 0
  %5088 = vmatprep.subr.bf16.mxu0 0
  %5089 = vmatpush1.bf16.msra.mxu0 0
  %5090 = vmatprep.subr.bf16.mxu0 0
  %5091 = vmatpush1.bf16.msra.mxu0 0
  %5092 = vmatprep.subr.bf16.mxu0 0
  %5093 = vmatpush1.bf16.msra.mxu0 0
  %5094 = vmatprep.subr.bf16.mxu0 0
  %5095 = vmatpush1.bf16.msra.mxu0 0
  %5096 = vmatprep.subr.bf16.mxu0 0
  %5097 = vmatpush1.bf16.msra.mxu0 0
  %5098 = vmatprep.subr.bf16.mxu0 0
  %5099 = vmatpush1.bf16.msra.mxu0 0
  %5100 = vmatprep.subr.bf16.mxu0 0
  %5101 = vmatpush1.bf16.msra.mxu0 0
  %5102 = vmatprep.mubr.bf16.mxu0 0
  %5103 = vmatmul.mubr.bf16.gmra.mrb[0].mxu0 %v634
  %v5104 = vpop.f32.mrb[0].mxu0
  %v5105 = vadd.f32 0.0, %v5104
  %v5106 = vpop.f32.mrb[0].mxu0
  %v5107 = vpop.f32.mrb[0].mxu0
  %v5108 = vadd.f32 0.0, %v5107
  %v5109 = vpop.f32.mrb[0].mxu0
  %5110 = vmatprep.mubr.bf16.mxu0 0
  %5111 = vmatmul.mubr.bf16.gmra.mrb[0].mxu0 %v4937
  %v5112 = vpop.f32.mrb[0].mxu0
  %v5113 = vadd.f32 0.0, %v5112
  %v5114 = vpop.f32.mrb[0].mxu0
  %v5115 = vpop.f32.mrb[0].mxu0
  %v5116 = vadd.f32 0.0, %v5115
  %v5117 = vpop.f32.mrb[0].mxu0
  %5118 = vmatprep.mubr.bf16.mxu0 0
  %5119 = vmatmul.mubr.bf16.gmra.mrb[0].mxu0 %v4949
  %v5120 = vpop.f32.mrb[0].mxu0
  %v5121 = vadd.f32 0.0, %v5120
  %v5122 = vpop.f32.mrb[0].mxu0
  %v5123 = vpop.f32.mrb[0].mxu0
  %v5124 = vadd.f32 0.0, %v5123
  %v5125 = vpop.f32.mrb[0].mxu0
  %5126 = vmatprep.mubr.bf16.mxu0 0
  %5127 = vmatmul.mubr.bf16.gmra.mrb[0].mxu0 %v4961
  %v5128 = vpop.f32.mrb[0].mxu0
  %v5129 = vadd.f32 0.0, %v5128
  %v5130 = vpop.f32.mrb[0].mxu0
  %v5131 = vpop.f32.mrb[0].mxu0
  %v5132 = vadd.f32 0.0, %v5131
  %v5133 = vpop.f32.mrb[0].mxu0
  %5134 = vmatprep.mubr.bf16.mxu0 0
  %5135 = vmatmul.mubr.bf16.gmra.mrb[0].mxu0 %v634
  %v5136 = vpop.f32.mrb[0].mxu0
  %v5137 = vadd.f32 0.0, %v5136
  %v5138 = vpop.f32.mrb[0].mxu0
  %v5139 = vpop.f32.mrb[0].mxu0
  %v5140 = vadd.f32 0.0, %v5139
  %v5141 = vpop.f32.mrb[0].mxu0
  %5142 = vmatprep.mubr.bf16.mxu0 0
  %5143 = vmatmul.mubr.bf16.gmra.mrb[0].mxu0 %v4973
  %v5144 = vpop.f32.mrb[0].mxu0
  %v5145 = vadd.f32 0.0, %v5144
  %v5146 = vpop.f32.mrb[0].mxu0
  %v5147 = vpop.f32.mrb[0].mxu0
  %v5148 = vadd.f32 0.0, %v5147
  %v5149 = vpop.f32.mrb[0].mxu0
  %5150 = vmatprep.mubr.bf16.mxu0 0
  %5151 = vmatmul.mubr.bf16.gmra.mrb[0].mxu0 %v4985
  %v5152 = vpop.f32.mrb[0].mxu0
  %v5153 = vadd.f32 0.0, %v5152
  %v5154 = vpop.f32.mrb[0].mxu0
  %v5155 = vpop.f32.mrb[0].mxu0
  %v5156 = vadd.f32 0.0, %v5155
  %v5157 = vpop.f32.mrb[0].mxu0
  %5158 = vmatprep.mubr.bf16.mxu0 0
  %5159 = vmatmul.mubr.bf16.gmra.mrb[0].mxu0 %v4997
  %v5160 = vpop.f32.mrb[0].mxu0
  %v5161 = vadd.f32 0.0, %v5160
  %v5162 = vpop.f32.mrb[0].mxu0
  %v5163 = vpop.f32.mrb[0].mxu0
  %v5164 = vadd.f32 0.0, %v5163
  %v5165 = vpop.f32.mrb[0].mxu0
  %5166 = vdwg.mxu0
  %v5183 = vunpack.c.l.b16 %v4910
  %v5184 = vunpack.c.l.b16 %v4911
  %v5185 = vunpack.c.l.b16 %v4912
  %v5186 = vunpack.c.l.b16 %v4913
  %v5187 = vunpack.c.l.b16 %v4914
  %v5188 = vunpack.c.l.b16 %v4915
  %v5189 = vunpack.c.l.b16 %v4916
  %v5190 = vunpack.c.l.b16 %v4917
  %v5191 = vunpack.c.l.b16 %v4918
  %v5192 = vunpack.c.l.b16 %v4919
  %v5193 = vunpack.c.l.b16 %v4920
  %v5194 = vunpack.c.l.b16 %v4921
  %v5195 = vunpack.c.l.b16 %v4922
  %v5196 = vunpack.c.l.b16 %v4923
  %v5197 = vunpack.c.l.b16 %v4924
  %v5198 = vunpack.c.l.b16 %v4925
  %v5199 = vpack.c.b16 %v5184, %v5183
  %v5200 = vpack.c.b16 %v5186, %v5185
  %v5201 = vpack.c.b16 %v5188, %v5187
  %v5202 = vpack.c.b16 %v5190, %v5189
  %v5203 = vpack.c.b16 %v5192, %v5191
  %v5204 = vpack.c.b16 %v5194, %v5193
  %v5205 = vpack.c.b16 %v5196, %v5195
  %v5206 = vpack.c.b16 %v5198, %v5197
  %5215 = vmatprep.subr.bf16.mxu0 0
  %5216 = vmatpush1.bf16.msra.mxu0 %v5199
  %5217 = vmatprep.subr.bf16.mxu0 0
  %5218 = vmatpush1.bf16.msra.mxu0 %v5200
  %5219 = vmatprep.subr.bf16.mxu0 0
  %5220 = vmatpush1.bf16.msra.mxu0 %v5201
  %5221 = vmatprep.subr.bf16.mxu0 0
  %5222 = vmatpush1.bf16.msra.mxu0 %v5202
  %5223 = vmatprep.subr.bf16.mxu0 0
  %5224 = vmatpush1.bf16.msra.mxu0 %v5203
  %5225 = vmatprep.subr.bf16.mxu0 0
  %5226 = vmatpush1.bf16.msra.mxu0 %v5204
  %5227 = vmatprep.subr.bf16.mxu0 0
  %5228 = vmatpush1.bf16.msra.mxu0 %v5205
  %5229 = vmatprep.subr.bf16.mxu0 0
  %5230 = vmatpush1.bf16.msra.mxu0 %v5206
  %5231 = vmatprep.subr.bf16.mxu0 0
  %5232 = vmatpush1.bf16.msra.mxu0 0
  %5233 = vmatprep.subr.bf16.mxu0 0
  %5234 = vmatpush1.bf16.msra.mxu0 0
  %5235 = vmatprep.subr.bf16.mxu0 0
  %5236 = vmatpush1.bf16.msra.mxu0 0
  %5237 = vmatprep.subr.bf16.mxu0 0
  %5238 = vmatpush1.bf16.msra.mxu0 0
  %5239 = vmatprep.subr.bf16.mxu0 0
  %5240 = vmatpush1.bf16.msra.mxu0 0
  %5241 = vmatprep.subr.bf16.mxu0 0
  %5242 = vmatpush1.bf16.msra.mxu0 0
  %5243 = vmatprep.subr.bf16.mxu0 0
  %5244 = vmatpush1.bf16.msra.mxu0 0
  %5245 = vmatprep.subr.bf16.mxu0 0
  %5246 = vmatpush1.bf16.msra.mxu0 0
  %5247 = vmatprep.mubr.bf16.mxu0 0
  %5248 = vmatmul.mubr.bf16.gmra.mrb[0].mxu0 0
  %v5249 = vpop.f32.mrb[0].mxu0
  %v5250 = vadd.f32 %v5105, %v5249
  %v5251 = vpop.f32.mrb[0].mxu0
  %v5252 = vpop.f32.mrb[0].mxu0
  %v5253 = vadd.f32 %v5108, %v5252
  %v5254 = vpop.f32.mrb[0].mxu0
  %5255 = vmatprep.mubr.bf16.mxu0 0
  %5256 = vmatmul.mubr.bf16.gmra.mrb[0].mxu0 %v4879
  %v5257 = vpop.f32.mrb[0].mxu0
  %v5258 = vadd.f32 %v5113, %v5257
  %v5259 = vpop.f32.mrb[0].mxu0
  %v5260 = vpop.f32.mrb[0].mxu0
  %v5261 = vadd.f32 %v5116, %v5260
  %v5262 = vpop.f32.mrb[0].mxu0
  %5263 = vmatprep.mubr.bf16.mxu0 0
  %5264 = vmatmul.mubr.bf16.gmra.mrb[0].mxu0 %v4881
  %v5265 = vpop.f32.mrb[0].mxu0
  %v5266 = vadd.f32 %v5121, %v5265
  %v5267 = vpop.f32.mrb[0].mxu0
  %v5268 = vpop.f32.mrb[0].mxu0
  %v5269 = vadd.f32 %v5124, %v5268
  %v5270 = vpop.f32.mrb[0].mxu0
  %5271 = vmatprep.mubr.bf16.mxu0 0
  %5272 = vmatmul.mubr.bf16.gmra.mrb[0].mxu0 %v4883
  %v5273 = vpop.f32.mrb[0].mxu0
  %v5274 = vadd.f32 %v5129, %v5273
  %v5275 = vpop.f32.mrb[0].mxu0
  %v5276 = vpop.f32.mrb[0].mxu0
  %v5277 = vadd.f32 %v5132, %v5276
  %v5278 = vpop.f32.mrb[0].mxu0
  %5279 = vmatprep.mubr.bf16.mxu0 0
  %5280 = vmatmul.mubr.bf16.gmra.mrb[0].mxu0 0
  %v5281 = vpop.f32.mrb[0].mxu0
  %v5282 = vadd.f32 %v5137, %v5281
  %v5283 = vpop.f32.mrb[0].mxu0
  %v5284 = vpop.f32.mrb[0].mxu0
  %v5285 = vadd.f32 %v5140, %v5284
  %v5286 = vpop.f32.mrb[0].mxu0
  %5287 = vmatprep.mubr.bf16.mxu0 0
  %5288 = vmatmul.mubr.bf16.gmra.mrb[0].mxu0 %v4887
  %v5289 = vpop.f32.mrb[0].mxu0
  %v5290 = vadd.f32 %v5145, %v5289
  %v5291 = vpop.f32.mrb[0].mxu0
  %v5292 = vpop.f32.mrb[0].mxu0
  %v5293 = vadd.f32 %v5148, %v5292
  %v5294 = vpop.f32.mrb[0].mxu0
  %5295 = vmatprep.mubr.bf16.mxu0 0
  %5296 = vmatmul.mubr.bf16.gmra.mrb[0].mxu0 %v4889
  %v5297 = vpop.f32.mrb[0].mxu0
  %v5298 = vadd.f32 %v5153, %v5297
  %v5299 = vpop.f32.mrb[0].mxu0
  %v5300 = vpop.f32.mrb[0].mxu0
  %v5301 = vadd.f32 %v5156, %v5300
  %v5302 = vpop.f32.mrb[0].mxu0
  %5303 = vmatprep.mubr.bf16.mxu0 0
  %5304 = vmatmul.mubr.bf16.gmra.mrb[0].mxu0 %v4891
  %v5305 = vpop.f32.mrb[0].mxu0
  %v5306 = vadd.f32 %v5161, %v5305
  %v5307 = vpop.f32.mrb[0].mxu0
  %v5308 = vpop.f32.mrb[0].mxu0
  %v5309 = vadd.f32 %v5164, %v5308
  %v5310 = vpop.f32.mrb[0].mxu0
  %5311 = vdwg.mxu0
  %v5324 = vrot.slane %v4879, 1
  %v5325 = vrot.slane %v4895, 1
  %v5326 = vsel %vm1287, %v5324, %v5325
  %v5327 = vrot.slane %v4881, 1
  %v5328 = vrot.slane %v4897, 1
  %v5329 = vsel %vm1287, %v5327, %v5328
  %v5330 = vrot.slane %v4883, 1
  %v5331 = vrot.slane %v4899, 1
  %v5332 = vsel %vm1287, %v5330, %v5331
  %v5333 = vrot.slane %v4887, 1
  %v5334 = vrot.slane %v4903, 1
  %v5335 = vsel %vm1287, %v5333, %v5334
  %v5336 = vrot.slane %v4889, 1
  %v5337 = vrot.slane %v4905, 1
  %v5338 = vsel %vm1287, %v5336, %v5337
  %v5339 = vrot.slane %v4891, 1
  %v5340 = vrot.slane %v4907, 1
  %v5341 = vsel %vm1287, %v5339, %v5340
  %s5349 = scalar_lea.vmem %s6, 128
  %v5350 = vld [vmem:[%s5349] sm:$0xf]
  %v5351 = vld [vmem:[%s5349 + $0x4] sm:$0xf]
  %v5352 = vld [vmem:[%s5349 + $0x8] sm:$0xf]
  %v5353 = vld [vmem:[%s5349 + $0xc] sm:$0xf]
  %v5354 = vld [vmem:[%s5349 + $0x10] sm:$0xf]
  %v5355 = vld [vmem:[%s5349 + $0x14] sm:$0xf]
  %v5356 = vld [vmem:[%s5349 + $0x18] sm:$0xf]
  %v5357 = vld [vmem:[%s5349 + $0x1c] sm:$0xf]
  %v5358 = vld [vmem:[%s5349 + $0x20] sm:$0xf]
  %v5359 = vld [vmem:[%s5349 + $0x24] sm:$0xf]
  %v5360 = vld [vmem:[%s5349 + $0x28] sm:$0xf]
  %v5361 = vld [vmem:[%s5349 + $0x2c] sm:$0xf]
  %v5362 = vld [vmem:[%s5349 + $0x30] sm:$0xf]
  %v5363 = vld [vmem:[%s5349 + $0x34] sm:$0xf]
  %v5364 = vld [vmem:[%s5349 + $0x38] sm:$0xf]
  %v5365 = vld [vmem:[%s5349 + $0x3c] sm:$0xf]
  %v5382 = vunpack.c.l.b16 %v5350
  %v5383 = vunpack.c.l.b16 %v5351
  %v5384 = vunpack.c.l.b16 %v5352
  %v5385 = vunpack.c.l.b16 %v5353
  %v5386 = vunpack.c.l.b16 %v5354
  %v5387 = vunpack.c.l.b16 %v5355
  %v5388 = vunpack.c.l.b16 %v5356
  %v5389 = vunpack.c.l.b16 %v5357
  %v5390 = vunpack.c.l.b16 %v5358
  %v5391 = vunpack.c.l.b16 %v5359
  %v5392 = vunpack.c.l.b16 %v5360
  %v5393 = vunpack.c.l.b16 %v5361
  %v5394 = vunpack.c.l.b16 %v5362
  %v5395 = vunpack.c.l.b16 %v5363
  %v5396 = vunpack.c.l.b16 %v5364
  %v5397 = vunpack.c.l.b16 %v5365
  %v5398 = vpack.c.b16 %v5383, %v5382
  %v5399 = vpack.c.b16 %v5385, %v5384
  %v5400 = vpack.c.b16 %v5387, %v5386
  %v5401 = vpack.c.b16 %v5389, %v5388
  %v5402 = vpack.c.b16 %v5391, %v5390
  %v5403 = vpack.c.b16 %v5393, %v5392
  %v5404 = vpack.c.b16 %v5395, %v5394
  %v5405 = vpack.c.b16 %v5397, %v5396
  %5414 = vmatprep.subr.bf16.mxu0 0
  %5415 = vmatpush1.bf16.msra.mxu0 %v5398
  %5416 = vmatprep.subr.bf16.mxu0 0
  %5417 = vmatpush1.bf16.msra.mxu0 %v5399
  %5418 = vmatprep.subr.bf16.mxu0 0
  %5419 = vmatpush1.bf16.msra.mxu0 %v5400
  %5420 = vmatprep.subr.bf16.mxu0 0
  %5421 = vmatpush1.bf16.msra.mxu0 %v5401
  %5422 = vmatprep.subr.bf16.mxu0 0
  %5423 = vmatpush1.bf16.msra.mxu0 %v5402
  %5424 = vmatprep.subr.bf16.mxu0 0
  %5425 = vmatpush1.bf16.msra.mxu0 %v5403
  %5426 = vmatprep.subr.bf16.mxu0 0
  %5427 = vmatpush1.bf16.msra.mxu0 %v5404
  %5428 = vmatprep.subr.bf16.mxu0 0
  %5429 = vmatpush1.bf16.msra.mxu0 %v5405
  %5430 = vmatprep.subr.bf16.mxu0 0
  %5431 = vmatpush1.bf16.msra.mxu0 0
  %5432 = vmatprep.subr.bf16.mxu0 0
  %5433 = vmatpush1.bf16.msra.mxu0 0
  %5434 = vmatprep.subr.bf16.mxu0 0
  %5435 = vmatpush1.bf16.msra.mxu0 0
  %5436 = vmatprep.subr.bf16.mxu0 0
  %5437 = vmatpush1.bf16.msra.mxu0 0
  %5438 = vmatprep.subr.bf16.mxu0 0
  %5439 = vmatpush1.bf16.msra.mxu0 0
  %5440 = vmatprep.subr.bf16.mxu0 0
  %5441 = vmatpush1.bf16.msra.mxu0 0
  %5442 = vmatprep.subr.bf16.mxu0 0
  %5443 = vmatpush1.bf16.msra.mxu0 0
  %5444 = vmatprep.subr.bf16.mxu0 0
  %5445 = vmatpush1.bf16.msra.mxu0 0
  %5446 = vmatprep.mubr.bf16.mxu0 0
  %5447 = vmatmul.mubr.bf16.gmra.mrb[0].mxu0 %v1289
  %v5448 = vpop.f32.mrb[0].mxu0
  %v5449 = vadd.f32 0.0, %v5448
  %v5450 = vpop.f32.mrb[0].mxu0
  %v5451 = vpop.f32.mrb[0].mxu0
  %v5452 = vadd.f32 0.0, %v5451
  %v5453 = vpop.f32.mrb[0].mxu0
  %5454 = vmatprep.mubr.bf16.mxu0 0
  %5455 = vmatmul.mubr.bf16.gmra.mrb[0].mxu0 %v5326
  %v5456 = vpop.f32.mrb[0].mxu0
  %v5457 = vadd.f32 0.0, %v5456
  %v5458 = vpop.f32.mrb[0].mxu0
  %v5459 = vpop.f32.mrb[0].mxu0
  %v5460 = vadd.f32 0.0, %v5459
  %v5461 = vpop.f32.mrb[0].mxu0
  %5462 = vmatprep.mubr.bf16.mxu0 0
  %5463 = vmatmul.mubr.bf16.gmra.mrb[0].mxu0 %v5329
  %v5464 = vpop.f32.mrb[0].mxu0
  %v5465 = vadd.f32 0.0, %v5464
  %v5466 = vpop.f32.mrb[0].mxu0
  %v5467 = vpop.f32.mrb[0].mxu0
  %v5468 = vadd.f32 0.0, %v5467
  %v5469 = vpop.f32.mrb[0].mxu0
  %5470 = vmatprep.mubr.bf16.mxu0 0
  %5471 = vmatmul.mubr.bf16.gmra.mrb[0].mxu0 %v5332
  %v5472 = vpop.f32.mrb[0].mxu0
  %v5473 = vadd.f32 0.0, %v5472
  %v5474 = vpop.f32.mrb[0].mxu0
  %v5475 = vpop.f32.mrb[0].mxu0
  %v5476 = vadd.f32 0.0, %v5475
  %v5477 = vpop.f32.mrb[0].mxu0
  %5478 = vmatprep.mubr.bf16.mxu0 0
  %5479 = vmatmul.mubr.bf16.gmra.mrb[0].mxu0 %v1289
  %v5480 = vpop.f32.mrb[0].mxu0
  %v5481 = vadd.f32 0.0, %v5480
  %v5482 = vpop.f32.mrb[0].mxu0
  %v5483 = vpop.f32.mrb[0].mxu0
  %v5484 = vadd.f32 0.0, %v5483
  %v5485 = vpop.f32.mrb[0].mxu0
  %5486 = vmatprep.mubr.bf16.mxu0 0
  %5487 = vmatmul.mubr.bf16.gmra.mrb[0].mxu0 %v5335
  %v5488 = vpop.f32.mrb[0].mxu0
  %v5489 = vadd.f32 0.0, %v5488
  %v5490 = vpop.f32.mrb[0].mxu0
  %v5491 = vpop.f32.mrb[0].mxu0
  %v5492 = vadd.f32 0.0, %v5491
  %v5493 = vpop.f32.mrb[0].mxu0
  %5494 = vmatprep.mubr.bf16.mxu0 0
  %5495 = vmatmul.mubr.bf16.gmra.mrb[0].mxu0 %v5338
  %v5496 = vpop.f32.mrb[0].mxu0
  %v5497 = vadd.f32 0.0, %v5496
  %v5498 = vpop.f32.mrb[0].mxu0
  %v5499 = vpop.f32.mrb[0].mxu0
  %v5500 = vadd.f32 0.0, %v5499
  %v5501 = vpop.f32.mrb[0].mxu0
  %5502 = vmatprep.mubr.bf16.mxu0 0
  %5503 = vmatmul.mubr.bf16.gmra.mrb[0].mxu0 %v5341
  %v5504 = vpop.f32.mrb[0].mxu0
  %v5505 = vadd.f32 0.0, %v5504
  %v5506 = vpop.f32.mrb[0].mxu0
  %v5507 = vpop.f32.mrb[0].mxu0
  %v5508 = vadd.f32 0.0, %v5507
  %v5509 = vpop.f32.mrb[0].mxu0
  %5510 = vdwg.mxu0
  %v5511 = vadd.f32 %v5250, %v5449
  %v5512 = vadd.f32 %v5253, %v5452
  %v5513 = vadd.f32 %v5258, %v5457
  %v5514 = vadd.f32 %v5261, %v5460
  %v5515 = vadd.f32 %v5266, %v5465
  %v5516 = vadd.f32 %v5269, %v5468
  %v5517 = vadd.f32 %v5274, %v5473
  %v5518 = vadd.f32 %v5277, %v5476
  %v5519 = vadd.f32 %v5282, %v5481
  %v5520 = vadd.f32 %v5285, %v5484
  %v5521 = vadd.f32 %v5290, %v5489
  %v5522 = vadd.f32 %v5293, %v5492
  %v5523 = vadd.f32 %v5298, %v5497
  %v5524 = vadd.f32 %v5301, %v5500
  %v5525 = vadd.f32 %v5306, %v5505
  %v5526 = vadd.f32 %v5309, %v5508
  %s5527 = scalar_lea.vmem %s6, 192
  %v5528 = vld [vmem:[%s5527] sm:$0xf]
  %v5529 = vld [vmem:[%s5527 + $0x4] sm:$0xf]
  %v5530 = vld [vmem:[%s5527 + $0x8] sm:$0xf]
  %v5531 = vld [vmem:[%s5527 + $0xc] sm:$0xf]
  %v5532 = vld [vmem:[%s5527 + $0x10] sm:$0xf]
  %v5533 = vld [vmem:[%s5527 + $0x14] sm:$0xf]
  %v5534 = vld [vmem:[%s5527 + $0x18] sm:$0xf]
  %v5535 = vld [vmem:[%s5527 + $0x1c] sm:$0xf]
  %v5536 = vld [vmem:[%s5527 + $0x20] sm:$0xf]
  %v5537 = vld [vmem:[%s5527 + $0x24] sm:$0xf]
  %v5538 = vld [vmem:[%s5527 + $0x28] sm:$0xf]
  %v5539 = vld [vmem:[%s5527 + $0x2c] sm:$0xf]
  %v5540 = vld [vmem:[%s5527 + $0x30] sm:$0xf]
  %v5541 = vld [vmem:[%s5527 + $0x34] sm:$0xf]
  %v5542 = vld [vmem:[%s5527 + $0x38] sm:$0xf]
  %v5543 = vld [vmem:[%s5527 + $0x3c] sm:$0xf]
  %v5560 = vunpack.c.l.b16 %v5528
  %v5561 = vunpack.c.l.b16 %v5529
  %v5562 = vunpack.c.l.b16 %v5530
  %v5563 = vunpack.c.l.b16 %v5531
  %v5564 = vunpack.c.l.b16 %v5532
  %v5565 = vunpack.c.l.b16 %v5533
  %v5566 = vunpack.c.l.b16 %v5534
  %v5567 = vunpack.c.l.b16 %v5535
  %v5568 = vunpack.c.l.b16 %v5536
  %v5569 = vunpack.c.l.b16 %v5537
  %v5570 = vunpack.c.l.b16 %v5538
  %v5571 = vunpack.c.l.b16 %v5539
  %v5572 = vunpack.c.l.b16 %v5540
  %v5573 = vunpack.c.l.b16 %v5541
  %v5574 = vunpack.c.l.b16 %v5542
  %v5575 = vunpack.c.l.b16 %v5543
  %v5576 = vpack.c.b16 %v5561, %v5560
  %v5577 = vpack.c.b16 %v5563, %v5562
  %v5578 = vpack.c.b16 %v5565, %v5564
  %v5579 = vpack.c.b16 %v5567, %v5566
  %v5580 = vpack.c.b16 %v5569, %v5568
  %v5581 = vpack.c.b16 %v5571, %v5570
  %v5582 = vpack.c.b16 %v5573, %v5572
  %v5583 = vpack.c.b16 %v5575, %v5574
  %5592 = vmatprep.subr.bf16.mxu0 0
  %5593 = vmatpush1.bf16.msra.mxu0 %v5576
  %5594 = vmatprep.subr.bf16.mxu0 0
  %5595 = vmatpush1.bf16.msra.mxu0 %v5577
  %5596 = vmatprep.subr.bf16.mxu0 0
  %5597 = vmatpush1.bf16.msra.mxu0 %v5578
  %5598 = vmatprep.subr.bf16.mxu0 0
  %5599 = vmatpush1.bf16.msra.mxu0 %v5579
  %5600 = vmatprep.subr.bf16.mxu0 0
  %5601 = vmatpush1.bf16.msra.mxu0 %v5580
  %5602 = vmatprep.subr.bf16.mxu0 0
  %5603 = vmatpush1.bf16.msra.mxu0 %v5581
  %5604 = vmatprep.subr.bf16.mxu0 0
  %5605 = vmatpush1.bf16.msra.mxu0 %v5582
  %5606 = vmatprep.subr.bf16.mxu0 0
  %5607 = vmatpush1.bf16.msra.mxu0 %v5583
  %5608 = vmatprep.subr.bf16.mxu0 0
  %5609 = vmatpush1.bf16.msra.mxu0 0
  %5610 = vmatprep.subr.bf16.mxu0 0
  %5611 = vmatpush1.bf16.msra.mxu0 0
  %5612 = vmatprep.subr.bf16.mxu0 0
  %5613 = vmatpush1.bf16.msra.mxu0 0
  %5614 = vmatprep.subr.bf16.mxu0 0
  %5615 = vmatpush1.bf16.msra.mxu0 0
  %5616 = vmatprep.subr.bf16.mxu0 0
  %5617 = vmatpush1.bf16.msra.mxu0 0
  %5618 = vmatprep.subr.bf16.mxu0 0
  %5619 = vmatpush1.bf16.msra.mxu0 0
  %5620 = vmatprep.subr.bf16.mxu0 0
  %5621 = vmatpush1.bf16.msra.mxu0 0
  %5622 = vmatprep.subr.bf16.mxu0 0
  %5623 = vmatpush1.bf16.msra.mxu0 0
  %5624 = vmatprep.mubr.bf16.mxu0 0
  %5625 = vmatmul.mubr.bf16.gmra.mrb[0].mxu0 %v4878
  %v5626 = vpop.f32.mrb[0].mxu0
  %v5627 = vadd.f32 0.0, %v5626
  %v5628 = vpop.f32.mrb[0].mxu0
  %v5629 = vpop.f32.mrb[0].mxu0
  %v5630 = vadd.f32 0.0, %v5629
  %v5631 = vpop.f32.mrb[0].mxu0
  %5632 = vmatprep.mubr.bf16.mxu0 0
  %5633 = vmatmul.mubr.bf16.gmra.mrb[0].mxu0 %v4880
  %v5634 = vpop.f32.mrb[0].mxu0
  %v5635 = vadd.f32 0.0, %v5634
  %v5636 = vpop.f32.mrb[0].mxu0
  %v5637 = vpop.f32.mrb[0].mxu0
  %v5638 = vadd.f32 0.0, %v5637
  %v5639 = vpop.f32.mrb[0].mxu0
  %5640 = vmatprep.mubr.bf16.mxu0 0
  %5641 = vmatmul.mubr.bf16.gmra.mrb[0].mxu0 %v4882
  %v5642 = vpop.f32.mrb[0].mxu0
  %v5643 = vadd.f32 0.0, %v5642
  %v5644 = vpop.f32.mrb[0].mxu0
  %v5645 = vpop.f32.mrb[0].mxu0
  %v5646 = vadd.f32 0.0, %v5645
  %v5647 = vpop.f32.mrb[0].mxu0
  %5648 = vmatprep.mubr.bf16.mxu0 0
  %5649 = vmatmul.mubr.bf16.gmra.mrb[0].mxu0 %v4884
  %v5650 = vpop.f32.mrb[0].mxu0
  %v5651 = vadd.f32 0.0, %v5650
  %v5652 = vpop.f32.mrb[0].mxu0
  %v5653 = vpop.f32.mrb[0].mxu0
  %v5654 = vadd.f32 0.0, %v5653
  %v5655 = vpop.f32.mrb[0].mxu0
  %5656 = vmatprep.mubr.bf16.mxu0 0
  %5657 = vmatmul.mubr.bf16.gmra.mrb[0].mxu0 %v4886
  %v5658 = vpop.f32.mrb[0].mxu0
  %v5659 = vadd.f32 0.0, %v5658
  %v5660 = vpop.f32.mrb[0].mxu0
  %v5661 = vpop.f32.mrb[0].mxu0
  %v5662 = vadd.f32 0.0, %v5661
  %v5663 = vpop.f32.mrb[0].mxu0
  %5664 = vmatprep.mubr.bf16.mxu0 0
  %5665 = vmatmul.mubr.bf16.gmra.mrb[0].mxu0 %v4888
  %v5666 = vpop.f32.mrb[0].mxu0
  %v5667 = vadd.f32 0.0, %v5666
  %v5668 = vpop.f32.mrb[0].mxu0
  %v5669 = vpop.f32.mrb[0].mxu0
  %v5670 = vadd.f32 0.0, %v5669
  %v5671 = vpop.f32.mrb[0].mxu0
  %5672 = vmatprep.mubr.bf16.mxu0 0
  %5673 = vmatmul.mubr.bf16.gmra.mrb[0].mxu0 %v4890
  %v5674 = vpop.f32.mrb[0].mxu0
  %v5675 = vadd.f32 0.0, %v5674
  %v5676 = vpop.f32.mrb[0].mxu0
  %v5677 = vpop.f32.mrb[0].mxu0
  %v5678 = vadd.f32 0.0, %v5677
  %v5679 = vpop.f32.mrb[0].mxu0
  %5680 = vmatprep.mubr.bf16.mxu0 0
  %5681 = vmatmul.mubr.bf16.gmra.mrb[0].mxu0 %v4892
  %v5682 = vpop.f32.mrb[0].mxu0
  %v5683 = vadd.f32 0.0, %v5682
  %v5684 = vpop.f32.mrb[0].mxu0
  %v5685 = vpop.f32.mrb[0].mxu0
  %v5686 = vadd.f32 0.0, %v5685
  %v5687 = vpop.f32.mrb[0].mxu0
  %5688 = vdwg.mxu0
  %v5689 = vadd.f32 %v5511, %v5627
  %v5690 = vadd.f32 %v5512, %v5630
  %v5691 = vadd.f32 %v5513, %v5635
  %v5692 = vadd.f32 %v5514, %v5638
  %v5693 = vadd.f32 %v5515, %v5643
  %v5694 = vadd.f32 %v5516, %v5646
  %v5695 = vadd.f32 %v5517, %v5651
  %v5696 = vadd.f32 %v5518, %v5654
  %v5697 = vadd.f32 %v5519, %v5659
  %v5698 = vadd.f32 %v5520, %v5662
  %v5699 = vadd.f32 %v5521, %v5667
  %v5700 = vadd.f32 %v5522, %v5670
  %v5701 = vadd.f32 %v5523, %v5675
  %v5702 = vadd.f32 %v5524, %v5678
  %v5703 = vadd.f32 %v5525, %v5683
  %v5704 = vadd.f32 %v5526, %v5686
  %v5706 = vshrl.u32 %v4878, 16
  %v5708 = vshll.u32 %v4878, 16
  %v5710 = vrot.slane %v5708, 1
  %v5711 = vor.u32 %v5706, %v5710
  %v5713 = vshll.u32 %v4894, 16
  %v5715 = vrot.slane %v5713, 1
  %v5716 = vsel %vm626, %v5711, %v5715
  %v5718 = vshrl.u32 %v4880, 16
  %v5720 = vshll.u32 %v4880, 16
  %v5722 = vrot.slane %v5720, 1
  %v5723 = vor.u32 %v5718, %v5722
  %v5725 = vshll.u32 %v4896, 16
  %v5727 = vrot.slane %v5725, 1
  %v5728 = vsel %vm626, %v5723, %v5727
  %v5730 = vshrl.u32 %v4882, 16
  %v5732 = vshll.u32 %v4882, 16
  %v5734 = vrot.slane %v5732, 1
  %v5735 = vor.u32 %v5730, %v5734
  %v5737 = vshll.u32 %v4898, 16
  %v5739 = vrot.slane %v5737, 1
  %v5740 = vsel %vm626, %v5735, %v5739
  %v5742 = vshrl.u32 %v4884, 16
  %v5744 = vshll.u32 %v4884, 16
  %v5746 = vrot.slane %v5744, 1
  %v5747 = vor.u32 %v5742, %v5746
  %v5749 = vshll.u32 %v4900, 16
  %v5751 = vrot.slane %v5749, 1
  %v5752 = vsel %vm626, %v5747, %v5751
  %v5754 = vshrl.u32 %v4886, 16
  %v5756 = vshll.u32 %v4886, 16
  %v5758 = vrot.slane %v5756, 1
  %v5759 = vor.u32 %v5754, %v5758
  %v5761 = vshll.u32 %v4902, 16
  %v5763 = vrot.slane %v5761, 1
  %v5764 = vsel %vm626, %v5759, %v5763
  %v5766 = vshrl.u32 %v4888, 16
  %v5768 = vshll.u32 %v4888, 16
  %v5770 = vrot.slane %v5768, 1
  %v5771 = vor.u32 %v5766, %v5770
  %v5773 = vshll.u32 %v4904, 16
  %v5775 = vrot.slane %v5773, 1
  %v5776 = vsel %vm626, %v5771, %v5775
  %v5778 = vshrl.u32 %v4890, 16
  %v5780 = vshll.u32 %v4890, 16
  %v5782 = vrot.slane %v5780, 1
  %v5783 = vor.u32 %v5778, %v5782
  %v5785 = vshll.u32 %v4906, 16
  %v5787 = vrot.slane %v5785, 1
  %v5788 = vsel %vm626, %v5783, %v5787
  %v5790 = vshrl.u32 %v4892, 16
  %v5792 = vshll.u32 %v4892, 16
  %v5794 = vrot.slane %v5792, 1
  %v5795 = vor.u32 %v5790, %v5794
  %v5797 = vshll.u32 %v4908, 16
  %v5799 = vrot.slane %v5797, 1
  %v5800 = vsel %vm626, %v5795, %v5799
  %s5809 = scalar_lea.vmem %s6, 256
  %v5810 = vld [vmem:[%s5809] sm:$0xf]
  %v5811 = vld [vmem:[%s5809 + $0x4] sm:$0xf]
  %v5812 = vld [vmem:[%s5809 + $0x8] sm:$0xf]
  %v5813 = vld [vmem:[%s5809 + $0xc] sm:$0xf]
  %v5814 = vld [vmem:[%s5809 + $0x10] sm:$0xf]
  %v5815 = vld [vmem:[%s5809 + $0x14] sm:$0xf]
  %v5816 = vld [vmem:[%s5809 + $0x18] sm:$0xf]
  %v5817 = vld [vmem:[%s5809 + $0x1c] sm:$0xf]
  %v5818 = vld [vmem:[%s5809 + $0x20] sm:$0xf]
  %v5819 = vld [vmem:[%s5809 + $0x24] sm:$0xf]
  %v5820 = vld [vmem:[%s5809 + $0x28] sm:$0xf]
  %v5821 = vld [vmem:[%s5809 + $0x2c] sm:$0xf]
  %v5822 = vld [vmem:[%s5809 + $0x30] sm:$0xf]
  %v5823 = vld [vmem:[%s5809 + $0x34] sm:$0xf]
  %v5824 = vld [vmem:[%s5809 + $0x38] sm:$0xf]
  %v5825 = vld [vmem:[%s5809 + $0x3c] sm:$0xf]
  %v5842 = vunpack.c.l.b16 %v5810
  %v5843 = vunpack.c.l.b16 %v5811
  %v5844 = vunpack.c.l.b16 %v5812
  %v5845 = vunpack.c.l.b16 %v5813
  %v5846 = vunpack.c.l.b16 %v5814
  %v5847 = vunpack.c.l.b16 %v5815
  %v5848 = vunpack.c.l.b16 %v5816
  %v5849 = vunpack.c.l.b16 %v5817
  %v5850 = vunpack.c.l.b16 %v5818
  %v5851 = vunpack.c.l.b16 %v5819
  %v5852 = vunpack.c.l.b16 %v5820
  %v5853 = vunpack.c.l.b16 %v5821
  %v5854 = vunpack.c.l.b16 %v5822
  %v5855 = vunpack.c.l.b16 %v5823
  %v5856 = vunpack.c.l.b16 %v5824
  %v5857 = vunpack.c.l.b16 %v5825
  %v5858 = vpack.c.b16 %v5843, %v5842
  %v5859 = vpack.c.b16 %v5845, %v5844
  %v5860 = vpack.c.b16 %v5847, %v5846
  %v5861 = vpack.c.b16 %v5849, %v5848
  %v5862 = vpack.c.b16 %v5851, %v5850
  %v5863 = vpack.c.b16 %v5853, %v5852
  %v5864 = vpack.c.b16 %v5855, %v5854
  %v5865 = vpack.c.b16 %v5857, %v5856
  %5874 = vmatprep.subr.bf16.mxu0 0
  %5875 = vmatpush1.bf16.msra.mxu0 %v5858
  %5876 = vmatprep.subr.bf16.mxu0 0
  %5877 = vmatpush1.bf16.msra.mxu0 %v5859
  %5878 = vmatprep.subr.bf16.mxu0 0
  %5879 = vmatpush1.bf16.msra.mxu0 %v5860
  %5880 = vmatprep.subr.bf16.mxu0 0
  %5881 = vmatpush1.bf16.msra.mxu0 %v5861
  %5882 = vmatprep.subr.bf16.mxu0 0
  %5883 = vmatpush1.bf16.msra.mxu0 %v5862
  %5884 = vmatprep.subr.bf16.mxu0 0
  %5885 = vmatpush1.bf16.msra.mxu0 %v5863
  %5886 = vmatprep.subr.bf16.mxu0 0
  %5887 = vmatpush1.bf16.msra.mxu0 %v5864
  %5888 = vmatprep.subr.bf16.mxu0 0
  %5889 = vmatpush1.bf16.msra.mxu0 %v5865
  %5890 = vmatprep.subr.bf16.mxu0 0
  %5891 = vmatpush1.bf16.msra.mxu0 0
  %5892 = vmatprep.subr.bf16.mxu0 0
  %5893 = vmatpush1.bf16.msra.mxu0 0
  %5894 = vmatprep.subr.bf16.mxu0 0
  %5895 = vmatpush1.bf16.msra.mxu0 0
  %5896 = vmatprep.subr.bf16.mxu0 0
  %5897 = vmatpush1.bf16.msra.mxu0 0
  %5898 = vmatprep.subr.bf16.mxu0 0
  %5899 = vmatpush1.bf16.msra.mxu0 0
  %5900 = vmatprep.subr.bf16.mxu0 0
  %5901 = vmatpush1.bf16.msra.mxu0 0
  %5902 = vmatprep.subr.bf16.mxu0 0
  %5903 = vmatpush1.bf16.msra.mxu0 0
  %5904 = vmatprep.subr.bf16.mxu0 0
  %5905 = vmatpush1.bf16.msra.mxu0 0
  %5906 = vmatprep.mubr.bf16.mxu0 0
  %5907 = vmatmul.mubr.bf16.gmra.mrb[0].mxu0 %v5716
  %v5908 = vpop.f32.mrb[0].mxu0
  %v5909 = vadd.f32 0.0, %v5908
  %v5910 = vpop.f32.mrb[0].mxu0
  %v5911 = vpop.f32.mrb[0].mxu0
  %v5912 = vadd.f32 0.0, %v5911
  %v5913 = vpop.f32.mrb[0].mxu0
  %5914 = vmatprep.mubr.bf16.mxu0 0
  %5915 = vmatmul.mubr.bf16.gmra.mrb[0].mxu0 %v5728
  %v5916 = vpop.f32.mrb[0].mxu0
  %v5917 = vadd.f32 0.0, %v5916
  %v5918 = vpop.f32.mrb[0].mxu0
  %v5919 = vpop.f32.mrb[0].mxu0
  %v5920 = vadd.f32 0.0, %v5919
  %v5921 = vpop.f32.mrb[0].mxu0
  %5922 = vmatprep.mubr.bf16.mxu0 0
  %5923 = vmatmul.mubr.bf16.gmra.mrb[0].mxu0 %v5740
  %v5924 = vpop.f32.mrb[0].mxu0
  %v5925 = vadd.f32 0.0, %v5924
  %v5926 = vpop.f32.mrb[0].mxu0
  %v5927 = vpop.f32.mrb[0].mxu0
  %v5928 = vadd.f32 0.0, %v5927
  %v5929 = vpop.f32.mrb[0].mxu0
  %5930 = vmatprep.mubr.bf16.mxu0 0
  %5931 = vmatmul.mubr.bf16.gmra.mrb[0].mxu0 %v5752
  %v5932 = vpop.f32.mrb[0].mxu0
  %v5933 = vadd.f32 0.0, %v5932
  %v5934 = vpop.f32.mrb[0].mxu0
  %v5935 = vpop.f32.mrb[0].mxu0
  %v5936 = vadd.f32 0.0, %v5935
  %v5937 = vpop.f32.mrb[0].mxu0
  %5938 = vmatprep.mubr.bf16.mxu0 0
  %5939 = vmatmul.mubr.bf16.gmra.mrb[0].mxu0 %v5764
  %v5940 = vpop.f32.mrb[0].mxu0
  %v5941 = vadd.f32 0.0, %v5940
  %v5942 = vpop.f32.mrb[0].mxu0
  %v5943 = vpop.f32.mrb[0].mxu0
  %v5944 = vadd.f32 0.0, %v5943
  %v5945 = vpop.f32.mrb[0].mxu0
  %5946 = vmatprep.mubr.bf16.mxu0 0
  %5947 = vmatmul.mubr.bf16.gmra.mrb[0].mxu0 %v5776
  %v5948 = vpop.f32.mrb[0].mxu0
  %v5949 = vadd.f32 0.0, %v5948
  %v5950 = vpop.f32.mrb[0].mxu0
  %v5951 = vpop.f32.mrb[0].mxu0
  %v5952 = vadd.f32 0.0, %v5951
  %v5953 = vpop.f32.mrb[0].mxu0
  %5954 = vmatprep.mubr.bf16.mxu0 0
  %5955 = vmatmul.mubr.bf16.gmra.mrb[0].mxu0 %v5788
  %v5956 = vpop.f32.mrb[0].mxu0
  %v5957 = vadd.f32 0.0, %v5956
  %v5958 = vpop.f32.mrb[0].mxu0
  %v5959 = vpop.f32.mrb[0].mxu0
  %v5960 = vadd.f32 0.0, %v5959
  %v5961 = vpop.f32.mrb[0].mxu0
  %5962 = vmatprep.mubr.bf16.mxu0 0
  %5963 = vmatmul.mubr.bf16.gmra.mrb[0].mxu0 %v5800
  %v5964 = vpop.f32.mrb[0].mxu0
  %v5965 = vadd.f32 0.0, %v5964
  %v5966 = vpop.f32.mrb[0].mxu0
  %v5967 = vpop.f32.mrb[0].mxu0
  %v5968 = vadd.f32 0.0, %v5967
  %v5969 = vpop.f32.mrb[0].mxu0
  %5970 = vdwg.mxu0
  %v5971 = vadd.f32 %v5689, %v5909
  %v5972 = vadd.f32 %v5690, %v5912
  %v5973 = vadd.f32 %v5691, %v5917
  %v5974 = vadd.f32 %v5692, %v5920
  %v5975 = vadd.f32 %v5693, %v5925
  %v5976 = vadd.f32 %v5694, %v5928
  %v5977 = vadd.f32 %v5695, %v5933
  %v5978 = vadd.f32 %v5696, %v5936
  %v5979 = vadd.f32 %v5697, %v5941
  %v5980 = vadd.f32 %v5698, %v5944
  %v5981 = vadd.f32 %v5699, %v5949
  %v5982 = vadd.f32 %v5700, %v5952
  %v5983 = vadd.f32 %v5701, %v5957
  %v5984 = vadd.f32 %v5702, %v5960
  %v5985 = vadd.f32 %v5703, %v5965
  %v5986 = vadd.f32 %v5704, %v5968
  %v6003 = vrot.slane %v4878, 1
  %v6004 = vrot.slane %v4894, 1
  %v6005 = vsel %vm1287, %v6003, %v6004
  %v6006 = vrot.slane %v4880, 1
  %v6007 = vrot.slane %v4896, 1
  %v6008 = vsel %vm1287, %v6006, %v6007
  %v6009 = vrot.slane %v4882, 1
  %v6010 = vrot.slane %v4898, 1
  %v6011 = vsel %vm1287, %v6009, %v6010
  %v6012 = vrot.slane %v4884, 1
  %v6013 = vrot.slane %v4900, 1
  %v6014 = vsel %vm1287, %v6012, %v6013
  %v6015 = vrot.slane %v4886, 1
  %v6016 = vrot.slane %v4902, 1
  %v6017 = vsel %vm1287, %v6015, %v6016
  %v6018 = vrot.slane %v4888, 1
  %v6019 = vrot.slane %v4904, 1
  %v6020 = vsel %vm1287, %v6018, %v6019
  %v6021 = vrot.slane %v4890, 1
  %v6022 = vrot.slane %v4906, 1
  %v6023 = vsel %vm1287, %v6021, %v6022
  %v6024 = vrot.slane %v4892, 1
  %v6025 = vrot.slane %v4908, 1
  %v6026 = vsel %vm1287, %v6024, %v6025
  %s6035 = scalar_lea.vmem %s6, 320
  %v6036 = vld [vmem:[%s6035] sm:$0xf]
  %v6037 = vld [vmem:[%s6035 + $0x4] sm:$0xf]
  %v6038 = vld [vmem:[%s6035 + $0x8] sm:$0xf]
  %v6039 = vld [vmem:[%s6035 + $0xc] sm:$0xf]
  %v6040 = vld [vmem:[%s6035 + $0x10] sm:$0xf]
  %v6041 = vld [vmem:[%s6035 + $0x14] sm:$0xf]
  %v6042 = vld [vmem:[%s6035 + $0x18] sm:$0xf]
  %v6043 = vld [vmem:[%s6035 + $0x1c] sm:$0xf]
  %v6044 = vld [vmem:[%s6035 + $0x20] sm:$0xf]
  %v6045 = vld [vmem:[%s6035 + $0x24] sm:$0xf]
  %v6046 = vld [vmem:[%s6035 + $0x28] sm:$0xf]
  %v6047 = vld [vmem:[%s6035 + $0x2c] sm:$0xf]
  %v6048 = vld [vmem:[%s6035 + $0x30] sm:$0xf]
  %v6049 = vld [vmem:[%s6035 + $0x34] sm:$0xf]
  %v6050 = vld [vmem:[%s6035 + $0x38] sm:$0xf]
  %v6051 = vld [vmem:[%s6035 + $0x3c] sm:$0xf]
  %v6068 = vunpack.c.l.b16 %v6036
  %v6069 = vunpack.c.l.b16 %v6037
  %v6070 = vunpack.c.l.b16 %v6038
  %v6071 = vunpack.c.l.b16 %v6039
  %v6072 = vunpack.c.l.b16 %v6040
  %v6073 = vunpack.c.l.b16 %v6041
  %v6074 = vunpack.c.l.b16 %v6042
  %v6075 = vunpack.c.l.b16 %v6043
  %v6076 = vunpack.c.l.b16 %v6044
  %v6077 = vunpack.c.l.b16 %v6045
  %v6078 = vunpack.c.l.b16 %v6046
  %v6079 = vunpack.c.l.b16 %v6047
  %v6080 = vunpack.c.l.b16 %v6048
  %v6081 = vunpack.c.l.b16 %v6049
  %v6082 = vunpack.c.l.b16 %v6050
  %v6083 = vunpack.c.l.b16 %v6051
  %v6084 = vpack.c.b16 %v6069, %v6068
  %v6085 = vpack.c.b16 %v6071, %v6070
  %v6086 = vpack.c.b16 %v6073, %v6072
  %v6087 = vpack.c.b16 %v6075, %v6074
  %v6088 = vpack.c.b16 %v6077, %v6076
  %v6089 = vpack.c.b16 %v6079, %v6078
  %v6090 = vpack.c.b16 %v6081, %v6080
  %v6091 = vpack.c.b16 %v6083, %v6082
  %6100 = vmatprep.subr.bf16.mxu0 0
  %6101 = vmatpush1.bf16.msra.mxu0 %v6084
  %6102 = vmatprep.subr.bf16.mxu0 0
  %6103 = vmatpush1.bf16.msra.mxu0 %v6085
  %6104 = vmatprep.subr.bf16.mxu0 0
  %6105 = vmatpush1.bf16.msra.mxu0 %v6086
  %6106 = vmatprep.subr.bf16.mxu0 0
  %6107 = vmatpush1.bf16.msra.mxu0 %v6087
  %6108 = vmatprep.subr.bf16.mxu0 0
  %6109 = vmatpush1.bf16.msra.mxu0 %v6088
  %6110 = vmatprep.subr.bf16.mxu0 0
  %6111 = vmatpush1.bf16.msra.mxu0 %v6089
  %6112 = vmatprep.subr.bf16.mxu0 0
  %6113 = vmatpush1.bf16.msra.mxu0 %v6090
  %6114 = vmatprep.subr.bf16.mxu0 0
  %6115 = vmatpush1.bf16.msra.mxu0 %v6091
  %6116 = vmatprep.subr.bf16.mxu0 0
  %6117 = vmatpush1.bf16.msra.mxu0 0
  %6118 = vmatprep.subr.bf16.mxu0 0
  %6119 = vmatpush1.bf16.msra.mxu0 0
  %6120 = vmatprep.subr.bf16.mxu0 0
  %6121 = vmatpush1.bf16.msra.mxu0 0
  %6122 = vmatprep.subr.bf16.mxu0 0
  %6123 = vmatpush1.bf16.msra.mxu0 0
  %6124 = vmatprep.subr.bf16.mxu0 0
  %6125 = vmatpush1.bf16.msra.mxu0 0
  %6126 = vmatprep.subr.bf16.mxu0 0
  %6127 = vmatpush1.bf16.msra.mxu0 0
  %6128 = vmatprep.subr.bf16.mxu0 0
  %6129 = vmatpush1.bf16.msra.mxu0 0
  %6130 = vmatprep.subr.bf16.mxu0 0
  %6131 = vmatpush1.bf16.msra.mxu0 0
  %6132 = vmatprep.mubr.bf16.mxu0 0
  %6133 = vmatmul.mubr.bf16.gmra.mrb[0].mxu0 %v6005
  %v6134 = vpop.f32.mrb[0].mxu0
  %v6135 = vadd.f32 0.0, %v6134
  %v6136 = vpop.f32.mrb[0].mxu0
  %v6137 = vpop.f32.mrb[0].mxu0
  %v6138 = vadd.f32 0.0, %v6137
  %v6139 = vpop.f32.mrb[0].mxu0
  %6140 = vmatprep.mubr.bf16.mxu0 0
  %6141 = vmatmul.mubr.bf16.gmra.mrb[0].mxu0 %v6008
  %v6142 = vpop.f32.mrb[0].mxu0
  %v6143 = vadd.f32 0.0, %v6142
  %v6144 = vpop.f32.mrb[0].mxu0
  %v6145 = vpop.f32.mrb[0].mxu0
  %v6146 = vadd.f32 0.0, %v6145
  %v6147 = vpop.f32.mrb[0].mxu0
  %6148 = vmatprep.mubr.bf16.mxu0 0
  %6149 = vmatmul.mubr.bf16.gmra.mrb[0].mxu0 %v6011
  %v6150 = vpop.f32.mrb[0].mxu0
  %v6151 = vadd.f32 0.0, %v6150
  %v6152 = vpop.f32.mrb[0].mxu0
  %v6153 = vpop.f32.mrb[0].mxu0
  %v6154 = vadd.f32 0.0, %v6153
  %v6155 = vpop.f32.mrb[0].mxu0
  %6156 = vmatprep.mubr.bf16.mxu0 0
  %6157 = vmatmul.mubr.bf16.gmra.mrb[0].mxu0 %v6014
  %v6158 = vpop.f32.mrb[0].mxu0
  %v6159 = vadd.f32 0.0, %v6158
  %v6160 = vpop.f32.mrb[0].mxu0
  %v6161 = vpop.f32.mrb[0].mxu0
  %v6162 = vadd.f32 0.0, %v6161
  %v6163 = vpop.f32.mrb[0].mxu0
  %6164 = vmatprep.mubr.bf16.mxu0 0
  %6165 = vmatmul.mubr.bf16.gmra.mrb[0].mxu0 %v6017
  %v6166 = vpop.f32.mrb[0].mxu0
  %v6167 = vadd.f32 0.0, %v6166
  %v6168 = vpop.f32.mrb[0].mxu0
  %v6169 = vpop.f32.mrb[0].mxu0
  %v6170 = vadd.f32 0.0, %v6169
  %v6171 = vpop.f32.mrb[0].mxu0
  %6172 = vmatprep.mubr.bf16.mxu0 0
  %6173 = vmatmul.mubr.bf16.gmra.mrb[0].mxu0 %v6020
  %v6174 = vpop.f32.mrb[0].mxu0
  %v6175 = vadd.f32 0.0, %v6174
  %v6176 = vpop.f32.mrb[0].mxu0
  %v6177 = vpop.f32.mrb[0].mxu0
  %v6178 = vadd.f32 0.0, %v6177
  %v6179 = vpop.f32.mrb[0].mxu0
  %6180 = vmatprep.mubr.bf16.mxu0 0
  %6181 = vmatmul.mubr.bf16.gmra.mrb[0].mxu0 %v6023
  %v6182 = vpop.f32.mrb[0].mxu0
  %v6183 = vadd.f32 0.0, %v6182
  %v6184 = vpop.f32.mrb[0].mxu0
  %v6185 = vpop.f32.mrb[0].mxu0
  %v6186 = vadd.f32 0.0, %v6185
  %v6187 = vpop.f32.mrb[0].mxu0
  %6188 = vmatprep.mubr.bf16.mxu0 0
  %6189 = vmatmul.mubr.bf16.gmra.mrb[0].mxu0 %v6026
  %v6190 = vpop.f32.mrb[0].mxu0
  %v6191 = vadd.f32 0.0, %v6190
  %v6192 = vpop.f32.mrb[0].mxu0
  %v6193 = vpop.f32.mrb[0].mxu0
  %v6194 = vadd.f32 0.0, %v6193
  %v6195 = vpop.f32.mrb[0].mxu0
  %6196 = vdwg.mxu0
  %v6197 = vadd.f32 %v5971, %v6135
  %v6198 = vadd.f32 %v5972, %v6138
  %v6199 = vadd.f32 %v5973, %v6143
  %v6200 = vadd.f32 %v5974, %v6146
  %v6201 = vadd.f32 %v5975, %v6151
  %v6202 = vadd.f32 %v5976, %v6154
  %v6203 = vadd.f32 %v5977, %v6159
  %v6204 = vadd.f32 %v5978, %v6162
  %v6205 = vadd.f32 %v5979, %v6167
  %v6206 = vadd.f32 %v5980, %v6170
  %v6207 = vadd.f32 %v5981, %v6175
  %v6208 = vadd.f32 %v5982, %v6178
  %v6209 = vadd.f32 %v5983, %v6183
  %v6210 = vadd.f32 %v5984, %v6186
  %v6211 = vadd.f32 %v5985, %v6191
  %v6212 = vadd.f32 %v5986, %v6194
  %s6213 = scalar_lea.vmem %s6, 384
  %v6214 = vld [vmem:[%s6213] sm:$0xf]
  %v6215 = vld [vmem:[%s6213 + $0x4] sm:$0xf]
  %v6216 = vld [vmem:[%s6213 + $0x8] sm:$0xf]
  %v6217 = vld [vmem:[%s6213 + $0xc] sm:$0xf]
  %v6218 = vld [vmem:[%s6213 + $0x10] sm:$0xf]
  %v6219 = vld [vmem:[%s6213 + $0x14] sm:$0xf]
  %v6220 = vld [vmem:[%s6213 + $0x18] sm:$0xf]
  %v6221 = vld [vmem:[%s6213 + $0x1c] sm:$0xf]
  %v6222 = vld [vmem:[%s6213 + $0x20] sm:$0xf]
  %v6223 = vld [vmem:[%s6213 + $0x24] sm:$0xf]
  %v6224 = vld [vmem:[%s6213 + $0x28] sm:$0xf]
  %v6225 = vld [vmem:[%s6213 + $0x2c] sm:$0xf]
  %v6226 = vld [vmem:[%s6213 + $0x30] sm:$0xf]
  %v6227 = vld [vmem:[%s6213 + $0x34] sm:$0xf]
  %v6228 = vld [vmem:[%s6213 + $0x38] sm:$0xf]
  %v6229 = vld [vmem:[%s6213 + $0x3c] sm:$0xf]
  %v6246 = vunpack.c.l.b16 %v6214
  %v6247 = vunpack.c.l.b16 %v6215
  %v6248 = vunpack.c.l.b16 %v6216
  %v6249 = vunpack.c.l.b16 %v6217
  %v6250 = vunpack.c.l.b16 %v6218
  %v6251 = vunpack.c.l.b16 %v6219
  %v6252 = vunpack.c.l.b16 %v6220
  %v6253 = vunpack.c.l.b16 %v6221
  %v6254 = vunpack.c.l.b16 %v6222
  %v6255 = vunpack.c.l.b16 %v6223
  %v6256 = vunpack.c.l.b16 %v6224
  %v6257 = vunpack.c.l.b16 %v6225
  %v6258 = vunpack.c.l.b16 %v6226
  %v6259 = vunpack.c.l.b16 %v6227
  %v6260 = vunpack.c.l.b16 %v6228
  %v6261 = vunpack.c.l.b16 %v6229
  %v6262 = vpack.c.b16 %v6247, %v6246
  %v6263 = vpack.c.b16 %v6249, %v6248
  %v6264 = vpack.c.b16 %v6251, %v6250
  %v6265 = vpack.c.b16 %v6253, %v6252
  %v6266 = vpack.c.b16 %v6255, %v6254
  %v6267 = vpack.c.b16 %v6257, %v6256
  %v6268 = vpack.c.b16 %v6259, %v6258
  %v6269 = vpack.c.b16 %v6261, %v6260
  %6278 = vmatprep.subr.bf16.mxu0 0
  %6279 = vmatpush1.bf16.msra.mxu0 %v6262
  %6280 = vmatprep.subr.bf16.mxu0 0
  %6281 = vmatpush1.bf16.msra.mxu0 %v6263
  %6282 = vmatprep.subr.bf16.mxu0 0
  %6283 = vmatpush1.bf16.msra.mxu0 %v6264
  %6284 = vmatprep.subr.bf16.mxu0 0
  %6285 = vmatpush1.bf16.msra.mxu0 %v6265
  %6286 = vmatprep.subr.bf16.mxu0 0
  %6287 = vmatpush1.bf16.msra.mxu0 %v6266
  %6288 = vmatprep.subr.bf16.mxu0 0
  %6289 = vmatpush1.bf16.msra.mxu0 %v6267
  %6290 = vmatprep.subr.bf16.mxu0 0
  %6291 = vmatpush1.bf16.msra.mxu0 %v6268
  %6292 = vmatprep.subr.bf16.mxu0 0
  %6293 = vmatpush1.bf16.msra.mxu0 %v6269
  %6294 = vmatprep.subr.bf16.mxu0 0
  %6295 = vmatpush1.bf16.msra.mxu0 0
  %6296 = vmatprep.subr.bf16.mxu0 0
  %6297 = vmatpush1.bf16.msra.mxu0 0
  %6298 = vmatprep.subr.bf16.mxu0 0
  %6299 = vmatpush1.bf16.msra.mxu0 0
  %6300 = vmatprep.subr.bf16.mxu0 0
  %6301 = vmatpush1.bf16.msra.mxu0 0
  %6302 = vmatprep.subr.bf16.mxu0 0
  %6303 = vmatpush1.bf16.msra.mxu0 0
  %6304 = vmatprep.subr.bf16.mxu0 0
  %6305 = vmatpush1.bf16.msra.mxu0 0
  %6306 = vmatprep.subr.bf16.mxu0 0
  %6307 = vmatpush1.bf16.msra.mxu0 0
  %6308 = vmatprep.subr.bf16.mxu0 0
  %6309 = vmatpush1.bf16.msra.mxu0 0
  %6310 = vmatprep.mubr.bf16.mxu0 0
  %6311 = vmatmul.mubr.bf16.gmra.mrb[0].mxu0 %v4879
  %v6312 = vpop.f32.mrb[0].mxu0
  %v6313 = vadd.f32 0.0, %v6312
  %v6314 = vpop.f32.mrb[0].mxu0
  %v6315 = vpop.f32.mrb[0].mxu0
  %v6316 = vadd.f32 0.0, %v6315
  %v6317 = vpop.f32.mrb[0].mxu0
  %6318 = vmatprep.mubr.bf16.mxu0 0
  %6319 = vmatmul.mubr.bf16.gmra.mrb[0].mxu0 %v4881
  %v6320 = vpop.f32.mrb[0].mxu0
  %v6321 = vadd.f32 0.0, %v6320
  %v6322 = vpop.f32.mrb[0].mxu0
  %v6323 = vpop.f32.mrb[0].mxu0
  %v6324 = vadd.f32 0.0, %v6323
  %v6325 = vpop.f32.mrb[0].mxu0
  %6326 = vmatprep.mubr.bf16.mxu0 0
  %6327 = vmatmul.mubr.bf16.gmra.mrb[0].mxu0 %v4883
  %v6328 = vpop.f32.mrb[0].mxu0
  %v6329 = vadd.f32 0.0, %v6328
  %v6330 = vpop.f32.mrb[0].mxu0
  %v6331 = vpop.f32.mrb[0].mxu0
  %v6332 = vadd.f32 0.0, %v6331
  %v6333 = vpop.f32.mrb[0].mxu0
  %6334 = vmatprep.mubr.bf16.mxu0 0
  %6335 = vmatmul.mubr.bf16.gmra.mrb[0].mxu0 %v4885
  %v6336 = vpop.f32.mrb[0].mxu0
  %v6337 = vadd.f32 0.0, %v6336
  %v6338 = vpop.f32.mrb[0].mxu0
  %v6339 = vpop.f32.mrb[0].mxu0
  %v6340 = vadd.f32 0.0, %v6339
  %v6341 = vpop.f32.mrb[0].mxu0
  %6342 = vmatprep.mubr.bf16.mxu0 0
  %6343 = vmatmul.mubr.bf16.gmra.mrb[0].mxu0 %v4887
  %v6344 = vpop.f32.mrb[0].mxu0
  %v6345 = vadd.f32 0.0, %v6344
  %v6346 = vpop.f32.mrb[0].mxu0
  %v6347 = vpop.f32.mrb[0].mxu0
  %v6348 = vadd.f32 0.0, %v6347
  %v6349 = vpop.f32.mrb[0].mxu0
  %6350 = vmatprep.mubr.bf16.mxu0 0
  %6351 = vmatmul.mubr.bf16.gmra.mrb[0].mxu0 %v4889
  %v6352 = vpop.f32.mrb[0].mxu0
  %v6353 = vadd.f32 0.0, %v6352
  %v6354 = vpop.f32.mrb[0].mxu0
  %v6355 = vpop.f32.mrb[0].mxu0
  %v6356 = vadd.f32 0.0, %v6355
  %v6357 = vpop.f32.mrb[0].mxu0
  %6358 = vmatprep.mubr.bf16.mxu0 0
  %6359 = vmatmul.mubr.bf16.gmra.mrb[0].mxu0 %v4891
  %v6360 = vpop.f32.mrb[0].mxu0
  %v6361 = vadd.f32 0.0, %v6360
  %v6362 = vpop.f32.mrb[0].mxu0
  %v6363 = vpop.f32.mrb[0].mxu0
  %v6364 = vadd.f32 0.0, %v6363
  %v6365 = vpop.f32.mrb[0].mxu0
  %6366 = vmatprep.mubr.bf16.mxu0 0
  %6367 = vmatmul.mubr.bf16.gmra.mrb[0].mxu0 %v4893
  %v6368 = vpop.f32.mrb[0].mxu0
  %v6369 = vadd.f32 0.0, %v6368
  %v6370 = vpop.f32.mrb[0].mxu0
  %v6371 = vpop.f32.mrb[0].mxu0
  %v6372 = vadd.f32 0.0, %v6371
  %v6373 = vpop.f32.mrb[0].mxu0
  %6374 = vdwg.mxu0
  %v6375 = vadd.f32 %v6197, %v6313
  %v6376 = vadd.f32 %v6198, %v6316
  %v6377 = vadd.f32 %v6199, %v6321
  %v6378 = vadd.f32 %v6200, %v6324
  %v6379 = vadd.f32 %v6201, %v6329
  %v6380 = vadd.f32 %v6202, %v6332
  %v6381 = vadd.f32 %v6203, %v6337
  %v6382 = vadd.f32 %v6204, %v6340
  %v6383 = vadd.f32 %v6205, %v6345
  %v6384 = vadd.f32 %v6206, %v6348
  %v6385 = vadd.f32 %v6207, %v6353
  %v6386 = vadd.f32 %v6208, %v6356
  %v6387 = vadd.f32 %v6209, %v6361
  %v6388 = vadd.f32 %v6210, %v6364
  %v6389 = vadd.f32 %v6211, %v6369
  %v6390 = vadd.f32 %v6212, %v6372
  %v6392 = vshrl.u32 %v4885, 16
  %v6394 = vshll.u32 %v4885, 16
  %v6396 = vrot.slane %v6394, 1
  %v6397 = vor.u32 %v6392, %v6396
  %v6399 = vshll.u32 %v4901, 16
  %v6401 = vrot.slane %v6399, 1
  %v6402 = vsel %vm626, %v6397, %v6401
  %v6404 = vshrl.u32 %v4893, 16
  %v6406 = vshll.u32 %v4893, 16
  %v6408 = vrot.slane %v6406, 1
  %v6409 = vor.u32 %v6404, %v6408
  %v6411 = vshll.u32 %v4909, 16
  %v6413 = vrot.slane %v6411, 1
  %v6414 = vsel %vm626, %v6409, %v6413
  %s6417 = scalar_lea.vmem %s6, 448
  %v6418 = vld [vmem:[%s6417] sm:$0xf]
  %v6419 = vld [vmem:[%s6417 + $0x4] sm:$0xf]
  %v6420 = vld [vmem:[%s6417 + $0x8] sm:$0xf]
  %v6421 = vld [vmem:[%s6417 + $0xc] sm:$0xf]
  %v6422 = vld [vmem:[%s6417 + $0x10] sm:$0xf]
  %v6423 = vld [vmem:[%s6417 + $0x14] sm:$0xf]
  %v6424 = vld [vmem:[%s6417 + $0x18] sm:$0xf]
  %v6425 = vld [vmem:[%s6417 + $0x1c] sm:$0xf]
  %v6426 = vld [vmem:[%s6417 + $0x20] sm:$0xf]
  %v6427 = vld [vmem:[%s6417 + $0x24] sm:$0xf]
  %v6428 = vld [vmem:[%s6417 + $0x28] sm:$0xf]
  %v6429 = vld [vmem:[%s6417 + $0x2c] sm:$0xf]
  %v6430 = vld [vmem:[%s6417 + $0x30] sm:$0xf]
  %v6431 = vld [vmem:[%s6417 + $0x34] sm:$0xf]
  %v6432 = vld [vmem:[%s6417 + $0x38] sm:$0xf]
  %v6433 = vld [vmem:[%s6417 + $0x3c] sm:$0xf]
  %v6450 = vunpack.c.l.b16 %v6418
  %v6451 = vunpack.c.l.b16 %v6419
  %v6452 = vunpack.c.l.b16 %v6420
  %v6453 = vunpack.c.l.b16 %v6421
  %v6454 = vunpack.c.l.b16 %v6422
  %v6455 = vunpack.c.l.b16 %v6423
  %v6456 = vunpack.c.l.b16 %v6424
  %v6457 = vunpack.c.l.b16 %v6425
  %v6458 = vunpack.c.l.b16 %v6426
  %v6459 = vunpack.c.l.b16 %v6427
  %v6460 = vunpack.c.l.b16 %v6428
  %v6461 = vunpack.c.l.b16 %v6429
  %v6462 = vunpack.c.l.b16 %v6430
  %v6463 = vunpack.c.l.b16 %v6431
  %v6464 = vunpack.c.l.b16 %v6432
  %v6465 = vunpack.c.l.b16 %v6433
  %v6466 = vpack.c.b16 %v6451, %v6450
  %v6467 = vpack.c.b16 %v6453, %v6452
  %v6468 = vpack.c.b16 %v6455, %v6454
  %v6469 = vpack.c.b16 %v6457, %v6456
  %v6470 = vpack.c.b16 %v6459, %v6458
  %v6471 = vpack.c.b16 %v6461, %v6460
  %v6472 = vpack.c.b16 %v6463, %v6462
  %v6473 = vpack.c.b16 %v6465, %v6464
  %6482 = vmatprep.subr.bf16.mxu0 0
  %6483 = vmatpush1.bf16.msra.mxu0 %v6466
  %6484 = vmatprep.subr.bf16.mxu0 0
  %6485 = vmatpush1.bf16.msra.mxu0 %v6467
  %6486 = vmatprep.subr.bf16.mxu0 0
  %6487 = vmatpush1.bf16.msra.mxu0 %v6468
  %6488 = vmatprep.subr.bf16.mxu0 0
  %6489 = vmatpush1.bf16.msra.mxu0 %v6469
  %6490 = vmatprep.subr.bf16.mxu0 0
  %6491 = vmatpush1.bf16.msra.mxu0 %v6470
  %6492 = vmatprep.subr.bf16.mxu0 0
  %6493 = vmatpush1.bf16.msra.mxu0 %v6471
  %6494 = vmatprep.subr.bf16.mxu0 0
  %6495 = vmatpush1.bf16.msra.mxu0 %v6472
  %6496 = vmatprep.subr.bf16.mxu0 0
  %6497 = vmatpush1.bf16.msra.mxu0 %v6473
  %6498 = vmatprep.subr.bf16.mxu0 0
  %6499 = vmatpush1.bf16.msra.mxu0 0
  %6500 = vmatprep.subr.bf16.mxu0 0
  %6501 = vmatpush1.bf16.msra.mxu0 0
  %6502 = vmatprep.subr.bf16.mxu0 0
  %6503 = vmatpush1.bf16.msra.mxu0 0
  %6504 = vmatprep.subr.bf16.mxu0 0
  %6505 = vmatpush1.bf16.msra.mxu0 0
  %6506 = vmatprep.subr.bf16.mxu0 0
  %6507 = vmatpush1.bf16.msra.mxu0 0
  %6508 = vmatprep.subr.bf16.mxu0 0
  %6509 = vmatpush1.bf16.msra.mxu0 0
  %6510 = vmatprep.subr.bf16.mxu0 0
  %6511 = vmatpush1.bf16.msra.mxu0 0
  %6512 = vmatprep.subr.bf16.mxu0 0
  %6513 = vmatpush1.bf16.msra.mxu0 0
  %6514 = vmatprep.mubr.bf16.mxu0 0
  %6515 = vmatmul.mubr.bf16.gmra.mrb[0].mxu0 %v4937
  %v6516 = vpop.f32.mrb[0].mxu0
  %v6517 = vadd.f32 0.0, %v6516
  %v6518 = vpop.f32.mrb[0].mxu0
  %v6519 = vpop.f32.mrb[0].mxu0
  %v6520 = vadd.f32 0.0, %v6519
  %v6521 = vpop.f32.mrb[0].mxu0
  %6522 = vmatprep.mubr.bf16.mxu0 0
  %6523 = vmatmul.mubr.bf16.gmra.mrb[0].mxu0 %v4949
  %v6524 = vpop.f32.mrb[0].mxu0
  %v6525 = vadd.f32 0.0, %v6524
  %v6526 = vpop.f32.mrb[0].mxu0
  %v6527 = vpop.f32.mrb[0].mxu0
  %v6528 = vadd.f32 0.0, %v6527
  %v6529 = vpop.f32.mrb[0].mxu0
  %6530 = vmatprep.mubr.bf16.mxu0 0
  %6531 = vmatmul.mubr.bf16.gmra.mrb[0].mxu0 %v4961
  %v6532 = vpop.f32.mrb[0].mxu0
  %v6533 = vadd.f32 0.0, %v6532
  %v6534 = vpop.f32.mrb[0].mxu0
  %v6535 = vpop.f32.mrb[0].mxu0
  %v6536 = vadd.f32 0.0, %v6535
  %v6537 = vpop.f32.mrb[0].mxu0
  %6538 = vmatprep.mubr.bf16.mxu0 0
  %6539 = vmatmul.mubr.bf16.gmra.mrb[0].mxu0 %v6402
  %v6540 = vpop.f32.mrb[0].mxu0
  %v6541 = vadd.f32 0.0, %v6540
  %v6542 = vpop.f32.mrb[0].mxu0
  %v6543 = vpop.f32.mrb[0].mxu0
  %v6544 = vadd.f32 0.0, %v6543
  %v6545 = vpop.f32.mrb[0].mxu0
  %6546 = vmatprep.mubr.bf16.mxu0 0
  %6547 = vmatmul.mubr.bf16.gmra.mrb[0].mxu0 %v4973
  %v6548 = vpop.f32.mrb[0].mxu0
  %v6549 = vadd.f32 0.0, %v6548
  %v6550 = vpop.f32.mrb[0].mxu0
  %v6551 = vpop.f32.mrb[0].mxu0
  %v6552 = vadd.f32 0.0, %v6551
  %v6553 = vpop.f32.mrb[0].mxu0
  %6554 = vmatprep.mubr.bf16.mxu0 0
  %6555 = vmatmul.mubr.bf16.gmra.mrb[0].mxu0 %v4985
  %v6556 = vpop.f32.mrb[0].mxu0
  %v6557 = vadd.f32 0.0, %v6556
  %v6558 = vpop.f32.mrb[0].mxu0
  %v6559 = vpop.f32.mrb[0].mxu0
  %v6560 = vadd.f32 0.0, %v6559
  %v6561 = vpop.f32.mrb[0].mxu0
  %6562 = vmatprep.mubr.bf16.mxu0 0
  %6563 = vmatmul.mubr.bf16.gmra.mrb[0].mxu0 %v4997
  %v6564 = vpop.f32.mrb[0].mxu0
  %v6565 = vadd.f32 0.0, %v6564
  %v6566 = vpop.f32.mrb[0].mxu0
  %v6567 = vpop.f32.mrb[0].mxu0
  %v6568 = vadd.f32 0.0, %v6567
  %v6569 = vpop.f32.mrb[0].mxu0
  %6570 = vmatprep.mubr.bf16.mxu0 0
  %6571 = vmatmul.mubr.bf16.gmra.mrb[0].mxu0 %v6414
  %v6572 = vpop.f32.mrb[0].mxu0
  %v6573 = vadd.f32 0.0, %v6572
  %v6574 = vpop.f32.mrb[0].mxu0
  %v6575 = vpop.f32.mrb[0].mxu0
  %v6576 = vadd.f32 0.0, %v6575
  %v6577 = vpop.f32.mrb[0].mxu0
  %6578 = vdwg.mxu0
  %v6579 = vadd.f32 %v6375, %v6517
  %v6580 = vadd.f32 %v6376, %v6520
  %v6581 = vadd.f32 %v6377, %v6525
  %v6582 = vadd.f32 %v6378, %v6528
  %v6583 = vadd.f32 %v6379, %v6533
  %v6584 = vadd.f32 %v6380, %v6536
  %v6585 = vadd.f32 %v6381, %v6541
  %v6586 = vadd.f32 %v6382, %v6544
  %v6587 = vadd.f32 %v6383, %v6549
  %v6588 = vadd.f32 %v6384, %v6552
  %v6589 = vadd.f32 %v6385, %v6557
  %v6590 = vadd.f32 %v6386, %v6560
  %v6591 = vadd.f32 %v6387, %v6565
  %v6592 = vadd.f32 %v6388, %v6568
  %v6593 = vadd.f32 %v6389, %v6573
  %v6594 = vadd.f32 %v6390, %v6576
  %v6599 = vrot.slane %v4885, 1
  %v6600 = vrot.slane %v4901, 1
  %v6601 = vsel %vm1287, %v6599, %v6600
  %v6602 = vrot.slane %v4893, 1
  %v6603 = vrot.slane %v4909, 1
  %v6604 = vsel %vm1287, %v6602, %v6603
  %s6607 = scalar_lea.vmem %s6, 512
  %v6608 = vld [vmem:[%s6607] sm:$0xf]
  %v6609 = vld [vmem:[%s6607 + $0x4] sm:$0xf]
  %v6610 = vld [vmem:[%s6607 + $0x8] sm:$0xf]
  %v6611 = vld [vmem:[%s6607 + $0xc] sm:$0xf]
  %v6612 = vld [vmem:[%s6607 + $0x10] sm:$0xf]
  %v6613 = vld [vmem:[%s6607 + $0x14] sm:$0xf]
  %v6614 = vld [vmem:[%s6607 + $0x18] sm:$0xf]
  %v6615 = vld [vmem:[%s6607 + $0x1c] sm:$0xf]
  %v6616 = vld [vmem:[%s6607 + $0x20] sm:$0xf]
  %v6617 = vld [vmem:[%s6607 + $0x24] sm:$0xf]
  %v6618 = vld [vmem:[%s6607 + $0x28] sm:$0xf]
  %v6619 = vld [vmem:[%s6607 + $0x2c] sm:$0xf]
  %v6620 = vld [vmem:[%s6607 + $0x30] sm:$0xf]
  %v6621 = vld [vmem:[%s6607 + $0x34] sm:$0xf]
  %v6622 = vld [vmem:[%s6607 + $0x38] sm:$0xf]
  %v6623 = vld [vmem:[%s6607 + $0x3c] sm:$0xf]
  %v6640 = vunpack.c.l.b16 %v6608
  %v6641 = vunpack.c.l.b16 %v6609
  %v6642 = vunpack.c.l.b16 %v6610
  %v6643 = vunpack.c.l.b16 %v6611
  %v6644 = vunpack.c.l.b16 %v6612
  %v6645 = vunpack.c.l.b16 %v6613
  %v6646 = vunpack.c.l.b16 %v6614
  %v6647 = vunpack.c.l.b16 %v6615
  %v6648 = vunpack.c.l.b16 %v6616
  %v6649 = vunpack.c.l.b16 %v6617
  %v6650 = vunpack.c.l.b16 %v6618
  %v6651 = vunpack.c.l.b16 %v6619
  %v6652 = vunpack.c.l.b16 %v6620
  %v6653 = vunpack.c.l.b16 %v6621
  %v6654 = vunpack.c.l.b16 %v6622
  %v6655 = vunpack.c.l.b16 %v6623
  %v6656 = vpack.c.b16 %v6641, %v6640
  %v6657 = vpack.c.b16 %v6643, %v6642
  %v6658 = vpack.c.b16 %v6645, %v6644
  %v6659 = vpack.c.b16 %v6647, %v6646
  %v6660 = vpack.c.b16 %v6649, %v6648
  %v6661 = vpack.c.b16 %v6651, %v6650
  %v6662 = vpack.c.b16 %v6653, %v6652
  %v6663 = vpack.c.b16 %v6655, %v6654
  %6672 = vmatprep.subr.bf16.mxu0 0
  %6673 = vmatpush1.bf16.msra.mxu0 %v6656
  %6674 = vmatprep.subr.bf16.mxu0 0
  %6675 = vmatpush1.bf16.msra.mxu0 %v6657
  %6676 = vmatprep.subr.bf16.mxu0 0
  %6677 = vmatpush1.bf16.msra.mxu0 %v6658
  %6678 = vmatprep.subr.bf16.mxu0 0
  %6679 = vmatpush1.bf16.msra.mxu0 %v6659
  %6680 = vmatprep.subr.bf16.mxu0 0
  %6681 = vmatpush1.bf16.msra.mxu0 %v6660
  %6682 = vmatprep.subr.bf16.mxu0 0
  %6683 = vmatpush1.bf16.msra.mxu0 %v6661
  %6684 = vmatprep.subr.bf16.mxu0 0
  %6685 = vmatpush1.bf16.msra.mxu0 %v6662
  %6686 = vmatprep.subr.bf16.mxu0 0
  %6687 = vmatpush1.bf16.msra.mxu0 %v6663
  %6688 = vmatprep.subr.bf16.mxu0 0
  %6689 = vmatpush1.bf16.msra.mxu0 0
  %6690 = vmatprep.subr.bf16.mxu0 0
  %6691 = vmatpush1.bf16.msra.mxu0 0
  %6692 = vmatprep.subr.bf16.mxu0 0
  %6693 = vmatpush1.bf16.msra.mxu0 0
  %6694 = vmatprep.subr.bf16.mxu0 0
  %6695 = vmatpush1.bf16.msra.mxu0 0
  %6696 = vmatprep.subr.bf16.mxu0 0
  %6697 = vmatpush1.bf16.msra.mxu0 0
  %6698 = vmatprep.subr.bf16.mxu0 0
  %6699 = vmatpush1.bf16.msra.mxu0 0
  %6700 = vmatprep.subr.bf16.mxu0 0
  %6701 = vmatpush1.bf16.msra.mxu0 0
  %6702 = vmatprep.subr.bf16.mxu0 0
  %6703 = vmatpush1.bf16.msra.mxu0 0
  %6704 = vmatprep.mubr.bf16.mxu0 0
  %6705 = vmatmul.mubr.bf16.gmra.mrb[0].mxu0 %v5326
  %v6706 = vpop.f32.mrb[0].mxu0
  %v6707 = vadd.f32 0.0, %v6706
  %v6708 = vpop.f32.mrb[0].mxu0
  %v6709 = vpop.f32.mrb[0].mxu0
  %v6710 = vadd.f32 0.0, %v6709
  %v6711 = vpop.f32.mrb[0].mxu0
  %6712 = vmatprep.mubr.bf16.mxu0 0
  %6713 = vmatmul.mubr.bf16.gmra.mrb[0].mxu0 %v5329
  %v6714 = vpop.f32.mrb[0].mxu0
  %v6715 = vadd.f32 0.0, %v6714
  %v6716 = vpop.f32.mrb[0].mxu0
  %v6717 = vpop.f32.mrb[0].mxu0
  %v6718 = vadd.f32 0.0, %v6717
  %v6719 = vpop.f32.mrb[0].mxu0
  %6720 = vmatprep.mubr.bf16.mxu0 0
  %6721 = vmatmul.mubr.bf16.gmra.mrb[0].mxu0 %v5332
  %v6722 = vpop.f32.mrb[0].mxu0
  %v6723 = vadd.f32 0.0, %v6722
  %v6724 = vpop.f32.mrb[0].mxu0
  %v6725 = vpop.f32.mrb[0].mxu0
  %v6726 = vadd.f32 0.0, %v6725
  %v6727 = vpop.f32.mrb[0].mxu0
  %6728 = vmatprep.mubr.bf16.mxu0 0
  %6729 = vmatmul.mubr.bf16.gmra.mrb[0].mxu0 %v6601
  %v6730 = vpop.f32.mrb[0].mxu0
  %v6731 = vadd.f32 0.0, %v6730
  %v6732 = vpop.f32.mrb[0].mxu0
  %v6733 = vpop.f32.mrb[0].mxu0
  %v6734 = vadd.f32 0.0, %v6733
  %v6735 = vpop.f32.mrb[0].mxu0
  %6736 = vmatprep.mubr.bf16.mxu0 0
  %6737 = vmatmul.mubr.bf16.gmra.mrb[0].mxu0 %v5335
  %v6738 = vpop.f32.mrb[0].mxu0
  %v6739 = vadd.f32 0.0, %v6738
  %v6740 = vpop.f32.mrb[0].mxu0
  %v6741 = vpop.f32.mrb[0].mxu0
  %v6742 = vadd.f32 0.0, %v6741
  %v6743 = vpop.f32.mrb[0].mxu0
  %6744 = vmatprep.mubr.bf16.mxu0 0
  %6745 = vmatmul.mubr.bf16.gmra.mrb[0].mxu0 %v5338
  %v6746 = vpop.f32.mrb[0].mxu0
  %v6747 = vadd.f32 0.0, %v6746
  %v6748 = vpop.f32.mrb[0].mxu0
  %v6749 = vpop.f32.mrb[0].mxu0
  %v6750 = vadd.f32 0.0, %v6749
  %v6751 = vpop.f32.mrb[0].mxu0
  %6752 = vmatprep.mubr.bf16.mxu0 0
  %6753 = vmatmul.mubr.bf16.gmra.mrb[0].mxu0 %v5341
  %v6754 = vpop.f32.mrb[0].mxu0
  %v6755 = vadd.f32 0.0, %v6754
  %v6756 = vpop.f32.mrb[0].mxu0
  %v6757 = vpop.f32.mrb[0].mxu0
  %v6758 = vadd.f32 0.0, %v6757
  %v6759 = vpop.f32.mrb[0].mxu0
  %6760 = vmatprep.mubr.bf16.mxu0 0
  %6761 = vmatmul.mubr.bf16.gmra.mrb[0].mxu0 %v6604
  %v6762 = vpop.f32.mrb[0].mxu0
  %v6763 = vadd.f32 0.0, %v6762
  %v6764 = vpop.f32.mrb[0].mxu0
  %v6765 = vpop.f32.mrb[0].mxu0
  %v6766 = vadd.f32 0.0, %v6765
  %v6767 = vpop.f32.mrb[0].mxu0
  %6768 = vdwg.mxu0
  %v6769 = vadd.f32 %v6579, %v6707
  %v6770 = vadd.f32 %v6580, %v6710
  %v6771 = vadd.f32 %v6581, %v6715
  %v6772 = vadd.f32 %v6582, %v6718
  %v6773 = vadd.f32 %v6583, %v6723
  %v6774 = vadd.f32 %v6584, %v6726
  %v6775 = vadd.f32 %v6585, %v6731
  %v6776 = vadd.f32 %v6586, %v6734
  %v6777 = vadd.f32 %v6587, %v6739
  %v6778 = vadd.f32 %v6588, %v6742
  %v6779 = vadd.f32 %v6589, %v6747
  %v6780 = vadd.f32 %v6590, %v6750
  %v6781 = vadd.f32 %v6591, %v6755
  %v6782 = vadd.f32 %v6592, %v6758
  %v6783 = vadd.f32 %v6593, %v6763
  %v6784 = vadd.f32 %v6594, %v6766
  %s6785 = scalar_lea.vmem %s6, 576
  %v6786 = vld [vmem:[%s6785] sm:$0xf]
  %v6787 = vld [vmem:[%s6785 + $0x4] sm:$0xf]
  %v6788 = vld [vmem:[%s6785 + $0x8] sm:$0xf]
  %v6789 = vld [vmem:[%s6785 + $0xc] sm:$0xf]
  %v6790 = vld [vmem:[%s6785 + $0x10] sm:$0xf]
  %v6791 = vld [vmem:[%s6785 + $0x14] sm:$0xf]
  %v6792 = vld [vmem:[%s6785 + $0x18] sm:$0xf]
  %v6793 = vld [vmem:[%s6785 + $0x1c] sm:$0xf]
  %v6794 = vld [vmem:[%s6785 + $0x20] sm:$0xf]
  %v6795 = vld [vmem:[%s6785 + $0x24] sm:$0xf]
  %v6796 = vld [vmem:[%s6785 + $0x28] sm:$0xf]
  %v6797 = vld [vmem:[%s6785 + $0x2c] sm:$0xf]
  %v6798 = vld [vmem:[%s6785 + $0x30] sm:$0xf]
  %v6799 = vld [vmem:[%s6785 + $0x34] sm:$0xf]
  %v6800 = vld [vmem:[%s6785 + $0x38] sm:$0xf]
  %v6801 = vld [vmem:[%s6785 + $0x3c] sm:$0xf]
  %v6818 = vunpack.c.l.b16 %v6786
  %v6819 = vunpack.c.l.b16 %v6787
  %v6820 = vunpack.c.l.b16 %v6788
  %v6821 = vunpack.c.l.b16 %v6789
  %v6822 = vunpack.c.l.b16 %v6790
  %v6823 = vunpack.c.l.b16 %v6791
  %v6824 = vunpack.c.l.b16 %v6792
  %v6825 = vunpack.c.l.b16 %v6793
  %v6826 = vunpack.c.l.b16 %v6794
  %v6827 = vunpack.c.l.b16 %v6795
  %v6828 = vunpack.c.l.b16 %v6796
  %v6829 = vunpack.c.l.b16 %v6797
  %v6830 = vunpack.c.l.b16 %v6798
  %v6831 = vunpack.c.l.b16 %v6799
  %v6832 = vunpack.c.l.b16 %v6800
  %v6833 = vunpack.c.l.b16 %v6801
  %v6834 = vpack.c.b16 %v6819, %v6818
  %v6835 = vpack.c.b16 %v6821, %v6820
  %v6836 = vpack.c.b16 %v6823, %v6822
  %v6837 = vpack.c.b16 %v6825, %v6824
  %v6838 = vpack.c.b16 %v6827, %v6826
  %v6839 = vpack.c.b16 %v6829, %v6828
  %v6840 = vpack.c.b16 %v6831, %v6830
  %v6841 = vpack.c.b16 %v6833, %v6832
  %6850 = vmatprep.subr.bf16.mxu0 0
  %6851 = vmatpush1.bf16.msra.mxu0 %v6834
  %6852 = vmatprep.subr.bf16.mxu0 0
  %6853 = vmatpush1.bf16.msra.mxu0 %v6835
  %6854 = vmatprep.subr.bf16.mxu0 0
  %6855 = vmatpush1.bf16.msra.mxu0 %v6836
  %6856 = vmatprep.subr.bf16.mxu0 0
  %6857 = vmatpush1.bf16.msra.mxu0 %v6837
  %6858 = vmatprep.subr.bf16.mxu0 0
  %6859 = vmatpush1.bf16.msra.mxu0 %v6838
  %6860 = vmatprep.subr.bf16.mxu0 0
  %6861 = vmatpush1.bf16.msra.mxu0 %v6839
  %6862 = vmatprep.subr.bf16.mxu0 0
  %6863 = vmatpush1.bf16.msra.mxu0 %v6840
  %6864 = vmatprep.subr.bf16.mxu0 0
  %6865 = vmatpush1.bf16.msra.mxu0 %v6841
  %6866 = vmatprep.subr.bf16.mxu0 0
  %6867 = vmatpush1.bf16.msra.mxu0 0
  %6868 = vmatprep.subr.bf16.mxu0 0
  %6869 = vmatpush1.bf16.msra.mxu0 0
  %6870 = vmatprep.subr.bf16.mxu0 0
  %6871 = vmatpush1.bf16.msra.mxu0 0
  %6872 = vmatprep.subr.bf16.mxu0 0
  %6873 = vmatpush1.bf16.msra.mxu0 0
  %6874 = vmatprep.subr.bf16.mxu0 0
  %6875 = vmatpush1.bf16.msra.mxu0 0
  %6876 = vmatprep.subr.bf16.mxu0 0
  %6877 = vmatpush1.bf16.msra.mxu0 0
  %6878 = vmatprep.subr.bf16.mxu0 0
  %6879 = vmatpush1.bf16.msra.mxu0 0
  %6880 = vmatprep.subr.bf16.mxu0 0
  %6881 = vmatpush1.bf16.msra.mxu0 0
  %6882 = vmatprep.mubr.bf16.mxu0 0
  %6883 = vmatmul.mubr.bf16.gmra.mrb[0].mxu0 %v4880
  %v6884 = vpop.f32.mrb[0].mxu0
  %v6885 = vadd.f32 0.0, %v6884
  %v6886 = vpop.f32.mrb[0].mxu0
  %v6887 = vpop.f32.mrb[0].mxu0
  %v6888 = vadd.f32 0.0, %v6887
  %v6889 = vpop.f32.mrb[0].mxu0
  %6890 = vmatprep.mubr.bf16.mxu0 0
  %6891 = vmatmul.mubr.bf16.gmra.mrb[0].mxu0 %v4882
  %v6892 = vpop.f32.mrb[0].mxu0
  %v6893 = vadd.f32 0.0, %v6892
  %v6894 = vpop.f32.mrb[0].mxu0
  %v6895 = vpop.f32.mrb[0].mxu0
  %v6896 = vadd.f32 0.0, %v6895
  %v6897 = vpop.f32.mrb[0].mxu0
  %6898 = vmatprep.mubr.bf16.mxu0 0
  %6899 = vmatmul.mubr.bf16.gmra.mrb[0].mxu0 %v4884
  %v6900 = vpop.f32.mrb[0].mxu0
  %v6901 = vadd.f32 0.0, %v6900
  %v6902 = vpop.f32.mrb[0].mxu0
  %v6903 = vpop.f32.mrb[0].mxu0
  %v6904 = vadd.f32 0.0, %v6903
  %v6905 = vpop.f32.mrb[0].mxu0
  %6906 = vmatprep.mubr.bf16.mxu0 0
  %6907 = vmatmul.mubr.bf16.gmra.mrb[0].mxu0 0
  %v6908 = vpop.f32.mrb[0].mxu0
  %v6909 = vadd.f32 0.0, %v6908
  %v6910 = vpop.f32.mrb[0].mxu0
  %v6911 = vpop.f32.mrb[0].mxu0
  %v6912 = vadd.f32 0.0, %v6911
  %v6913 = vpop.f32.mrb[0].mxu0
  %6914 = vmatprep.mubr.bf16.mxu0 0
  %6915 = vmatmul.mubr.bf16.gmra.mrb[0].mxu0 %v4888
  %v6916 = vpop.f32.mrb[0].mxu0
  %v6917 = vadd.f32 0.0, %v6916
  %v6918 = vpop.f32.mrb[0].mxu0
  %v6919 = vpop.f32.mrb[0].mxu0
  %v6920 = vadd.f32 0.0, %v6919
  %v6921 = vpop.f32.mrb[0].mxu0
  %6922 = vmatprep.mubr.bf16.mxu0 0
  %6923 = vmatmul.mubr.bf16.gmra.mrb[0].mxu0 %v4890
  %v6924 = vpop.f32.mrb[0].mxu0
  %v6925 = vadd.f32 0.0, %v6924
  %v6926 = vpop.f32.mrb[0].mxu0
  %v6927 = vpop.f32.mrb[0].mxu0
  %v6928 = vadd.f32 0.0, %v6927
  %v6929 = vpop.f32.mrb[0].mxu0
  %6930 = vmatprep.mubr.bf16.mxu0 0
  %6931 = vmatmul.mubr.bf16.gmra.mrb[0].mxu0 %v4892
  %v6932 = vpop.f32.mrb[0].mxu0
  %v6933 = vadd.f32 0.0, %v6932
  %v6934 = vpop.f32.mrb[0].mxu0
  %v6935 = vpop.f32.mrb[0].mxu0
  %v6936 = vadd.f32 0.0, %v6935
  %v6937 = vpop.f32.mrb[0].mxu0
  %6938 = vmatprep.mubr.bf16.mxu0 0
  %6939 = vmatmul.mubr.bf16.gmra.mrb[0].mxu0 0
  %v6940 = vpop.f32.mrb[0].mxu0
  %v6941 = vadd.f32 0.0, %v6940
  %v6942 = vpop.f32.mrb[0].mxu0
  %v6943 = vpop.f32.mrb[0].mxu0
  %v6944 = vadd.f32 0.0, %v6943
  %v6945 = vpop.f32.mrb[0].mxu0
  %6946 = vdwg.mxu0
  %v6947 = vadd.f32 %v6769, %v6885
  %v6948 = vadd.f32 %v6770, %v6888
  %v6949 = vadd.f32 %v6771, %v6893
  %v6950 = vadd.f32 %v6772, %v6896
  %v6951 = vadd.f32 %v6773, %v6901
  %v6952 = vadd.f32 %v6774, %v6904
  %v6953 = vadd.f32 %v6775, %v6909
  %v6954 = vadd.f32 %v6776, %v6912
  %v6955 = vadd.f32 %v6777, %v6917
  %v6956 = vadd.f32 %v6778, %v6920
  %v6957 = vadd.f32 %v6779, %v6925
  %v6958 = vadd.f32 %v6780, %v6928
  %v6959 = vadd.f32 %v6781, %v6933
  %v6960 = vadd.f32 %v6782, %v6936
  %v6961 = vadd.f32 %v6783, %v6941
  %v6962 = vadd.f32 %v6784, %v6944
  %s6963 = scalar_lea.vmem %s6, 640
  %v6964 = vld [vmem:[%s6963] sm:$0xf]
  %v6965 = vld [vmem:[%s6963 + $0x4] sm:$0xf]
  %v6966 = vld [vmem:[%s6963 + $0x8] sm:$0xf]
  %v6967 = vld [vmem:[%s6963 + $0xc] sm:$0xf]
  %v6968 = vld [vmem:[%s6963 + $0x10] sm:$0xf]
  %v6969 = vld [vmem:[%s6963 + $0x14] sm:$0xf]
  %v6970 = vld [vmem:[%s6963 + $0x18] sm:$0xf]
  %v6971 = vld [vmem:[%s6963 + $0x1c] sm:$0xf]
  %v6972 = vld [vmem:[%s6963 + $0x20] sm:$0xf]
  %v6973 = vld [vmem:[%s6963 + $0x24] sm:$0xf]
  %v6974 = vld [vmem:[%s6963 + $0x28] sm:$0xf]
  %v6975 = vld [vmem:[%s6963 + $0x2c] sm:$0xf]
  %v6976 = vld [vmem:[%s6963 + $0x30] sm:$0xf]
  %v6977 = vld [vmem:[%s6963 + $0x34] sm:$0xf]
  %v6978 = vld [vmem:[%s6963 + $0x38] sm:$0xf]
  %v6979 = vld [vmem:[%s6963 + $0x3c] sm:$0xf]
  %v6996 = vunpack.c.l.b16 %v6964
  %v6997 = vunpack.c.l.b16 %v6965
  %v6998 = vunpack.c.l.b16 %v6966
  %v6999 = vunpack.c.l.b16 %v6967
  %v7000 = vunpack.c.l.b16 %v6968
  %v7001 = vunpack.c.l.b16 %v6969
  %v7002 = vunpack.c.l.b16 %v6970
  %v7003 = vunpack.c.l.b16 %v6971
  %v7004 = vunpack.c.l.b16 %v6972
  %v7005 = vunpack.c.l.b16 %v6973
  %v7006 = vunpack.c.l.b16 %v6974
  %v7007 = vunpack.c.l.b16 %v6975
  %v7008 = vunpack.c.l.b16 %v6976
  %v7009 = vunpack.c.l.b16 %v6977
  %v7010 = vunpack.c.l.b16 %v6978
  %v7011 = vunpack.c.l.b16 %v6979
  %v7012 = vpack.c.b16 %v6997, %v6996
  %v7013 = vpack.c.b16 %v6999, %v6998
  %v7014 = vpack.c.b16 %v7001, %v7000
  %v7015 = vpack.c.b16 %v7003, %v7002
  %v7016 = vpack.c.b16 %v7005, %v7004
  %v7017 = vpack.c.b16 %v7007, %v7006
  %v7018 = vpack.c.b16 %v7009, %v7008
  %v7019 = vpack.c.b16 %v7011, %v7010
  %7028 = vmatprep.subr.bf16.mxu0 0
  %7029 = vmatpush1.bf16.msra.mxu0 %v7012
  %7030 = vmatprep.subr.bf16.mxu0 0
  %7031 = vmatpush1.bf16.msra.mxu0 %v7013
  %7032 = vmatprep.subr.bf16.mxu0 0
  %7033 = vmatpush1.bf16.msra.mxu0 %v7014
  %7034 = vmatprep.subr.bf16.mxu0 0
  %7035 = vmatpush1.bf16.msra.mxu0 %v7015
  %7036 = vmatprep.subr.bf16.mxu0 0
  %7037 = vmatpush1.bf16.msra.mxu0 %v7016
  %7038 = vmatprep.subr.bf16.mxu0 0
  %7039 = vmatpush1.bf16.msra.mxu0 %v7017
  %7040 = vmatprep.subr.bf16.mxu0 0
  %7041 = vmatpush1.bf16.msra.mxu0 %v7018
  %7042 = vmatprep.subr.bf16.mxu0 0
  %7043 = vmatpush1.bf16.msra.mxu0 %v7019
  %7044 = vmatprep.subr.bf16.mxu0 0
  %7045 = vmatpush1.bf16.msra.mxu0 0
  %7046 = vmatprep.subr.bf16.mxu0 0
  %7047 = vmatpush1.bf16.msra.mxu0 0
  %7048 = vmatprep.subr.bf16.mxu0 0
  %7049 = vmatpush1.bf16.msra.mxu0 0
  %7050 = vmatprep.subr.bf16.mxu0 0
  %7051 = vmatpush1.bf16.msra.mxu0 0
  %7052 = vmatprep.subr.bf16.mxu0 0
  %7053 = vmatpush1.bf16.msra.mxu0 0
  %7054 = vmatprep.subr.bf16.mxu0 0
  %7055 = vmatpush1.bf16.msra.mxu0 0
  %7056 = vmatprep.subr.bf16.mxu0 0
  %7057 = vmatpush1.bf16.msra.mxu0 0
  %7058 = vmatprep.subr.bf16.mxu0 0
  %7059 = vmatpush1.bf16.msra.mxu0 0
  %7060 = vmatprep.mubr.bf16.mxu0 0
  %7061 = vmatmul.mubr.bf16.gmra.mrb[0].mxu0 %v5728
  %v7062 = vpop.f32.mrb[0].mxu0
  %v7063 = vadd.f32 0.0, %v7062
  %v7064 = vpop.f32.mrb[0].mxu0
  %v7065 = vpop.f32.mrb[0].mxu0
  %v7066 = vadd.f32 0.0, %v7065
  %v7067 = vpop.f32.mrb[0].mxu0
  %7068 = vmatprep.mubr.bf16.mxu0 0
  %7069 = vmatmul.mubr.bf16.gmra.mrb[0].mxu0 %v5740
  %v7070 = vpop.f32.mrb[0].mxu0
  %v7071 = vadd.f32 0.0, %v7070
  %v7072 = vpop.f32.mrb[0].mxu0
  %v7073 = vpop.f32.mrb[0].mxu0
  %v7074 = vadd.f32 0.0, %v7073
  %v7075 = vpop.f32.mrb[0].mxu0
  %7076 = vmatprep.mubr.bf16.mxu0 0
  %7077 = vmatmul.mubr.bf16.gmra.mrb[0].mxu0 %v5752
  %v7078 = vpop.f32.mrb[0].mxu0
  %v7079 = vadd.f32 0.0, %v7078
  %v7080 = vpop.f32.mrb[0].mxu0
  %v7081 = vpop.f32.mrb[0].mxu0
  %v7082 = vadd.f32 0.0, %v7081
  %v7083 = vpop.f32.mrb[0].mxu0
  %7084 = vmatprep.mubr.bf16.mxu0 0
  %7085 = vmatmul.mubr.bf16.gmra.mrb[0].mxu0 %v634
  %v7086 = vpop.f32.mrb[0].mxu0
  %v7087 = vadd.f32 0.0, %v7086
  %v7088 = vpop.f32.mrb[0].mxu0
  %v7089 = vpop.f32.mrb[0].mxu0
  %v7090 = vadd.f32 0.0, %v7089
  %v7091 = vpop.f32.mrb[0].mxu0
  %7092 = vmatprep.mubr.bf16.mxu0 0
  %7093 = vmatmul.mubr.bf16.gmra.mrb[0].mxu0 %v5776
  %v7094 = vpop.f32.mrb[0].mxu0
  %v7095 = vadd.f32 0.0, %v7094
  %v7096 = vpop.f32.mrb[0].mxu0
  %v7097 = vpop.f32.mrb[0].mxu0
  %v7098 = vadd.f32 0.0, %v7097
  %v7099 = vpop.f32.mrb[0].mxu0
  %7100 = vmatprep.mubr.bf16.mxu0 0
  %7101 = vmatmul.mubr.bf16.gmra.mrb[0].mxu0 %v5788
  %v7102 = vpop.f32.mrb[0].mxu0
  %v7103 = vadd.f32 0.0, %v7102
  %v7104 = vpop.f32.mrb[0].mxu0
  %v7105 = vpop.f32.mrb[0].mxu0
  %v7106 = vadd.f32 0.0, %v7105
  %v7107 = vpop.f32.mrb[0].mxu0
  %7108 = vmatprep.mubr.bf16.mxu0 0
  %7109 = vmatmul.mubr.bf16.gmra.mrb[0].mxu0 %v5800
  %v7110 = vpop.f32.mrb[0].mxu0
  %v7111 = vadd.f32 0.0, %v7110
  %v7112 = vpop.f32.mrb[0].mxu0
  %v7113 = vpop.f32.mrb[0].mxu0
  %v7114 = vadd.f32 0.0, %v7113
  %v7115 = vpop.f32.mrb[0].mxu0
  %7116 = vmatprep.mubr.bf16.mxu0 0
  %7117 = vmatmul.mubr.bf16.gmra.mrb[0].mxu0 %v634
  %v7118 = vpop.f32.mrb[0].mxu0
  %v7119 = vadd.f32 0.0, %v7118
  %v7120 = vpop.f32.mrb[0].mxu0
  %v7121 = vpop.f32.mrb[0].mxu0
  %v7122 = vadd.f32 0.0, %v7121
  %v7123 = vpop.f32.mrb[0].mxu0
  %7124 = vdwg.mxu0
  %v7125 = vadd.f32 %v6947, %v7063
  %v7126 = vadd.f32 %v6948, %v7066
  %v7127 = vadd.f32 %v6949, %v7071
  %v7128 = vadd.f32 %v6950, %v7074
  %v7129 = vadd.f32 %v6951, %v7079
  %v7130 = vadd.f32 %v6952, %v7082
  %v7131 = vadd.f32 %v6953, %v7087
  %v7132 = vadd.f32 %v6954, %v7090
  %v7133 = vadd.f32 %v6955, %v7095
  %v7134 = vadd.f32 %v6956, %v7098
  %v7135 = vadd.f32 %v6957, %v7103
  %v7136 = vadd.f32 %v6958, %v7106
  %v7137 = vadd.f32 %v6959, %v7111
  %v7138 = vadd.f32 %v6960, %v7114
  %v7139 = vadd.f32 %v6961, %v7119
  %v7140 = vadd.f32 %v6962, %v7122
  %s7141 = scalar_lea.vmem %s6, 704
  %v7142 = vld [vmem:[%s7141] sm:$0xf]
  %v7143 = vld [vmem:[%s7141 + $0x4] sm:$0xf]
  %v7144 = vld [vmem:[%s7141 + $0x8] sm:$0xf]
  %v7145 = vld [vmem:[%s7141 + $0xc] sm:$0xf]
  %v7146 = vld [vmem:[%s7141 + $0x10] sm:$0xf]
  %v7147 = vld [vmem:[%s7141 + $0x14] sm:$0xf]
  %v7148 = vld [vmem:[%s7141 + $0x18] sm:$0xf]
  %v7149 = vld [vmem:[%s7141 + $0x1c] sm:$0xf]
  %v7150 = vld [vmem:[%s7141 + $0x20] sm:$0xf]
  %v7151 = vld [vmem:[%s7141 + $0x24] sm:$0xf]
  %v7152 = vld [vmem:[%s7141 + $0x28] sm:$0xf]
  %v7153 = vld [vmem:[%s7141 + $0x2c] sm:$0xf]
  %v7154 = vld [vmem:[%s7141 + $0x30] sm:$0xf]
  %v7155 = vld [vmem:[%s7141 + $0x34] sm:$0xf]
  %v7156 = vld [vmem:[%s7141 + $0x38] sm:$0xf]
  %v7157 = vld [vmem:[%s7141 + $0x3c] sm:$0xf]
  %v7174 = vunpack.c.l.b16 %v7142
  %v7175 = vunpack.c.l.b16 %v7143
  %v7176 = vunpack.c.l.b16 %v7144
  %v7177 = vunpack.c.l.b16 %v7145
  %v7178 = vunpack.c.l.b16 %v7146
  %v7179 = vunpack.c.l.b16 %v7147
  %v7180 = vunpack.c.l.b16 %v7148
  %v7181 = vunpack.c.l.b16 %v7149
  %v7182 = vunpack.c.l.b16 %v7150
  %v7183 = vunpack.c.l.b16 %v7151
  %v7184 = vunpack.c.l.b16 %v7152
  %v7185 = vunpack.c.l.b16 %v7153
  %v7186 = vunpack.c.l.b16 %v7154
  %v7187 = vunpack.c.l.b16 %v7155
  %v7188 = vunpack.c.l.b16 %v7156
  %v7189 = vunpack.c.l.b16 %v7157
  %v7190 = vpack.c.b16 %v7175, %v7174
  %v7191 = vpack.c.b16 %v7177, %v7176
  %v7192 = vpack.c.b16 %v7179, %v7178
  %v7193 = vpack.c.b16 %v7181, %v7180
  %v7194 = vpack.c.b16 %v7183, %v7182
  %v7195 = vpack.c.b16 %v7185, %v7184
  %v7196 = vpack.c.b16 %v7187, %v7186
  %v7197 = vpack.c.b16 %v7189, %v7188
  %7206 = vmatprep.subr.bf16.mxu0 0
  %7207 = vmatpush1.bf16.msra.mxu0 %v7190
  %7208 = vmatprep.subr.bf16.mxu0 0
  %7209 = vmatpush1.bf16.msra.mxu0 %v7191
  %7210 = vmatprep.subr.bf16.mxu0 0
  %7211 = vmatpush1.bf16.msra.mxu0 %v7192
  %7212 = vmatprep.subr.bf16.mxu0 0
  %7213 = vmatpush1.bf16.msra.mxu0 %v7193
  %7214 = vmatprep.subr.bf16.mxu0 0
  %7215 = vmatpush1.bf16.msra.mxu0 %v7194
  %7216 = vmatprep.subr.bf16.mxu0 0
  %7217 = vmatpush1.bf16.msra.mxu0 %v7195
  %7218 = vmatprep.subr.bf16.mxu0 0
  %7219 = vmatpush1.bf16.msra.mxu0 %v7196
  %7220 = vmatprep.subr.bf16.mxu0 0
  %7221 = vmatpush1.bf16.msra.mxu0 %v7197
  %7222 = vmatprep.subr.bf16.mxu0 0
  %7223 = vmatpush1.bf16.msra.mxu0 0
  %7224 = vmatprep.subr.bf16.mxu0 0
  %7225 = vmatpush1.bf16.msra.mxu0 0
  %7226 = vmatprep.subr.bf16.mxu0 0
  %7227 = vmatpush1.bf16.msra.mxu0 0
  %7228 = vmatprep.subr.bf16.mxu0 0
  %7229 = vmatpush1.bf16.msra.mxu0 0
  %7230 = vmatprep.subr.bf16.mxu0 0
  %7231 = vmatpush1.bf16.msra.mxu0 0
  %7232 = vmatprep.subr.bf16.mxu0 0
  %7233 = vmatpush1.bf16.msra.mxu0 0
  %7234 = vmatprep.subr.bf16.mxu0 0
  %7235 = vmatpush1.bf16.msra.mxu0 0
  %7236 = vmatprep.subr.bf16.mxu0 0
  %7237 = vmatpush1.bf16.msra.mxu0 0
  %7238 = vmatprep.mubr.bf16.mxu0 0
  %7239 = vmatmul.mubr.bf16.gmra.mrb[0].mxu0 %v6008
  %v7240 = vpop.f32.mrb[0].mxu0
  %v7241 = vadd.f32 0.0, %v7240
  %v7242 = vpop.f32.mrb[0].mxu0
  %v7243 = vpop.f32.mrb[0].mxu0
  %v7244 = vadd.f32 0.0, %v7243
  %v7245 = vpop.f32.mrb[0].mxu0
  %7246 = vmatprep.mubr.bf16.mxu0 0
  %7247 = vmatmul.mubr.bf16.gmra.mrb[0].mxu0 %v6011
  %v7248 = vpop.f32.mrb[0].mxu0
  %v7249 = vadd.f32 0.0, %v7248
  %v7250 = vpop.f32.mrb[0].mxu0
  %v7251 = vpop.f32.mrb[0].mxu0
  %v7252 = vadd.f32 0.0, %v7251
  %v7253 = vpop.f32.mrb[0].mxu0
  %7254 = vmatprep.mubr.bf16.mxu0 0
  %7255 = vmatmul.mubr.bf16.gmra.mrb[0].mxu0 %v6014
  %v7256 = vpop.f32.mrb[0].mxu0
  %v7257 = vadd.f32 0.0, %v7256
  %v7258 = vpop.f32.mrb[0].mxu0
  %v7259 = vpop.f32.mrb[0].mxu0
  %v7260 = vadd.f32 0.0, %v7259
  %v7261 = vpop.f32.mrb[0].mxu0
  %7262 = vmatprep.mubr.bf16.mxu0 0
  %7263 = vmatmul.mubr.bf16.gmra.mrb[0].mxu0 %v1289
  %v7264 = vpop.f32.mrb[0].mxu0
  %v7265 = vadd.f32 0.0, %v7264
  %v7266 = vpop.f32.mrb[0].mxu0
  %v7267 = vpop.f32.mrb[0].mxu0
  %v7268 = vadd.f32 0.0, %v7267
  %v7269 = vpop.f32.mrb[0].mxu0
  %7270 = vmatprep.mubr.bf16.mxu0 0
  %7271 = vmatmul.mubr.bf16.gmra.mrb[0].mxu0 %v6020
  %v7272 = vpop.f32.mrb[0].mxu0
  %v7273 = vadd.f32 0.0, %v7272
  %v7274 = vpop.f32.mrb[0].mxu0
  %v7275 = vpop.f32.mrb[0].mxu0
  %v7276 = vadd.f32 0.0, %v7275
  %v7277 = vpop.f32.mrb[0].mxu0
  %7278 = vmatprep.mubr.bf16.mxu0 0
  %7279 = vmatmul.mubr.bf16.gmra.mrb[0].mxu0 %v6023
  %v7280 = vpop.f32.mrb[0].mxu0
  %v7281 = vadd.f32 0.0, %v7280
  %v7282 = vpop.f32.mrb[0].mxu0
  %v7283 = vpop.f32.mrb[0].mxu0
  %v7284 = vadd.f32 0.0, %v7283
  %v7285 = vpop.f32.mrb[0].mxu0
  %7286 = vmatprep.mubr.bf16.mxu0 0
  %7287 = vmatmul.mubr.bf16.gmra.mrb[0].mxu0 %v6026
  %v7288 = vpop.f32.mrb[0].mxu0
  %v7289 = vadd.f32 0.0, %v7288
  %v7290 = vpop.f32.mrb[0].mxu0
  %v7291 = vpop.f32.mrb[0].mxu0
  %v7292 = vadd.f32 0.0, %v7291
  %v7293 = vpop.f32.mrb[0].mxu0
  %7294 = vmatprep.mubr.bf16.mxu0 0
  %7295 = vmatmul.mubr.bf16.gmra.mrb[0].mxu0 %v1289
  %v7296 = vpop.f32.mrb[0].mxu0
  %v7297 = vadd.f32 0.0, %v7296
  %v7298 = vpop.f32.mrb[0].mxu0
  %v7299 = vpop.f32.mrb[0].mxu0
  %v7300 = vadd.f32 0.0, %v7299
  %v7301 = vpop.f32.mrb[0].mxu0
  %7302 = vdwg.mxu0
  %v7303 = vadd.f32 %v7125, %v7241
  %v7304 = vadd.f32 %v7126, %v7244
  %v7305 = vadd.f32 %v7127, %v7249
  %v7306 = vadd.f32 %v7128, %v7252
  %v7307 = vadd.f32 %v7129, %v7257
  %v7308 = vadd.f32 %v7130, %v7260
  %v7309 = vadd.f32 %v7131, %v7265
  %v7310 = vadd.f32 %v7132, %v7268
  %v7311 = vadd.f32 %v7133, %v7273
  %v7312 = vadd.f32 %v7134, %v7276
  %v7313 = vadd.f32 %v7135, %v7281
  %v7314 = vadd.f32 %v7136, %v7284
  %v7315 = vadd.f32 %v7137, %v7289
  %v7316 = vadd.f32 %v7138, %v7292
  %v7317 = vadd.f32 %v7139, %v7297
  %v7318 = vadd.f32 %v7140, %v7300
  %v7319 = vadd.f32 %v7303, %v7304
  %v7320 = vadd.f32 %v7319, %v7305
  %v7321 = vadd.f32 %v7320, %v7306
  %v7322 = vadd.f32 %v7321, %v7307
  %v7323 = vadd.f32 %v7322, %v7308
  %v7324 = vadd.f32 %v7323, %v7309
  %v7325 = vadd.f32 %v7324, %v7310
  %v7326 = vadd.f32 %v7325, %v7311
  %v7327 = vadd.f32 %v7326, %v7312
  %v7328 = vadd.f32 %v7327, %v7313
  %v7329 = vadd.f32 %v7328, %v7314
  %v7330 = vadd.f32 %v7329, %v7315
  %v7331 = vadd.f32 %v7330, %v7316
  %v7332 = vadd.f32 %v7331, %v7317
  %v7333 = vadd.f32 %v7332, %v7318
  %v7334 = vrot.slane %v7333, 4
  %v7335 = vadd.f32 %v7333, %v7334
  %v7336 = vrot.slane %v7335, 2
  %v7337 = vadd.f32 %v7335, %v7336
  %v7338 = vrot.slane %v7337, 1
  %v7339 = vadd.f32 %v7337, %v7338
  %7340 = vmatprep.subr.mxu0 0.0
  %7341 = vmatpush1.msra.mxu0 %v4124
  %7342 = vmatprep.subr.mxu0 0.0
  %7343 = vmatpush1.msra.mxu0 %v4125
  %7344 = vmatprep.subr.mxu0 0.0
  %7345 = vmatpush1.msra.mxu0 %v4126
  %7346 = vmatprep.subr.mxu0 0.0
  %7347 = vmatpush1.msra.mxu0 %v4127
  %7348 = vmatprep.subr.mxu0 0.0
  %7349 = vmatpush1.msra.mxu0 %v4128
  %7350 = vmatprep.subr.mxu0 0.0
  %7351 = vmatpush1.msra.mxu0 %v4129
  %7352 = vmatprep.subr.mxu0 0.0
  %7353 = vmatpush1.msra.mxu0 %v4130
  %7354 = vmatprep.subr.mxu0 0.0
  %7355 = vmatpush1.msra.mxu0 %v4131
  %7356 = vmatprep.subr.mxu0 0.0
  %7357 = vmatpush1.msra.mxu0 %v4132
  %7358 = vmatprep.subr.mxu0 0.0
  %7359 = vmatpush1.msra.mxu0 %v4133
  %7360 = vmatprep.subr.mxu0 0.0
  %7361 = vmatpush1.msra.mxu0 %v4134
  %7362 = vmatprep.subr.mxu0 0.0
  %7363 = vmatpush1.msra.mxu0 %v4135
  %7364 = vmatprep.subr.mxu0 0.0
  %7365 = vmatpush1.msra.mxu0 %v4136
  %7366 = vmatprep.subr.mxu0 0.0
  %7367 = vmatpush1.msra.mxu0 %v4137
  %7368 = vmatprep.subr.mxu0 0.0
  %7369 = vmatpush1.msra.mxu0 %v4138
  %7370 = vmatprep.subr.mxu0 0.0
  %7371 = vmatpush1.msra.mxu0 %v4139
  %7372 = vmatprep.subr.mxu0 0.0
  %7373 = vmatpush1.msra.mxu0 0.0
  %7374 = vmatprep.subr.mxu0 0.0
  %7375 = vmatpush1.msra.mxu0 0.0
  %7376 = vmatprep.subr.mxu0 0.0
  %7377 = vmatpush1.msra.mxu0 0.0
  %7378 = vmatprep.subr.mxu0 0.0
  %7379 = vmatpush1.msra.mxu0 0.0
  %7380 = vmatprep.subr.mxu0 0.0
  %7381 = vmatpush1.msra.mxu0 0.0
  %7382 = vmatprep.subr.mxu0 0.0
  %7383 = vmatpush1.msra.mxu0 0.0
  %7384 = vmatprep.subr.mxu0 0.0
  %7385 = vmatpush1.msra.mxu0 0.0
  %7386 = vmatprep.subr.mxu0 0.0
  %7387 = vmatpush1.msra.mxu0 0.0
  %7388 = vmatprep.subr.mxu0 0.0
  %7389 = vmatpush1.msra.mxu0 0.0
  %7390 = vmatprep.subr.mxu0 0.0
  %7391 = vmatpush1.msra.mxu0 0.0
  %7392 = vmatprep.subr.mxu0 0.0
  %7393 = vmatpush1.msra.mxu0 0.0
  %7394 = vmatprep.subr.mxu0 0.0
  %7395 = vmatpush1.msra.mxu0 0.0
  %7396 = vmatprep.subr.mxu0 0.0
  %7397 = vmatpush1.msra.mxu0 0.0
  %7398 = vmatprep.subr.mxu0 0.0
  %7399 = vmatpush1.msra.mxu0 0.0
  %7400 = vmatprep.subr.mxu0 0.0
  %7401 = vmatpush1.msra.mxu0 0.0
  %7402 = vmatprep.subr.mxu0 0.0
  %7403 = vmatpush1.msra.mxu0 0.0
  %7404 = vmatprep.mubr.f32.mxu0 0.0
  %7405 = vmatmul.mubr.f32.gmra.mrb[0].mxu0 %v7339
  %v7406 = vpop.f32.mrb[0].mxu0
  %v7407 = vadd.f32 0.0, %v7406
  %v7408 = vpop.f32.mrb[0].mxu0
  %7409 = vdwg.mxu0
  %v7410 = vrcp.pop 2048.0
  %v7411 = vmul.f32 %v7407, %v7410
  %v7413 = vsel %vm4213, %v7411, 0
  %7415 = vmatprep.subr.mxu0 0.0
  %7416 = vmatpush1.msra.mxu0 %v4212
  %7417 = vmatprep.subr.mxu0 0.0
  %7418 = vmatpush1.msra.mxu0 0.0
  %7419 = vmatprep.subr.mxu0 0.0
  %7420 = vmatpush1.msra.mxu0 0.0
  %7421 = vmatprep.subr.mxu0 0.0
  %7422 = vmatpush1.msra.mxu0 0.0
  %7423 = vmatprep.subr.mxu0 0.0
  %7424 = vmatpush1.msra.mxu0 0.0
  %7425 = vmatprep.subr.mxu0 0.0
  %7426 = vmatpush1.msra.mxu0 0.0
  %7427 = vmatprep.subr.mxu0 0.0
  %7428 = vmatpush1.msra.mxu0 0.0
  %7429 = vmatprep.subr.mxu0 0.0
  %7430 = vmatpush1.msra.mxu0 0.0
  %7431 = vmatprep.subr.mxu0 0.0
  %7432 = vmatpush1.msra.mxu0 0.0
  %7433 = vmatprep.subr.mxu0 0.0
  %7434 = vmatpush1.msra.mxu0 0.0
  %7435 = vmatprep.subr.mxu0 0.0
  %7436 = vmatpush1.msra.mxu0 0.0
  %7437 = vmatprep.subr.mxu0 0.0
  %7438 = vmatpush1.msra.mxu0 0.0
  %7439 = vmatprep.subr.mxu0 0.0
  %7440 = vmatpush1.msra.mxu0 0.0
  %7441 = vmatprep.subr.mxu0 0.0
  %7442 = vmatpush1.msra.mxu0 0.0
  %7443 = vmatprep.subr.mxu0 0.0
  %7444 = vmatpush1.msra.mxu0 0.0
  %7445 = vmatprep.subr.mxu0 0.0
  %7446 = vmatpush1.msra.mxu0 0.0
  %7447 = vmatprep.subr.mxu0 0.0
  %7448 = vmatpush1.msra.mxu0 0.0
  %7449 = vmatprep.subr.mxu0 0.0
  %7450 = vmatpush1.msra.mxu0 0.0
  %7451 = vmatprep.subr.mxu0 0.0
  %7452 = vmatpush1.msra.mxu0 0.0
  %7453 = vmatprep.subr.mxu0 0.0
  %7454 = vmatpush1.msra.mxu0 0.0
  %7455 = vmatprep.subr.mxu0 0.0
  %7456 = vmatpush1.msra.mxu0 0.0
  %7457 = vmatprep.subr.mxu0 0.0
  %7458 = vmatpush1.msra.mxu0 0.0
  %7459 = vmatprep.subr.mxu0 0.0
  %7460 = vmatpush1.msra.mxu0 0.0
  %7461 = vmatprep.subr.mxu0 0.0
  %7462 = vmatpush1.msra.mxu0 0.0
  %7463 = vmatprep.subr.mxu0 0.0
  %7464 = vmatpush1.msra.mxu0 0.0
  %7465 = vmatprep.subr.mxu0 0.0
  %7466 = vmatpush1.msra.mxu0 0.0
  %7467 = vmatprep.subr.mxu0 0.0
  %7468 = vmatpush1.msra.mxu0 0.0
  %7469 = vmatprep.subr.mxu0 0.0
  %7470 = vmatpush1.msra.mxu0 0.0
  %7471 = vmatprep.subr.mxu0 0.0
  %7472 = vmatpush1.msra.mxu0 0.0
  %7473 = vmatprep.subr.mxu0 0.0
  %7474 = vmatpush1.msra.mxu0 0.0
  %7475 = vmatprep.subr.mxu0 0.0
  %7476 = vmatpush1.msra.mxu0 0.0
  %7477 = vmatprep.subr.mxu0 0.0
  %7478 = vmatpush1.msra.mxu0 0.0
  %7479 = vmatprep.mubr.f32.mxu0 0.0
  %7480 = vmatmul.mubr.f32.gmra.mrb[0].mxu0 %v7413
  %v7481 = vpop.f32.mrb[0].mxu0
  %v7482 = vadd.f32 0.0, %v7481
  %v7483 = vpop.f32.mrb[0].mxu0
  %7484 = vdwg.mxu0
  %v7485 = vlaneseq
  %v7486 = vshrl.u32 %v7485, 7
  %v7487 = vsub.s32 0, %v7486
  %v7488 = vrot.slane %v7482, %v7487
  %v7489 = vsub.f32 %v7303, %v7488
  %v7490 = vsub.f32 %v7304, %v7488
  %v7491 = vsub.f32 %v7305, %v7488
  %v7492 = vsub.f32 %v7306, %v7488
  %v7493 = vsub.f32 %v7307, %v7488
  %v7494 = vsub.f32 %v7308, %v7488
  %v7495 = vsub.f32 %v7309, %v7488
  %v7496 = vsub.f32 %v7310, %v7488
  %v7497 = vsub.f32 %v7311, %v7488
  %v7498 = vsub.f32 %v7312, %v7488
  %v7499 = vsub.f32 %v7313, %v7488
  %v7500 = vsub.f32 %v7314, %v7488
  %v7501 = vsub.f32 %v7315, %v7488
  %v7502 = vsub.f32 %v7316, %v7488
  %v7503 = vsub.f32 %v7317, %v7488
  %v7504 = vsub.f32 %v7318, %v7488
  %v7505 = vmul.f32 %v7489, %v7489
  %v7506 = vmul.f32 %v7490, %v7490
  %v7507 = vmul.f32 %v7491, %v7491
  %v7508 = vmul.f32 %v7492, %v7492
  %v7509 = vmul.f32 %v7493, %v7493
  %v7510 = vmul.f32 %v7494, %v7494
  %v7511 = vmul.f32 %v7495, %v7495
  %v7512 = vmul.f32 %v7496, %v7496
  %v7513 = vmul.f32 %v7497, %v7497
  %v7514 = vmul.f32 %v7498, %v7498
  %v7515 = vmul.f32 %v7499, %v7499
  %v7516 = vmul.f32 %v7500, %v7500
  %v7517 = vmul.f32 %v7501, %v7501
  %v7518 = vmul.f32 %v7502, %v7502
  %v7519 = vmul.f32 %v7503, %v7503
  %v7520 = vmul.f32 %v7504, %v7504
  %v7521 = vadd.f32 %v7505, %v7506
  %v7522 = vadd.f32 %v7521, %v7507
  %v7523 = vadd.f32 %v7522, %v7508
  %v7524 = vadd.f32 %v7523, %v7509
  %v7525 = vadd.f32 %v7524, %v7510
  %v7526 = vadd.f32 %v7525, %v7511
  %v7527 = vadd.f32 %v7526, %v7512
  %v7528 = vadd.f32 %v7527, %v7513
  %v7529 = vadd.f32 %v7528, %v7514
  %v7530 = vadd.f32 %v7529, %v7515
  %v7531 = vadd.f32 %v7530, %v7516
  %v7532 = vadd.f32 %v7531, %v7517
  %v7533 = vadd.f32 %v7532, %v7518
  %v7534 = vadd.f32 %v7533, %v7519
  %v7535 = vadd.f32 %v7534, %v7520
  %v7536 = vrot.slane %v7535, 4
  %v7537 = vadd.f32 %v7535, %v7536
  %v7538 = vrot.slane %v7537, 2
  %v7539 = vadd.f32 %v7537, %v7538
  %v7540 = vrot.slane %v7539, 1
  %v7541 = vadd.f32 %v7539, %v7540
  %7542 = vmatprep.subr.mxu0 0.0
  %7543 = vmatpush1.msra.mxu0 %v4124
  %7544 = vmatprep.subr.mxu0 0.0
  %7545 = vmatpush1.msra.mxu0 %v4125
  %7546 = vmatprep.subr.mxu0 0.0
  %7547 = vmatpush1.msra.mxu0 %v4126
  %7548 = vmatprep.subr.mxu0 0.0
  %7549 = vmatpush1.msra.mxu0 %v4127
  %7550 = vmatprep.subr.mxu0 0.0
  %7551 = vmatpush1.msra.mxu0 %v4128
  %7552 = vmatprep.subr.mxu0 0.0
  %7553 = vmatpush1.msra.mxu0 %v4129
  %7554 = vmatprep.subr.mxu0 0.0
  %7555 = vmatpush1.msra.mxu0 %v4130
  %7556 = vmatprep.subr.mxu0 0.0
  %7557 = vmatpush1.msra.mxu0 %v4131
  %7558 = vmatprep.subr.mxu0 0.0
  %7559 = vmatpush1.msra.mxu0 %v4132
  %7560 = vmatprep.subr.mxu0 0.0
  %7561 = vmatpush1.msra.mxu0 %v4133
  %7562 = vmatprep.subr.mxu0 0.0
  %7563 = vmatpush1.msra.mxu0 %v4134
  %7564 = vmatprep.subr.mxu0 0.0
  %7565 = vmatpush1.msra.mxu0 %v4135
  %7566 = vmatprep.subr.mxu0 0.0
  %7567 = vmatpush1.msra.mxu0 %v4136
  %7568 = vmatprep.subr.mxu0 0.0
  %7569 = vmatpush1.msra.mxu0 %v4137
  %7570 = vmatprep.subr.mxu0 0.0
  %7571 = vmatpush1.msra.mxu0 %v4138
  %7572 = vmatprep.subr.mxu0 0.0
  %7573 = vmatpush1.msra.mxu0 %v4139
  %7574 = vmatprep.subr.mxu0 0.0
  %7575 = vmatpush1.msra.mxu0 0.0
  %7576 = vmatprep.subr.mxu0 0.0
  %7577 = vmatpush1.msra.mxu0 0.0
  %7578 = vmatprep.subr.mxu0 0.0
  %7579 = vmatpush1.msra.mxu0 0.0
  %7580 = vmatprep.subr.mxu0 0.0
  %7581 = vmatpush1.msra.mxu0 0.0
  %7582 = vmatprep.subr.mxu0 0.0
  %7583 = vmatpush1.msra.mxu0 0.0
  %7584 = vmatprep.subr.mxu0 0.0
  %7585 = vmatpush1.msra.mxu0 0.0
  %7586 = vmatprep.subr.mxu0 0.0
  %7587 = vmatpush1.msra.mxu0 0.0
  %7588 = vmatprep.subr.mxu0 0.0
  %7589 = vmatpush1.msra.mxu0 0.0
  %7590 = vmatprep.subr.mxu0 0.0
  %7591 = vmatpush1.msra.mxu0 0.0
  %7592 = vmatprep.subr.mxu0 0.0
  %7593 = vmatpush1.msra.mxu0 0.0
  %7594 = vmatprep.subr.mxu0 0.0
  %7595 = vmatpush1.msra.mxu0 0.0
  %7596 = vmatprep.subr.mxu0 0.0
  %7597 = vmatpush1.msra.mxu0 0.0
  %7598 = vmatprep.subr.mxu0 0.0
  %7599 = vmatpush1.msra.mxu0 0.0
  %7600 = vmatprep.subr.mxu0 0.0
  %7601 = vmatpush1.msra.mxu0 0.0
  %7602 = vmatprep.subr.mxu0 0.0
  %7603 = vmatpush1.msra.mxu0 0.0
  %7604 = vmatprep.subr.mxu0 0.0
  %7605 = vmatpush1.msra.mxu0 0.0
  %7606 = vmatprep.mubr.f32.mxu0 0.0
  %7607 = vmatmul.mubr.f32.gmra.mrb[0].mxu0 %v7541
  %v7608 = vpop.f32.mrb[0].mxu0
  %v7609 = vadd.f32 0.0, %v7608
  %v7610 = vpop.f32.mrb[0].mxu0
  %7611 = vdwg.mxu0
  %v7612 = vmul.f32 %v7609, %v7410
  %v7613 = vld [vmem:[%s7] sm:$0x1]
  %v7614 = vadd.f32 %v7612, 1e-05
  %v7615 = vrsqrt.pop %v7614
  %v7616 = vmul.f32 %v7613, %v7615
  %v7618 = vsel %vm4213, %v7616, 0
  %7620 = vmatprep.subr.mxu0 0.0
  %7621 = vmatpush1.msra.mxu0 %v4212
  %7622 = vmatprep.subr.mxu0 0.0
  %7623 = vmatpush1.msra.mxu0 0.0
  %7624 = vmatprep.subr.mxu0 0.0
  %7625 = vmatpush1.msra.mxu0 0.0
  %7626 = vmatprep.subr.mxu0 0.0
  %7627 = vmatpush1.msra.mxu0 0.0
  %7628 = vmatprep.subr.mxu0 0.0
  %7629 = vmatpush1.msra.mxu0 0.0
  %7630 = vmatprep.subr.mxu0 0.0
  %7631 = vmatpush1.msra.mxu0 0.0
  %7632 = vmatprep.subr.mxu0 0.0
  %7633 = vmatpush1.msra.mxu0 0.0
  %7634 = vmatprep.subr.mxu0 0.0
  %7635 = vmatpush1.msra.mxu0 0.0
  %7636 = vmatprep.subr.mxu0 0.0
  %7637 = vmatpush1.msra.mxu0 0.0
  %7638 = vmatprep.subr.mxu0 0.0
  %7639 = vmatpush1.msra.mxu0 0.0
  %7640 = vmatprep.subr.mxu0 0.0
  %7641 = vmatpush1.msra.mxu0 0.0
  %7642 = vmatprep.subr.mxu0 0.0
  %7643 = vmatpush1.msra.mxu0 0.0
  %7644 = vmatprep.subr.mxu0 0.0
  %7645 = vmatpush1.msra.mxu0 0.0
  %7646 = vmatprep.subr.mxu0 0.0
  %7647 = vmatpush1.msra.mxu0 0.0
  %7648 = vmatprep.subr.mxu0 0.0
  %7649 = vmatpush1.msra.mxu0 0.0
  %7650 = vmatprep.subr.mxu0 0.0
  %7651 = vmatpush1.msra.mxu0 0.0
  %7652 = vmatprep.subr.mxu0 0.0
  %7653 = vmatpush1.msra.mxu0 0.0
  %7654 = vmatprep.subr.mxu0 0.0
  %7655 = vmatpush1.msra.mxu0 0.0
  %7656 = vmatprep.subr.mxu0 0.0
  %7657 = vmatpush1.msra.mxu0 0.0
  %7658 = vmatprep.subr.mxu0 0.0
  %7659 = vmatpush1.msra.mxu0 0.0
  %7660 = vmatprep.subr.mxu0 0.0
  %7661 = vmatpush1.msra.mxu0 0.0
  %7662 = vmatprep.subr.mxu0 0.0
  %7663 = vmatpush1.msra.mxu0 0.0
  %7664 = vmatprep.subr.mxu0 0.0
  %7665 = vmatpush1.msra.mxu0 0.0
  %7666 = vmatprep.subr.mxu0 0.0
  %7667 = vmatpush1.msra.mxu0 0.0
  %7668 = vmatprep.subr.mxu0 0.0
  %7669 = vmatpush1.msra.mxu0 0.0
  %7670 = vmatprep.subr.mxu0 0.0
  %7671 = vmatpush1.msra.mxu0 0.0
  %7672 = vmatprep.subr.mxu0 0.0
  %7673 = vmatpush1.msra.mxu0 0.0
  %7674 = vmatprep.subr.mxu0 0.0
  %7675 = vmatpush1.msra.mxu0 0.0
  %7676 = vmatprep.subr.mxu0 0.0
  %7677 = vmatpush1.msra.mxu0 0.0
  %7678 = vmatprep.subr.mxu0 0.0
  %7679 = vmatpush1.msra.mxu0 0.0
  %7680 = vmatprep.subr.mxu0 0.0
  %7681 = vmatpush1.msra.mxu0 0.0
  %7682 = vmatprep.subr.mxu0 0.0
  %7683 = vmatpush1.msra.mxu0 0.0
  %7684 = vmatprep.mubr.f32.mxu0 0.0
  %7685 = vmatmul.mubr.f32.gmra.mrb[0].mxu0 %v7618
  %v7686 = vpop.f32.mrb[0].mxu0
  %v7687 = vadd.f32 0.0, %v7686
  %v7688 = vpop.f32.mrb[0].mxu0
  %7689 = vdwg.mxu0
  %v7690 = vld [vmem:[%s8] sm:$0x1]
  %v7692 = vsel %vm4213, %v7690, 0
  %7694 = vmatprep.subr.mxu0 0.0
  %7695 = vmatpush1.msra.mxu0 %v4212
  %7696 = vmatprep.subr.mxu0 0.0
  %7697 = vmatpush1.msra.mxu0 0.0
  %7698 = vmatprep.subr.mxu0 0.0
  %7699 = vmatpush1.msra.mxu0 0.0
  %7700 = vmatprep.subr.mxu0 0.0
  %7701 = vmatpush1.msra.mxu0 0.0
  %7702 = vmatprep.subr.mxu0 0.0
  %7703 = vmatpush1.msra.mxu0 0.0
  %7704 = vmatprep.subr.mxu0 0.0
  %7705 = vmatpush1.msra.mxu0 0.0
  %7706 = vmatprep.subr.mxu0 0.0
  %7707 = vmatpush1.msra.mxu0 0.0
  %7708 = vmatprep.subr.mxu0 0.0
  %7709 = vmatpush1.msra.mxu0 0.0
  %7710 = vmatprep.subr.mxu0 0.0
  %7711 = vmatpush1.msra.mxu0 0.0
  %7712 = vmatprep.subr.mxu0 0.0
  %7713 = vmatpush1.msra.mxu0 0.0
  %7714 = vmatprep.subr.mxu0 0.0
  %7715 = vmatpush1.msra.mxu0 0.0
  %7716 = vmatprep.subr.mxu0 0.0
  %7717 = vmatpush1.msra.mxu0 0.0
  %7718 = vmatprep.subr.mxu0 0.0
  %7719 = vmatpush1.msra.mxu0 0.0
  %7720 = vmatprep.subr.mxu0 0.0
  %7721 = vmatpush1.msra.mxu0 0.0
  %7722 = vmatprep.subr.mxu0 0.0
  %7723 = vmatpush1.msra.mxu0 0.0
  %7724 = vmatprep.subr.mxu0 0.0
  %7725 = vmatpush1.msra.mxu0 0.0
  %7726 = vmatprep.subr.mxu0 0.0
  %7727 = vmatpush1.msra.mxu0 0.0
  %7728 = vmatprep.subr.mxu0 0.0
  %7729 = vmatpush1.msra.mxu0 0.0
  %7730 = vmatprep.subr.mxu0 0.0
  %7731 = vmatpush1.msra.mxu0 0.0
  %7732 = vmatprep.subr.mxu0 0.0
  %7733 = vmatpush1.msra.mxu0 0.0
  %7734 = vmatprep.subr.mxu0 0.0
  %7735 = vmatpush1.msra.mxu0 0.0
  %7736 = vmatprep.subr.mxu0 0.0
  %7737 = vmatpush1.msra.mxu0 0.0
  %7738 = vmatprep.subr.mxu0 0.0
  %7739 = vmatpush1.msra.mxu0 0.0
  %7740 = vmatprep.subr.mxu0 0.0
  %7741 = vmatpush1.msra.mxu0 0.0
  %7742 = vmatprep.subr.mxu0 0.0
  %7743 = vmatpush1.msra.mxu0 0.0
  %7744 = vmatprep.subr.mxu0 0.0
  %7745 = vmatpush1.msra.mxu0 0.0
  %7746 = vmatprep.subr.mxu0 0.0
  %7747 = vmatpush1.msra.mxu0 0.0
  %7748 = vmatprep.subr.mxu0 0.0
  %7749 = vmatpush1.msra.mxu0 0.0
  %7750 = vmatprep.subr.mxu0 0.0
  %7751 = vmatpush1.msra.mxu0 0.0
  %7752 = vmatprep.subr.mxu0 0.0
  %7753 = vmatpush1.msra.mxu0 0.0
  %7754 = vmatprep.subr.mxu0 0.0
  %7755 = vmatpush1.msra.mxu0 0.0
  %7756 = vmatprep.subr.mxu0 0.0
  %7757 = vmatpush1.msra.mxu0 0.0
  %7758 = vmatprep.mubr.f32.mxu0 0.0
  %7759 = vmatmul.mubr.f32.gmra.mrb[0].mxu0 %v7692
  %v7760 = vpop.f32.mrb[0].mxu0
  %v7761 = vadd.f32 0.0, %v7760
  %v7762 = vpop.f32.mrb[0].mxu0
  %7763 = vdwg.mxu0
  %v7764 = vlaneseq
  %v7765 = vshrl.u32 %v7764, 7
  %v7766 = vsub.s32 0, %v7765
  %v7767 = vrot.slane %v7687, %v7766
  %v7768 = vmul.f32 %v7489, %v7767
  %v7769 = vmul.f32 %v7490, %v7767
  %v7770 = vmul.f32 %v7491, %v7767
  %v7771 = vmul.f32 %v7492, %v7767
  %v7772 = vmul.f32 %v7493, %v7767
  %v7773 = vmul.f32 %v7494, %v7767
  %v7774 = vmul.f32 %v7495, %v7767
  %v7775 = vmul.f32 %v7496, %v7767
  %v7776 = vmul.f32 %v7497, %v7767
  %v7777 = vmul.f32 %v7498, %v7767
  %v7778 = vmul.f32 %v7499, %v7767
  %v7779 = vmul.f32 %v7500, %v7767
  %v7780 = vmul.f32 %v7501, %v7767
  %v7781 = vmul.f32 %v7502, %v7767
  %v7782 = vmul.f32 %v7503, %v7767
  %v7783 = vmul.f32 %v7504, %v7767
  %v7784 = vlaneseq
  %v7785 = vshrl.u32 %v7784, 7
  %v7786 = vsub.s32 0, %v7785
  %v7787 = vrot.slane %v7761, %v7786
  %v7788 = vadd.f32 %v7768, %v7787
  %v7789 = vadd.f32 %v7769, %v7787
  %v7790 = vadd.f32 %v7770, %v7787
  %v7791 = vadd.f32 %v7771, %v7787
  %v7792 = vadd.f32 %v7772, %v7787
  %v7793 = vadd.f32 %v7773, %v7787
  %v7794 = vadd.f32 %v7774, %v7787
  %v7795 = vadd.f32 %v7775, %v7787
  %v7796 = vadd.f32 %v7776, %v7787
  %v7797 = vadd.f32 %v7777, %v7787
  %v7798 = vadd.f32 %v7778, %v7787
  %v7799 = vadd.f32 %v7779, %v7787
  %v7800 = vadd.f32 %v7780, %v7787
  %v7801 = vadd.f32 %v7781, %v7787
  %v7802 = vadd.f32 %v7782, %v7787
  %v7803 = vadd.f32 %v7783, %v7787
  %v7804 = vmax.f32 %v7788, 0.0
  %v7805 = vmax.f32 %v7789, 0.0
  %v7806 = vmax.f32 %v7790, 0.0
  %v7807 = vmax.f32 %v7791, 0.0
  %v7808 = vmax.f32 %v7792, 0.0
  %v7809 = vmax.f32 %v7793, 0.0
  %v7810 = vmax.f32 %v7794, 0.0
  %v7811 = vmax.f32 %v7795, 0.0
  %v7812 = vmax.f32 %v7796, 0.0
  %v7813 = vmax.f32 %v7797, 0.0
  %v7814 = vmax.f32 %v7798, 0.0
  %v7815 = vmax.f32 %v7799, 0.0
  %v7816 = vmax.f32 %v7800, 0.0
  %v7817 = vmax.f32 %v7801, 0.0
  %v7818 = vmax.f32 %v7802, 0.0
  %v7819 = vmax.f32 %v7803, 0.0
  %v7820 = vpack.c.bf16 %v7805, %v7804
  %v7821 = vpack.c.bf16 %v7807, %v7806
  %v7822 = vpack.c.bf16 %v7809, %v7808
  %v7823 = vpack.c.bf16 %v7811, %v7810
  %v7824 = vpack.c.bf16 %v7813, %v7812
  %v7825 = vpack.c.bf16 %v7815, %v7814
  %v7826 = vpack.c.bf16 %v7817, %v7816
  %v7827 = vpack.c.bf16 %v7819, %v7818
  %v7828 = vld [vmem:[%s10] sm:$0x1]
  %v7830 = vshrl.u32 %v7820, 16
  %v7832 = vrot.slane %v7830, 7
  %v7833 = vshll.u32 %v7820, 16
  %v7835 = vor.u32 %v7832, %v7833
  %v7837 = vshrl.u32 %v7821, 16
  %v7839 = vrot.slane %v7837, 7
  %v7840 = vshll.u32 %v7821, 16
  %v7842 = vor.u32 %v7839, %v7840
  %v7844 = vshrl.u32 %v7822, 16
  %v7846 = vrot.slane %v7844, 7
  %v7847 = vshll.u32 %v7822, 16
  %v7849 = vor.u32 %v7846, %v7847
  %v7851 = vshrl.u32 %v7823, 16
  %v7853 = vrot.slane %v7851, 7
  %v7854 = vshll.u32 %v7823, 16
  %v7856 = vor.u32 %v7853, %v7854
  %v7858 = vshrl.u32 %v7824, 16
  %v7860 = vrot.slane %v7858, 7
  %v7861 = vshll.u32 %v7824, 16
  %v7863 = vor.u32 %v7860, %v7861
  %v7865 = vshrl.u32 %v7825, 16
  %v7867 = vrot.slane %v7865, 7
  %v7868 = vshll.u32 %v7825, 16
  %v7870 = vor.u32 %v7867, %v7868
  %v7872 = vshrl.u32 %v7826, 16
  %v7874 = vrot.slane %v7872, 7
  %v7875 = vshll.u32 %v7826, 16
  %v7877 = vor.u32 %v7874, %v7875
  %v7879 = vshrl.u32 %v7827, 16
  %v7881 = vrot.slane %v7879, 7
  %v7882 = vshll.u32 %v7827, 16
  %v7884 = vor.u32 %v7881, %v7882
  %v7901 = vsel %vm553, 0, %v7835
  %v7902 = vsel %vm553, 0, %v7842
  %v7903 = vsel %vm553, 0, %v7849
  %v7904 = vsel %vm553, 0, %v7856
  %v7905 = vsel %vm553, 0, %v7863
  %v7906 = vsel %vm553, 0, %v7870
  %v7907 = vsel %vm553, 0, %v7877
  %v7908 = vsel %vm553, 0, %v7884
  %v7909 = vsel %vm553, %v7832, 0
  %v7910 = vsel %vm553, %v7839, 0
  %v7911 = vsel %vm553, %v7846, 0
  %v7912 = vsel %vm553, %v7853, 0
  %v7913 = vsel %vm553, %v7860, 0
  %v7914 = vsel %vm553, %v7867, 0
  %v7915 = vsel %vm553, %v7874, 0
  %v7916 = vsel %vm553, %v7881, 0
  %v7917 = vld [vmem:[%s9] sm:$0xf]
  %v7918 = vld [vmem:[%s9 + $0x4] sm:$0xf]
  %v7919 = vld [vmem:[%s9 + $0x8] sm:$0xf]
  %v7920 = vld [vmem:[%s9 + $0xc] sm:$0xf]
  %v7921 = vld [vmem:[%s9 + $0x10] sm:$0xf]
  %v7922 = vld [vmem:[%s9 + $0x14] sm:$0xf]
  %v7923 = vld [vmem:[%s9 + $0x18] sm:$0xf]
  %v7924 = vld [vmem:[%s9 + $0x1c] sm:$0xf]
  %v7925 = vld [vmem:[%s9 + $0x20] sm:$0xf]
  %v7926 = vld [vmem:[%s9 + $0x24] sm:$0xf]
  %v7927 = vld [vmem:[%s9 + $0x28] sm:$0xf]
  %v7928 = vld [vmem:[%s9 + $0x2c] sm:$0xf]
  %v7929 = vld [vmem:[%s9 + $0x30] sm:$0xf]
  %v7930 = vld [vmem:[%s9 + $0x34] sm:$0xf]
  %v7931 = vld [vmem:[%s9 + $0x38] sm:$0xf]
  %v7932 = vld [vmem:[%s9 + $0x3c] sm:$0xf]
  %v7934 = vshrl.u32 %v7902, 16
  %v7936 = vshll.u32 %v7902, 16
  %v7938 = vrot.slane %v7936, 1
  %v7939 = vor.u32 %v7934, %v7938
  %v7941 = vshll.u32 %v7910, 16
  %v7943 = vrot.slane %v7941, 1
  %v7944 = vsel %vm626, %v7939, %v7943
  %v7946 = vshrl.u32 %v7906, 16
  %v7948 = vshll.u32 %v7906, 16
  %v7950 = vrot.slane %v7948, 1
  %v7951 = vor.u32 %v7946, %v7950
  %v7953 = vshll.u32 %v7914, 16
  %v7955 = vrot.slane %v7953, 1
  %v7956 = vsel %vm626, %v7951, %v7955
  %s7959 = scalar_lea.vmem %s9, 64
  %v7960 = vld [vmem:[%s7959] sm:$0xf]
  %v7961 = vld [vmem:[%s7959 + $0x4] sm:$0xf]
  %v7962 = vld [vmem:[%s7959 + $0x8] sm:$0xf]
  %v7963 = vld [vmem:[%s7959 + $0xc] sm:$0xf]
  %v7964 = vld [vmem:[%s7959 + $0x10] sm:$0xf]
  %v7965 = vld [vmem:[%s7959 + $0x14] sm:$0xf]
  %v7966 = vld [vmem:[%s7959 + $0x18] sm:$0xf]
  %v7967 = vld [vmem:[%s7959 + $0x1c] sm:$0xf]
  %v7968 = vld [vmem:[%s7959 + $0x20] sm:$0xf]
  %v7969 = vld [vmem:[%s7959 + $0x24] sm:$0xf]
  %v7970 = vld [vmem:[%s7959 + $0x28] sm:$0xf]
  %v7971 = vld [vmem:[%s7959 + $0x2c] sm:$0xf]
  %v7972 = vld [vmem:[%s7959 + $0x30] sm:$0xf]
  %v7973 = vld [vmem:[%s7959 + $0x34] sm:$0xf]
  %v7974 = vld [vmem:[%s7959 + $0x38] sm:$0xf]
  %v7975 = vld [vmem:[%s7959 + $0x3c] sm:$0xf]
  %v7992 = vunpack.c.l.b16 %v7960
  %v7993 = vunpack.c.l.b16 %v7961
  %v7994 = vunpack.c.l.b16 %v7962
  %v7995 = vunpack.c.l.b16 %v7963
  %v7996 = vunpack.c.l.b16 %v7964
  %v7997 = vunpack.c.l.b16 %v7965
  %v7998 = vunpack.c.l.b16 %v7966
  %v7999 = vunpack.c.l.b16 %v7967
  %v8000 = vunpack.c.l.b16 %v7968
  %v8001 = vunpack.c.l.b16 %v7969
  %v8002 = vunpack.c.l.b16 %v7970
  %v8003 = vunpack.c.l.b16 %v7971
  %v8004 = vunpack.c.l.b16 %v7972
  %v8005 = vunpack.c.l.b16 %v7973
  %v8006 = vunpack.c.l.b16 %v7974
  %v8007 = vunpack.c.l.b16 %v7975
  %v8008 = vpack.c.b16 %v7993, %v7992
  %v8009 = vpack.c.b16 %v7995, %v7994
  %v8010 = vpack.c.b16 %v7997, %v7996
  %v8011 = vpack.c.b16 %v7999, %v7998
  %v8012 = vpack.c.b16 %v8001, %v8000
  %v8013 = vpack.c.b16 %v8003, %v8002
  %v8014 = vpack.c.b16 %v8005, %v8004
  %v8015 = vpack.c.b16 %v8007, %v8006
  %8024 = vmatprep.subr.bf16.mxu0 0
  %8025 = vmatpush1.bf16.msra.mxu0 %v8008
  %8026 = vmatprep.subr.bf16.mxu0 0
  %8027 = vmatpush1.bf16.msra.mxu0 %v8009
  %8028 = vmatprep.subr.bf16.mxu0 0
  %8029 = vmatpush1.bf16.msra.mxu0 %v8010
  %8030 = vmatprep.subr.bf16.mxu0 0
  %8031 = vmatpush1.bf16.msra.mxu0 %v8011
  %8032 = vmatprep.subr.bf16.mxu0 0
  %8033 = vmatpush1.bf16.msra.mxu0 %v8012
  %8034 = vmatprep.subr.bf16.mxu0 0
  %8035 = vmatpush1.bf16.msra.mxu0 %v8013
  %8036 = vmatprep.subr.bf16.mxu0 0
  %8037 = vmatpush1.bf16.msra.mxu0 %v8014
  %8038 = vmatprep.subr.bf16.mxu0 0
  %8039 = vmatpush1.bf16.msra.mxu0 %v8015
  %8040 = vmatprep.subr.bf16.mxu0 0
  %8041 = vmatpush1.bf16.msra.mxu0 0
  %8042 = vmatprep.subr.bf16.mxu0 0
  %8043 = vmatpush1.bf16.msra.mxu0 0
  %8044 = vmatprep.subr.bf16.mxu0 0
  %8045 = vmatpush1.bf16.msra.mxu0 0
  %8046 = vmatprep.subr.bf16.mxu0 0
  %8047 = vmatpush1.bf16.msra.mxu0 0
  %8048 = vmatprep.subr.bf16.mxu0 0
  %8049 = vmatpush1.bf16.msra.mxu0 0
  %8050 = vmatprep.subr.bf16.mxu0 0
  %8051 = vmatpush1.bf16.msra.mxu0 0
  %8052 = vmatprep.subr.bf16.mxu0 0
  %8053 = vmatpush1.bf16.msra.mxu0 0
  %8054 = vmatprep.subr.bf16.mxu0 0
  %8055 = vmatpush1.bf16.msra.mxu0 0
  %8056 = vmatprep.mubr.bf16.mxu0 0
  %8057 = vmatmul.mubr.bf16.gmra.mrb[0].mxu0 %v634
  %v8058 = vpop.f32.mrb[0].mxu0
  %v8059 = vadd.f32 0.0, %v8058
  %v8060 = vpop.f32.mrb[0].mxu0
  %v8061 = vpop.f32.mrb[0].mxu0
  %v8062 = vadd.f32 0.0, %v8061
  %v8063 = vpop.f32.mrb[0].mxu0
  %8064 = vmatprep.mubr.bf16.mxu0 0
  %8065 = vmatmul.mubr.bf16.gmra.mrb[0].mxu0 %v7944
  %v8066 = vpop.f32.mrb[0].mxu0
  %v8067 = vadd.f32 0.0, %v8066
  %v8068 = vpop.f32.mrb[0].mxu0
  %v8069 = vpop.f32.mrb[0].mxu0
  %v8070 = vadd.f32 0.0, %v8069
  %v8071 = vpop.f32.mrb[0].mxu0
  %8072 = vmatprep.mubr.bf16.mxu0 0
  %8073 = vmatmul.mubr.bf16.gmra.mrb[0].mxu0 %v634
  %v8074 = vpop.f32.mrb[0].mxu0
  %v8075 = vadd.f32 0.0, %v8074
  %v8076 = vpop.f32.mrb[0].mxu0
  %v8077 = vpop.f32.mrb[0].mxu0
  %v8078 = vadd.f32 0.0, %v8077
  %v8079 = vpop.f32.mrb[0].mxu0
  %8080 = vmatprep.mubr.bf16.mxu0 0
  %8081 = vmatmul.mubr.bf16.gmra.mrb[0].mxu0 %v7956
  %v8082 = vpop.f32.mrb[0].mxu0
  %v8083 = vadd.f32 0.0, %v8082
  %v8084 = vpop.f32.mrb[0].mxu0
  %v8085 = vpop.f32.mrb[0].mxu0
  %v8086 = vadd.f32 0.0, %v8085
  %v8087 = vpop.f32.mrb[0].mxu0
  %8088 = vdwg.mxu0
  %v8105 = vunpack.c.l.b16 %v7917
  %v8106 = vunpack.c.l.b16 %v7918
  %v8107 = vunpack.c.l.b16 %v7919
  %v8108 = vunpack.c.l.b16 %v7920
  %v8109 = vunpack.c.l.b16 %v7921
  %v8110 = vunpack.c.l.b16 %v7922
  %v8111 = vunpack.c.l.b16 %v7923
  %v8112 = vunpack.c.l.b16 %v7924
  %v8113 = vunpack.c.l.b16 %v7925
  %v8114 = vunpack.c.l.b16 %v7926
  %v8115 = vunpack.c.l.b16 %v7927
  %v8116 = vunpack.c.l.b16 %v7928
  %v8117 = vunpack.c.l.b16 %v7929
  %v8118 = vunpack.c.l.b16 %v7930
  %v8119 = vunpack.c.l.b16 %v7931
  %v8120 = vunpack.c.l.b16 %v7932
  %v8121 = vpack.c.b16 %v8106, %v8105
  %v8122 = vpack.c.b16 %v8108, %v8107
  %v8123 = vpack.c.b16 %v8110, %v8109
  %v8124 = vpack.c.b16 %v8112, %v8111
  %v8125 = vpack.c.b16 %v8114, %v8113
  %v8126 = vpack.c.b16 %v8116, %v8115
  %v8127 = vpack.c.b16 %v8118, %v8117
  %v8128 = vpack.c.b16 %v8120, %v8119
  %8137 = vmatprep.subr.bf16.mxu0 0
  %8138 = vmatpush1.bf16.msra.mxu0 %v8121
  %8139 = vmatprep.subr.bf16.mxu0 0
  %8140 = vmatpush1.bf16.msra.mxu0 %v8122
  %8141 = vmatprep.subr.bf16.mxu0 0
  %8142 = vmatpush1.bf16.msra.mxu0 %v8123
  %8143 = vmatprep.subr.bf16.mxu0 0
  %8144 = vmatpush1.bf16.msra.mxu0 %v8124
  %8145 = vmatprep.subr.bf16.mxu0 0
  %8146 = vmatpush1.bf16.msra.mxu0 %v8125
  %8147 = vmatprep.subr.bf16.mxu0 0
  %8148 = vmatpush1.bf16.msra.mxu0 %v8126
  %8149 = vmatprep.subr.bf16.mxu0 0
  %8150 = vmatpush1.bf16.msra.mxu0 %v8127
  %8151 = vmatprep.subr.bf16.mxu0 0
  %8152 = vmatpush1.bf16.msra.mxu0 %v8128
  %8153 = vmatprep.subr.bf16.mxu0 0
  %8154 = vmatpush1.bf16.msra.mxu0 0
  %8155 = vmatprep.subr.bf16.mxu0 0
  %8156 = vmatpush1.bf16.msra.mxu0 0
  %8157 = vmatprep.subr.bf16.mxu0 0
  %8158 = vmatpush1.bf16.msra.mxu0 0
  %8159 = vmatprep.subr.bf16.mxu0 0
  %8160 = vmatpush1.bf16.msra.mxu0 0
  %8161 = vmatprep.subr.bf16.mxu0 0
  %8162 = vmatpush1.bf16.msra.mxu0 0
  %8163 = vmatprep.subr.bf16.mxu0 0
  %8164 = vmatpush1.bf16.msra.mxu0 0
  %8165 = vmatprep.subr.bf16.mxu0 0
  %8166 = vmatpush1.bf16.msra.mxu0 0
  %8167 = vmatprep.subr.bf16.mxu0 0
  %8168 = vmatpush1.bf16.msra.mxu0 0
  %8169 = vmatprep.mubr.bf16.mxu0 0
  %8170 = vmatmul.mubr.bf16.gmra.mrb[0].mxu0 0
  %v8171 = vpop.f32.mrb[0].mxu0
  %v8172 = vadd.f32 %v8059, %v8171
  %v8173 = vpop.f32.mrb[0].mxu0
  %v8174 = vpop.f32.mrb[0].mxu0
  %v8175 = vadd.f32 %v8062, %v8174
  %v8176 = vpop.f32.mrb[0].mxu0
  %8177 = vmatprep.mubr.bf16.mxu0 0
  %8178 = vmatmul.mubr.bf16.gmra.mrb[0].mxu0 %v7902
  %v8179 = vpop.f32.mrb[0].mxu0
  %v8180 = vadd.f32 %v8067, %v8179
  %v8181 = vpop.f32.mrb[0].mxu0
  %v8182 = vpop.f32.mrb[0].mxu0
  %v8183 = vadd.f32 %v8070, %v8182
  %v8184 = vpop.f32.mrb[0].mxu0
  %8185 = vmatprep.mubr.bf16.mxu0 0
  %8186 = vmatmul.mubr.bf16.gmra.mrb[0].mxu0 0
  %v8187 = vpop.f32.mrb[0].mxu0
  %v8188 = vadd.f32 %v8075, %v8187
  %v8189 = vpop.f32.mrb[0].mxu0
  %v8190 = vpop.f32.mrb[0].mxu0
  %v8191 = vadd.f32 %v8078, %v8190
  %v8192 = vpop.f32.mrb[0].mxu0
  %8193 = vmatprep.mubr.bf16.mxu0 0
  %8194 = vmatmul.mubr.bf16.gmra.mrb[0].mxu0 %v7906
  %v8195 = vpop.f32.mrb[0].mxu0
  %v8196 = vadd.f32 %v8083, %v8195
  %v8197 = vpop.f32.mrb[0].mxu0
  %v8198 = vpop.f32.mrb[0].mxu0
  %v8199 = vadd.f32 %v8086, %v8198
  %v8200 = vpop.f32.mrb[0].mxu0
  %8201 = vdwg.mxu0
  %v8206 = vrot.slane %v7902, 1
  %v8207 = vrot.slane %v7910, 1
  %v8208 = vsel %vm1287, %v8206, %v8207
  %v8209 = vrot.slane %v7906, 1
  %v8210 = vrot.slane %v7914, 1
  %v8211 = vsel %vm1287, %v8209, %v8210
  %s8214 = scalar_lea.vmem %s9, 128
  %v8215 = vld [vmem:[%s8214] sm:$0xf]
  %v8216 = vld [vmem:[%s8214 + $0x4] sm:$0xf]
  %v8217 = vld [vmem:[%s8214 + $0x8] sm:$0xf]
  %v8218 = vld [vmem:[%s8214 + $0xc] sm:$0xf]
  %v8219 = vld [vmem:[%s8214 + $0x10] sm:$0xf]
  %v8220 = vld [vmem:[%s8214 + $0x14] sm:$0xf]
  %v8221 = vld [vmem:[%s8214 + $0x18] sm:$0xf]
  %v8222 = vld [vmem:[%s8214 + $0x1c] sm:$0xf]
  %v8223 = vld [vmem:[%s8214 + $0x20] sm:$0xf]
  %v8224 = vld [vmem:[%s8214 + $0x24] sm:$0xf]
  %v8225 = vld [vmem:[%s8214 + $0x28] sm:$0xf]
  %v8226 = vld [vmem:[%s8214 + $0x2c] sm:$0xf]
  %v8227 = vld [vmem:[%s8214 + $0x30] sm:$0xf]
  %v8228 = vld [vmem:[%s8214 + $0x34] sm:$0xf]
  %v8229 = vld [vmem:[%s8214 + $0x38] sm:$0xf]
  %v8230 = vld [vmem:[%s8214 + $0x3c] sm:$0xf]
  %v8247 = vunpack.c.l.b16 %v8215
  %v8248 = vunpack.c.l.b16 %v8216
  %v8249 = vunpack.c.l.b16 %v8217
  %v8250 = vunpack.c.l.b16 %v8218
  %v8251 = vunpack.c.l.b16 %v8219
  %v8252 = vunpack.c.l.b16 %v8220
  %v8253 = vunpack.c.l.b16 %v8221
  %v8254 = vunpack.c.l.b16 %v8222
  %v8255 = vunpack.c.l.b16 %v8223
  %v8256 = vunpack.c.l.b16 %v8224
  %v8257 = vunpack.c.l.b16 %v8225
  %v8258 = vunpack.c.l.b16 %v8226
  %v8259 = vunpack.c.l.b16 %v8227
  %v8260 = vunpack.c.l.b16 %v8228
  %v8261 = vunpack.c.l.b16 %v8229
  %v8262 = vunpack.c.l.b16 %v8230
  %v8263 = vpack.c.b16 %v8248, %v8247
  %v8264 = vpack.c.b16 %v8250, %v8249
  %v8265 = vpack.c.b16 %v8252, %v8251
  %v8266 = vpack.c.b16 %v8254, %v8253
  %v8267 = vpack.c.b16 %v8256, %v8255
  %v8268 = vpack.c.b16 %v8258, %v8257
  %v8269 = vpack.c.b16 %v8260, %v8259
  %v8270 = vpack.c.b16 %v8262, %v8261
  %8279 = vmatprep.subr.bf16.mxu0 0
  %8280 = vmatpush1.bf16.msra.mxu0 %v8263
  %8281 = vmatprep.subr.bf16.mxu0 0
  %8282 = vmatpush1.bf16.msra.mxu0 %v8264
  %8283 = vmatprep.subr.bf16.mxu0 0
  %8284 = vmatpush1.bf16.msra.mxu0 %v8265
  %8285 = vmatprep.subr.bf16.mxu0 0
  %8286 = vmatpush1.bf16.msra.mxu0 %v8266
  %8287 = vmatprep.subr.bf16.mxu0 0
  %8288 = vmatpush1.bf16.msra.mxu0 %v8267
  %8289 = vmatprep.subr.bf16.mxu0 0
  %8290 = vmatpush1.bf16.msra.mxu0 %v8268
  %8291 = vmatprep.subr.bf16.mxu0 0
  %8292 = vmatpush1.bf16.msra.mxu0 %v8269
  %8293 = vmatprep.subr.bf16.mxu0 0
  %8294 = vmatpush1.bf16.msra.mxu0 %v8270
  %8295 = vmatprep.subr.bf16.mxu0 0
  %8296 = vmatpush1.bf16.msra.mxu0 0
  %8297 = vmatprep.subr.bf16.mxu0 0
  %8298 = vmatpush1.bf16.msra.mxu0 0
  %8299 = vmatprep.subr.bf16.mxu0 0
  %8300 = vmatpush1.bf16.msra.mxu0 0
  %8301 = vmatprep.subr.bf16.mxu0 0
  %8302 = vmatpush1.bf16.msra.mxu0 0
  %8303 = vmatprep.subr.bf16.mxu0 0
  %8304 = vmatpush1.bf16.msra.mxu0 0
  %8305 = vmatprep.subr.bf16.mxu0 0
  %8306 = vmatpush1.bf16.msra.mxu0 0
  %8307 = vmatprep.subr.bf16.mxu0 0
  %8308 = vmatpush1.bf16.msra.mxu0 0
  %8309 = vmatprep.subr.bf16.mxu0 0
  %8310 = vmatpush1.bf16.msra.mxu0 0
  %8311 = vmatprep.mubr.bf16.mxu0 0
  %8312 = vmatmul.mubr.bf16.gmra.mrb[0].mxu0 %v1289
  %v8313 = vpop.f32.mrb[0].mxu0
  %v8314 = vadd.f32 0.0, %v8313
  %v8315 = vpop.f32.mrb[0].mxu0
  %v8316 = vpop.f32.mrb[0].mxu0
  %v8317 = vadd.f32 0.0, %v8316
  %v8318 = vpop.f32.mrb[0].mxu0
  %8319 = vmatprep.mubr.bf16.mxu0 0
  %8320 = vmatmul.mubr.bf16.gmra.mrb[0].mxu0 %v8208
  %v8321 = vpop.f32.mrb[0].mxu0
  %v8322 = vadd.f32 0.0, %v8321
  %v8323 = vpop.f32.mrb[0].mxu0
  %v8324 = vpop.f32.mrb[0].mxu0
  %v8325 = vadd.f32 0.0, %v8324
  %v8326 = vpop.f32.mrb[0].mxu0
  %8327 = vmatprep.mubr.bf16.mxu0 0
  %8328 = vmatmul.mubr.bf16.gmra.mrb[0].mxu0 %v1289
  %v8329 = vpop.f32.mrb[0].mxu0
  %v8330 = vadd.f32 0.0, %v8329
  %v8331 = vpop.f32.mrb[0].mxu0
  %v8332 = vpop.f32.mrb[0].mxu0
  %v8333 = vadd.f32 0.0, %v8332
  %v8334 = vpop.f32.mrb[0].mxu0
  %8335 = vmatprep.mubr.bf16.mxu0 0
  %8336 = vmatmul.mubr.bf16.gmra.mrb[0].mxu0 %v8211
  %v8337 = vpop.f32.mrb[0].mxu0
  %v8338 = vadd.f32 0.0, %v8337
  %v8339 = vpop.f32.mrb[0].mxu0
  %v8340 = vpop.f32.mrb[0].mxu0
  %v8341 = vadd.f32 0.0, %v8340
  %v8342 = vpop.f32.mrb[0].mxu0
  %8343 = vdwg.mxu0
  %v8344 = vadd.f32 %v8172, %v8314
  %v8345 = vadd.f32 %v8175, %v8317
  %v8346 = vadd.f32 %v8180, %v8322
  %v8347 = vadd.f32 %v8183, %v8325
  %v8348 = vadd.f32 %v8188, %v8330
  %v8349 = vadd.f32 %v8191, %v8333
  %v8350 = vadd.f32 %v8196, %v8338
  %v8351 = vadd.f32 %v8199, %v8341
  %s8352 = scalar_lea.vmem %s9, 192
  %v8353 = vld [vmem:[%s8352] sm:$0xf]
  %v8354 = vld [vmem:[%s8352 + $0x4] sm:$0xf]
  %v8355 = vld [vmem:[%s8352 + $0x8] sm:$0xf]
  %v8356 = vld [vmem:[%s8352 + $0xc] sm:$0xf]
  %v8357 = vld [vmem:[%s8352 + $0x10] sm:$0xf]
  %v8358 = vld [vmem:[%s8352 + $0x14] sm:$0xf]
  %v8359 = vld [vmem:[%s8352 + $0x18] sm:$0xf]
  %v8360 = vld [vmem:[%s8352 + $0x1c] sm:$0xf]
  %v8361 = vld [vmem:[%s8352 + $0x20] sm:$0xf]
  %v8362 = vld [vmem:[%s8352 + $0x24] sm:$0xf]
  %v8363 = vld [vmem:[%s8352 + $0x28] sm:$0xf]
  %v8364 = vld [vmem:[%s8352 + $0x2c] sm:$0xf]
  %v8365 = vld [vmem:[%s8352 + $0x30] sm:$0xf]
  %v8366 = vld [vmem:[%s8352 + $0x34] sm:$0xf]
  %v8367 = vld [vmem:[%s8352 + $0x38] sm:$0xf]
  %v8368 = vld [vmem:[%s8352 + $0x3c] sm:$0xf]
  %v8385 = vunpack.c.l.b16 %v8353
  %v8386 = vunpack.c.l.b16 %v8354
  %v8387 = vunpack.c.l.b16 %v8355
  %v8388 = vunpack.c.l.b16 %v8356
  %v8389 = vunpack.c.l.b16 %v8357
  %v8390 = vunpack.c.l.b16 %v8358
  %v8391 = vunpack.c.l.b16 %v8359
  %v8392 = vunpack.c.l.b16 %v8360
  %v8393 = vunpack.c.l.b16 %v8361
  %v8394 = vunpack.c.l.b16 %v8362
  %v8395 = vunpack.c.l.b16 %v8363
  %v8396 = vunpack.c.l.b16 %v8364
  %v8397 = vunpack.c.l.b16 %v8365
  %v8398 = vunpack.c.l.b16 %v8366
  %v8399 = vunpack.c.l.b16 %v8367
  %v8400 = vunpack.c.l.b16 %v8368
  %v8401 = vpack.c.b16 %v8386, %v8385
  %v8402 = vpack.c.b16 %v8388, %v8387
  %v8403 = vpack.c.b16 %v8390, %v8389
  %v8404 = vpack.c.b16 %v8392, %v8391
  %v8405 = vpack.c.b16 %v8394, %v8393
  %v8406 = vpack.c.b16 %v8396, %v8395
  %v8407 = vpack.c.b16 %v8398, %v8397
  %v8408 = vpack.c.b16 %v8400, %v8399
  %8417 = vmatprep.subr.bf16.mxu0 0
  %8418 = vmatpush1.bf16.msra.mxu0 %v8401
  %8419 = vmatprep.subr.bf16.mxu0 0
  %8420 = vmatpush1.bf16.msra.mxu0 %v8402
  %8421 = vmatprep.subr.bf16.mxu0 0
  %8422 = vmatpush1.bf16.msra.mxu0 %v8403
  %8423 = vmatprep.subr.bf16.mxu0 0
  %8424 = vmatpush1.bf16.msra.mxu0 %v8404
  %8425 = vmatprep.subr.bf16.mxu0 0
  %8426 = vmatpush1.bf16.msra.mxu0 %v8405
  %8427 = vmatprep.subr.bf16.mxu0 0
  %8428 = vmatpush1.bf16.msra.mxu0 %v8406
  %8429 = vmatprep.subr.bf16.mxu0 0
  %8430 = vmatpush1.bf16.msra.mxu0 %v8407
  %8431 = vmatprep.subr.bf16.mxu0 0
  %8432 = vmatpush1.bf16.msra.mxu0 %v8408
  %8433 = vmatprep.subr.bf16.mxu0 0
  %8434 = vmatpush1.bf16.msra.mxu0 0
  %8435 = vmatprep.subr.bf16.mxu0 0
  %8436 = vmatpush1.bf16.msra.mxu0 0
  %8437 = vmatprep.subr.bf16.mxu0 0
  %8438 = vmatpush1.bf16.msra.mxu0 0
  %8439 = vmatprep.subr.bf16.mxu0 0
  %8440 = vmatpush1.bf16.msra.mxu0 0
  %8441 = vmatprep.subr.bf16.mxu0 0
  %8442 = vmatpush1.bf16.msra.mxu0 0
  %8443 = vmatprep.subr.bf16.mxu0 0
  %8444 = vmatpush1.bf16.msra.mxu0 0
  %8445 = vmatprep.subr.bf16.mxu0 0
  %8446 = vmatpush1.bf16.msra.mxu0 0
  %8447 = vmatprep.subr.bf16.mxu0 0
  %8448 = vmatpush1.bf16.msra.mxu0 0
  %8449 = vmatprep.mubr.bf16.mxu0 0
  %8450 = vmatmul.mubr.bf16.gmra.mrb[0].mxu0 %v7901
  %v8451 = vpop.f32.mrb[0].mxu0
  %v8452 = vadd.f32 0.0, %v8451
  %v8453 = vpop.f32.mrb[0].mxu0
  %v8454 = vpop.f32.mrb[0].mxu0
  %v8455 = vadd.f32 0.0, %v8454
  %v8456 = vpop.f32.mrb[0].mxu0
  %8457 = vmatprep.mubr.bf16.mxu0 0
  %8458 = vmatmul.mubr.bf16.gmra.mrb[0].mxu0 %v7903
  %v8459 = vpop.f32.mrb[0].mxu0
  %v8460 = vadd.f32 0.0, %v8459
  %v8461 = vpop.f32.mrb[0].mxu0
  %v8462 = vpop.f32.mrb[0].mxu0
  %v8463 = vadd.f32 0.0, %v8462
  %v8464 = vpop.f32.mrb[0].mxu0
  %8465 = vmatprep.mubr.bf16.mxu0 0
  %8466 = vmatmul.mubr.bf16.gmra.mrb[0].mxu0 %v7905
  %v8467 = vpop.f32.mrb[0].mxu0
  %v8468 = vadd.f32 0.0, %v8467
  %v8469 = vpop.f32.mrb[0].mxu0
  %v8470 = vpop.f32.mrb[0].mxu0
  %v8471 = vadd.f32 0.0, %v8470
  %v8472 = vpop.f32.mrb[0].mxu0
  %8473 = vmatprep.mubr.bf16.mxu0 0
  %8474 = vmatmul.mubr.bf16.gmra.mrb[0].mxu0 %v7907
  %v8475 = vpop.f32.mrb[0].mxu0
  %v8476 = vadd.f32 0.0, %v8475
  %v8477 = vpop.f32.mrb[0].mxu0
  %v8478 = vpop.f32.mrb[0].mxu0
  %v8479 = vadd.f32 0.0, %v8478
  %v8480 = vpop.f32.mrb[0].mxu0
  %8481 = vdwg.mxu0
  %v8482 = vadd.f32 %v8344, %v8452
  %v8483 = vadd.f32 %v8345, %v8455
  %v8484 = vadd.f32 %v8346, %v8460
  %v8485 = vadd.f32 %v8347, %v8463
  %v8486 = vadd.f32 %v8348, %v8468
  %v8487 = vadd.f32 %v8349, %v8471
  %v8488 = vadd.f32 %v8350, %v8476
  %v8489 = vadd.f32 %v8351, %v8479
  %v8491 = vshrl.u32 %v7901, 16
  %v8493 = vshll.u32 %v7901, 16
  %v8495 = vrot.slane %v8493, 1
  %v8496 = vor.u32 %v8491, %v8495
  %v8498 = vshll.u32 %v7909, 16
  %v8500 = vrot.slane %v8498, 1
  %v8501 = vsel %vm626, %v8496, %v8500
  %v8503 = vshrl.u32 %v7903, 16
  %v8505 = vshll.u32 %v7903, 16
  %v8507 = vrot.slane %v8505, 1
  %v8508 = vor.u32 %v8503, %v8507
  %v8510 = vshll.u32 %v7911, 16
  %v8512 = vrot.slane %v8510, 1
  %v8513 = vsel %vm626, %v8508, %v8512
  %v8515 = vshrl.u32 %v7905, 16
  %v8517 = vshll.u32 %v7905, 16
  %v8519 = vrot.slane %v8517, 1
  %v8520 = vor.u32 %v8515, %v8519
  %v8522 = vshll.u32 %v7913, 16
  %v8524 = vrot.slane %v8522, 1
  %v8525 = vsel %vm626, %v8520, %v8524
  %v8527 = vshrl.u32 %v7907, 16
  %v8529 = vshll.u32 %v7907, 16
  %v8531 = vrot.slane %v8529, 1
  %v8532 = vor.u32 %v8527, %v8531
  %v8534 = vshll.u32 %v7915, 16
  %v8536 = vrot.slane %v8534, 1
  %v8537 = vsel %vm626, %v8532, %v8536
  %s8542 = scalar_lea.vmem %s9, 256
  %v8543 = vld [vmem:[%s8542] sm:$0xf]
  %v8544 = vld [vmem:[%s8542 + $0x4] sm:$0xf]
  %v8545 = vld [vmem:[%s8542 + $0x8] sm:$0xf]
  %v8546 = vld [vmem:[%s8542 + $0xc] sm:$0xf]
  %v8547 = vld [vmem:[%s8542 + $0x10] sm:$0xf]
  %v8548 = vld [vmem:[%s8542 + $0x14] sm:$0xf]
  %v8549 = vld [vmem:[%s8542 + $0x18] sm:$0xf]
  %v8550 = vld [vmem:[%s8542 + $0x1c] sm:$0xf]
  %v8551 = vld [vmem:[%s8542 + $0x20] sm:$0xf]
  %v8552 = vld [vmem:[%s8542 + $0x24] sm:$0xf]
  %v8553 = vld [vmem:[%s8542 + $0x28] sm:$0xf]
  %v8554 = vld [vmem:[%s8542 + $0x2c] sm:$0xf]
  %v8555 = vld [vmem:[%s8542 + $0x30] sm:$0xf]
  %v8556 = vld [vmem:[%s8542 + $0x34] sm:$0xf]
  %v8557 = vld [vmem:[%s8542 + $0x38] sm:$0xf]
  %v8558 = vld [vmem:[%s8542 + $0x3c] sm:$0xf]
  %v8575 = vunpack.c.l.b16 %v8543
  %v8576 = vunpack.c.l.b16 %v8544
  %v8577 = vunpack.c.l.b16 %v8545
  %v8578 = vunpack.c.l.b16 %v8546
  %v8579 = vunpack.c.l.b16 %v8547
  %v8580 = vunpack.c.l.b16 %v8548
  %v8581 = vunpack.c.l.b16 %v8549
  %v8582 = vunpack.c.l.b16 %v8550
  %v8583 = vunpack.c.l.b16 %v8551
  %v8584 = vunpack.c.l.b16 %v8552
  %v8585 = vunpack.c.l.b16 %v8553
  %v8586 = vunpack.c.l.b16 %v8554
  %v8587 = vunpack.c.l.b16 %v8555
  %v8588 = vunpack.c.l.b16 %v8556
  %v8589 = vunpack.c.l.b16 %v8557
  %v8590 = vunpack.c.l.b16 %v8558
  %v8591 = vpack.c.b16 %v8576, %v8575
  %v8592 = vpack.c.b16 %v8578, %v8577
  %v8593 = vpack.c.b16 %v8580, %v8579
  %v8594 = vpack.c.b16 %v8582, %v8581
  %v8595 = vpack.c.b16 %v8584, %v8583
  %v8596 = vpack.c.b16 %v8586, %v8585
  %v8597 = vpack.c.b16 %v8588, %v8587
  %v8598 = vpack.c.b16 %v8590, %v8589
  %8607 = vmatprep.subr.bf16.mxu0 0
  %8608 = vmatpush1.bf16.msra.mxu0 %v8591
  %8609 = vmatprep.subr.bf16.mxu0 0
  %8610 = vmatpush1.bf16.msra.mxu0 %v8592
  %8611 = vmatprep.subr.bf16.mxu0 0
  %8612 = vmatpush1.bf16.msra.mxu0 %v8593
  %8613 = vmatprep.subr.bf16.mxu0 0
  %8614 = vmatpush1.bf16.msra.mxu0 %v8594
  %8615 = vmatprep.subr.bf16.mxu0 0
  %8616 = vmatpush1.bf16.msra.mxu0 %v8595
  %8617 = vmatprep.subr.bf16.mxu0 0
  %8618 = vmatpush1.bf16.msra.mxu0 %v8596
  %8619 = vmatprep.subr.bf16.mxu0 0
  %8620 = vmatpush1.bf16.msra.mxu0 %v8597
  %8621 = vmatprep.subr.bf16.mxu0 0
  %8622 = vmatpush1.bf16.msra.mxu0 %v8598
  %8623 = vmatprep.subr.bf16.mxu0 0
  %8624 = vmatpush1.bf16.msra.mxu0 0
  %8625 = vmatprep.subr.bf16.mxu0 0
  %8626 = vmatpush1.bf16.msra.mxu0 0
  %8627 = vmatprep.subr.bf16.mxu0 0
  %8628 = vmatpush1.bf16.msra.mxu0 0
  %8629 = vmatprep.subr.bf16.mxu0 0
  %8630 = vmatpush1.bf16.msra.mxu0 0
  %8631 = vmatprep.subr.bf16.mxu0 0
  %8632 = vmatpush1.bf16.msra.mxu0 0
  %8633 = vmatprep.subr.bf16.mxu0 0
  %8634 = vmatpush1.bf16.msra.mxu0 0
  %8635 = vmatprep.subr.bf16.mxu0 0
  %8636 = vmatpush1.bf16.msra.mxu0 0
  %8637 = vmatprep.subr.bf16.mxu0 0
  %8638 = vmatpush1.bf16.msra.mxu0 0
  %8639 = vmatprep.mubr.bf16.mxu0 0
  %8640 = vmatmul.mubr.bf16.gmra.mrb[0].mxu0 %v8501
  %v8641 = vpop.f32.mrb[0].mxu0
  %v8642 = vadd.f32 0.0, %v8641
  %v8643 = vpop.f32.mrb[0].mxu0
  %v8644 = vpop.f32.mrb[0].mxu0
  %v8645 = vadd.f32 0.0, %v8644
  %v8646 = vpop.f32.mrb[0].mxu0
  %8647 = vmatprep.mubr.bf16.mxu0 0
  %8648 = vmatmul.mubr.bf16.gmra.mrb[0].mxu0 %v8513
  %v8649 = vpop.f32.mrb[0].mxu0
  %v8650 = vadd.f32 0.0, %v8649
  %v8651 = vpop.f32.mrb[0].mxu0
  %v8652 = vpop.f32.mrb[0].mxu0
  %v8653 = vadd.f32 0.0, %v8652
  %v8654 = vpop.f32.mrb[0].mxu0
  %8655 = vmatprep.mubr.bf16.mxu0 0
  %8656 = vmatmul.mubr.bf16.gmra.mrb[0].mxu0 %v8525
  %v8657 = vpop.f32.mrb[0].mxu0
  %v8658 = vadd.f32 0.0, %v8657
  %v8659 = vpop.f32.mrb[0].mxu0
  %v8660 = vpop.f32.mrb[0].mxu0
  %v8661 = vadd.f32 0.0, %v8660
  %v8662 = vpop.f32.mrb[0].mxu0
  %8663 = vmatprep.mubr.bf16.mxu0 0
  %8664 = vmatmul.mubr.bf16.gmra.mrb[0].mxu0 %v8537
  %v8665 = vpop.f32.mrb[0].mxu0
  %v8666 = vadd.f32 0.0, %v8665
  %v8667 = vpop.f32.mrb[0].mxu0
  %v8668 = vpop.f32.mrb[0].mxu0
  %v8669 = vadd.f32 0.0, %v8668
  %v8670 = vpop.f32.mrb[0].mxu0
  %8671 = vdwg.mxu0
  %v8672 = vadd.f32 %v8482, %v8642
  %v8673 = vadd.f32 %v8483, %v8645
  %v8674 = vadd.f32 %v8484, %v8650
  %v8675 = vadd.f32 %v8485, %v8653
  %v8676 = vadd.f32 %v8486, %v8658
  %v8677 = vadd.f32 %v8487, %v8661
  %v8678 = vadd.f32 %v8488, %v8666
  %v8679 = vadd.f32 %v8489, %v8669
  %v8688 = vrot.slane %v7901, 1
  %v8689 = vrot.slane %v7909, 1
  %v8690 = vsel %vm1287, %v8688, %v8689
  %v8691 = vrot.slane %v7903, 1
  %v8692 = vrot.slane %v7911, 1
  %v8693 = vsel %vm1287, %v8691, %v8692
  %v8694 = vrot.slane %v7905, 1
  %v8695 = vrot.slane %v7913, 1
  %v8696 = vsel %vm1287, %v8694, %v8695
  %v8697 = vrot.slane %v7907, 1
  %v8698 = vrot.slane %v7915, 1
  %v8699 = vsel %vm1287, %v8697, %v8698
  %s8704 = scalar_lea.vmem %s9, 320
  %v8705 = vld [vmem:[%s8704] sm:$0xf]
  %v8706 = vld [vmem:[%s8704 + $0x4] sm:$0xf]
  %v8707 = vld [vmem:[%s8704 + $0x8] sm:$0xf]
  %v8708 = vld [vmem:[%s8704 + $0xc] sm:$0xf]
  %v8709 = vld [vmem:[%s8704 + $0x10] sm:$0xf]
  %v8710 = vld [vmem:[%s8704 + $0x14] sm:$0xf]
  %v8711 = vld [vmem:[%s8704 + $0x18] sm:$0xf]
  %v8712 = vld [vmem:[%s8704 + $0x1c] sm:$0xf]
  %v8713 = vld [vmem:[%s8704 + $0x20] sm:$0xf]
  %v8714 = vld [vmem:[%s8704 + $0x24] sm:$0xf]
  %v8715 = vld [vmem:[%s8704 + $0x28] sm:$0xf]
  %v8716 = vld [vmem:[%s8704 + $0x2c] sm:$0xf]
  %v8717 = vld [vmem:[%s8704 + $0x30] sm:$0xf]
  %v8718 = vld [vmem:[%s8704 + $0x34] sm:$0xf]
  %v8719 = vld [vmem:[%s8704 + $0x38] sm:$0xf]
  %v8720 = vld [vmem:[%s8704 + $0x3c] sm:$0xf]
  %v8737 = vunpack.c.l.b16 %v8705
  %v8738 = vunpack.c.l.b16 %v8706
  %v8739 = vunpack.c.l.b16 %v8707
  %v8740 = vunpack.c.l.b16 %v8708
  %v8741 = vunpack.c.l.b16 %v8709
  %v8742 = vunpack.c.l.b16 %v8710
  %v8743 = vunpack.c.l.b16 %v8711
  %v8744 = vunpack.c.l.b16 %v8712
  %v8745 = vunpack.c.l.b16 %v8713
  %v8746 = vunpack.c.l.b16 %v8714
  %v8747 = vunpack.c.l.b16 %v8715
  %v8748 = vunpack.c.l.b16 %v8716
  %v8749 = vunpack.c.l.b16 %v8717
  %v8750 = vunpack.c.l.b16 %v8718
  %v8751 = vunpack.c.l.b16 %v8719
  %v8752 = vunpack.c.l.b16 %v8720
  %v8753 = vpack.c.b16 %v8738, %v8737
  %v8754 = vpack.c.b16 %v8740, %v8739
  %v8755 = vpack.c.b16 %v8742, %v8741
  %v8756 = vpack.c.b16 %v8744, %v8743
  %v8757 = vpack.c.b16 %v8746, %v8745
  %v8758 = vpack.c.b16 %v8748, %v8747
  %v8759 = vpack.c.b16 %v8750, %v8749
  %v8760 = vpack.c.b16 %v8752, %v8751
  %8769 = vmatprep.subr.bf16.mxu0 0
  %8770 = vmatpush1.bf16.msra.mxu0 %v8753
  %8771 = vmatprep.subr.bf16.mxu0 0
  %8772 = vmatpush1.bf16.msra.mxu0 %v8754
  %8773 = vmatprep.subr.bf16.mxu0 0
  %8774 = vmatpush1.bf16.msra.mxu0 %v8755
  %8775 = vmatprep.subr.bf16.mxu0 0
  %8776 = vmatpush1.bf16.msra.mxu0 %v8756
  %8777 = vmatprep.subr.bf16.mxu0 0
  %8778 = vmatpush1.bf16.msra.mxu0 %v8757
  %8779 = vmatprep.subr.bf16.mxu0 0
  %8780 = vmatpush1.bf16.msra.mxu0 %v8758
  %8781 = vmatprep.subr.bf16.mxu0 0
  %8782 = vmatpush1.bf16.msra.mxu0 %v8759
  %8783 = vmatprep.subr.bf16.mxu0 0
  %8784 = vmatpush1.bf16.msra.mxu0 %v8760
  %8785 = vmatprep.subr.bf16.mxu0 0
  %8786 = vmatpush1.bf16.msra.mxu0 0
  %8787 = vmatprep.subr.bf16.mxu0 0
  %8788 = vmatpush1.bf16.msra.mxu0 0
  %8789 = vmatprep.subr.bf16.mxu0 0
  %8790 = vmatpush1.bf16.msra.mxu0 0
  %8791 = vmatprep.subr.bf16.mxu0 0
  %8792 = vmatpush1.bf16.msra.mxu0 0
  %8793 = vmatprep.subr.bf16.mxu0 0
  %8794 = vmatpush1.bf16.msra.mxu0 0
  %8795 = vmatprep.subr.bf16.mxu0 0
  %8796 = vmatpush1.bf16.msra.mxu0 0
  %8797 = vmatprep.subr.bf16.mxu0 0
  %8798 = vmatpush1.bf16.msra.mxu0 0
  %8799 = vmatprep.subr.bf16.mxu0 0
  %8800 = vmatpush1.bf16.msra.mxu0 0
  %8801 = vmatprep.mubr.bf16.mxu0 0
  %8802 = vmatmul.mubr.bf16.gmra.mrb[0].mxu0 %v8690
  %v8803 = vpop.f32.mrb[0].mxu0
  %v8804 = vadd.f32 0.0, %v8803
  %v8805 = vpop.f32.mrb[0].mxu0
  %v8806 = vpop.f32.mrb[0].mxu0
  %v8807 = vadd.f32 0.0, %v8806
  %v8808 = vpop.f32.mrb[0].mxu0
  %8809 = vmatprep.mubr.bf16.mxu0 0
  %8810 = vmatmul.mubr.bf16.gmra.mrb[0].mxu0 %v8693
  %v8811 = vpop.f32.mrb[0].mxu0
  %v8812 = vadd.f32 0.0, %v8811
  %v8813 = vpop.f32.mrb[0].mxu0
  %v8814 = vpop.f32.mrb[0].mxu0
  %v8815 = vadd.f32 0.0, %v8814
  %v8816 = vpop.f32.mrb[0].mxu0
  %8817 = vmatprep.mubr.bf16.mxu0 0
  %8818 = vmatmul.mubr.bf16.gmra.mrb[0].mxu0 %v8696
  %v8819 = vpop.f32.mrb[0].mxu0
  %v8820 = vadd.f32 0.0, %v8819
  %v8821 = vpop.f32.mrb[0].mxu0
  %v8822 = vpop.f32.mrb[0].mxu0
  %v8823 = vadd.f32 0.0, %v8822
  %v8824 = vpop.f32.mrb[0].mxu0
  %8825 = vmatprep.mubr.bf16.mxu0 0
  %8826 = vmatmul.mubr.bf16.gmra.mrb[0].mxu0 %v8699
  %v8827 = vpop.f32.mrb[0].mxu0
  %v8828 = vadd.f32 0.0, %v8827
  %v8829 = vpop.f32.mrb[0].mxu0
  %v8830 = vpop.f32.mrb[0].mxu0
  %v8831 = vadd.f32 0.0, %v8830
  %v8832 = vpop.f32.mrb[0].mxu0
  %8833 = vdwg.mxu0
  %v8834 = vadd.f32 %v8672, %v8804
  %v8835 = vadd.f32 %v8673, %v8807
  %v8836 = vadd.f32 %v8674, %v8812
  %v8837 = vadd.f32 %v8675, %v8815
  %v8838 = vadd.f32 %v8676, %v8820
  %v8839 = vadd.f32 %v8677, %v8823
  %v8840 = vadd.f32 %v8678, %v8828
  %v8841 = vadd.f32 %v8679, %v8831
  %s8842 = scalar_lea.vmem %s9, 384
  %v8843 = vld [vmem:[%s8842] sm:$0xf]
  %v8844 = vld [vmem:[%s8842 + $0x4] sm:$0xf]
  %v8845 = vld [vmem:[%s8842 + $0x8] sm:$0xf]
  %v8846 = vld [vmem:[%s8842 + $0xc] sm:$0xf]
  %v8847 = vld [vmem:[%s8842 + $0x10] sm:$0xf]
  %v8848 = vld [vmem:[%s8842 + $0x14] sm:$0xf]
  %v8849 = vld [vmem:[%s8842 + $0x18] sm:$0xf]
  %v8850 = vld [vmem:[%s8842 + $0x1c] sm:$0xf]
  %v8851 = vld [vmem:[%s8842 + $0x20] sm:$0xf]
  %v8852 = vld [vmem:[%s8842 + $0x24] sm:$0xf]
  %v8853 = vld [vmem:[%s8842 + $0x28] sm:$0xf]
  %v8854 = vld [vmem:[%s8842 + $0x2c] sm:$0xf]
  %v8855 = vld [vmem:[%s8842 + $0x30] sm:$0xf]
  %v8856 = vld [vmem:[%s8842 + $0x34] sm:$0xf]
  %v8857 = vld [vmem:[%s8842 + $0x38] sm:$0xf]
  %v8858 = vld [vmem:[%s8842 + $0x3c] sm:$0xf]
  %v8875 = vunpack.c.l.b16 %v8843
  %v8876 = vunpack.c.l.b16 %v8844
  %v8877 = vunpack.c.l.b16 %v8845
  %v8878 = vunpack.c.l.b16 %v8846
  %v8879 = vunpack.c.l.b16 %v8847
  %v8880 = vunpack.c.l.b16 %v8848
  %v8881 = vunpack.c.l.b16 %v8849
  %v8882 = vunpack.c.l.b16 %v8850
  %v8883 = vunpack.c.l.b16 %v8851
  %v8884 = vunpack.c.l.b16 %v8852
  %v8885 = vunpack.c.l.b16 %v8853
  %v8886 = vunpack.c.l.b16 %v8854
  %v8887 = vunpack.c.l.b16 %v8855
  %v8888 = vunpack.c.l.b16 %v8856
  %v8889 = vunpack.c.l.b16 %v8857
  %v8890 = vunpack.c.l.b16 %v8858
  %v8891 = vpack.c.b16 %v8876, %v8875
  %v8892 = vpack.c.b16 %v8878, %v8877
  %v8893 = vpack.c.b16 %v8880, %v8879
  %v8894 = vpack.c.b16 %v8882, %v8881
  %v8895 = vpack.c.b16 %v8884, %v8883
  %v8896 = vpack.c.b16 %v8886, %v8885
  %v8897 = vpack.c.b16 %v8888, %v8887
  %v8898 = vpack.c.b16 %v8890, %v8889
  %8907 = vmatprep.subr.bf16.mxu0 0
  %8908 = vmatpush1.bf16.msra.mxu0 %v8891
  %8909 = vmatprep.subr.bf16.mxu0 0
  %8910 = vmatpush1.bf16.msra.mxu0 %v8892
  %8911 = vmatprep.subr.bf16.mxu0 0
  %8912 = vmatpush1.bf16.msra.mxu0 %v8893
  %8913 = vmatprep.subr.bf16.mxu0 0
  %8914 = vmatpush1.bf16.msra.mxu0 %v8894
  %8915 = vmatprep.subr.bf16.mxu0 0
  %8916 = vmatpush1.bf16.msra.mxu0 %v8895
  %8917 = vmatprep.subr.bf16.mxu0 0
  %8918 = vmatpush1.bf16.msra.mxu0 %v8896
  %8919 = vmatprep.subr.bf16.mxu0 0
  %8920 = vmatpush1.bf16.msra.mxu0 %v8897
  %8921 = vmatprep.subr.bf16.mxu0 0
  %8922 = vmatpush1.bf16.msra.mxu0 %v8898
  %8923 = vmatprep.subr.bf16.mxu0 0
  %8924 = vmatpush1.bf16.msra.mxu0 0
  %8925 = vmatprep.subr.bf16.mxu0 0
  %8926 = vmatpush1.bf16.msra.mxu0 0
  %8927 = vmatprep.subr.bf16.mxu0 0
  %8928 = vmatpush1.bf16.msra.mxu0 0
  %8929 = vmatprep.subr.bf16.mxu0 0
  %8930 = vmatpush1.bf16.msra.mxu0 0
  %8931 = vmatprep.subr.bf16.mxu0 0
  %8932 = vmatpush1.bf16.msra.mxu0 0
  %8933 = vmatprep.subr.bf16.mxu0 0
  %8934 = vmatpush1.bf16.msra.mxu0 0
  %8935 = vmatprep.subr.bf16.mxu0 0
  %8936 = vmatpush1.bf16.msra.mxu0 0
  %8937 = vmatprep.subr.bf16.mxu0 0
  %8938 = vmatpush1.bf16.msra.mxu0 0
  %8939 = vmatprep.mubr.bf16.mxu0 0
  %8940 = vmatmul.mubr.bf16.gmra.mrb[0].mxu0 %v7902
  %v8941 = vpop.f32.mrb[0].mxu0
  %v8942 = vadd.f32 0.0, %v8941
  %v8943 = vpop.f32.mrb[0].mxu0
  %v8944 = vpop.f32.mrb[0].mxu0
  %v8945 = vadd.f32 0.0, %v8944
  %v8946 = vpop.f32.mrb[0].mxu0
  %8947 = vmatprep.mubr.bf16.mxu0 0
  %8948 = vmatmul.mubr.bf16.gmra.mrb[0].mxu0 %v7904
  %v8949 = vpop.f32.mrb[0].mxu0
  %v8950 = vadd.f32 0.0, %v8949
  %v8951 = vpop.f32.mrb[0].mxu0
  %v8952 = vpop.f32.mrb[0].mxu0
  %v8953 = vadd.f32 0.0, %v8952
  %v8954 = vpop.f32.mrb[0].mxu0
  %8955 = vmatprep.mubr.bf16.mxu0 0
  %8956 = vmatmul.mubr.bf16.gmra.mrb[0].mxu0 %v7906
  %v8957 = vpop.f32.mrb[0].mxu0
  %v8958 = vadd.f32 0.0, %v8957
  %v8959 = vpop.f32.mrb[0].mxu0
  %v8960 = vpop.f32.mrb[0].mxu0
  %v8961 = vadd.f32 0.0, %v8960
  %v8962 = vpop.f32.mrb[0].mxu0
  %8963 = vmatprep.mubr.bf16.mxu0 0
  %8964 = vmatmul.mubr.bf16.gmra.mrb[0].mxu0 %v7908
  %v8965 = vpop.f32.mrb[0].mxu0
  %v8966 = vadd.f32 0.0, %v8965
  %v8967 = vpop.f32.mrb[0].mxu0
  %v8968 = vpop.f32.mrb[0].mxu0
  %v8969 = vadd.f32 0.0, %v8968
  %v8970 = vpop.f32.mrb[0].mxu0
  %8971 = vdwg.mxu0
  %v8972 = vadd.f32 %v8834, %v8942
  %v8973 = vadd.f32 %v8835, %v8945
  %v8974 = vadd.f32 %v8836, %v8950
  %v8975 = vadd.f32 %v8837, %v8953
  %v8976 = vadd.f32 %v8838, %v8958
  %v8977 = vadd.f32 %v8839, %v8961
  %v8978 = vadd.f32 %v8840, %v8966
  %v8979 = vadd.f32 %v8841, %v8969
  %v8981 = vshrl.u32 %v7904, 16
  %v8983 = vshll.u32 %v7904, 16
  %v8985 = vrot.slane %v8983, 1
  %v8986 = vor.u32 %v8981, %v8985
  %v8988 = vshll.u32 %v7912, 16
  %v8990 = vrot.slane %v8988, 1
  %v8991 = vsel %vm626, %v8986, %v8990
  %v8993 = vshrl.u32 %v7908, 16
  %v8995 = vshll.u32 %v7908, 16
  %v8997 = vrot.slane %v8995, 1
  %v8998 = vor.u32 %v8993, %v8997
  %v9000 = vshll.u32 %v7916, 16
  %v9002 = vrot.slane %v9000, 1
  %v9003 = vsel %vm626, %v8998, %v9002
  %s9006 = scalar_lea.vmem %s9, 448
  %v9007 = vld [vmem:[%s9006] sm:$0xf]
  %v9008 = vld [vmem:[%s9006 + $0x4] sm:$0xf]
  %v9009 = vld [vmem:[%s9006 + $0x8] sm:$0xf]
  %v9010 = vld [vmem:[%s9006 + $0xc] sm:$0xf]
  %v9011 = vld [vmem:[%s9006 + $0x10] sm:$0xf]
  %v9012 = vld [vmem:[%s9006 + $0x14] sm:$0xf]
  %v9013 = vld [vmem:[%s9006 + $0x18] sm:$0xf]
  %v9014 = vld [vmem:[%s9006 + $0x1c] sm:$0xf]
  %v9015 = vld [vmem:[%s9006 + $0x20] sm:$0xf]
  %v9016 = vld [vmem:[%s9006 + $0x24] sm:$0xf]
  %v9017 = vld [vmem:[%s9006 + $0x28] sm:$0xf]
  %v9018 = vld [vmem:[%s9006 + $0x2c] sm:$0xf]
  %v9019 = vld [vmem:[%s9006 + $0x30] sm:$0xf]
  %v9020 = vld [vmem:[%s9006 + $0x34] sm:$0xf]
  %v9021 = vld [vmem:[%s9006 + $0x38] sm:$0xf]
  %v9022 = vld [vmem:[%s9006 + $0x3c] sm:$0xf]
  %v9039 = vunpack.c.l.b16 %v9007
  %v9040 = vunpack.c.l.b16 %v9008
  %v9041 = vunpack.c.l.b16 %v9009
  %v9042 = vunpack.c.l.b16 %v9010
  %v9043 = vunpack.c.l.b16 %v9011
  %v9044 = vunpack.c.l.b16 %v9012
  %v9045 = vunpack.c.l.b16 %v9013
  %v9046 = vunpack.c.l.b16 %v9014
  %v9047 = vunpack.c.l.b16 %v9015
  %v9048 = vunpack.c.l.b16 %v9016
  %v9049 = vunpack.c.l.b16 %v9017
  %v9050 = vunpack.c.l.b16 %v9018
  %v9051 = vunpack.c.l.b16 %v9019
  %v9052 = vunpack.c.l.b16 %v9020
  %v9053 = vunpack.c.l.b16 %v9021
  %v9054 = vunpack.c.l.b16 %v9022
  %v9055 = vpack.c.b16 %v9040, %v9039
  %v9056 = vpack.c.b16 %v9042, %v9041
  %v9057 = vpack.c.b16 %v9044, %v9043
  %v9058 = vpack.c.b16 %v9046, %v9045
  %v9059 = vpack.c.b16 %v9048, %v9047
  %v9060 = vpack.c.b16 %v9050, %v9049
  %v9061 = vpack.c.b16 %v9052, %v9051
  %v9062 = vpack.c.b16 %v9054, %v9053
  %9071 = vmatprep.subr.bf16.mxu0 0
  %9072 = vmatpush1.bf16.msra.mxu0 %v9055
  %9073 = vmatprep.subr.bf16.mxu0 0
  %9074 = vmatpush1.bf16.msra.mxu0 %v9056
  %9075 = vmatprep.subr.bf16.mxu0 0
  %9076 = vmatpush1.bf16.msra.mxu0 %v9057
  %9077 = vmatprep.subr.bf16.mxu0 0
  %9078 = vmatpush1.bf16.msra.mxu0 %v9058
  %9079 = vmatprep.subr.bf16.mxu0 0
  %9080 = vmatpush1.bf16.msra.mxu0 %v9059
  %9081 = vmatprep.subr.bf16.mxu0 0
  %9082 = vmatpush1.bf16.msra.mxu0 %v9060
  %9083 = vmatprep.subr.bf16.mxu0 0
  %9084 = vmatpush1.bf16.msra.mxu0 %v9061
  %9085 = vmatprep.subr.bf16.mxu0 0
  %9086 = vmatpush1.bf16.msra.mxu0 %v9062
  %9087 = vmatprep.subr.bf16.mxu0 0
  %9088 = vmatpush1.bf16.msra.mxu0 0
  %9089 = vmatprep.subr.bf16.mxu0 0
  %9090 = vmatpush1.bf16.msra.mxu0 0
  %9091 = vmatprep.subr.bf16.mxu0 0
  %9092 = vmatpush1.bf16.msra.mxu0 0
  %9093 = vmatprep.subr.bf16.mxu0 0
  %9094 = vmatpush1.bf16.msra.mxu0 0
  %9095 = vmatprep.subr.bf16.mxu0 0
  %9096 = vmatpush1.bf16.msra.mxu0 0
  %9097 = vmatprep.subr.bf16.mxu0 0
  %9098 = vmatpush1.bf16.msra.mxu0 0
  %9099 = vmatprep.subr.bf16.mxu0 0
  %9100 = vmatpush1.bf16.msra.mxu0 0
  %9101 = vmatprep.subr.bf16.mxu0 0
  %9102 = vmatpush1.bf16.msra.mxu0 0
  %9103 = vmatprep.mubr.bf16.mxu0 0
  %9104 = vmatmul.mubr.bf16.gmra.mrb[0].mxu0 %v7944
  %v9105 = vpop.f32.mrb[0].mxu0
  %v9106 = vadd.f32 0.0, %v9105
  %v9107 = vpop.f32.mrb[0].mxu0
  %v9108 = vpop.f32.mrb[0].mxu0
  %v9109 = vadd.f32 0.0, %v9108
  %v9110 = vpop.f32.mrb[0].mxu0
  %9111 = vmatprep.mubr.bf16.mxu0 0
  %9112 = vmatmul.mubr.bf16.gmra.mrb[0].mxu0 %v8991
  %v9113 = vpop.f32.mrb[0].mxu0
  %v9114 = vadd.f32 0.0, %v9113
  %v9115 = vpop.f32.mrb[0].mxu0
  %v9116 = vpop.f32.mrb[0].mxu0
  %v9117 = vadd.f32 0.0, %v9116
  %v9118 = vpop.f32.mrb[0].mxu0
  %9119 = vmatprep.mubr.bf16.mxu0 0
  %9120 = vmatmul.mubr.bf16.gmra.mrb[0].mxu0 %v7956
  %v9121 = vpop.f32.mrb[0].mxu0
  %v9122 = vadd.f32 0.0, %v9121
  %v9123 = vpop.f32.mrb[0].mxu0
  %v9124 = vpop.f32.mrb[0].mxu0
  %v9125 = vadd.f32 0.0, %v9124
  %v9126 = vpop.f32.mrb[0].mxu0
  %9127 = vmatprep.mubr.bf16.mxu0 0
  %9128 = vmatmul.mubr.bf16.gmra.mrb[0].mxu0 %v9003
  %v9129 = vpop.f32.mrb[0].mxu0
  %v9130 = vadd.f32 0.0, %v9129
  %v9131 = vpop.f32.mrb[0].mxu0
  %v9132 = vpop.f32.mrb[0].mxu0
  %v9133 = vadd.f32 0.0, %v9132
  %v9134 = vpop.f32.mrb[0].mxu0
  %9135 = vdwg.mxu0
  %v9136 = vadd.f32 %v8972, %v9106
  %v9137 = vadd.f32 %v8973, %v9109
  %v9138 = vadd.f32 %v8974, %v9114
  %v9139 = vadd.f32 %v8975, %v9117
  %v9140 = vadd.f32 %v8976, %v9122
  %v9141 = vadd.f32 %v8977, %v9125
  %v9142 = vadd.f32 %v8978, %v9130
  %v9143 = vadd.f32 %v8979, %v9133
  %v9148 = vrot.slane %v7904, 1
  %v9149 = vrot.slane %v7912, 1
  %v9150 = vsel %vm1287, %v9148, %v9149
  %v9151 = vrot.slane %v7908, 1
  %v9152 = vrot.slane %v7916, 1
  %v9153 = vsel %vm1287, %v9151, %v9152
  %s9156 = scalar_lea.vmem %s9, 512
  %v9157 = vld [vmem:[%s9156] sm:$0xf]
  %v9158 = vld [vmem:[%s9156 + $0x4] sm:$0xf]
  %v9159 = vld [vmem:[%s9156 + $0x8] sm:$0xf]
  %v9160 = vld [vmem:[%s9156 + $0xc] sm:$0xf]
  %v9161 = vld [vmem:[%s9156 + $0x10] sm:$0xf]
  %v9162 = vld [vmem:[%s9156 + $0x14] sm:$0xf]
  %v9163 = vld [vmem:[%s9156 + $0x18] sm:$0xf]
  %v9164 = vld [vmem:[%s9156 + $0x1c] sm:$0xf]
  %v9165 = vld [vmem:[%s9156 + $0x20] sm:$0xf]
  %v9166 = vld [vmem:[%s9156 + $0x24] sm:$0xf]
  %v9167 = vld [vmem:[%s9156 + $0x28] sm:$0xf]
  %v9168 = vld [vmem:[%s9156 + $0x2c] sm:$0xf]
  %v9169 = vld [vmem:[%s9156 + $0x30] sm:$0xf]
  %v9170 = vld [vmem:[%s9156 + $0x34] sm:$0xf]
  %v9171 = vld [vmem:[%s9156 + $0x38] sm:$0xf]
  %v9172 = vld [vmem:[%s9156 + $0x3c] sm:$0xf]
  %v9189 = vunpack.c.l.b16 %v9157
  %v9190 = vunpack.c.l.b16 %v9158
  %v9191 = vunpack.c.l.b16 %v9159
  %v9192 = vunpack.c.l.b16 %v9160
  %v9193 = vunpack.c.l.b16 %v9161
  %v9194 = vunpack.c.l.b16 %v9162
  %v9195 = vunpack.c.l.b16 %v9163
  %v9196 = vunpack.c.l.b16 %v9164
  %v9197 = vunpack.c.l.b16 %v9165
  %v9198 = vunpack.c.l.b16 %v9166
  %v9199 = vunpack.c.l.b16 %v9167
  %v9200 = vunpack.c.l.b16 %v9168
  %v9201 = vunpack.c.l.b16 %v9169
  %v9202 = vunpack.c.l.b16 %v9170
  %v9203 = vunpack.c.l.b16 %v9171
  %v9204 = vunpack.c.l.b16 %v9172
  %v9205 = vpack.c.b16 %v9190, %v9189
  %v9206 = vpack.c.b16 %v9192, %v9191
  %v9207 = vpack.c.b16 %v9194, %v9193
  %v9208 = vpack.c.b16 %v9196, %v9195
  %v9209 = vpack.c.b16 %v9198, %v9197
  %v9210 = vpack.c.b16 %v9200, %v9199
  %v9211 = vpack.c.b16 %v9202, %v9201
  %v9212 = vpack.c.b16 %v9204, %v9203
  %9221 = vmatprep.subr.bf16.mxu0 0
  %9222 = vmatpush1.bf16.msra.mxu0 %v9205
  %9223 = vmatprep.subr.bf16.mxu0 0
  %9224 = vmatpush1.bf16.msra.mxu0 %v9206
  %9225 = vmatprep.subr.bf16.mxu0 0
  %9226 = vmatpush1.bf16.msra.mxu0 %v9207
  %9227 = vmatprep.subr.bf16.mxu0 0
  %9228 = vmatpush1.bf16.msra.mxu0 %v9208
  %9229 = vmatprep.subr.bf16.mxu0 0
  %9230 = vmatpush1.bf16.msra.mxu0 %v9209
  %9231 = vmatprep.subr.bf16.mxu0 0
  %9232 = vmatpush1.bf16.msra.mxu0 %v9210
  %9233 = vmatprep.subr.bf16.mxu0 0
  %9234 = vmatpush1.bf16.msra.mxu0 %v9211
  %9235 = vmatprep.subr.bf16.mxu0 0
  %9236 = vmatpush1.bf16.msra.mxu0 %v9212
  %9237 = vmatprep.subr.bf16.mxu0 0
  %9238 = vmatpush1.bf16.msra.mxu0 0
  %9239 = vmatprep.subr.bf16.mxu0 0
  %9240 = vmatpush1.bf16.msra.mxu0 0
  %9241 = vmatprep.subr.bf16.mxu0 0
  %9242 = vmatpush1.bf16.msra.mxu0 0
  %9243 = vmatprep.subr.bf16.mxu0 0
  %9244 = vmatpush1.bf16.msra.mxu0 0
  %9245 = vmatprep.subr.bf16.mxu0 0
  %9246 = vmatpush1.bf16.msra.mxu0 0
  %9247 = vmatprep.subr.bf16.mxu0 0
  %9248 = vmatpush1.bf16.msra.mxu0 0
  %9249 = vmatprep.subr.bf16.mxu0 0
  %9250 = vmatpush1.bf16.msra.mxu0 0
  %9251 = vmatprep.subr.bf16.mxu0 0
  %9252 = vmatpush1.bf16.msra.mxu0 0
  %9253 = vmatprep.mubr.bf16.mxu0 0
  %9254 = vmatmul.mubr.bf16.gmra.mrb[0].mxu0 %v8208
  %v9255 = vpop.f32.mrb[0].mxu0
  %v9256 = vadd.f32 0.0, %v9255
  %v9257 = vpop.f32.mrb[0].mxu0
  %v9258 = vpop.f32.mrb[0].mxu0
  %v9259 = vadd.f32 0.0, %v9258
  %v9260 = vpop.f32.mrb[0].mxu0
  %9261 = vmatprep.mubr.bf16.mxu0 0
  %9262 = vmatmul.mubr.bf16.gmra.mrb[0].mxu0 %v9150
  %v9263 = vpop.f32.mrb[0].mxu0
  %v9264 = vadd.f32 0.0, %v9263
  %v9265 = vpop.f32.mrb[0].mxu0
  %v9266 = vpop.f32.mrb[0].mxu0
  %v9267 = vadd.f32 0.0, %v9266
  %v9268 = vpop.f32.mrb[0].mxu0
  %9269 = vmatprep.mubr.bf16.mxu0 0
  %9270 = vmatmul.mubr.bf16.gmra.mrb[0].mxu0 %v8211
  %v9271 = vpop.f32.mrb[0].mxu0
  %v9272 = vadd.f32 0.0, %v9271
  %v9273 = vpop.f32.mrb[0].mxu0
  %v9274 = vpop.f32.mrb[0].mxu0
  %v9275 = vadd.f32 0.0, %v9274
  %v9276 = vpop.f32.mrb[0].mxu0
  %9277 = vmatprep.mubr.bf16.mxu0 0
  %9278 = vmatmul.mubr.bf16.gmra.mrb[0].mxu0 %v9153
  %v9279 = vpop.f32.mrb[0].mxu0
  %v9280 = vadd.f32 0.0, %v9279
  %v9281 = vpop.f32.mrb[0].mxu0
  %v9282 = vpop.f32.mrb[0].mxu0
  %v9283 = vadd.f32 0.0, %v9282
  %v9284 = vpop.f32.mrb[0].mxu0
  %9285 = vdwg.mxu0
  %v9286 = vadd.f32 %v9136, %v9256
  %v9287 = vadd.f32 %v9137, %v9259
  %v9288 = vadd.f32 %v9138, %v9264
  %v9289 = vadd.f32 %v9139, %v9267
  %v9290 = vadd.f32 %v9140, %v9272
  %v9291 = vadd.f32 %v9141, %v9275
  %v9292 = vadd.f32 %v9142, %v9280
  %v9293 = vadd.f32 %v9143, %v9283
  %s9294 = scalar_lea.vmem %s9, 576
  %v9295 = vld [vmem:[%s9294] sm:$0xf]
  %v9296 = vld [vmem:[%s9294 + $0x4] sm:$0xf]
  %v9297 = vld [vmem:[%s9294 + $0x8] sm:$0xf]
  %v9298 = vld [vmem:[%s9294 + $0xc] sm:$0xf]
  %v9299 = vld [vmem:[%s9294 + $0x10] sm:$0xf]
  %v9300 = vld [vmem:[%s9294 + $0x14] sm:$0xf]
  %v9301 = vld [vmem:[%s9294 + $0x18] sm:$0xf]
  %v9302 = vld [vmem:[%s9294 + $0x1c] sm:$0xf]
  %v9303 = vld [vmem:[%s9294 + $0x20] sm:$0xf]
  %v9304 = vld [vmem:[%s9294 + $0x24] sm:$0xf]
  %v9305 = vld [vmem:[%s9294 + $0x28] sm:$0xf]
  %v9306 = vld [vmem:[%s9294 + $0x2c] sm:$0xf]
  %v9307 = vld [vmem:[%s9294 + $0x30] sm:$0xf]
  %v9308 = vld [vmem:[%s9294 + $0x34] sm:$0xf]
  %v9309 = vld [vmem:[%s9294 + $0x38] sm:$0xf]
  %v9310 = vld [vmem:[%s9294 + $0x3c] sm:$0xf]
  %v9327 = vunpack.c.l.b16 %v9295
  %v9328 = vunpack.c.l.b16 %v9296
  %v9329 = vunpack.c.l.b16 %v9297
  %v9330 = vunpack.c.l.b16 %v9298
  %v9331 = vunpack.c.l.b16 %v9299
  %v9332 = vunpack.c.l.b16 %v9300
  %v9333 = vunpack.c.l.b16 %v9301
  %v9334 = vunpack.c.l.b16 %v9302
  %v9335 = vunpack.c.l.b16 %v9303
  %v9336 = vunpack.c.l.b16 %v9304
  %v9337 = vunpack.c.l.b16 %v9305
  %v9338 = vunpack.c.l.b16 %v9306
  %v9339 = vunpack.c.l.b16 %v9307
  %v9340 = vunpack.c.l.b16 %v9308
  %v9341 = vunpack.c.l.b16 %v9309
  %v9342 = vunpack.c.l.b16 %v9310
  %v9343 = vpack.c.b16 %v9328, %v9327
  %v9344 = vpack.c.b16 %v9330, %v9329
  %v9345 = vpack.c.b16 %v9332, %v9331
  %v9346 = vpack.c.b16 %v9334, %v9333
  %v9347 = vpack.c.b16 %v9336, %v9335
  %v9348 = vpack.c.b16 %v9338, %v9337
  %v9349 = vpack.c.b16 %v9340, %v9339
  %v9350 = vpack.c.b16 %v9342, %v9341
  %9359 = vmatprep.subr.bf16.mxu0 0
  %9360 = vmatpush1.bf16.msra.mxu0 %v9343
  %9361 = vmatprep.subr.bf16.mxu0 0
  %9362 = vmatpush1.bf16.msra.mxu0 %v9344
  %9363 = vmatprep.subr.bf16.mxu0 0
  %9364 = vmatpush1.bf16.msra.mxu0 %v9345
  %9365 = vmatprep.subr.bf16.mxu0 0
  %9366 = vmatpush1.bf16.msra.mxu0 %v9346
  %9367 = vmatprep.subr.bf16.mxu0 0
  %9368 = vmatpush1.bf16.msra.mxu0 %v9347
  %9369 = vmatprep.subr.bf16.mxu0 0
  %9370 = vmatpush1.bf16.msra.mxu0 %v9348
  %9371 = vmatprep.subr.bf16.mxu0 0
  %9372 = vmatpush1.bf16.msra.mxu0 %v9349
  %9373 = vmatprep.subr.bf16.mxu0 0
  %9374 = vmatpush1.bf16.msra.mxu0 %v9350
  %9375 = vmatprep.subr.bf16.mxu0 0
  %9376 = vmatpush1.bf16.msra.mxu0 0
  %9377 = vmatprep.subr.bf16.mxu0 0
  %9378 = vmatpush1.bf16.msra.mxu0 0
  %9379 = vmatprep.subr.bf16.mxu0 0
  %9380 = vmatpush1.bf16.msra.mxu0 0
  %9381 = vmatprep.subr.bf16.mxu0 0
  %9382 = vmatpush1.bf16.msra.mxu0 0
  %9383 = vmatprep.subr.bf16.mxu0 0
  %9384 = vmatpush1.bf16.msra.mxu0 0
  %9385 = vmatprep.subr.bf16.mxu0 0
  %9386 = vmatpush1.bf16.msra.mxu0 0
  %9387 = vmatprep.subr.bf16.mxu0 0
  %9388 = vmatpush1.bf16.msra.mxu0 0
  %9389 = vmatprep.subr.bf16.mxu0 0
  %9390 = vmatpush1.bf16.msra.mxu0 0
  %9391 = vmatprep.mubr.bf16.mxu0 0
  %9392 = vmatmul.mubr.bf16.gmra.mrb[0].mxu0 %v7903
  %v9393 = vpop.f32.mrb[0].mxu0
  %v9394 = vadd.f32 0.0, %v9393
  %v9395 = vpop.f32.mrb[0].mxu0
  %v9396 = vpop.f32.mrb[0].mxu0
  %v9397 = vadd.f32 0.0, %v9396
  %v9398 = vpop.f32.mrb[0].mxu0
  %9399 = vmatprep.mubr.bf16.mxu0 0
  %9400 = vmatmul.mubr.bf16.gmra.mrb[0].mxu0 0
  %v9401 = vpop.f32.mrb[0].mxu0
  %v9402 = vadd.f32 0.0, %v9401
  %v9403 = vpop.f32.mrb[0].mxu0
  %v9404 = vpop.f32.mrb[0].mxu0
  %v9405 = vadd.f32 0.0, %v9404
  %v9406 = vpop.f32.mrb[0].mxu0
  %9407 = vmatprep.mubr.bf16.mxu0 0
  %9408 = vmatmul.mubr.bf16.gmra.mrb[0].mxu0 %v7907
  %v9409 = vpop.f32.mrb[0].mxu0
  %v9410 = vadd.f32 0.0, %v9409
  %v9411 = vpop.f32.mrb[0].mxu0
  %v9412 = vpop.f32.mrb[0].mxu0
  %v9413 = vadd.f32 0.0, %v9412
  %v9414 = vpop.f32.mrb[0].mxu0
  %9415 = vmatprep.mubr.bf16.mxu0 0
  %9416 = vmatmul.mubr.bf16.gmra.mrb[0].mxu0 0
  %v9417 = vpop.f32.mrb[0].mxu0
  %v9418 = vadd.f32 0.0, %v9417
  %v9419 = vpop.f32.mrb[0].mxu0
  %v9420 = vpop.f32.mrb[0].mxu0
  %v9421 = vadd.f32 0.0, %v9420
  %v9422 = vpop.f32.mrb[0].mxu0
  %9423 = vdwg.mxu0
  %v9424 = vadd.f32 %v9286, %v9394
  %v9425 = vadd.f32 %v9287, %v9397
  %v9426 = vadd.f32 %v9288, %v9402
  %v9427 = vadd.f32 %v9289, %v9405
  %v9428 = vadd.f32 %v9290, %v9410
  %v9429 = vadd.f32 %v9291, %v9413
  %v9430 = vadd.f32 %v9292, %v9418
  %v9431 = vadd.f32 %v9293, %v9421
  %s9432 = scalar_lea.vmem %s9, 640
  %v9433 = vld [vmem:[%s9432] sm:$0xf]
  %v9434 = vld [vmem:[%s9432 + $0x4] sm:$0xf]
  %v9435 = vld [vmem:[%s9432 + $0x8] sm:$0xf]
  %v9436 = vld [vmem:[%s9432 + $0xc] sm:$0xf]
  %v9437 = vld [vmem:[%s9432 + $0x10] sm:$0xf]
  %v9438 = vld [vmem:[%s9432 + $0x14] sm:$0xf]
  %v9439 = vld [vmem:[%s9432 + $0x18] sm:$0xf]
  %v9440 = vld [vmem:[%s9432 + $0x1c] sm:$0xf]
  %v9441 = vld [vmem:[%s9432 + $0x20] sm:$0xf]
  %v9442 = vld [vmem:[%s9432 + $0x24] sm:$0xf]
  %v9443 = vld [vmem:[%s9432 + $0x28] sm:$0xf]
  %v9444 = vld [vmem:[%s9432 + $0x2c] sm:$0xf]
  %v9445 = vld [vmem:[%s9432 + $0x30] sm:$0xf]
  %v9446 = vld [vmem:[%s9432 + $0x34] sm:$0xf]
  %v9447 = vld [vmem:[%s9432 + $0x38] sm:$0xf]
  %v9448 = vld [vmem:[%s9432 + $0x3c] sm:$0xf]
  %v9465 = vunpack.c.l.b16 %v9433
  %v9466 = vunpack.c.l.b16 %v9434
  %v9467 = vunpack.c.l.b16 %v9435
  %v9468 = vunpack.c.l.b16 %v9436
  %v9469 = vunpack.c.l.b16 %v9437
  %v9470 = vunpack.c.l.b16 %v9438
  %v9471 = vunpack.c.l.b16 %v9439
  %v9472 = vunpack.c.l.b16 %v9440
  %v9473 = vunpack.c.l.b16 %v9441
  %v9474 = vunpack.c.l.b16 %v9442
  %v9475 = vunpack.c.l.b16 %v9443
  %v9476 = vunpack.c.l.b16 %v9444
  %v9477 = vunpack.c.l.b16 %v9445
  %v9478 = vunpack.c.l.b16 %v9446
  %v9479 = vunpack.c.l.b16 %v9447
  %v9480 = vunpack.c.l.b16 %v9448
  %v9481 = vpack.c.b16 %v9466, %v9465
  %v9482 = vpack.c.b16 %v9468, %v9467
  %v9483 = vpack.c.b16 %v9470, %v9469
  %v9484 = vpack.c.b16 %v9472, %v9471
  %v9485 = vpack.c.b16 %v9474, %v9473
  %v9486 = vpack.c.b16 %v9476, %v9475
  %v9487 = vpack.c.b16 %v9478, %v9477
  %v9488 = vpack.c.b16 %v9480, %v9479
  %9497 = vmatprep.subr.bf16.mxu0 0
  %9498 = vmatpush1.bf16.msra.mxu0 %v9481
  %9499 = vmatprep.subr.bf16.mxu0 0
  %9500 = vmatpush1.bf16.msra.mxu0 %v9482
  %9501 = vmatprep.subr.bf16.mxu0 0
  %9502 = vmatpush1.bf16.msra.mxu0 %v9483
  %9503 = vmatprep.subr.bf16.mxu0 0
  %9504 = vmatpush1.bf16.msra.mxu0 %v9484
  %9505 = vmatprep.subr.bf16.mxu0 0
  %9506 = vmatpush1.bf16.msra.mxu0 %v9485
  %9507 = vmatprep.subr.bf16.mxu0 0
  %9508 = vmatpush1.bf16.msra.mxu0 %v9486
  %9509 = vmatprep.subr.bf16.mxu0 0
  %9510 = vmatpush1.bf16.msra.mxu0 %v9487
  %9511 = vmatprep.subr.bf16.mxu0 0
  %9512 = vmatpush1.bf16.msra.mxu0 %v9488
  %9513 = vmatprep.subr.bf16.mxu0 0
  %9514 = vmatpush1.bf16.msra.mxu0 0
  %9515 = vmatprep.subr.bf16.mxu0 0
  %9516 = vmatpush1.bf16.msra.mxu0 0
  %9517 = vmatprep.subr.bf16.mxu0 0
  %9518 = vmatpush1.bf16.msra.mxu0 0
  %9519 = vmatprep.subr.bf16.mxu0 0
  %9520 = vmatpush1.bf16.msra.mxu0 0
  %9521 = vmatprep.subr.bf16.mxu0 0
  %9522 = vmatpush1.bf16.msra.mxu0 0
  %9523 = vmatprep.subr.bf16.mxu0 0
  %9524 = vmatpush1.bf16.msra.mxu0 0
  %9525 = vmatprep.subr.bf16.mxu0 0
  %9526 = vmatpush1.bf16.msra.mxu0 0
  %9527 = vmatprep.subr.bf16.mxu0 0
  %9528 = vmatpush1.bf16.msra.mxu0 0
  %9529 = vmatprep.mubr.bf16.mxu0 0
  %9530 = vmatmul.mubr.bf16.gmra.mrb[0].mxu0 %v8513
  %v9531 = vpop.f32.mrb[0].mxu0
  %v9532 = vadd.f32 0.0, %v9531
  %v9533 = vpop.f32.mrb[0].mxu0
  %v9534 = vpop.f32.mrb[0].mxu0
  %v9535 = vadd.f32 0.0, %v9534
  %v9536 = vpop.f32.mrb[0].mxu0
  %9537 = vmatprep.mubr.bf16.mxu0 0
  %9538 = vmatmul.mubr.bf16.gmra.mrb[0].mxu0 %v634
  %v9539 = vpop.f32.mrb[0].mxu0
  %v9540 = vadd.f32 0.0, %v9539
  %v9541 = vpop.f32.mrb[0].mxu0
  %v9542 = vpop.f32.mrb[0].mxu0
  %v9543 = vadd.f32 0.0, %v9542
  %v9544 = vpop.f32.mrb[0].mxu0
  %9545 = vmatprep.mubr.bf16.mxu0 0
  %9546 = vmatmul.mubr.bf16.gmra.mrb[0].mxu0 %v8537
  %v9547 = vpop.f32.mrb[0].mxu0
  %v9548 = vadd.f32 0.0, %v9547
  %v9549 = vpop.f32.mrb[0].mxu0
  %v9550 = vpop.f32.mrb[0].mxu0
  %v9551 = vadd.f32 0.0, %v9550
  %v9552 = vpop.f32.mrb[0].mxu0
  %9553 = vmatprep.mubr.bf16.mxu0 0
  %9554 = vmatmul.mubr.bf16.gmra.mrb[0].mxu0 %v634
  %v9555 = vpop.f32.mrb[0].mxu0
  %v9556 = vadd.f32 0.0, %v9555
  %v9557 = vpop.f32.mrb[0].mxu0
  %v9558 = vpop.f32.mrb[0].mxu0
  %v9559 = vadd.f32 0.0, %v9558
  %v9560 = vpop.f32.mrb[0].mxu0
  %9561 = vdwg.mxu0
  %v9562 = vadd.f32 %v9424, %v9532
  %v9563 = vadd.f32 %v9425, %v9535
  %v9564 = vadd.f32 %v9426, %v9540
  %v9565 = vadd.f32 %v9427, %v9543
  %v9566 = vadd.f32 %v9428, %v9548
  %v9567 = vadd.f32 %v9429, %v9551
  %v9568 = vadd.f32 %v9430, %v9556
  %v9569 = vadd.f32 %v9431, %v9559
  %s9570 = scalar_lea.vmem %s9, 704
  %v9571 = vld [vmem:[%s9570] sm:$0xf]
  %v9572 = vld [vmem:[%s9570 + $0x4] sm:$0xf]
  %v9573 = vld [vmem:[%s9570 + $0x8] sm:$0xf]
  %v9574 = vld [vmem:[%s9570 + $0xc] sm:$0xf]
  %v9575 = vld [vmem:[%s9570 + $0x10] sm:$0xf]
  %v9576 = vld [vmem:[%s9570 + $0x14] sm:$0xf]
  %v9577 = vld [vmem:[%s9570 + $0x18] sm:$0xf]
  %v9578 = vld [vmem:[%s9570 + $0x1c] sm:$0xf]
  %v9579 = vld [vmem:[%s9570 + $0x20] sm:$0xf]
  %v9580 = vld [vmem:[%s9570 + $0x24] sm:$0xf]
  %v9581 = vld [vmem:[%s9570 + $0x28] sm:$0xf]
  %v9582 = vld [vmem:[%s9570 + $0x2c] sm:$0xf]
  %v9583 = vld [vmem:[%s9570 + $0x30] sm:$0xf]
  %v9584 = vld [vmem:[%s9570 + $0x34] sm:$0xf]
  %v9585 = vld [vmem:[%s9570 + $0x38] sm:$0xf]
  %v9586 = vld [vmem:[%s9570 + $0x3c] sm:$0xf]
  %v9603 = vunpack.c.l.b16 %v9571
  %v9604 = vunpack.c.l.b16 %v9572
  %v9605 = vunpack.c.l.b16 %v9573
  %v9606 = vunpack.c.l.b16 %v9574
  %v9607 = vunpack.c.l.b16 %v9575
  %v9608 = vunpack.c.l.b16 %v9576
  %v9609 = vunpack.c.l.b16 %v9577
  %v9610 = vunpack.c.l.b16 %v9578
  %v9611 = vunpack.c.l.b16 %v9579
  %v9612 = vunpack.c.l.b16 %v9580
  %v9613 = vunpack.c.l.b16 %v9581
  %v9614 = vunpack.c.l.b16 %v9582
  %v9615 = vunpack.c.l.b16 %v9583
  %v9616 = vunpack.c.l.b16 %v9584
  %v9617 = vunpack.c.l.b16 %v9585
  %v9618 = vunpack.c.l.b16 %v9586
  %v9619 = vpack.c.b16 %v9604, %v9603
  %v9620 = vpack.c.b16 %v9606, %v9605
  %v9621 = vpack.c.b16 %v9608, %v9607
  %v9622 = vpack.c.b16 %v9610, %v9609
  %v9623 = vpack.c.b16 %v9612, %v9611
  %v9624 = vpack.c.b16 %v9614, %v9613
  %v9625 = vpack.c.b16 %v9616, %v9615
  %v9626 = vpack.c.b16 %v9618, %v9617
  %9635 = vmatprep.subr.bf16.mxu0 0
  %9636 = vmatpush1.bf16.msra.mxu0 %v9619
  %9637 = vmatprep.subr.bf16.mxu0 0
  %9638 = vmatpush1.bf16.msra.mxu0 %v9620
  %9639 = vmatprep.subr.bf16.mxu0 0
  %9640 = vmatpush1.bf16.msra.mxu0 %v9621
  %9641 = vmatprep.subr.bf16.mxu0 0
  %9642 = vmatpush1.bf16.msra.mxu0 %v9622
  %9643 = vmatprep.subr.bf16.mxu0 0
  %9644 = vmatpush1.bf16.msra.mxu0 %v9623
  %9645 = vmatprep.subr.bf16.mxu0 0
  %9646 = vmatpush1.bf16.msra.mxu0 %v9624
  %9647 = vmatprep.subr.bf16.mxu0 0
  %9648 = vmatpush1.bf16.msra.mxu0 %v9625
  %9649 = vmatprep.subr.bf16.mxu0 0
  %9650 = vmatpush1.bf16.msra.mxu0 %v9626
  %9651 = vmatprep.subr.bf16.mxu0 0
  %9652 = vmatpush1.bf16.msra.mxu0 0
  %9653 = vmatprep.subr.bf16.mxu0 0
  %9654 = vmatpush1.bf16.msra.mxu0 0
  %9655 = vmatprep.subr.bf16.mxu0 0
  %9656 = vmatpush1.bf16.msra.mxu0 0
  %9657 = vmatprep.subr.bf16.mxu0 0
  %9658 = vmatpush1.bf16.msra.mxu0 0
  %9659 = vmatprep.subr.bf16.mxu0 0
  %9660 = vmatpush1.bf16.msra.mxu0 0
  %9661 = vmatprep.subr.bf16.mxu0 0
  %9662 = vmatpush1.bf16.msra.mxu0 0
  %9663 = vmatprep.subr.bf16.mxu0 0
  %9664 = vmatpush1.bf16.msra.mxu0 0
  %9665 = vmatprep.subr.bf16.mxu0 0
  %9666 = vmatpush1.bf16.msra.mxu0 0
  %9667 = vmatprep.mubr.bf16.mxu0 0
  %9668 = vmatmul.mubr.bf16.gmra.mrb[0].mxu0 %v8693
  %v9669 = vpop.f32.mrb[0].mxu0
  %v9670 = vadd.f32 0.0, %v9669
  %v9671 = vpop.f32.mrb[0].mxu0
  %v9672 = vpop.f32.mrb[0].mxu0
  %v9673 = vadd.f32 0.0, %v9672
  %v9674 = vpop.f32.mrb[0].mxu0
  %9675 = vmatprep.mubr.bf16.mxu0 0
  %9676 = vmatmul.mubr.bf16.gmra.mrb[0].mxu0 %v1289
  %v9677 = vpop.f32.mrb[0].mxu0
  %v9678 = vadd.f32 0.0, %v9677
  %v9679 = vpop.f32.mrb[0].mxu0
  %v9680 = vpop.f32.mrb[0].mxu0
  %v9681 = vadd.f32 0.0, %v9680
  %v9682 = vpop.f32.mrb[0].mxu0
  %9683 = vmatprep.mubr.bf16.mxu0 0
  %9684 = vmatmul.mubr.bf16.gmra.mrb[0].mxu0 %v8699
  %v9685 = vpop.f32.mrb[0].mxu0
  %v9686 = vadd.f32 0.0, %v9685
  %v9687 = vpop.f32.mrb[0].mxu0
  %v9688 = vpop.f32.mrb[0].mxu0
  %v9689 = vadd.f32 0.0, %v9688
  %v9690 = vpop.f32.mrb[0].mxu0
  %9691 = vmatprep.mubr.bf16.mxu0 0
  %9692 = vmatmul.mubr.bf16.gmra.mrb[0].mxu0 %v1289
  %v9693 = vpop.f32.mrb[0].mxu0
  %v9694 = vadd.f32 0.0, %v9693
  %v9695 = vpop.f32.mrb[0].mxu0
  %v9696 = vpop.f32.mrb[0].mxu0
  %v9697 = vadd.f32 0.0, %v9696
  %v9698 = vpop.f32.mrb[0].mxu0
  %9699 = vdwg.mxu0
  %v9700 = vadd.f32 %v9562, %v9670
  %v9701 = vadd.f32 %v9563, %v9673
  %v9702 = vadd.f32 %v9564, %v9678
  %v9703 = vadd.f32 %v9565, %v9681
  %v9704 = vadd.f32 %v9566, %v9686
  %v9705 = vadd.f32 %v9567, %v9689
  %v9706 = vadd.f32 %v9568, %v9694
  %v9707 = vadd.f32 %v9569, %v9697
  %v9709 = vlaneseq
  %v9710 = vshrl.u32 %v9709, 7
  %v9711 = vsub.s32 0, %v9710
  %v9712 = vrot.slane %v7828, %v9711
  %v9714 = vadd.f32 %v9700, %v9712
  %v9715 = vadd.f32 %v9701, %v9712
  %v9716 = vadd.f32 %v9702, %v9712
  %v9717 = vadd.f32 %v9703, %v9712
  %v9718 = vadd.f32 %v9704, %v9712
  %v9719 = vadd.f32 %v9705, %v9712
  %v9720 = vadd.f32 %v9706, %v9712
  %v9721 = vadd.f32 %v9707, %v9712
  %v9726 = vrot.slane %v9716, 7
  %vm9727 = vcmask 1041409
  %v9728 = vsel %vm9727, %v9726, %v9714
  %v9729 = vrot.slane %v9718, 6
  %vm9730 = vcmask 1042434
  %v9731 = vsel %vm9730, %v9729, %v9728
  %v9732 = vrot.slane %v9720, 5
  %vm9733 = vcmask 1043459
  %v9734 = vsel %vm9733, %v9732, %v9731
  %v9736 = vrot.slane %v9714, 1
  %v9737 = vsel %vm9727, %v9716, %v9736
  %v9738 = vrot.slane %v9718, 7
  %v9739 = vsel %vm9730, %v9738, %v9737
  %v9740 = vrot.slane %v9720, 6
  %v9741 = vsel %vm9733, %v9740, %v9739
  %9742 = vrot.lane.b32.xlu0 %v9741, 64
  %v9743 = vpop.permute.xlu0 %9742
  %v9745 = vrot.slane %v9714, 2
  %v9746 = vrot.slane %v9716, 1
  %v9747 = vsel %vm9727, %v9746, %v9745
  %v9748 = vsel %vm9730, %v9718, %v9747
  %v9749 = vrot.slane %v9720, 7
  %v9750 = vsel %vm9733, %v9749, %v9748
  %v9752 = vrot.slane %v9714, 3
  %v9753 = vrot.slane %v9716, 2
  %v9754 = vsel %vm9727, %v9753, %v9752
  %v9755 = vrot.slane %v9718, 1
  %v9756 = vsel %vm9730, %v9755, %v9754
  %v9757 = vsel %vm9733, %v9720, %v9756
  %9758 = vrot.lane.b32.xlu0 %v9757, 64
  %v9759 = vpop.permute.xlu0 %9758
  %v9761 = vrot.slane %v9714, 4
  %v9762 = vrot.slane %v9716, 3
  %v9763 = vsel %vm9727, %v9762, %v9761
  %v9764 = vrot.slane %v9718, 2
  %v9765 = vsel %vm9730, %v9764, %v9763
  %v9766 = vrot.slane %v9720, 1
  %v9767 = vsel %vm9733, %v9766, %v9765
  %v9769 = vrot.slane %v9714, 5
  %v9770 = vrot.slane %v9716, 4
  %v9771 = vsel %vm9727, %v9770, %v9769
  %v9772 = vrot.slane %v9718, 3
  %v9773 = vsel %vm9730, %v9772, %v9771
  %v9774 = vrot.slane %v9720, 2
  %v9775 = vsel %vm9733, %v9774, %v9773
  %9776 = vrot.lane.b32.xlu0 %v9775, 64
  %v9777 = vpop.permute.xlu0 %9776
  %v9779 = vrot.slane %v9714, 6
  %v9780 = vrot.slane %v9716, 5
  %v9781 = vsel %vm9727, %v9780, %v9779
  %v9782 = vrot.slane %v9718, 4
  %v9783 = vsel %vm9730, %v9782, %v9781
  %v9784 = vrot.slane %v9720, 3
  %v9785 = vsel %vm9733, %v9784, %v9783
  %v9787 = vrot.slane %v9714, 7
  %v9788 = vrot.slane %v9716, 6
  %v9789 = vsel %vm9727, %v9788, %v9787
  %v9790 = vrot.slane %v9718, 5
  %v9791 = vsel %vm9730, %v9790, %v9789
  %v9792 = vrot.slane %v9720, 4
  %v9793 = vsel %vm9733, %v9792, %v9791
  %9794 = vrot.lane.b32.xlu0 %v9793, 64
  %v9795 = vpop.permute.xlu0 %9794
  %v9801 = vrot.slane %v9717, 7
  %v9802 = vsel %vm9727, %v9801, %v9715
  %v9803 = vrot.slane %v9719, 6
  %v9804 = vsel %vm9730, %v9803, %v9802
  %v9805 = vrot.slane %v9721, 5
  %v9806 = vsel %vm9733, %v9805, %v9804
  %v9808 = vrot.slane %v9715, 1
  %v9809 = vsel %vm9727, %v9717, %v9808
  %v9810 = vrot.slane %v9719, 7
  %v9811 = vsel %vm9730, %v9810, %v9809
  %v9812 = vrot.slane %v9721, 6
  %v9813 = vsel %vm9733, %v9812, %v9811
  %9814 = vrot.lane.b32.xlu0 %v9813, 64
  %v9815 = vpop.permute.xlu0 %9814
  %v9817 = vrot.slane %v9715, 2
  %v9818 = vrot.slane %v9717, 1
  %v9819 = vsel %vm9727, %v9818, %v9817
  %v9820 = vsel %vm9730, %v9719, %v9819
  %v9821 = vrot.slane %v9721, 7
  %v9822 = vsel %vm9733, %v9821, %v9820
  %v9824 = vrot.slane %v9715, 3
  %v9825 = vrot.slane %v9717, 2
  %v9826 = vsel %vm9727, %v9825, %v9824
  %v9827 = vrot.slane %v9719, 1
  %v9828 = vsel %vm9730, %v9827, %v9826
  %v9829 = vsel %vm9733, %v9721, %v9828
  %9830 = vrot.lane.b32.xlu0 %v9829, 64
  %v9831 = vpop.permute.xlu0 %9830
  %v9833 = vrot.slane %v9715, 4
  %v9834 = vrot.slane %v9717, 3
  %v9835 = vsel %vm9727, %v9834, %v9833
  %v9836 = vrot.slane %v9719, 2
  %v9837 = vsel %vm9730, %v9836, %v9835
  %v9838 = vrot.slane %v9721, 1
  %v9839 = vsel %vm9733, %v9838, %v9837
  %v9841 = vrot.slane %v9715, 5
  %v9842 = vrot.slane %v9717, 4
  %v9843 = vsel %vm9727, %v9842, %v9841
  %v9844 = vrot.slane %v9719, 3
  %v9845 = vsel %vm9730, %v9844, %v9843
  %v9846 = vrot.slane %v9721, 2
  %v9847 = vsel %vm9733, %v9846, %v9845
  %9848 = vrot.lane.b32.xlu0 %v9847, 64
  %v9849 = vpop.permute.xlu0 %9848
  %v9851 = vrot.slane %v9715, 6
  %v9852 = vrot.slane %v9717, 5
  %v9853 = vsel %vm9727, %v9852, %v9851
  %v9854 = vrot.slane %v9719, 4
  %v9855 = vsel %vm9730, %v9854, %v9853
  %v9856 = vrot.slane %v9721, 3
  %v9857 = vsel %vm9733, %v9856, %v9855
  %v9859 = vrot.slane %v9715, 7
  %v9860 = vrot.slane %v9717, 6
  %v9861 = vsel %vm9727, %v9860, %v9859
  %v9862 = vrot.slane %v9719, 5
  %v9863 = vsel %vm9730, %v9862, %v9861
  %v9864 = vrot.slane %v9721, 4
  %v9865 = vsel %vm9733, %v9864, %v9863
  %9866 = vrot.lane.b32.xlu0 %v9865, 64
  %v9867 = vpop.permute.xlu0 %9866
  %v9869 = vsel %vm836, %v9734, %v9743
  %v9870 = vsel %vm836, %v9750, %v9759
  %v9871 = vsel %vm836, %v9767, %v9777
  %v9872 = vsel %vm836, %v9785, %v9795
  %v9873 = vsel %vm836, %v9806, %v9815
  %v9874 = vsel %vm836, %v9822, %v9831
  %v9875 = vsel %vm836, %v9839, %v9849
  %v9876 = vsel %vm836, %v9857, %v9867
  %v9885 = vcombine.low %v9869, %v9870
  %v9886 = vcombine.low %v9871, %v9872
  %v9887 = vcombine.low %v9873, %v9874
  %v9888 = vcombine.low %v9875, %v9876
  %9893 = vst [vmem:[%s11] sm:$0xff] %v9885
  %9894 = vst [vmem:[%s11 + $0x8] sm:$0xff] %v9886
  %9895 = vst [vmem:[%s11 + $0x10] sm:$0xff] %v9887
  %9896 = vst [vmem:[%s11 + $0x18] sm:$0xff] %v9888
  // Predicated region
  $region46: #{block3d_forward.1} parent=0 // pred_check
    _
  $region47: #{block3d_forward.1} parent=0 // pred_check_branch
    %9898 = sbr.rel (0) target = $region49
  $region48: #{block3d_forward.1} parent=0 // pred_region
    _
  $region49: #{block3d_forward.1} parent=0 // pred_fallthru
    _
  // Predicated region
  $region50: #{block3d_forward.1} parent=0 // pred_check
    _
  $region51: #{block3d_forward.1} parent=0 // pred_check_branch
    %9900 = sbr.rel (0) target = $region53
  $region52: #{block3d_forward.1} parent=0 // pred_region
    _
  $region53: #{block3d_forward.1} parent=0 // pred_fallthru
    _

</llo_original>
